<compile_context>
chip_gen: v7x
topology: tpu7x:2x2x1
jax: 0.10.0
libtpu: 0.0.40
codegen_flags: <defaults>
</compile_context>

<pallas_src>
import functools

import jax
import jax.numpy as jnp
from jax.experimental import pallas as pl
from jax.experimental.pallas import tpu as pltpu


C = 64      # internal channel width (Cin=3 / Cout=3 are zero padded to 64)
CR = 12     # image rows per in-kernel chunk


def _round_up(x, m):
    return (x + m - 1) // m * m


# ------------------------------- Pallas kernel --------------------------------

def _reccnn_kernel(qv_ref, cnt_ref, nc_ref,
                   w8_ref, w1_ref, b_ref, g_ref, bt_ref, cm_ref, x_ref,
                   o_ref, buf_ref, acc_ref,
                   *, n_batch, chunk, ch_in, wp, s_in, qf):
    """One grid step == one conv layer of the 20-layer RecCNN stack.

    qv_ref  : (nl,) SMEM    first invalid flattened output row (= hv_l * wp)
    cnt_ref : (nl,) SMEM    BatchNorm element count (= B * hv_l * wv_l)
    nc_ref  : (nl,) SMEM    number of live output-row chunks for this layer
    w8_ref  : (1, BC, 8*BC) taps 0..7 packed along the output dim
                            (block-diagonal over the batch, lane = b*C + chan)
    w1_ref  : (1, BC, BC)   tap 8
    b_ref   : (1, 1, BC)    bias       (batch tiled)
    g_ref   : (1, 1, BC)    BN gamma   (batch tiled, unused first/last layer)
    bt_ref  : (1, 1, BC)    BN beta    (batch tiled, unused first/last layer)
    cm_ref  : (1, chunk, 1) per-layer column-validity mask (static j pattern)
    x_ref   : (S, BC)       padded input, batch in lanes (resident VMEM block)
    o_ref   : (qf, BC)      final-layer output slab (written once, last step)
    buf_ref : (SP, BC)      resident activation buffer (flattened grid)
    acc_ref : (QA, BC)      raw conv+bias output of the current layer
    """
    l = pl.program_id(0)
    nl = pl.num_programs(0)
    bc = buf_ref.shape[1]
    c = bc // n_batch
    sp_alloc = buf_ref.shape[0]

    # -- step 0: stage the pre-padded input into the resident buffer ----------
    @pl.when(l == 0)
    def _init():
        nfull = s_in // chunk
        for k in range(nfull):
            buf_ref[pl.ds(k * chunk, chunk), :] = x_ref[pl.ds(k * chunk, chunk), :]
        rem = s_in - nfull * chunk
        if rem:
            buf_ref[pl.ds(nfull * chunk, rem), :] = x_ref[pl.ds(nfull * chunk, rem), :]
        if sp_alloc > s_in:   # zero the tail pad rows so bottom taps stay finite
            buf_ref[pl.ds(s_in, sp_alloc - s_in), :] = jnp.zeros(
                (sp_alloc - s_in, bc), jnp.float32)

    qv = qv_ref[l]              # rows >= qv are outside the valid i-range
    n_chunks = nc_ref[l]        # live output-row chunks for this layer
    off_last = 2 * wp + 2       # row offset of tap (ky=2, kx=2)
    cm = cm_ref[0]              # (chunk, 1) column-validity mask

    # -- pass 1: 3x3 VALID conv (+bias) over the live chunks ------------------
    #    Output row q = i*wp + j gets tap (ky, kx)'s contribution from row
    #    q + ky*wp + kx of (activations @ W_tap); taps 0..7 come out of one
    #    wide (BC, 8*BC) matmul, tap 8 out of a (BC, BC) matmul.
    def conv_chunk(ci, carry):
        s1, s2 = carry
        base = pl.multiple_of(ci * chunk, 8)
        lhs = buf_ref[pl.ds(base, ch_in), :]                          # (ch_in, BC)
        z8 = jnp.dot(lhs, w8_ref[0], preferred_element_type=jnp.float32)
        z1 = jnp.dot(lhs, w1_ref[0], preferred_element_type=jnp.float32)
        acc = z1[off_last:off_last + chunk, :]
        for t in range(8):
            off = (t // 3) * wp + (t % 3)
            acc = acc + z8[off:off + chunk, t * bc:(t + 1) * bc]
        acc = acc + b_ref[0]
        acc_ref[pl.ds(base, chunk), :] = acc
        # masked BatchNorm moments over this layer's valid output region
        rowq = jax.lax.broadcasted_iota(jnp.int32, (chunk, 1), 0) + base
        m = jnp.where(rowq < qv, cm, 0.0)                             # (chunk, 1)
        sel = acc * m
        s1 = s1 + jnp.sum(sel, axis=0, keepdims=True)
        s2 = s2 + jnp.sum(sel * sel, axis=0, keepdims=True)
        return s1, s2

    zero_moment = jnp.zeros((1, bc), jnp.float32)
    s1, s2 = jax.lax.fori_loop(0, n_chunks, conv_chunk,
                               (zero_moment, zero_moment))

    # -- BatchNorm batch statistics (training-mode, biased variance, eps=1e-5) -
    cnt = cnt_ref[l].astype(jnp.float32)
    s1c = s1[:, 0:c]
    s2c = s2[:, 0:c]
    for bi in range(1, n_batch):                 # fold the batch lane blocks
        s1c = s1c + s1[:, bi * c:(bi + 1) * c]
        s2c = s2c + s2[:, bi * c:(bi + 1) * c]
    mean = s1c / cnt
    var = jnp.maximum(s2c / cnt - mean * mean, 0.0)
    inv = jax.lax.rsqrt(var + 1e-5)
    mean_b = jnp.concatenate([mean] * n_batch, axis=1)                # (1, BC)
    inv_b = jnp.concatenate([inv] * n_batch, axis=1)

    # -- pass 2: activation, written back into the resident buffer ------------
    @pl.when(l == 0)                                      # layer 1: plain ReLU
    def _relu_first():
        def body(ci, carry):
            base = pl.multiple_of(ci * chunk, 8)
            buf_ref[pl.ds(base, chunk), :] = jnp.maximum(
                acc_ref[pl.ds(base, chunk), :], 0.0)
            return carry
        jax.lax.fori_loop(0, n_chunks, body, 0)

    @pl.when(jnp.logical_and(l > 0, l < nl - 1))          # BN + ReLU6
    def _bn_relu6_mid():
        def body(ci, carry):
            base = pl.multiple_of(ci * chunk, 8)
            a = acc_ref[pl.ds(base, chunk), :]
            y = (a - mean_b) * inv_b * g_ref[0] + bt_ref[0]
            buf_ref[pl.ds(base, chunk), :] = jnp.clip(y, 0.0, 6.0)
            return carry
        jax.lax.fori_loop(0, n_chunks, body, 0)

    # -- final layer: flush the raw conv output slab exactly once --------------
    @pl.when(l == nl - 1)
    def _flush():
        o_ref[...] = acc_ref[pl.ds(0, qf), :]


# --------------------------------- wrapper -------------------------------------

def _pack_params(params, n_batch):
    """Stack all 20 layers, zero-pad Cin=3 / Cout=3 up to C=64, make weights
    block-diagonal over the batch (lane = b*C + channel), and split the nine
    3x3 taps into one wide (BC, 8*BC) RHS plus one (BC, BC) RHS per layer."""
    bc = n_batch * C
    eye_b = jnp.eye(n_batch, dtype=jnp.float32)
    ones = jnp.ones((1, C), jnp.float32)
    zeros = jnp.zeros((1, C), jnp.float32)

    def pack(w, b, g, bt):
        cin, cout = w.shape[1], w.shape[2]
        w_pad = jnp.zeros((9, C, C), jnp.float32).at[:, :cin, :cout].set(w)
        w_bd = jnp.einsum('ab,tio->taibo', eye_b, w_pad).reshape(9, bc, bc)
        w8 = jnp.transpose(w_bd[:8], (1, 0, 2)).reshape(bc, 8 * bc)
        w1 = w_bd[8]
        b_pad = jnp.zeros((1, C), jnp.float32).at[:, :cout].set(b)
        return (w8, w1,
                jnp.tile(b_pad, (1, n_batch)),
                jnp.tile(g, (1, n_batch)),
                jnp.tile(bt, (1, n_batch)))

    layers = []
    w, b = params["layer_1"]
    layers.append(pack(w, b, ones, zeros))
    for (w, b, g, bt) in params["intermediate"]:
        layers.append(pack(w, b, g, bt))
    w, b = params["final"]
    layers.append(pack(w, b, ones, zeros))

    w8 = jnp.stack([t[0] for t in layers])                 # (nl, BC, 8*BC)
    w1 = jnp.stack([t[1] for t in layers])                 # (nl, BC, BC)
    bias = jnp.stack([t[2] for t in layers])[:, None, :]   # (nl, 1, BC)
    gamma = jnp.stack([t[3] for t in layers])[:, None, :]
    beta = jnp.stack([t[4] for t in layers])[:, None, :]
    # pack() already returns (1, BC); jnp.stack gives (nl, 1, BC) -- fix shapes
    bias = bias.reshape(w8.shape[0], 1, w8.shape[1])
    gamma = gamma.reshape(w8.shape[0], 1, w8.shape[1])
    beta = beta.reshape(w8.shape[0], 1, w8.shape[1])
    return w8, w1, bias, gamma, beta


def reccnn_forward(x_nchw, params):
    x = jnp.transpose(x_nchw, (0, 2, 3, 1)).astype(jnp.float32)        # NHWC
    n_batch, h, w, cin = x.shape
    assert h > 38 and w > 38, "19 VALID 3x3 convs shrink H,W by 38"
    bc = n_batch * C
    hp, wp = h + 2, w + 2
    s_in = hp * wp                        # rows of the flattened padded grid
    hf, wf = h - 38, w - 38               # final valid spatial size
    qf = hf * wp                          # rows of the final output slab

    chunk = CR * wp                       # output rows per in-kernel chunk
    ch_in = _round_up(chunk + 2 * wp + 2, 8)
    n_chunks_max = -(-h // CR)            # ceil(h / CR)
    qb_alloc = n_chunks_max * chunk
    sp_alloc = _round_up(max((n_chunks_max - 1) * chunk + ch_in, s_in), 8)

    # padding=1 for layer 1, channels 3 -> 64, batch folded into the lanes.
    xp = jnp.pad(x, ((0, 0), (1, 1), (1, 1), (0, C - cin)))            # (B,hp,wp,C)
    x_flat = jnp.transpose(xp, (1, 2, 0, 3)).reshape(s_in, bc)

    w8, w1, bias, gamma, beta = _pack_params(params, n_batch)
    nl = w8.shape[0]

    # per-layer valid extents -> SMEM scalars + tiny column-validity mask
    ls = jnp.arange(nl, dtype=jnp.int32)
    hv = h - 2 * ls
    wv = w - 2 * ls
    qv = (hv * wp).astype(jnp.int32)                       # row-valid threshold
    cnt = (hv * wv * n_batch).astype(jnp.int32)            # BN element count
    nc = ((hv + CR - 1) // CR).astype(jnp.int32)           # live chunks
    col = jnp.arange(chunk, dtype=jnp.int32) % wp
    colmask = (col[None, :] < wv[:, None]).astype(jnp.float32)[..., None]

    kernel = functools.partial(_reccnn_kernel, n_batch=n_batch, chunk=chunk,
                               ch_in=ch_in, wp=wp, s_in=s_in, qf=qf)

    out_slab = pl.pallas_call(
        kernel,
        out_shape=jax.ShapeDtypeStruct((qf, bc), jnp.float32),
        grid_spec=pltpu.PrefetchScalarGridSpec(
            num_scalar_prefetch=3,
            grid=(nl,),
            in_specs=[
                pl.BlockSpec((1, bc, 8 * bc), lambda l, *_: (l, 0, 0)),  # taps 0..7
                pl.BlockSpec((1, bc, bc), lambda l, *_: (l, 0, 0)),      # tap 8
                pl.BlockSpec((1, 1, bc), lambda l, *_: (l, 0, 0)),       # bias
                pl.BlockSpec((1, 1, bc), lambda l, *_: (l, 0, 0)),       # gamma
                pl.BlockSpec((1, 1, bc), lambda l, *_: (l, 0, 0)),       # beta
                pl.BlockSpec((1, chunk, 1), lambda l, *_: (l, 0, 0)),    # col mask
                pl.BlockSpec((s_in, bc), lambda l, *_: (0, 0)),          # input
            ],
            out_specs=pl.BlockSpec((qf, bc), lambda l, *_: (0, 0)),
            scratch_shapes=[
                pltpu.VMEM((sp_alloc, bc), jnp.float32),     # resident activations
                pltpu.VMEM((qb_alloc, bc), jnp.float32),     # raw conv accumulator
            ],
        ),
        compiler_params=pltpu.CompilerParams(
            # layers are sequentially dependent through the resident buffer and
            # BatchNorm couples the whole batch -> no parallel grid axis.
            dimension_semantics=("arbitrary",),
            vmem_limit_bytes=32 * 1024 * 1024,
        ),
    )(qv, cnt, nc, w8, w1, bias, gamma, beta, colmask, x_flat)

    out = out_slab.reshape(hf, wp, n_batch, C)             # rows -> (i, j), lanes -> (b, c)
    out = jnp.transpose(out, (2, 3, 0, 1))[:, :3, :, :wf]  # NCHW, drop padding
    return out


# ----------------------------- params / reference ------------------------------

def init_params(key):
    """Deterministic synthetic parameters with the same shapes as RecCNN."""
    def conv_init(k, cin, cout):
        k1, k2 = jax.random.split(k)
        bound = 1.0 / jnp.sqrt(jnp.float32(9 * cin))
        w_oihw = jax.random.uniform(k1, (cout, cin, 3, 3), jnp.float32,
                                    -bound, bound)
        w = jnp.transpose(w_oihw, (2, 3, 1, 0)).reshape(9, cin, cout)
        bias = jax.random.uniform(k2, (1, cout), jnp.float32, -bound, bound)
        return w, bias

    keys = jax.random.split(key, 38)
    params = {"layer_1": conv_init(keys[0], 3, 64), "intermediate": []}
    for j in range(18):
        w, b = conv_init(keys[1 + j], 64, 64)
        kg, kb = jax.random.split(keys[20 + j])
        gamma = 1.0 + 0.1 * jax.random.normal(kg, (1, 64), jnp.float32)
        beta = 0.1 * jax.random.normal(kb, (1, 64), jnp.float32)
        params["intermediate"].append((w, b, gamma, beta))
    params["final"] = conv_init(keys[19], 64, 3)
    return params


def reccnn_reference(x_nchw, params):
    """Pure-JAX reference (lax.conv) for correctness checking."""
    x = jnp.transpose(x_nchw, (0, 2, 3, 1)).astype(jnp.float32)

    def conv(x, w, bias, padding):
        w_hwio = w.reshape(3, 3, w.shape[1], w.shape[2])
        y = jax.lax.conv_general_dilated(
            x, w_hwio, (1, 1), padding,
            dimension_numbers=("NHWC", "HWIO", "NHWC"),
            precision=jax.lax.Precision.HIGHEST)
        return y + bias.reshape(1, 1, 1, -1)

    w, b = params["layer_1"]
    x = jax.nn.relu(conv(x, w, b, [(1, 1), (1, 1)]))
    for (w, b, gamma, beta) in params["intermediate"]:
        x = conv(x, w, b, "VALID")
        mean = jnp.mean(x, axis=(0, 1, 2), keepdims=True)
        var = jnp.mean((x - mean) ** 2, axis=(0, 1, 2), keepdims=True)
        x = (x - mean) * jax.lax.rsqrt(var + 1e-5)
        x = x * gamma.reshape(1, 1, 1, -1) + beta.reshape(1, 1, 1, -1)
        x = jnp.clip(x, 0.0, 6.0)
    w, b = params["final"]
    x = conv(x, w, b, "VALID")
    return jnp.transpose(x, (0, 3, 1, 2))


if __name__ == "__main__":
    key = jax.random.PRNGKey(0)
    pkey, xkey = jax.random.split(key)
    params = init_params(pkey)

    # 19 un-padded VALID convs shrink H,W by 38, so the input must be > 38.
    B, Cin, H, W = 2, 3, 46, 46
    x = jax.random.normal(xkey, (B, Cin, H, W), jnp.float32)

    out = reccnn_forward(x, params)
    out = jax.block_until_ready(out)
    assert out.shape == (B, 3, H - 38, W - 38), out.shape

    ref = reccnn_reference(x, params)
    err = float(jnp.max(jnp.abs(out - ref)))
    assert bool(jnp.all(jnp.isfinite(out)))
    assert err < 5e-2, f"max abs error vs reference: {err}"
    print("KERNEL_OK")
</pallas_src>

<mosaic_0001>
module attributes {stable_mosaic.version = 11 : i64} {
  func.func @_reccnn_kernel(%arg0: i32, %arg1: memref<20xi32, #tpu.memory_space<smem>>, %arg2: memref<20xi32, #tpu.memory_space<smem>>, %arg3: memref<20xi32, #tpu.memory_space<smem>>, %arg4: memref<1x128x1024xf32, #tpu.memory_space<vmem>>, %arg5: memref<1x128x128xf32, #tpu.memory_space<vmem>>, %arg6: memref<1x1x128xf32, #tpu.memory_space<vmem>>, %arg7: memref<1x1x128xf32, #tpu.memory_space<vmem>>, %arg8: memref<1x1x128xf32, #tpu.memory_space<vmem>>, %arg9: memref<1x576x1xf32, #tpu.memory_space<vmem>>, %arg10: memref<2304x128xf32, #tpu.memory_space<vmem>>, %arg11: memref<384x128xf32, #tpu.memory_space<vmem>>, %arg12: memref<2408x128xf32, #tpu.memory_space<vmem>>, %arg13: memref<2304x128xf32, #tpu.memory_space<vmem>>) attributes {dimension_semantics = [#tpu.dimension_semantics<arbitrary>], iteration_bounds = array<i64: 20>, scalar_prefetch = 3 : i64, scratch_operands = 2 : i64, tpu.core_type = #tpu.core_type<tc>, window_params = [{transform_indices = @transform_0, window_bounds = array<i64: 1, 128, 1024>}, {transform_indices = @transform_1, window_bounds = array<i64: 1, 128, 128>}, {transform_indices = @transform_2, window_bounds = array<i64: 1, 1, 128>}, {transform_indices = @transform_3, window_bounds = array<i64: 1, 1, 128>}, {transform_indices = @transform_4, window_bounds = array<i64: 1, 1, 128>}, {transform_indices = @transform_5, window_bounds = array<i64: 1, 576, 1>}, {pipeline_mode = #tpu.pipeline_mode<synchronous>, transform_indices = @transform_6, window_bounds = array<i64: 2304, 128>}, {pipeline_mode = #tpu.pipeline_mode<synchronous>, transform_indices = @transform_7, window_bounds = array<i64: 384, 128>}]} {
    %c0_i32 = arith.constant 0 : i32
    %0 = arith.cmpi eq, %arg0, %c0_i32 : i32
    %1 = arith.extui %0 : i1 to i32
    %c0_i32_0 = arith.constant 0 : i32
    %2 = arith.cmpi ne, %1, %c0_i32_0 : i32
    scf.if %2 {
      %c0_12 = arith.constant 0 : index
      %c0_13 = arith.constant 0 : index
      %46 = vector.load %arg10[%c0_12, %c0_13] : memref<2304x128xf32, #tpu.memory_space<vmem>>, vector<576x128xf32>
      %c0_14 = arith.constant 0 : index
      %c0_15 = arith.constant 0 : index
      %47 = vector.load %arg12[%c0_14, %c0_15] : memref<2408x128xf32, #tpu.memory_space<vmem>>, vector<576x128xf32>
      tpu.vector_store %arg12[%c0_14, %c0_15], %46 {strides = array<i32>} : memref<2408x128xf32, #tpu.memory_space<vmem>>, vector<576x128xf32>,
      %c576 = arith.constant 576 : index
      %c0_16 = arith.constant 0 : index
      %48 = vector.load %arg10[%c576, %c0_16] : memref<2304x128xf32, #tpu.memory_space<vmem>>, vector<576x128xf32>
      %c576_17 = arith.constant 576 : index
      %c0_18 = arith.constant 0 : index
      %49 = vector.load %arg12[%c576_17, %c0_18] : memref<2408x128xf32, #tpu.memory_space<vmem>>, vector<576x128xf32>
      tpu.vector_store %arg12[%c576_17, %c0_18], %48 {strides = array<i32>} : memref<2408x128xf32, #tpu.memory_space<vmem>>, vector<576x128xf32>,
      %c1152 = arith.constant 1152 : index
      %c0_19 = arith.constant 0 : index
      %50 = vector.load %arg10[%c1152, %c0_19] : memref<2304x128xf32, #tpu.memory_space<vmem>>, vector<576x128xf32>
      %c1152_20 = arith.constant 1152 : index
      %c0_21 = arith.constant 0 : index
      %51 = vector.load %arg12[%c1152_20, %c0_21] : memref<2408x128xf32, #tpu.memory_space<vmem>>, vector<576x128xf32>
      tpu.vector_store %arg12[%c1152_20, %c0_21], %50 {strides = array<i32>} : memref<2408x128xf32, #tpu.memory_space<vmem>>, vector<576x128xf32>,
      %c1728 = arith.constant 1728 : index
      %c0_22 = arith.constant 0 : index
      %52 = vector.load %arg10[%c1728, %c0_22] : memref<2304x128xf32, #tpu.memory_space<vmem>>, vector<576x128xf32>
      %c1728_23 = arith.constant 1728 : index
      %c0_24 = arith.constant 0 : index
      %53 = vector.load %arg12[%c1728_23, %c0_24] : memref<2408x128xf32, #tpu.memory_space<vmem>>, vector<576x128xf32>
      tpu.vector_store %arg12[%c1728_23, %c0_24], %52 {strides = array<i32>} : memref<2408x128xf32, #tpu.memory_space<vmem>>, vector<576x128xf32>,
      %cst_25 = arith.constant 0.000000e+00 : f32
      %54 = vector.broadcast %cst_25 : f32 to vector<104x128xf32>
      %c2304 = arith.constant 2304 : index
      %c0_26 = arith.constant 0 : index
      %55 = vector.load %arg12[%c2304, %c0_26] : memref<2408x128xf32, #tpu.memory_space<vmem>>, vector<104x128xf32>
      tpu.vector_store %arg12[%c2304, %c0_26], %54 {strides = array<i32>} : memref<2408x128xf32, #tpu.memory_space<vmem>>, vector<104x128xf32>,
    } else {
    }
    %3 = arith.index_cast %arg0 : i32 to index
    %4 = memref.load %arg1[%3] : memref<20xi32, #tpu.memory_space<smem>>
    %5 = arith.index_cast %arg0 : i32 to index
    %6 = memref.load %arg3[%5] : memref<20xi32, #tpu.memory_space<smem>>
    %c0 = arith.constant 0 : index
    %c0_1 = arith.constant 0 : index
    %c0_2 = arith.constant 0 : index
    %7 = vector.load %arg9[%c0, %c0_1, %c0_2] : memref<1x576x1xf32, #tpu.memory_space<vmem>>, vector<1x576x1xf32>
    %8 = vector.shape_cast %7 : vector<1x576x1xf32> to vector<576x1xf32>
    %cst = arith.constant 0.000000e+00 : f32
    %9 = vector.broadcast %cst : f32 to vector<1x128xf32>
    %c0_i32_3 = arith.constant 0 : i32
    %10 = arith.subi %6, %c0_i32_3 : i32
    %11 = arith.addi %c0_i32_3, %10 : i32
    %c1_i32 = arith.constant 1 : i32
    %12:2 = scf.for %arg14 = %c0_i32_3 to %11 step %c1_i32 iter_args(%arg15 = %9, %arg16 = %9) -> (vector<1x128xf32>, vector<1x128xf32>)  : i32 {
      %c576_i32 = arith.constant 576 : i32
      %46 = arith.muli %arg14, %c576_i32 : i32
      %47 = tpu.assume_multiple %46, 8 : i32
      %48 = arith.index_cast %47 : i32 to index
      %c0_12 = arith.constant 0 : index
      %49 = vector.load %arg12[%48, %c0_12] : memref<2408x128xf32, #tpu.memory_space<vmem>>, vector<680x128xf32>
      %c0_13 = arith.constant 0 : index
      %c0_14 = arith.constant 0 : index
      %c0_15 = arith.constant 0 : index
      %50 = vector.load %arg4[%c0_13, %c0_14, %c0_15] : memref<1x128x1024xf32, #tpu.memory_space<vmem>>, vector<1x128x1024xf32>
      %51 = vector.shape_cast %50 : vector<1x128x1024xf32> to vector<128x1024xf32>
      %cst_16 = arith.constant dense<0.000000e+00> : vector<680x1024xf32>
      %52 = tpu.matmul %49, %51, %cst_16 {dimension_numbers = #tpu.dot_dimension_numbers<[1], [0], [0], [1], [0, 0, 1, 1], [], []>} : vector<680x128xf32>, vector<128x1024xf32>, vector<680x1024xf32> -> vector<680x1024xf32>
      %c0_17 = arith.constant 0 : index
      %c0_18 = arith.constant 0 : index
      %c0_19 = arith.constant 0 : index
      %53 = vector.load %arg5[%c0_17, %c0_18, %c0_19] : memref<1x128x128xf32, #tpu.memory_space<vmem>>, vector<1x128x128xf32>
      %54 = vector.shape_cast %53 : vector<1x128x128xf32> to vector<128x128xf32>
      %cst_20 = arith.constant dense<0.000000e+00> : vector<680x128xf32>
      %55 = tpu.matmul %49, %54, %cst_20 {dimension_numbers = #tpu.dot_dimension_numbers<[1], [0], [0], [1], [0, 0, 1, 1], [], []>} : vector<680x128xf32>, vector<128x128xf32>, vector<680x128xf32> -> vector<680x128xf32>
      %56 = vector.extract_strided_slice %55 {offsets = [98, 0], sizes = [576, 128], strides = [1, 1]} : vector<680x128xf32> to vector<576x128xf32>
      %57 = vector.extract_strided_slice %52 {offsets = [0, 0], sizes = [576, 128], strides = [1, 1]} : vector<680x1024xf32> to vector<576x128xf32>
      %58 = arith.addf %56, %57 : vector<576x128xf32>
      %59 = vector.extract_strided_slice %52 {offsets = [1, 128], sizes = [576, 128], strides = [1, 1]} : vector<680x1024xf32> to vector<576x128xf32>
      %60 = arith.addf %58, %59 : vector<576x128xf32>
      %61 = vector.extract_strided_slice %52 {offsets = [2, 256], sizes = [576, 128], strides = [1, 1]} : vector<680x1024xf32> to vector<576x128xf32>
      %62 = arith.addf %60, %61 : vector<576x128xf32>
      %63 = vector.extract_strided_slice %52 {offsets = [48, 384], sizes = [576, 128], strides = [1, 1]} : vector<680x1024xf32> to vector<576x128xf32>
      %64 = arith.addf %62, %63 : vector<576x128xf32>
      %65 = vector.extract_strided_slice %52 {offsets = [49, 512], sizes = [576, 128], strides = [1, 1]} : vector<680x1024xf32> to vector<576x128xf32>
      %66 = arith.addf %64, %65 : vector<576x128xf32>
      %67 = vector.extract_strided_slice %52 {offsets = [50, 640], sizes = [576, 128], strides = [1, 1]} : vector<680x1024xf32> to vector<576x128xf32>
      %68 = arith.addf %66, %67 : vector<576x128xf32>
      %69 = vector.extract_strided_slice %52 {offsets = [96, 768], sizes = [576, 128], strides = [1, 1]} : vector<680x1024xf32> to vector<576x128xf32>
      %70 = arith.addf %68, %69 : vector<576x128xf32>
      %71 = vector.extract_strided_slice %52 {offsets = [97, 896], sizes = [576, 128], strides = [1, 1]} : vector<680x1024xf32> to vector<576x128xf32>
      %72 = arith.addf %70, %71 : vector<576x128xf32>
      %c0_21 = arith.constant 0 : index
      %c0_22 = arith.constant 0 : index
      %c0_23 = arith.constant 0 : index
      %73 = vector.load %arg6[%c0_21, %c0_22, %c0_23] : memref<1x1x128xf32, #tpu.memory_space<vmem>>, vector<1x1x128xf32>
      %74 = vector.shape_cast %73 : vector<1x1x128xf32> to vector<1x128xf32>
      %75 = vector.broadcast %74 : vector<1x128xf32> to vector<576x128xf32>
      %76 = arith.addf %72, %75 : vector<576x128xf32>
      %77 = arith.index_cast %47 : i32 to index
      %c0_24 = arith.constant 0 : index
      %78 = vector.load %arg13[%77, %c0_24] : memref<2304x128xf32, #tpu.memory_space<vmem>>, vector<576x128xf32>
      tpu.vector_store %arg13[%77, %c0_24], %76 {strides = array<i32>} : memref<2304x128xf32, #tpu.memory_space<vmem>>, vector<576x128xf32>,
      %79 = tpu.iota {dimensions = array<i32: 0>} : vector<576x1xi32>
      %80 = vector.broadcast %47 : i32 to vector<576x1xi32>
      %81 = arith.addi %79, %80 : vector<576x1xi32>
      %82 = vector.broadcast %4 : i32 to vector<576x1xi32>
      %83 = arith.cmpi slt, %81, %82 : vector<576x1xi32>
      %cst_25 = arith.constant 0.000000e+00 : f32
      %84 = vector.broadcast %cst_25 : f32 to vector<576x1xf32>
      %85 = arith.select %83, %8, %84 : vector<576x1xi1>, vector<576x1xf32>
      %86 = vector.broadcast %85 : vector<576x1xf32> to vector<576x128xf32>
      %87 = arith.mulf %76, %86 : vector<576x128xf32>
      %cst_26 = arith.constant dense<0.000000e+00> : vector<128xf32>
      %88 = vector.multi_reduction <add>, %87, %cst_26 [0] : vector<576x128xf32> to vector<128xf32>
      %89 = vector.shape_cast %88 : vector<128xf32> to vector<1x128xf32>
      %90 = arith.addf %arg15, %89 : vector<1x128xf32>
      %91 = arith.mulf %87, %87 : vector<576x128xf32>
      %cst_27 = arith.constant dense<0.000000e+00> : vector<128xf32>
      %92 = vector.multi_reduction <add>, %91, %cst_27 [0] : vector<576x128xf32> to vector<128xf32>
      %93 = vector.shape_cast %92 : vector<128xf32> to vector<1x128xf32>
      %94 = arith.addf %arg16, %93 : vector<1x128xf32>
      scf.yield %90, %94 : vector<1x128xf32>, vector<1x128xf32>
    }
    %13 = arith.index_cast %arg0 : i32 to index
    %14 = memref.load %arg2[%13] : memref<20xi32, #tpu.memory_space<smem>>
    %15 = arith.sitofp %14 : i32 to f32
    %16 = vector.extract_strided_slice %12#0 {offsets = [0, 0], sizes = [1, 64], strides = [1, 1]} : vector<1x128xf32> to vector<1x64xf32>
    %17 = vector.extract_strided_slice %12#1 {offsets = [0, 0], sizes = [1, 64], strides = [1, 1]} : vector<1x128xf32> to vector<1x64xf32>
    %18 = vector.extract_strided_slice %12#0 {offsets = [0, 64], sizes = [1, 64], strides = [1, 1]} : vector<1x128xf32> to vector<1x64xf32>
    %19 = arith.addf %16, %18 : vector<1x64xf32>
    %20 = vector.extract_strided_slice %12#1 {offsets = [0, 64], sizes = [1, 64], strides = [1, 1]} : vector<1x128xf32> to vector<1x64xf32>
    %21 = arith.addf %17, %20 : vector<1x64xf32>
    %22 = vector.broadcast %15 : f32 to vector<1x64xf32>
    %23 = arith.divf %19, %22 : vector<1x64xf32>
    %24 = vector.broadcast %15 : f32 to vector<1x64xf32>
    %25 = arith.divf %21, %24 : vector<1x64xf32>
    %26 = arith.mulf %23, %23 : vector<1x64xf32>
    %27 = arith.subf %25, %26 : vector<1x64xf32>
    %cst_4 = arith.constant 0.000000e+00 : f32
    %28 = vector.broadcast %cst_4 : f32 to vector<1x64xf32>
    %29 = arith.maximumf %27, %28 : vector<1x64xf32>
    %cst_5 = arith.constant 9.99999974E-6 : f32
    %30 = vector.broadcast %cst_5 : f32 to vector<1x64xf32>
    %31 = arith.addf %29, %30 : vector<1x64xf32>
    %32 = math.rsqrt %31 : vector<1x64xf32>
    %33 = tpu.concatenate %23, %23 in 1 : vector<1x64xf32>, vector<1x64xf32> -> vector<1x128xf32>
    %34 = tpu.concatenate %32, %32 in 1 : vector<1x64xf32>, vector<1x64xf32> -> vector<1x128xf32>
    %c0_i32_6 = arith.constant 0 : i32
    %35 = arith.cmpi eq, %arg0, %c0_i32_6 : i32
    %36 = arith.extui %35 : i1 to i32
    %c0_i32_7 = arith.constant 0 : i32
    %37 = arith.cmpi ne, %36, %c0_i32_7 : i32
    scf.if %37 {
      %c0_i32_12 = arith.constant 0 : i32
      %c0_i32_13 = arith.constant 0 : i32
      %46 = arith.subi %6, %c0_i32_13 : i32
      %47 = arith.addi %c0_i32_13, %46 : i32
      %c1_i32_14 = arith.constant 1 : i32
      scf.for %arg14 = %c0_i32_13 to %47 step %c1_i32_14  : i32 {
        %c576_i32 = arith.constant 576 : i32
        %48 = arith.muli %arg14, %c576_i32 : i32
        %49 = tpu.assume_multiple %48, 8 : i32
        %50 = arith.index_cast %49 : i32 to index
        %c0_15 = arith.constant 0 : index
        %51 = vector.load %arg13[%50, %c0_15] : memref<2304x128xf32, #tpu.memory_space<vmem>>, vector<576x128xf32>
        %cst_16 = arith.constant 0.000000e+00 : f32
        %52 = vector.broadcast %cst_16 : f32 to vector<576x128xf32>
        %53 = arith.maximumf %51, %52 : vector<576x128xf32>
        %54 = arith.index_cast %49 : i32 to index
        %c0_17 = arith.constant 0 : index
        %55 = vector.load %arg12[%54, %c0_17] : memref<2408x128xf32, #tpu.memory_space<vmem>>, vector<576x128xf32>
        tpu.vector_store %arg12[%54, %c0_17], %53 {strides = array<i32>} : memref<2408x128xf32, #tpu.memory_space<vmem>>, vector<576x128xf32>,
      }
    } else {
    }
    %c0_i32_8 = arith.constant 0 : i32
    %38 = arith.cmpi sgt, %arg0, %c0_i32_8 : i32
    %c19_i32 = arith.constant 19 : i32
    %39 = arith.cmpi slt, %arg0, %c19_i32 : i32
    %40 = arith.andi %38, %39 : i1
    %41 = arith.extui %40 : i1 to i32
    %c0_i32_9 = arith.constant 0 : i32
    %42 = arith.cmpi ne, %41, %c0_i32_9 : i32
    scf.if %42 {
      %c0_i32_12 = arith.constant 0 : i32
      %c0_i32_13 = arith.constant 0 : i32
      %46 = arith.subi %6, %c0_i32_13 : i32
      %47 = arith.addi %c0_i32_13, %46 : i32
      %c1_i32_14 = arith.constant 1 : i32
      scf.for %arg14 = %c0_i32_13 to %47 step %c1_i32_14  : i32 {
        %c576_i32 = arith.constant 576 : i32
        %48 = arith.muli %arg14, %c576_i32 : i32
        %49 = tpu.assume_multiple %48, 8 : i32
        %50 = arith.index_cast %49 : i32 to index
        %c0_15 = arith.constant 0 : index
        %51 = vector.load %arg13[%50, %c0_15] : memref<2304x128xf32, #tpu.memory_space<vmem>>, vector<576x128xf32>
        %52 = vector.broadcast %33 : vector<1x128xf32> to vector<576x128xf32>
        %53 = arith.subf %51, %52 : vector<576x128xf32>
        %54 = vector.broadcast %34 : vector<1x128xf32> to vector<576x128xf32>
        %55 = arith.mulf %53, %54 : vector<576x128xf32>
        %c0_16 = arith.constant 0 : index
        %c0_17 = arith.constant 0 : index
        %c0_18 = arith.constant 0 : index
        %56 = vector.load %arg7[%c0_16, %c0_17, %c0_18] : memref<1x1x128xf32, #tpu.memory_space<vmem>>, vector<1x1x128xf32>
        %57 = vector.shape_cast %56 : vector<1x1x128xf32> to vector<1x128xf32>
        %58 = vector.broadcast %57 : vector<1x128xf32> to vector<576x128xf32>
        %59 = arith.mulf %55, %58 : vector<576x128xf32>
        %c0_19 = arith.constant 0 : index
        %c0_20 = arith.constant 0 : index
        %c0_21 = arith.constant 0 : index
        %60 = vector.load %arg8[%c0_19, %c0_20, %c0_21] : memref<1x1x128xf32, #tpu.memory_space<vmem>>, vector<1x1x128xf32>
        %61 = vector.shape_cast %60 : vector<1x1x128xf32> to vector<1x128xf32>
        %62 = vector.broadcast %61 : vector<1x128xf32> to vector<576x128xf32>
        %63 = arith.addf %59, %62 : vector<576x128xf32>
        %cst_22 = arith.constant 0.000000e+00 : f32
        %cst_23 = arith.constant 6.000000e+00 : f32
        %64 = vector.broadcast %cst_22 : f32 to vector<576x128xf32>
        %65 = arith.maximumf %64, %63 : vector<576x128xf32>
        %66 = vector.broadcast %cst_23 : f32 to vector<576x128xf32>
        %67 = arith.minimumf %66, %65 : vector<576x128xf32>
        %68 = arith.index_cast %49 : i32 to index
        %c0_24 = arith.constant 0 : index
        %69 = vector.load %arg12[%68, %c0_24] : memref<2408x128xf32, #tpu.memory_space<vmem>>, vector<576x128xf32>
        tpu.vector_store %arg12[%68, %c0_24], %67 {strides = array<i32>} : memref<2408x128xf32, #tpu.memory_space<vmem>>, vector<576x128xf32>,
      }
    } else {
    }
    %c19_i32_10 = arith.constant 19 : i32
    %43 = arith.cmpi eq, %arg0, %c19_i32_10 : i32
    %44 = arith.extui %43 : i1 to i32
    %c0_i32_11 = arith.constant 0 : i32
    %45 = arith.cmpi ne, %44, %c0_i32_11 : i32
    scf.if %45 {
      %c0_12 = arith.constant 0 : index
      %c0_13 = arith.constant 0 : index
      %46 = vector.load %arg13[%c0_12, %c0_13] : memref<2304x128xf32, #tpu.memory_space<vmem>>, vector<384x128xf32>
      %c0_14 = arith.constant 0 : index
      %c0_15 = arith.constant 0 : index
      %47 = vector.load %arg11[%c0_14, %c0_15] : memref<384x128xf32, #tpu.memory_space<vmem>>, vector<384x128xf32>
      tpu.vector_store %arg11[%c0_14, %c0_15], %46 {strides = array<i32>} : memref<384x128xf32, #tpu.memory_space<vmem>>, vector<384x128xf32>,
    } else {
    }
    return
  }
  func.func @transform_0(%arg0: i32, %arg1: memref<20xi32, #tpu.memory_space<smem>>, %arg2: memref<20xi32, #tpu.memory_space<smem>>, %arg3: memref<20xi32, #tpu.memory_space<smem>>) -> (i32, i32, i32) {
    %c0_i32 = arith.constant 0 : i32
    %c0_i32_0 = arith.constant 0 : i32
    %c0_i32_1 = arith.constant 0 : i32
    return %arg0, %c0_i32, %c0_i32_0 : i32, i32, i32
  }
  func.func @transform_1(%arg0: i32, %arg1: memref<20xi32, #tpu.memory_space<smem>>, %arg2: memref<20xi32, #tpu.memory_space<smem>>, %arg3: memref<20xi32, #tpu.memory_space<smem>>) -> (i32, i32, i32) {
    %c0_i32 = arith.constant 0 : i32
    %c0_i32_0 = arith.constant 0 : i32
    %c0_i32_1 = arith.constant 0 : i32
    return %arg0, %c0_i32, %c0_i32_0 : i32, i32, i32
  }
  func.func @transform_2(%arg0: i32, %arg1: memref<20xi32, #tpu.memory_space<smem>>, %arg2: memref<20xi32, #tpu.memory_space<smem>>, %arg3: memref<20xi32, #tpu.memory_space<smem>>) -> (i32, i32, i32) {
    %c0_i32 = arith.constant 0 : i32
    %c0_i32_0 = arith.constant 0 : i32
    %c0_i32_1 = arith.constant 0 : i32
    return %arg0, %c0_i32, %c0_i32_0 : i32, i32, i32
  }
  func.func @transform_3(%arg0: i32, %arg1: memref<20xi32, #tpu.memory_space<smem>>, %arg2: memref<20xi32, #tpu.memory_space<smem>>, %arg3: memref<20xi32, #tpu.memory_space<smem>>) -> (i32, i32, i32) {
    %c0_i32 = arith.constant 0 : i32
    %c0_i32_0 = arith.constant 0 : i32
    %c0_i32_1 = arith.constant 0 : i32
    return %arg0, %c0_i32, %c0_i32_0 : i32, i32, i32
  }
  func.func @transform_4(%arg0: i32, %arg1: memref<20xi32, #tpu.memory_space<smem>>, %arg2: memref<20xi32, #tpu.memory_space<smem>>, %arg3: memref<20xi32, #tpu.memory_space<smem>>) -> (i32, i32, i32) {
    %c0_i32 = arith.constant 0 : i32
    %c0_i32_0 = arith.constant 0 : i32
    %c0_i32_1 = arith.constant 0 : i32
    return %arg0, %c0_i32, %c0_i32_0 : i32, i32, i32
  }
  func.func @transform_5(%arg0: i32, %arg1: memref<20xi32, #tpu.memory_space<smem>>, %arg2: memref<20xi32, #tpu.memory_space<smem>>, %arg3: memref<20xi32, #tpu.memory_space<smem>>) -> (i32, i32, i32) {
    %c0_i32 = arith.constant 0 : i32
    %c0_i32_0 = arith.constant 0 : i32
    %c0_i32_1 = arith.constant 0 : i32
    return %arg0, %c0_i32, %c0_i32_0 : i32, i32, i32
  }
  func.func @transform_6(%arg0: i32, %arg1: memref<20xi32, #tpu.memory_space<smem>>, %arg2: memref<20xi32, #tpu.memory_space<smem>>, %arg3: memref<20xi32, #tpu.memory_space<smem>>) -> (i32, i32) {
    %c0_i32 = arith.constant 0 : i32
    %c0_i32_0 = arith.constant 0 : i32
    %c0_i32_1 = arith.constant 0 : i32
    return %c0_i32, %c0_i32_0 : i32, i32
  }
  func.func @transform_7(%arg0: i32, %arg1: memref<20xi32, #tpu.memory_space<smem>>, %arg2: memref<20xi32, #tpu.memory_space<smem>>, %arg3: memref<20xi32, #tpu.memory_space<smem>>) -> (i32, i32) {
    %c0_i32 = arith.constant 0 : i32
    %c0_i32_0 = arith.constant 0 : i32
    %c0_i32_1 = arith.constant 0 : i32
    return %c0_i32, %c0_i32_0 : i32, i32
  }
}

</mosaic_0001>

<llo_original>
// kernel: tpu_custom_call.1
$region0: #{tpu_custom_call.1}
  #allocation0 [shape = 'u32[]', space=smem, size = 0x4, offset = 0x4, fixed_abs, tag = 'smem constant byte address 0x4 - core index']
  #allocation1 [shape = 'u32[144,128]{1,0:T(1,128)}', space=vmem, size = 0x12000, scoped, tag = 'internal scratch']
  #allocation2 [shape = 'f32[2408,128]{1,0:T(8,128)}', space=vmem, size = 0x12d000, scoped, tag = 'scratch operand']
  #allocation3 [shape = 'f32[2304,128]{1,0:T(8,128)}', space=vmem, size = 0x120000, scoped, tag = 'scratch operand']
  #allocation4 [shape = 's32[1]{0}', space=sflag, size = 0x4, scoped, tag = 'scoped memory for tpu_custom_call.1']
  #allocation5 [shape = 'u8[512]{0}', space=smem, size = 0x200, scoped, tag = 'prefetched SMEM operand 0']
  #allocation6 [shape = 'u8[512]{0}', space=smem, size = 0x200, scoped, tag = 'prefetched SMEM operand 1']
  #allocation7 [shape = 'u8[512]{0}', space=smem, size = 0x200, scoped, tag = 'prefetched SMEM operand 2']
  %s0 = inlined_call_operand.vmem [shape: s32[20], index: 0, kind: input, shape index: {}]
  %s1 = inlined_call_operand.vmem [shape: s32[20], index: 1, kind: input, shape index: {}]
  %s2 = inlined_call_operand.vmem [shape: s32[20], index: 2, kind: input, shape index: {}]
  %s3 = inlined_call_operand.hbm [shape: f32[20,128,1024], index: 3, kind: input, shape index: {}]
  %s4 = inlined_call_operand.vmem [shape: f32[20,128,128], index: 4, kind: input, shape index: {}]
  %s5 = inlined_call_operand.vmem [shape: f32[20,1,128], index: 5, kind: input, shape index: {}]
  %s6 = inlined_call_operand.vmem [shape: f32[20,1,128], index: 6, kind: input, shape index: {}]
  %s7 = inlined_call_operand.vmem [shape: f32[20,1,128], index: 7, kind: input, shape index: {}]
  %s8 = inlined_call_operand.vmem [shape: f32[20,576,1], index: 8, kind: input, shape index: {}]
  %s9 = inlined_call_operand.vmem [shape: f32[2304,128], index: 9, kind: input, shape index: {}]
  %s10 = inlined_call_operand.hbm [shape: f32[384,128], index: 10, kind: output, shape index: {}]
  %s11 = sld [smem:[#allocation0]]
  $region102: #{tpu_custom_call.1} parent=0
    _
  %s13 = ssub.s32 1, %s11
  %s14 = scalar_select 0, %s13, %s11
  %s15 = sshll.u32 %s0, 4
  %s16 = int_to_ptr.vmem [resolvable:$true] %s15
  %18 = dma.vmem_to_smem %s16, 16, [#allocation5], [#allocation4]
  %s19 = sshll.u32 %s1, 4
  %s20 = int_to_ptr.vmem [resolvable:$true] %s19
  %22 = dma.vmem_to_smem %s20, 16, [#allocation6], [#allocation4]
  %s23 = sshll.u32 %s2, 4
  %s24 = int_to_ptr.vmem [resolvable:$true] %s23
  %26 = dma.vmem_to_smem %s24, 16, [#allocation7], [#allocation4]
  %27 = dma.done [#allocation4], 48
  %28 = sfence
  $region1: #{tpu_custom_call.1} parent=0
    #allocation8 [shape = 'u8[1048576]{0}', space=vmem, size = 0x100000, scoped, tag = 'input window, operand 3']
    #allocation9 [shape = 's32[2]{0}', space=sflag, size = 0x8, scoped, tag = 'scoped memory for tpu_custom_call.1']
    #allocation10 [shape = 's32[2]{0}', space=sflag, size = 0x8, scoped, tag = 'scoped memory for tpu_custom_call.1']
    #allocation11 [shape = 'u8[196608]{0}', space=vmem, size = 0x30000, scoped, tag = 'output window, operand 0, single buffered']
    %29 = vsyncpa [#allocation9], 0
    %s30 = scalar_lea.sflag [#allocation9], 1
    %31 = vsyncpa %s30, 0
    %32 = vsyncpa [#allocation10], 0
    loop: start=0, step=1, limit=22
    $region2: #{tpu_custom_call.1} parent=1 // loop_pre_header
      _
    $region3: #{tpu_custom_call.1} parent=1 // loop_header
      %s34 = sphi 0, %s38
      %p35 = scmp.ge.s32.totalorder %s34, 22
      %s44 = sphi 0, %s46
      %s47 = sphi 0, %s44
      %s48 = sphi 0, %s47
      %s64 = sphi 0, %s48
      %s70 = sphi 0, %s72
      %s73 = sphi 0, %s70
      %s74 = sphi 0, %s73
      %s90 = sphi 0, %s74
      %s96 = sphi 0, %s98
      %s99 = sphi 0, %s96
      %s100 = sphi 0, %s99
      %s116 = sphi 0, %s100
      %s122 = sphi 0, %s124
      %s125 = sphi 0, %s122
      %s126 = sphi 0, %s125
      %s142 = sphi 0, %s126
      %s148 = sphi 0, %s150
      %s151 = sphi 0, %s148
      %s152 = sphi 0, %s151
      %s168 = sphi 0, %s152
      %s174 = sphi 0, %s176
      %s177 = sphi 0, %s174
      %s178 = sphi 0, %s177
      %s194 = sphi 0, %s178
      %s198 = sphi 0, %s198
      %s200 = sphi 0, %s198
      %s201 = sphi 0, %s200
      %s215 = sphi 0, %s201
      %s219 = sphi 0, %s219
      %s221 = sphi 0, %s219
      %s222 = sphi 0, %s221
      %s236 = sphi 0, %s222
    $region4: #{tpu_custom_call.1} parent=1 // loop_header_branch
      %37 = sbr.rel (%p35) target = $region8
    $region5: #{tpu_custom_call.1} parent=1 // loop_body
      %s39 = ssub.s32 %s34, 1
      %s40 = ssub.s32 %s34, 2
      %s41 = sadd.s32 %s34, 1
      %s42 = ssub.s32 %s34, %s41
      %p43 = scmp.eq.s32.totalorder %s42, 0
      %s45 = sadd.s32 %s44, 1
      %s46 = scalar_select %p43, %s44, %s45
      %p49 = pneg %p43
      %p50 = scmp.eq.s32.totalorder %s34, 19
      %p51 = por %p49, %p50
      %p52 = scmp.ne.s32.totalorder %s44, %s47
      %p53 = scmp.eq.s32.totalorder %s34, 0
      %p54 = por %p52, %p53
      %p55 = scmp.ne.s32.totalorder %s44, %s47
      %p56 = scmp.eq.s32.totalorder %s39, 19
      %p57 = por %p55, %p56
      %p58 = scmp.ne.s32.totalorder %s47, %s48
      %p59 = scmp.eq.s32.totalorder %s39, 0
      %p60 = por %p58, %p59
      %p61 = scmp.ne.s32.totalorder %s47, %s48
      %p62 = scmp.eq.s32.totalorder %s40, 19
      %p63 = por %p61, %p62
      %p65 = scmp.ne.s32.totalorder %s48, %s64
      %p66 = scmp.eq.s32.totalorder %s40, 0
      %p67 = por %p65, %p66
      %s68 = ssub.s32 %s34, %s41
      %p69 = scmp.eq.s32.totalorder %s68, 0
      %s71 = sadd.s32 %s70, 1
      %s72 = scalar_select %p69, %s70, %s71
      %p75 = pneg %p69
      %p76 = scmp.eq.s32.totalorder %s34, 19
      %p77 = por %p75, %p76
      %p78 = scmp.ne.s32.totalorder %s70, %s73
      %p79 = scmp.eq.s32.totalorder %s34, 0
      %p80 = por %p78, %p79
      %p81 = scmp.ne.s32.totalorder %s70, %s73
      %p82 = scmp.eq.s32.totalorder %s39, 19
      %p83 = por %p81, %p82
      %p84 = scmp.ne.s32.totalorder %s73, %s74
      %p85 = scmp.eq.s32.totalorder %s39, 0
      %p86 = por %p84, %p85
      %p87 = scmp.ne.s32.totalorder %s73, %s74
      %p88 = scmp.eq.s32.totalorder %s40, 19
      %p89 = por %p87, %p88
      %p91 = scmp.ne.s32.totalorder %s74, %s90
      %p92 = scmp.eq.s32.totalorder %s40, 0
      %p93 = por %p91, %p92
      %s94 = ssub.s32 %s34, %s41
      %p95 = scmp.eq.s32.totalorder %s94, 0
      %s97 = sadd.s32 %s96, 1
      %s98 = scalar_select %p95, %s96, %s97
      %p101 = pneg %p95
      %p102 = scmp.eq.s32.totalorder %s34, 19
      %p103 = por %p101, %p102
      %p104 = scmp.ne.s32.totalorder %s96, %s99
      %p105 = scmp.eq.s32.totalorder %s34, 0
      %p106 = por %p104, %p105
      %p107 = scmp.ne.s32.totalorder %s96, %s99
      %p108 = scmp.eq.s32.totalorder %s39, 19
      %p109 = por %p107, %p108
      %p110 = scmp.ne.s32.totalorder %s99, %s100
      %p111 = scmp.eq.s32.totalorder %s39, 0
      %p112 = por %p110, %p111
      %p113 = scmp.ne.s32.totalorder %s99, %s100
      %p114 = scmp.eq.s32.totalorder %s40, 19
      %p115 = por %p113, %p114
      %p117 = scmp.ne.s32.totalorder %s100, %s116
      %p118 = scmp.eq.s32.totalorder %s40, 0
      %p119 = por %p117, %p118
      %s120 = ssub.s32 %s34, %s41
      %p121 = scmp.eq.s32.totalorder %s120, 0
      %s123 = sadd.s32 %s122, 1
      %s124 = scalar_select %p121, %s122, %s123
      %p127 = pneg %p121
      %p128 = scmp.eq.s32.totalorder %s34, 19
      %p129 = por %p127, %p128
      %p130 = scmp.ne.s32.totalorder %s122, %s125
      %p131 = scmp.eq.s32.totalorder %s34, 0
      %p132 = por %p130, %p131
      %p133 = scmp.ne.s32.totalorder %s122, %s125
      %p134 = scmp.eq.s32.totalorder %s39, 19
      %p135 = por %p133, %p134
      %p136 = scmp.ne.s32.totalorder %s125, %s126
      %p137 = scmp.eq.s32.totalorder %s39, 0
      %p138 = por %p136, %p137
      %p139 = scmp.ne.s32.totalorder %s125, %s126
      %p140 = scmp.eq.s32.totalorder %s40, 19
      %p141 = por %p139, %p140
      %p143 = scmp.ne.s32.totalorder %s126, %s142
      %p144 = scmp.eq.s32.totalorder %s40, 0
      %p145 = por %p143, %p144
      %s146 = ssub.s32 %s34, %s41
      %p147 = scmp.eq.s32.totalorder %s146, 0
      %s149 = sadd.s32 %s148, 1
      %s150 = scalar_select %p147, %s148, %s149
      %p153 = pneg %p147
      %p154 = scmp.eq.s32.totalorder %s34, 19
      %p155 = por %p153, %p154
      %p156 = scmp.ne.s32.totalorder %s148, %s151
      %p157 = scmp.eq.s32.totalorder %s34, 0
      %p158 = por %p156, %p157
      %p159 = scmp.ne.s32.totalorder %s148, %s151
      %p160 = scmp.eq.s32.totalorder %s39, 19
      %p161 = por %p159, %p160
      %p162 = scmp.ne.s32.totalorder %s151, %s152
      %p163 = scmp.eq.s32.totalorder %s39, 0
      %p164 = por %p162, %p163
      %p165 = scmp.ne.s32.totalorder %s151, %s152
      %p166 = scmp.eq.s32.totalorder %s40, 19
      %p167 = por %p165, %p166
      %p169 = scmp.ne.s32.totalorder %s152, %s168
      %p170 = scmp.eq.s32.totalorder %s40, 0
      %p171 = por %p169, %p170
      %s172 = ssub.s32 %s34, %s41
      %p173 = scmp.eq.s32.totalorder %s172, 0
      %s175 = sadd.s32 %s174, 1
      %s176 = scalar_select %p173, %s174, %s175
      %p179 = pneg %p173
      %p180 = scmp.eq.s32.totalorder %s34, 19
      %p181 = por %p179, %p180
      %p182 = scmp.ne.s32.totalorder %s174, %s177
      %p183 = scmp.eq.s32.totalorder %s34, 0
      %p184 = por %p182, %p183
      %p185 = scmp.ne.s32.totalorder %s174, %s177
      %p186 = scmp.eq.s32.totalorder %s39, 19
      %p187 = por %p185, %p186
      %p188 = scmp.ne.s32.totalorder %s177, %s178
      %p189 = scmp.eq.s32.totalorder %s39, 0
      %p190 = por %p188, %p189
      %p191 = scmp.ne.s32.totalorder %s177, %s178
      %p192 = scmp.eq.s32.totalorder %s40, 19
      %p193 = por %p191, %p192
      %p195 = scmp.ne.s32.totalorder %s178, %s194
      %p196 = scmp.eq.s32.totalorder %s40, 0
      %p197 = por %p195, %p196
      %s199 = sadd.s32 %s198, 1
      %p202 = scmp.eq.s32.totalorder %s34, 19
      %p203 = scmp.ne.s32.totalorder %s198, %s200
      %p204 = scmp.eq.s32.totalorder %s34, 0
      %p205 = por %p203, %p204
      %p206 = scmp.ne.s32.totalorder %s198, %s200
      %p207 = scmp.eq.s32.totalorder %s39, 19
      %p208 = por %p206, %p207
      %p209 = scmp.ne.s32.totalorder %s200, %s201
      %p210 = scmp.eq.s32.totalorder %s39, 0
      %p211 = por %p209, %p210
      %p212 = scmp.ne.s32.totalorder %s200, %s201
      %p213 = scmp.eq.s32.totalorder %s40, 19
      %p214 = por %p212, %p213
      %p216 = scmp.ne.s32.totalorder %s201, %s215
      %p217 = scmp.eq.s32.totalorder %s40, 0
      %p218 = por %p216, %p217
      %s220 = sadd.s32 %s219, 1
      %p223 = scmp.eq.s32.totalorder %s34, 19
      %p224 = scmp.ne.s32.totalorder %s219, %s221
      %p225 = scmp.eq.s32.totalorder %s34, 0
      %p226 = por %p224, %p225
      %p227 = scmp.ne.s32.totalorder %s219, %s221
      %p228 = scmp.eq.s32.totalorder %s39, 19
      %p229 = por %p227, %p228
      %p230 = scmp.ne.s32.totalorder %s221, %s222
      %p231 = scmp.eq.s32.totalorder %s39, 0
      %p232 = por %p230, %p231
      %p233 = scmp.ne.s32.totalorder %s221, %s222
      %p234 = scmp.eq.s32.totalorder %s40, 19
      %p235 = por %p233, %p234
      %p237 = scmp.ne.s32.totalorder %s222, %s236
      %p238 = scmp.eq.s32.totalorder %s40, 0
      %p239 = por %p237, %p238
      %p240 = scmp.le.s32.totalorder 1, %s34
      %p241 = scmp.lt.s32.totalorder %s34, 21
      %p242 = pnand %p240, %p241
      %p243 = pneg %p242
      // Predicated region
      $region9: #{tpu_custom_call.1} parent=5 // pred_check
        _
      $region10: #{tpu_custom_call.1} parent=5 // pred_check_branch
        %245 = sbr.rel (%p242) target = $region12
      $region11: #{tpu_custom_call.1} parent=5 // pred_region
        %s246 = ssub.s32 %s34, 1
        // Predicated region
        $region13: #{tpu_custom_call.1} parent=11 // pred_check
          %p247 = pneg %p211
        $region14: #{tpu_custom_call.1} parent=11 // pred_check_branch
          %249 = sbr.rel (%p247) target = $region16
        $region15: #{tpu_custom_call.1} parent=11 // pred_region
          _
        $region16: #{tpu_custom_call.1} parent=11 // pred_fallthru
          _
      $region12: #{tpu_custom_call.1} parent=5 // pred_fallthru
        _
      %p250 = scmp.lt.s32.totalorder %s34, 20
      // Predicated region
      $region17: #{tpu_custom_call.1} parent=5 // pred_check
        %p251 = pneg %p250
      $region18: #{tpu_custom_call.1} parent=5 // pred_check_branch
        %253 = sbr.rel (%p251) target = $region20
      $region19: #{tpu_custom_call.1} parent=5 // pred_region
        // Predicated region
        $region21: #{tpu_custom_call.1} parent=19 // pred_check
          %p254 = pneg %p54
        $region22: #{tpu_custom_call.1} parent=19 // pred_check_branch
          %256 = sbr.rel (%p254) target = $region24
        $region23: #{tpu_custom_call.1} parent=19 // pred_region
          %s257 = sand.u32 %s44, 1
          %s258 = scalar_lea.sflag [#allocation9], %s257
          %s259 = sand.u32 %s44, 1
          %s260 = smul.addr %s259, 1024
          %s261 = scalar_lea.vmem [#allocation8], %s260
          %s263 = ssub.s32 16384, 16384
          %264 = vsyncadd %s258, %s263
          %s265 = smul.addr %s34, 128
          %s266 = smul.addr %s265, 128
          %s267 = scalar_lea.hbm %s3, %s266
          %s268 = sshll.u32 %s261, 4
          %s269 = int_to_ptr.vmem [resolvable:$true] %s268
          %274 = dma.hbm_to_vmem [thread:$0]  %s267, 16384, %s269, %s258, 1024, 1024, 64
        $region24: #{tpu_custom_call.1} parent=19 // pred_fallthru
          _
        // Predicated region
        $region25: #{tpu_custom_call.1} parent=19 // pred_check
          %p275 = pneg %p80
        $region26: #{tpu_custom_call.1} parent=19 // pred_check_branch
          %277 = sbr.rel (%p275) target = $region28
        $region27: #{tpu_custom_call.1} parent=19 // pred_region
          %p278 = scmp.lt.s32.totalorder %s34, 19
          %s279 = scalar_select %p278, %s34, 19
          %s280 = smul.addr %s279, 16
          %s281 = smul.addr %s280, 8
          %s282 = scalar_lea.vmem %s4, %s281
        $region28: #{tpu_custom_call.1} parent=19 // pred_fallthru
          _
        // Predicated region
        $region29: #{tpu_custom_call.1} parent=19 // pred_check
          %p283 = pneg %p106
        $region30: #{tpu_custom_call.1} parent=19 // pred_check_branch
          %285 = sbr.rel (%p283) target = $region32
        $region31: #{tpu_custom_call.1} parent=19 // pred_region
          %p286 = scmp.lt.s32.totalorder %s34, 19
          %s287 = scalar_select %p286, %s34, 19
          %s288 = scalar_lea.vmem %s5, %s287
        $region32: #{tpu_custom_call.1} parent=19 // pred_fallthru
          _
        // Predicated region
        $region33: #{tpu_custom_call.1} parent=19 // pred_check
          %p289 = pneg %p132
        $region34: #{tpu_custom_call.1} parent=19 // pred_check_branch
          %291 = sbr.rel (%p289) target = $region36
        $region35: #{tpu_custom_call.1} parent=19 // pred_region
          %p292 = scmp.lt.s32.totalorder %s34, 19
          %s293 = scalar_select %p292, %s34, 19
          %s294 = scalar_lea.vmem %s6, %s293
        $region36: #{tpu_custom_call.1} parent=19 // pred_fallthru
          _
        // Predicated region
        $region37: #{tpu_custom_call.1} parent=19 // pred_check
          %p295 = pneg %p158
        $region38: #{tpu_custom_call.1} parent=19 // pred_check_branch
          %297 = sbr.rel (%p295) target = $region40
        $region39: #{tpu_custom_call.1} parent=19 // pred_region
          %p298 = scmp.lt.s32.totalorder %s34, 19
          %s299 = scalar_select %p298, %s34, 19
          %s300 = scalar_lea.vmem %s7, %s299
        $region40: #{tpu_custom_call.1} parent=19 // pred_fallthru
          _
        // Predicated region
        $region41: #{tpu_custom_call.1} parent=19 // pred_check
          %p301 = pneg %p184
        $region42: #{tpu_custom_call.1} parent=19 // pred_check_branch
          %303 = sbr.rel (%p301) target = $region44
        $region43: #{tpu_custom_call.1} parent=19 // pred_region
          %p304 = scmp.lt.s32.totalorder %s34, 19
          %s305 = scalar_select %p304, %s34, 19
          %s306 = smul.addr %s305, 72
          %s307 = smul.addr %s306, 8
          %s308 = scalar_lea.vmem %s8, %s307
        $region44: #{tpu_custom_call.1} parent=19 // pred_fallthru
          _
      $region20: #{tpu_custom_call.1} parent=5 // pred_fallthru
        _
      %p309 = scmp.le.s32.totalorder 1, %s34
      %p310 = scmp.lt.s32.totalorder %s34, 21
      %p311 = pnand %p309, %p310
      %p312 = pneg %p311
      // Predicated region
      $region45: #{tpu_custom_call.1} parent=5 // pred_check
        _
      $region46: #{tpu_custom_call.1} parent=5 // pred_check_branch
        %314 = sbr.rel (%p311) target = $region48
      $region47: #{tpu_custom_call.1} parent=5 // pred_region
        %s315 = ssub.s32 %s34, 1
        %s316 = sand.u32 %s47, 1
        %s317 = scalar_lea.sflag [#allocation9], %s316
        %s318 = sand.u32 %s47, 1
        %s319 = smul.addr %s318, 1024
        %s320 = scalar_lea.vmem [#allocation8], %s319
        // Predicated region
        $region49: #{tpu_custom_call.1} parent=47 // pred_check
          %p321 = pneg %p60
        $region50: #{tpu_custom_call.1} parent=47 // pred_check_branch
          %323 = sbr.rel (%p321) target = $region52
        $region51: #{tpu_custom_call.1} parent=47 // pred_region
          %324 = dma.done %s317, 16384
        $region52: #{tpu_custom_call.1} parent=47 // pred_fallthru
          _
        %s325 = sand.u32 %s47, 1
        %s326 = scalar_lea.sflag [#allocation9], %s325
        %s327 = sand.u32 %s47, 1
        %s328 = smul.addr %s327, 1024
        %s329 = scalar_lea.vmem [#allocation8], %s328
        %p330 = pneg %p60
        %p331 = pneg %p57
        %p332 = scmp.lt.s32.totalorder %s39, 19
        %s333 = scalar_select %p332, %s39, 19
        %s334 = smul.addr %s333, 16
        %s335 = smul.addr %s334, 8
        %s336 = scalar_lea.vmem %s4, %s335
        %p337 = pneg %p86
        %p338 = pneg %p83
        %p339 = scmp.lt.s32.totalorder %s39, 19
        %s340 = scalar_select %p339, %s39, 19
        %s341 = scalar_lea.vmem %s5, %s340
        %p342 = pneg %p112
        %p343 = pneg %p109
        %p344 = scmp.lt.s32.totalorder %s39, 19
        %s345 = scalar_select %p344, %s39, 19
        %s346 = scalar_lea.vmem %s6, %s345
        %p347 = pneg %p138
        %p348 = pneg %p135
        %p349 = scmp.lt.s32.totalorder %s39, 19
        %s350 = scalar_select %p349, %s39, 19
        %s351 = scalar_lea.vmem %s7, %s350
        %p352 = pneg %p164
        %p353 = pneg %p161
        %p354 = scmp.lt.s32.totalorder %s39, 19
        %s355 = scalar_select %p354, %s39, 19
        %s356 = smul.addr %s355, 72
        %s357 = smul.addr %s356, 8
        %s358 = scalar_lea.vmem %s8, %s357
        %p359 = pneg %p190
        %p360 = pneg %p187
        %p361 = pneg %p211
        %p362 = pneg %p208
        %p363 = pneg %p232
        %p364 = pneg %p229
        %p365 = scmp.lt.s32.totalorder %s39, 19
        %s366 = scalar_select %p365, %s39, 19
        %s367 = smul.addr %s366, 16
        %s368 = smul.addr %s367, 8
        %s369 = scalar_lea.vmem %s4, %s368
        %p370 = scmp.lt.s32.totalorder %s39, 19
        %s371 = scalar_select %p370, %s39, 19
        %s372 = scalar_lea.vmem %s5, %s371
        %p373 = scmp.lt.s32.totalorder %s39, 19
        %s374 = scalar_select %p373, %s39, 19
        %s375 = scalar_lea.vmem %s6, %s374
        %p376 = scmp.lt.s32.totalorder %s39, 19
        %s377 = scalar_select %p376, %s39, 19
        %s378 = scalar_lea.vmem %s7, %s377
        %p379 = scmp.lt.s32.totalorder %s39, 19
        %s380 = scalar_select %p379, %s39, 19
        %s381 = smul.addr %s380, 72
        %s382 = smul.addr %s381, 8
        %s383 = scalar_lea.vmem %s8, %s382
        %p384 = scmp.eq.s32.totalorder %s39, 0
        // Predicated region
        $region53: #{tpu_custom_call.1} parent=47 // pred_check
          %p385 = pneg %p384
        $region54: #{tpu_custom_call.1} parent=47 // pred_check_branch
          %387 = sbr.rel (%p385) target = $region56
        $region55: #{tpu_custom_call.1} parent=47 // pred_region
          %v388 = vld [vmem:[%s9] sm:$0xff]
          %v389 = vld [vmem:[%s9 + $0x8] sm:$0xff]
          %v390 = vld [vmem:[%s9 + $0x10] sm:$0xff]
          %v391 = vld [vmem:[%s9 + $0x18] sm:$0xff]
          %v392 = vld [vmem:[%s9 + $0x20] sm:$0xff]
          %v393 = vld [vmem:[%s9 + $0x28] sm:$0xff]
          %v394 = vld [vmem:[%s9 + $0x30] sm:$0xff]
          %v395 = vld [vmem:[%s9 + $0x38] sm:$0xff]
          %v396 = vld [vmem:[%s9 + $0x40] sm:$0xff]
          %v397 = vld [vmem:[%s9 + $0x48] sm:$0xff]
          %v398 = vld [vmem:[%s9 + $0x50] sm:$0xff]
          %v399 = vld [vmem:[%s9 + $0x58] sm:$0xff]
          %v400 = vld [vmem:[%s9 + $0x60] sm:$0xff]
          %v401 = vld [vmem:[%s9 + $0x68] sm:$0xff]
          %v402 = vld [vmem:[%s9 + $0x70] sm:$0xff]
          %v403 = vld [vmem:[%s9 + $0x78] sm:$0xff]
          %v404 = vld [vmem:[%s9 + $0x80] sm:$0xff]
          %v405 = vld [vmem:[%s9 + $0x88] sm:$0xff]
          %v406 = vld [vmem:[%s9 + $0x90] sm:$0xff]
          %v407 = vld [vmem:[%s9 + $0x98] sm:$0xff]
          %v408 = vld [vmem:[%s9 + $0xa0] sm:$0xff]
          %v409 = vld [vmem:[%s9 + $0xa8] sm:$0xff]
          %v410 = vld [vmem:[%s9 + $0xb0] sm:$0xff]
          %v411 = vld [vmem:[%s9 + $0xb8] sm:$0xff]
          %v412 = vld [vmem:[%s9 + $0xc0] sm:$0xff]
          %v413 = vld [vmem:[%s9 + $0xc8] sm:$0xff]
          %v414 = vld [vmem:[%s9 + $0xd0] sm:$0xff]
          %v415 = vld [vmem:[%s9 + $0xd8] sm:$0xff]
          %v416 = vld [vmem:[%s9 + $0xe0] sm:$0xff]
          %v417 = vld [vmem:[%s9 + $0xe8] sm:$0xff]
          %v418 = vld [vmem:[%s9 + $0xf0] sm:$0xff]
          %v419 = vld [vmem:[%s9 + $0xf8] sm:$0xff]
          %v420 = vld [vmem:[%s9 + $0x100] sm:$0xff]
          %v421 = vld [vmem:[%s9 + $0x108] sm:$0xff]
          %v422 = vld [vmem:[%s9 + $0x110] sm:$0xff]
          %v423 = vld [vmem:[%s9 + $0x118] sm:$0xff]
          %v424 = vld [vmem:[%s9 + $0x120] sm:$0xff]
          %v425 = vld [vmem:[%s9 + $0x128] sm:$0xff]
          %v426 = vld [vmem:[%s9 + $0x130] sm:$0xff]
          %v427 = vld [vmem:[%s9 + $0x138] sm:$0xff]
          %v428 = vld [vmem:[%s9 + $0x140] sm:$0xff]
          %v429 = vld [vmem:[%s9 + $0x148] sm:$0xff]
          %v430 = vld [vmem:[%s9 + $0x150] sm:$0xff]
          %v431 = vld [vmem:[%s9 + $0x158] sm:$0xff]
          %v432 = vld [vmem:[%s9 + $0x160] sm:$0xff]
          %v433 = vld [vmem:[%s9 + $0x168] sm:$0xff]
          %v434 = vld [vmem:[%s9 + $0x170] sm:$0xff]
          %v435 = vld [vmem:[%s9 + $0x178] sm:$0xff]
          %v436 = vld [vmem:[%s9 + $0x180] sm:$0xff]
          %v437 = vld [vmem:[%s9 + $0x188] sm:$0xff]
          %v438 = vld [vmem:[%s9 + $0x190] sm:$0xff]
          %v439 = vld [vmem:[%s9 + $0x198] sm:$0xff]
          %v440 = vld [vmem:[%s9 + $0x1a0] sm:$0xff]
          %v441 = vld [vmem:[%s9 + $0x1a8] sm:$0xff]
          %v442 = vld [vmem:[%s9 + $0x1b0] sm:$0xff]
          %v443 = vld [vmem:[%s9 + $0x1b8] sm:$0xff]
          %v444 = vld [vmem:[%s9 + $0x1c0] sm:$0xff]
          %v445 = vld [vmem:[%s9 + $0x1c8] sm:$0xff]
          %v446 = vld [vmem:[%s9 + $0x1d0] sm:$0xff]
          %v447 = vld [vmem:[%s9 + $0x1d8] sm:$0xff]
          %v448 = vld [vmem:[%s9 + $0x1e0] sm:$0xff]
          %v449 = vld [vmem:[%s9 + $0x1e8] sm:$0xff]
          %v450 = vld [vmem:[%s9 + $0x1f0] sm:$0xff]
          %v451 = vld [vmem:[%s9 + $0x1f8] sm:$0xff]
          %v452 = vld [vmem:[%s9 + $0x200] sm:$0xff]
          %v453 = vld [vmem:[%s9 + $0x208] sm:$0xff]
          %v454 = vld [vmem:[%s9 + $0x210] sm:$0xff]
          %v455 = vld [vmem:[%s9 + $0x218] sm:$0xff]
          %v456 = vld [vmem:[%s9 + $0x220] sm:$0xff]
          %v457 = vld [vmem:[%s9 + $0x228] sm:$0xff]
          %v458 = vld [vmem:[%s9 + $0x230] sm:$0xff]
          %v459 = vld [vmem:[%s9 + $0x238] sm:$0xff]
          %460 = vst [vmem:[#allocation2] sm:$0xff] %v388
          %461 = vst [vmem:[#allocation2 + $0x8] sm:$0xff] %v389
          %462 = vst [vmem:[#allocation2 + $0x10] sm:$0xff] %v390
          %463 = vst [vmem:[#allocation2 + $0x18] sm:$0xff] %v391
          %464 = vst [vmem:[#allocation2 + $0x20] sm:$0xff] %v392
          %465 = vst [vmem:[#allocation2 + $0x28] sm:$0xff] %v393
          %466 = vst [vmem:[#allocation2 + $0x30] sm:$0xff] %v394
          %467 = vst [vmem:[#allocation2 + $0x38] sm:$0xff] %v395
          %468 = vst [vmem:[#allocation2 + $0x40] sm:$0xff] %v396
          %469 = vst [vmem:[#allocation2 + $0x48] sm:$0xff] %v397
          %470 = vst [vmem:[#allocation2 + $0x50] sm:$0xff] %v398
          %471 = vst [vmem:[#allocation2 + $0x58] sm:$0xff] %v399
          %472 = vst [vmem:[#allocation2 + $0x60] sm:$0xff] %v400
          %473 = vst [vmem:[#allocation2 + $0x68] sm:$0xff] %v401
          %474 = vst [vmem:[#allocation2 + $0x70] sm:$0xff] %v402
          %475 = vst [vmem:[#allocation2 + $0x78] sm:$0xff] %v403
          %476 = vst [vmem:[#allocation2 + $0x80] sm:$0xff] %v404
          %477 = vst [vmem:[#allocation2 + $0x88] sm:$0xff] %v405
          %478 = vst [vmem:[#allocation2 + $0x90] sm:$0xff] %v406
          %479 = vst [vmem:[#allocation2 + $0x98] sm:$0xff] %v407
          %480 = vst [vmem:[#allocation2 + $0xa0] sm:$0xff] %v408
          %481 = vst [vmem:[#allocation2 + $0xa8] sm:$0xff] %v409
          %482 = vst [vmem:[#allocation2 + $0xb0] sm:$0xff] %v410
          %483 = vst [vmem:[#allocation2 + $0xb8] sm:$0xff] %v411
          %484 = vst [vmem:[#allocation2 + $0xc0] sm:$0xff] %v412
          %485 = vst [vmem:[#allocation2 + $0xc8] sm:$0xff] %v413
          %486 = vst [vmem:[#allocation2 + $0xd0] sm:$0xff] %v414
          %487 = vst [vmem:[#allocation2 + $0xd8] sm:$0xff] %v415
          %488 = vst [vmem:[#allocation2 + $0xe0] sm:$0xff] %v416
          %489 = vst [vmem:[#allocation2 + $0xe8] sm:$0xff] %v417
          %490 = vst [vmem:[#allocation2 + $0xf0] sm:$0xff] %v418
          %491 = vst [vmem:[#allocation2 + $0xf8] sm:$0xff] %v419
          %492 = vst [vmem:[#allocation2 + $0x100] sm:$0xff] %v420
          %493 = vst [vmem:[#allocation2 + $0x108] sm:$0xff] %v421
          %494 = vst [vmem:[#allocation2 + $0x110] sm:$0xff] %v422
          %495 = vst [vmem:[#allocation2 + $0x118] sm:$0xff] %v423
          %496 = vst [vmem:[#allocation2 + $0x120] sm:$0xff] %v424
          %497 = vst [vmem:[#allocation2 + $0x128] sm:$0xff] %v425
          %498 = vst [vmem:[#allocation2 + $0x130] sm:$0xff] %v426
          %499 = vst [vmem:[#allocation2 + $0x138] sm:$0xff] %v427
          %500 = vst [vmem:[#allocation2 + $0x140] sm:$0xff] %v428
          %501 = vst [vmem:[#allocation2 + $0x148] sm:$0xff] %v429
          %502 = vst [vmem:[#allocation2 + $0x150] sm:$0xff] %v430
          %503 = vst [vmem:[#allocation2 + $0x158] sm:$0xff] %v431
          %504 = vst [vmem:[#allocation2 + $0x160] sm:$0xff] %v432
          %505 = vst [vmem:[#allocation2 + $0x168] sm:$0xff] %v433
          %506 = vst [vmem:[#allocation2 + $0x170] sm:$0xff] %v434
          %507 = vst [vmem:[#allocation2 + $0x178] sm:$0xff] %v435
          %508 = vst [vmem:[#allocation2 + $0x180] sm:$0xff] %v436
          %509 = vst [vmem:[#allocation2 + $0x188] sm:$0xff] %v437
          %510 = vst [vmem:[#allocation2 + $0x190] sm:$0xff] %v438
          %511 = vst [vmem:[#allocation2 + $0x198] sm:$0xff] %v439
          %512 = vst [vmem:[#allocation2 + $0x1a0] sm:$0xff] %v440
          %513 = vst [vmem:[#allocation2 + $0x1a8] sm:$0xff] %v441
          %514 = vst [vmem:[#allocation2 + $0x1b0] sm:$0xff] %v442
          %515 = vst [vmem:[#allocation2 + $0x1b8] sm:$0xff] %v443
          %516 = vst [vmem:[#allocation2 + $0x1c0] sm:$0xff] %v444
          %517 = vst [vmem:[#allocation2 + $0x1c8] sm:$0xff] %v445
          %518 = vst [vmem:[#allocation2 + $0x1d0] sm:$0xff] %v446
          %519 = vst [vmem:[#allocation2 + $0x1d8] sm:$0xff] %v447
          %520 = vst [vmem:[#allocation2 + $0x1e0] sm:$0xff] %v448
          %521 = vst [vmem:[#allocation2 + $0x1e8] sm:$0xff] %v449
          %522 = vst [vmem:[#allocation2 + $0x1f0] sm:$0xff] %v450
          %523 = vst [vmem:[#allocation2 + $0x1f8] sm:$0xff] %v451
          %524 = vst [vmem:[#allocation2 + $0x200] sm:$0xff] %v452
          %525 = vst [vmem:[#allocation2 + $0x208] sm:$0xff] %v453
          %526 = vst [vmem:[#allocation2 + $0x210] sm:$0xff] %v454
          %527 = vst [vmem:[#allocation2 + $0x218] sm:$0xff] %v455
          %528 = vst [vmem:[#allocation2 + $0x220] sm:$0xff] %v456
          %529 = vst [vmem:[#allocation2 + $0x228] sm:$0xff] %v457
          %530 = vst [vmem:[#allocation2 + $0x230] sm:$0xff] %v458
          %531 = vst [vmem:[#allocation2 + $0x238] sm:$0xff] %v459
          %v532 = vld [vmem:[%s9 + $0x240] sm:$0xff]
          %v533 = vld [vmem:[%s9 + $0x248] sm:$0xff]
          %v534 = vld [vmem:[%s9 + $0x250] sm:$0xff]
          %v535 = vld [vmem:[%s9 + $0x258] sm:$0xff]
          %v536 = vld [vmem:[%s9 + $0x260] sm:$0xff]
          %v537 = vld [vmem:[%s9 + $0x268] sm:$0xff]
          %v538 = vld [vmem:[%s9 + $0x270] sm:$0xff]
          %v539 = vld [vmem:[%s9 + $0x278] sm:$0xff]
          %v540 = vld [vmem:[%s9 + $0x280] sm:$0xff]
          %v541 = vld [vmem:[%s9 + $0x288] sm:$0xff]
          %v542 = vld [vmem:[%s9 + $0x290] sm:$0xff]
          %v543 = vld [vmem:[%s9 + $0x298] sm:$0xff]
          %v544 = vld [vmem:[%s9 + $0x2a0] sm:$0xff]
          %v545 = vld [vmem:[%s9 + $0x2a8] sm:$0xff]
          %v546 = vld [vmem:[%s9 + $0x2b0] sm:$0xff]
          %v547 = vld [vmem:[%s9 + $0x2b8] sm:$0xff]
          %v548 = vld [vmem:[%s9 + $0x2c0] sm:$0xff]
          %v549 = vld [vmem:[%s9 + $0x2c8] sm:$0xff]
          %v550 = vld [vmem:[%s9 + $0x2d0] sm:$0xff]
          %v551 = vld [vmem:[%s9 + $0x2d8] sm:$0xff]
          %v552 = vld [vmem:[%s9 + $0x2e0] sm:$0xff]
          %v553 = vld [vmem:[%s9 + $0x2e8] sm:$0xff]
          %v554 = vld [vmem:[%s9 + $0x2f0] sm:$0xff]
          %v555 = vld [vmem:[%s9 + $0x2f8] sm:$0xff]
          %v556 = vld [vmem:[%s9 + $0x300] sm:$0xff]
          %v557 = vld [vmem:[%s9 + $0x308] sm:$0xff]
          %v558 = vld [vmem:[%s9 + $0x310] sm:$0xff]
          %v559 = vld [vmem:[%s9 + $0x318] sm:$0xff]
          %v560 = vld [vmem:[%s9 + $0x320] sm:$0xff]
          %v561 = vld [vmem:[%s9 + $0x328] sm:$0xff]
          %v562 = vld [vmem:[%s9 + $0x330] sm:$0xff]
          %v563 = vld [vmem:[%s9 + $0x338] sm:$0xff]
          %v564 = vld [vmem:[%s9 + $0x340] sm:$0xff]
          %v565 = vld [vmem:[%s9 + $0x348] sm:$0xff]
          %v566 = vld [vmem:[%s9 + $0x350] sm:$0xff]
          %v567 = vld [vmem:[%s9 + $0x358] sm:$0xff]
          %v568 = vld [vmem:[%s9 + $0x360] sm:$0xff]
          %v569 = vld [vmem:[%s9 + $0x368] sm:$0xff]
          %v570 = vld [vmem:[%s9 + $0x370] sm:$0xff]
          %v571 = vld [vmem:[%s9 + $0x378] sm:$0xff]
          %v572 = vld [vmem:[%s9 + $0x380] sm:$0xff]
          %v573 = vld [vmem:[%s9 + $0x388] sm:$0xff]
          %v574 = vld [vmem:[%s9 + $0x390] sm:$0xff]
          %v575 = vld [vmem:[%s9 + $0x398] sm:$0xff]
          %v576 = vld [vmem:[%s9 + $0x3a0] sm:$0xff]
          %v577 = vld [vmem:[%s9 + $0x3a8] sm:$0xff]
          %v578 = vld [vmem:[%s9 + $0x3b0] sm:$0xff]
          %v579 = vld [vmem:[%s9 + $0x3b8] sm:$0xff]
          %v580 = vld [vmem:[%s9 + $0x3c0] sm:$0xff]
          %v581 = vld [vmem:[%s9 + $0x3c8] sm:$0xff]
          %v582 = vld [vmem:[%s9 + $0x3d0] sm:$0xff]
          %v583 = vld [vmem:[%s9 + $0x3d8] sm:$0xff]
          %v584 = vld [vmem:[%s9 + $0x3e0] sm:$0xff]
          %v585 = vld [vmem:[%s9 + $0x3e8] sm:$0xff]
          %v586 = vld [vmem:[%s9 + $0x3f0] sm:$0xff]
          %v587 = vld [vmem:[%s9 + $0x3f8] sm:$0xff]
          %v588 = vld [vmem:[%s9 + $0x400] sm:$0xff]
          %v589 = vld [vmem:[%s9 + $0x408] sm:$0xff]
          %v590 = vld [vmem:[%s9 + $0x410] sm:$0xff]
          %v591 = vld [vmem:[%s9 + $0x418] sm:$0xff]
          %v592 = vld [vmem:[%s9 + $0x420] sm:$0xff]
          %v593 = vld [vmem:[%s9 + $0x428] sm:$0xff]
          %v594 = vld [vmem:[%s9 + $0x430] sm:$0xff]
          %v595 = vld [vmem:[%s9 + $0x438] sm:$0xff]
          %v596 = vld [vmem:[%s9 + $0x440] sm:$0xff]
          %v597 = vld [vmem:[%s9 + $0x448] sm:$0xff]
          %v598 = vld [vmem:[%s9 + $0x450] sm:$0xff]
          %v599 = vld [vmem:[%s9 + $0x458] sm:$0xff]
          %v600 = vld [vmem:[%s9 + $0x460] sm:$0xff]
          %v601 = vld [vmem:[%s9 + $0x468] sm:$0xff]
          %v602 = vld [vmem:[%s9 + $0x470] sm:$0xff]
          %v603 = vld [vmem:[%s9 + $0x478] sm:$0xff]
          %604 = vst [vmem:[#allocation2 + $0x240] sm:$0xff] %v532
          %605 = vst [vmem:[#allocation2 + $0x248] sm:$0xff] %v533
          %606 = vst [vmem:[#allocation2 + $0x250] sm:$0xff] %v534
          %607 = vst [vmem:[#allocation2 + $0x258] sm:$0xff] %v535
          %608 = vst [vmem:[#allocation2 + $0x260] sm:$0xff] %v536
          %609 = vst [vmem:[#allocation2 + $0x268] sm:$0xff] %v537
          %610 = vst [vmem:[#allocation2 + $0x270] sm:$0xff] %v538
          %611 = vst [vmem:[#allocation2 + $0x278] sm:$0xff] %v539
          %612 = vst [vmem:[#allocation2 + $0x280] sm:$0xff] %v540
          %613 = vst [vmem:[#allocation2 + $0x288] sm:$0xff] %v541
          %614 = vst [vmem:[#allocation2 + $0x290] sm:$0xff] %v542
          %615 = vst [vmem:[#allocation2 + $0x298] sm:$0xff] %v543
          %616 = vst [vmem:[#allocation2 + $0x2a0] sm:$0xff] %v544
          %617 = vst [vmem:[#allocation2 + $0x2a8] sm:$0xff] %v545
          %618 = vst [vmem:[#allocation2 + $0x2b0] sm:$0xff] %v546
          %619 = vst [vmem:[#allocation2 + $0x2b8] sm:$0xff] %v547
          %620 = vst [vmem:[#allocation2 + $0x2c0] sm:$0xff] %v548
          %621 = vst [vmem:[#allocation2 + $0x2c8] sm:$0xff] %v549
          %622 = vst [vmem:[#allocation2 + $0x2d0] sm:$0xff] %v550
          %623 = vst [vmem:[#allocation2 + $0x2d8] sm:$0xff] %v551
          %624 = vst [vmem:[#allocation2 + $0x2e0] sm:$0xff] %v552
          %625 = vst [vmem:[#allocation2 + $0x2e8] sm:$0xff] %v553
          %626 = vst [vmem:[#allocation2 + $0x2f0] sm:$0xff] %v554
          %627 = vst [vmem:[#allocation2 + $0x2f8] sm:$0xff] %v555
          %628 = vst [vmem:[#allocation2 + $0x300] sm:$0xff] %v556
          %629 = vst [vmem:[#allocation2 + $0x308] sm:$0xff] %v557
          %630 = vst [vmem:[#allocation2 + $0x310] sm:$0xff] %v558
          %631 = vst [vmem:[#allocation2 + $0x318] sm:$0xff] %v559
          %632 = vst [vmem:[#allocation2 + $0x320] sm:$0xff] %v560
          %633 = vst [vmem:[#allocation2 + $0x328] sm:$0xff] %v561
          %634 = vst [vmem:[#allocation2 + $0x330] sm:$0xff] %v562
          %635 = vst [vmem:[#allocation2 + $0x338] sm:$0xff] %v563
          %636 = vst [vmem:[#allocation2 + $0x340] sm:$0xff] %v564
          %637 = vst [vmem:[#allocation2 + $0x348] sm:$0xff] %v565
          %638 = vst [vmem:[#allocation2 + $0x350] sm:$0xff] %v566
          %639 = vst [vmem:[#allocation2 + $0x358] sm:$0xff] %v567
          %640 = vst [vmem:[#allocation2 + $0x360] sm:$0xff] %v568
          %641 = vst [vmem:[#allocation2 + $0x368] sm:$0xff] %v569
          %642 = vst [vmem:[#allocation2 + $0x370] sm:$0xff] %v570
          %643 = vst [vmem:[#allocation2 + $0x378] sm:$0xff] %v571
          %644 = vst [vmem:[#allocation2 + $0x380] sm:$0xff] %v572
          %645 = vst [vmem:[#allocation2 + $0x388] sm:$0xff] %v573
          %646 = vst [vmem:[#allocation2 + $0x390] sm:$0xff] %v574
          %647 = vst [vmem:[#allocation2 + $0x398] sm:$0xff] %v575
          %648 = vst [vmem:[#allocation2 + $0x3a0] sm:$0xff] %v576
          %649 = vst [vmem:[#allocation2 + $0x3a8] sm:$0xff] %v577
          %650 = vst [vmem:[#allocation2 + $0x3b0] sm:$0xff] %v578
          %651 = vst [vmem:[#allocation2 + $0x3b8] sm:$0xff] %v579
          %652 = vst [vmem:[#allocation2 + $0x3c0] sm:$0xff] %v580
          %653 = vst [vmem:[#allocation2 + $0x3c8] sm:$0xff] %v581
          %654 = vst [vmem:[#allocation2 + $0x3d0] sm:$0xff] %v582
          %655 = vst [vmem:[#allocation2 + $0x3d8] sm:$0xff] %v583
          %656 = vst [vmem:[#allocation2 + $0x3e0] sm:$0xff] %v584
          %657 = vst [vmem:[#allocation2 + $0x3e8] sm:$0xff] %v585
          %658 = vst [vmem:[#allocation2 + $0x3f0] sm:$0xff] %v586
          %659 = vst [vmem:[#allocation2 + $0x3f8] sm:$0xff] %v587
          %660 = vst [vmem:[#allocation2 + $0x400] sm:$0xff] %v588
          %661 = vst [vmem:[#allocation2 + $0x408] sm:$0xff] %v589
          %662 = vst [vmem:[#allocation2 + $0x410] sm:$0xff] %v590
          %663 = vst [vmem:[#allocation2 + $0x418] sm:$0xff] %v591
          %664 = vst [vmem:[#allocation2 + $0x420] sm:$0xff] %v592
          %665 = vst [vmem:[#allocation2 + $0x428] sm:$0xff] %v593
          %666 = vst [vmem:[#allocation2 + $0x430] sm:$0xff] %v594
          %667 = vst [vmem:[#allocation2 + $0x438] sm:$0xff] %v595
          %668 = vst [vmem:[#allocation2 + $0x440] sm:$0xff] %v596
          %669 = vst [vmem:[#allocation2 + $0x448] sm:$0xff] %v597
          %670 = vst [vmem:[#allocation2 + $0x450] sm:$0xff] %v598
          %671 = vst [vmem:[#allocation2 + $0x458] sm:$0xff] %v599
          %672 = vst [vmem:[#allocation2 + $0x460] sm:$0xff] %v600
          %673 = vst [vmem:[#allocation2 + $0x468] sm:$0xff] %v601
          %674 = vst [vmem:[#allocation2 + $0x470] sm:$0xff] %v602
          %675 = vst [vmem:[#allocation2 + $0x478] sm:$0xff] %v603
          %v676 = vld [vmem:[%s9 + $0x480] sm:$0xff]
          %v677 = vld [vmem:[%s9 + $0x488] sm:$0xff]
          %v678 = vld [vmem:[%s9 + $0x490] sm:$0xff]
          %v679 = vld [vmem:[%s9 + $0x498] sm:$0xff]
          %v680 = vld [vmem:[%s9 + $0x4a0] sm:$0xff]
          %v681 = vld [vmem:[%s9 + $0x4a8] sm:$0xff]
          %v682 = vld [vmem:[%s9 + $0x4b0] sm:$0xff]
          %v683 = vld [vmem:[%s9 + $0x4b8] sm:$0xff]
          %v684 = vld [vmem:[%s9 + $0x4c0] sm:$0xff]
          %v685 = vld [vmem:[%s9 + $0x4c8] sm:$0xff]
          %v686 = vld [vmem:[%s9 + $0x4d0] sm:$0xff]
          %v687 = vld [vmem:[%s9 + $0x4d8] sm:$0xff]
          %v688 = vld [vmem:[%s9 + $0x4e0] sm:$0xff]
          %v689 = vld [vmem:[%s9 + $0x4e8] sm:$0xff]
          %v690 = vld [vmem:[%s9 + $0x4f0] sm:$0xff]
          %v691 = vld [vmem:[%s9 + $0x4f8] sm:$0xff]
          %v692 = vld [vmem:[%s9 + $0x500] sm:$0xff]
          %v693 = vld [vmem:[%s9 + $0x508] sm:$0xff]
          %v694 = vld [vmem:[%s9 + $0x510] sm:$0xff]
          %v695 = vld [vmem:[%s9 + $0x518] sm:$0xff]
          %v696 = vld [vmem:[%s9 + $0x520] sm:$0xff]
          %v697 = vld [vmem:[%s9 + $0x528] sm:$0xff]
          %v698 = vld [vmem:[%s9 + $0x530] sm:$0xff]
          %v699 = vld [vmem:[%s9 + $0x538] sm:$0xff]
          %v700 = vld [vmem:[%s9 + $0x540] sm:$0xff]
          %v701 = vld [vmem:[%s9 + $0x548] sm:$0xff]
          %v702 = vld [vmem:[%s9 + $0x550] sm:$0xff]
          %v703 = vld [vmem:[%s9 + $0x558] sm:$0xff]
          %v704 = vld [vmem:[%s9 + $0x560] sm:$0xff]
          %v705 = vld [vmem:[%s9 + $0x568] sm:$0xff]
          %v706 = vld [vmem:[%s9 + $0x570] sm:$0xff]
          %v707 = vld [vmem:[%s9 + $0x578] sm:$0xff]
          %v708 = vld [vmem:[%s9 + $0x580] sm:$0xff]
          %v709 = vld [vmem:[%s9 + $0x588] sm:$0xff]
          %v710 = vld [vmem:[%s9 + $0x590] sm:$0xff]
          %v711 = vld [vmem:[%s9 + $0x598] sm:$0xff]
          %v712 = vld [vmem:[%s9 + $0x5a0] sm:$0xff]
          %v713 = vld [vmem:[%s9 + $0x5a8] sm:$0xff]
          %v714 = vld [vmem:[%s9 + $0x5b0] sm:$0xff]
          %v715 = vld [vmem:[%s9 + $0x5b8] sm:$0xff]
          %v716 = vld [vmem:[%s9 + $0x5c0] sm:$0xff]
          %v717 = vld [vmem:[%s9 + $0x5c8] sm:$0xff]
          %v718 = vld [vmem:[%s9 + $0x5d0] sm:$0xff]
          %v719 = vld [vmem:[%s9 + $0x5d8] sm:$0xff]
          %v720 = vld [vmem:[%s9 + $0x5e0] sm:$0xff]
          %v721 = vld [vmem:[%s9 + $0x5e8] sm:$0xff]
          %v722 = vld [vmem:[%s9 + $0x5f0] sm:$0xff]
          %v723 = vld [vmem:[%s9 + $0x5f8] sm:$0xff]
          %v724 = vld [vmem:[%s9 + $0x600] sm:$0xff]
          %v725 = vld [vmem:[%s9 + $0x608] sm:$0xff]
          %v726 = vld [vmem:[%s9 + $0x610] sm:$0xff]
          %v727 = vld [vmem:[%s9 + $0x618] sm:$0xff]
          %v728 = vld [vmem:[%s9 + $0x620] sm:$0xff]
          %v729 = vld [vmem:[%s9 + $0x628] sm:$0xff]
          %v730 = vld [vmem:[%s9 + $0x630] sm:$0xff]
          %v731 = vld [vmem:[%s9 + $0x638] sm:$0xff]
          %v732 = vld [vmem:[%s9 + $0x640] sm:$0xff]
          %v733 = vld [vmem:[%s9 + $0x648] sm:$0xff]
          %v734 = vld [vmem:[%s9 + $0x650] sm:$0xff]
          %v735 = vld [vmem:[%s9 + $0x658] sm:$0xff]
          %v736 = vld [vmem:[%s9 + $0x660] sm:$0xff]
          %v737 = vld [vmem:[%s9 + $0x668] sm:$0xff]
          %v738 = vld [vmem:[%s9 + $0x670] sm:$0xff]
          %v739 = vld [vmem:[%s9 + $0x678] sm:$0xff]
          %v740 = vld [vmem:[%s9 + $0x680] sm:$0xff]
          %v741 = vld [vmem:[%s9 + $0x688] sm:$0xff]
          %v742 = vld [vmem:[%s9 + $0x690] sm:$0xff]
          %v743 = vld [vmem:[%s9 + $0x698] sm:$0xff]
          %v744 = vld [vmem:[%s9 + $0x6a0] sm:$0xff]
          %v745 = vld [vmem:[%s9 + $0x6a8] sm:$0xff]
          %v746 = vld [vmem:[%s9 + $0x6b0] sm:$0xff]
          %v747 = vld [vmem:[%s9 + $0x6b8] sm:$0xff]
          %748 = vst [vmem:[#allocation2 + $0x480] sm:$0xff] %v676
          %749 = vst [vmem:[#allocation2 + $0x488] sm:$0xff] %v677
          %750 = vst [vmem:[#allocation2 + $0x490] sm:$0xff] %v678
          %751 = vst [vmem:[#allocation2 + $0x498] sm:$0xff] %v679
          %752 = vst [vmem:[#allocation2 + $0x4a0] sm:$0xff] %v680
          %753 = vst [vmem:[#allocation2 + $0x4a8] sm:$0xff] %v681
          %754 = vst [vmem:[#allocation2 + $0x4b0] sm:$0xff] %v682
          %755 = vst [vmem:[#allocation2 + $0x4b8] sm:$0xff] %v683
          %756 = vst [vmem:[#allocation2 + $0x4c0] sm:$0xff] %v684
          %757 = vst [vmem:[#allocation2 + $0x4c8] sm:$0xff] %v685
          %758 = vst [vmem:[#allocation2 + $0x4d0] sm:$0xff] %v686
          %759 = vst [vmem:[#allocation2 + $0x4d8] sm:$0xff] %v687
          %760 = vst [vmem:[#allocation2 + $0x4e0] sm:$0xff] %v688
          %761 = vst [vmem:[#allocation2 + $0x4e8] sm:$0xff] %v689
          %762 = vst [vmem:[#allocation2 + $0x4f0] sm:$0xff] %v690
          %763 = vst [vmem:[#allocation2 + $0x4f8] sm:$0xff] %v691
          %764 = vst [vmem:[#allocation2 + $0x500] sm:$0xff] %v692
          %765 = vst [vmem:[#allocation2 + $0x508] sm:$0xff] %v693
          %766 = vst [vmem:[#allocation2 + $0x510] sm:$0xff] %v694
          %767 = vst [vmem:[#allocation2 + $0x518] sm:$0xff] %v695
          %768 = vst [vmem:[#allocation2 + $0x520] sm:$0xff] %v696
          %769 = vst [vmem:[#allocation2 + $0x528] sm:$0xff] %v697
          %770 = vst [vmem:[#allocation2 + $0x530] sm:$0xff] %v698
          %771 = vst [vmem:[#allocation2 + $0x538] sm:$0xff] %v699
          %772 = vst [vmem:[#allocation2 + $0x540] sm:$0xff] %v700
          %773 = vst [vmem:[#allocation2 + $0x548] sm:$0xff] %v701
          %774 = vst [vmem:[#allocation2 + $0x550] sm:$0xff] %v702
          %775 = vst [vmem:[#allocation2 + $0x558] sm:$0xff] %v703
          %776 = vst [vmem:[#allocation2 + $0x560] sm:$0xff] %v704
          %777 = vst [vmem:[#allocation2 + $0x568] sm:$0xff] %v705
          %778 = vst [vmem:[#allocation2 + $0x570] sm:$0xff] %v706
          %779 = vst [vmem:[#allocation2 + $0x578] sm:$0xff] %v707
          %780 = vst [vmem:[#allocation2 + $0x580] sm:$0xff] %v708
          %781 = vst [vmem:[#allocation2 + $0x588] sm:$0xff] %v709
          %782 = vst [vmem:[#allocation2 + $0x590] sm:$0xff] %v710
          %783 = vst [vmem:[#allocation2 + $0x598] sm:$0xff] %v711
          %784 = vst [vmem:[#allocation2 + $0x5a0] sm:$0xff] %v712
          %785 = vst [vmem:[#allocation2 + $0x5a8] sm:$0xff] %v713
          %786 = vst [vmem:[#allocation2 + $0x5b0] sm:$0xff] %v714
          %787 = vst [vmem:[#allocation2 + $0x5b8] sm:$0xff] %v715
          %788 = vst [vmem:[#allocation2 + $0x5c0] sm:$0xff] %v716
          %789 = vst [vmem:[#allocation2 + $0x5c8] sm:$0xff] %v717
          %790 = vst [vmem:[#allocation2 + $0x5d0] sm:$0xff] %v718
          %791 = vst [vmem:[#allocation2 + $0x5d8] sm:$0xff] %v719
          %792 = vst [vmem:[#allocation2 + $0x5e0] sm:$0xff] %v720
          %793 = vst [vmem:[#allocation2 + $0x5e8] sm:$0xff] %v721
          %794 = vst [vmem:[#allocation2 + $0x5f0] sm:$0xff] %v722
          %795 = vst [vmem:[#allocation2 + $0x5f8] sm:$0xff] %v723
          %796 = vst [vmem:[#allocation2 + $0x600] sm:$0xff] %v724
          %797 = vst [vmem:[#allocation2 + $0x608] sm:$0xff] %v725
          %798 = vst [vmem:[#allocation2 + $0x610] sm:$0xff] %v726
          %799 = vst [vmem:[#allocation2 + $0x618] sm:$0xff] %v727
          %800 = vst [vmem:[#allocation2 + $0x620] sm:$0xff] %v728
          %801 = vst [vmem:[#allocation2 + $0x628] sm:$0xff] %v729
          %802 = vst [vmem:[#allocation2 + $0x630] sm:$0xff] %v730
          %803 = vst [vmem:[#allocation2 + $0x638] sm:$0xff] %v731
          %804 = vst [vmem:[#allocation2 + $0x640] sm:$0xff] %v732
          %805 = vst [vmem:[#allocation2 + $0x648] sm:$0xff] %v733
          %806 = vst [vmem:[#allocation2 + $0x650] sm:$0xff] %v734
          %807 = vst [vmem:[#allocation2 + $0x658] sm:$0xff] %v735
          %808 = vst [vmem:[#allocation2 + $0x660] sm:$0xff] %v736
          %809 = vst [vmem:[#allocation2 + $0x668] sm:$0xff] %v737
          %810 = vst [vmem:[#allocation2 + $0x670] sm:$0xff] %v738
          %811 = vst [vmem:[#allocation2 + $0x678] sm:$0xff] %v739
          %812 = vst [vmem:[#allocation2 + $0x680] sm:$0xff] %v740
          %813 = vst [vmem:[#allocation2 + $0x688] sm:$0xff] %v741
          %814 = vst [vmem:[#allocation2 + $0x690] sm:$0xff] %v742
          %815 = vst [vmem:[#allocation2 + $0x698] sm:$0xff] %v743
          %816 = vst [vmem:[#allocation2 + $0x6a0] sm:$0xff] %v744
          %817 = vst [vmem:[#allocation2 + $0x6a8] sm:$0xff] %v745
          %818 = vst [vmem:[#allocation2 + $0x6b0] sm:$0xff] %v746
          %819 = vst [vmem:[#allocation2 + $0x6b8] sm:$0xff] %v747
          %v820 = vld [vmem:[%s9 + $0x6c0] sm:$0xff]
          %v821 = vld [vmem:[%s9 + $0x6c8] sm:$0xff]
          %v822 = vld [vmem:[%s9 + $0x6d0] sm:$0xff]
          %v823 = vld [vmem:[%s9 + $0x6d8] sm:$0xff]
          %v824 = vld [vmem:[%s9 + $0x6e0] sm:$0xff]
          %v825 = vld [vmem:[%s9 + $0x6e8] sm:$0xff]
          %v826 = vld [vmem:[%s9 + $0x6f0] sm:$0xff]
          %v827 = vld [vmem:[%s9 + $0x6f8] sm:$0xff]
          %v828 = vld [vmem:[%s9 + $0x700] sm:$0xff]
          %v829 = vld [vmem:[%s9 + $0x708] sm:$0xff]
          %v830 = vld [vmem:[%s9 + $0x710] sm:$0xff]
          %v831 = vld [vmem:[%s9 + $0x718] sm:$0xff]
          %v832 = vld [vmem:[%s9 + $0x720] sm:$0xff]
          %v833 = vld [vmem:[%s9 + $0x728] sm:$0xff]
          %v834 = vld [vmem:[%s9 + $0x730] sm:$0xff]
          %v835 = vld [vmem:[%s9 + $0x738] sm:$0xff]
          %v836 = vld [vmem:[%s9 + $0x740] sm:$0xff]
          %v837 = vld [vmem:[%s9 + $0x748] sm:$0xff]
          %v838 = vld [vmem:[%s9 + $0x750] sm:$0xff]
          %v839 = vld [vmem:[%s9 + $0x758] sm:$0xff]
          %v840 = vld [vmem:[%s9 + $0x760] sm:$0xff]
          %v841 = vld [vmem:[%s9 + $0x768] sm:$0xff]
          %v842 = vld [vmem:[%s9 + $0x770] sm:$0xff]
          %v843 = vld [vmem:[%s9 + $0x778] sm:$0xff]
          %v844 = vld [vmem:[%s9 + $0x780] sm:$0xff]
          %v845 = vld [vmem:[%s9 + $0x788] sm:$0xff]
          %v846 = vld [vmem:[%s9 + $0x790] sm:$0xff]
          %v847 = vld [vmem:[%s9 + $0x798] sm:$0xff]
          %v848 = vld [vmem:[%s9 + $0x7a0] sm:$0xff]
          %v849 = vld [vmem:[%s9 + $0x7a8] sm:$0xff]
          %v850 = vld [vmem:[%s9 + $0x7b0] sm:$0xff]
          %v851 = vld [vmem:[%s9 + $0x7b8] sm:$0xff]
          %v852 = vld [vmem:[%s9 + $0x7c0] sm:$0xff]
          %v853 = vld [vmem:[%s9 + $0x7c8] sm:$0xff]
          %v854 = vld [vmem:[%s9 + $0x7d0] sm:$0xff]
          %v855 = vld [vmem:[%s9 + $0x7d8] sm:$0xff]
          %v856 = vld [vmem:[%s9 + $0x7e0] sm:$0xff]
          %v857 = vld [vmem:[%s9 + $0x7e8] sm:$0xff]
          %v858 = vld [vmem:[%s9 + $0x7f0] sm:$0xff]
          %v859 = vld [vmem:[%s9 + $0x7f8] sm:$0xff]
          %v860 = vld [vmem:[%s9 + $0x800] sm:$0xff]
          %v861 = vld [vmem:[%s9 + $0x808] sm:$0xff]
          %v862 = vld [vmem:[%s9 + $0x810] sm:$0xff]
          %v863 = vld [vmem:[%s9 + $0x818] sm:$0xff]
          %v864 = vld [vmem:[%s9 + $0x820] sm:$0xff]
          %v865 = vld [vmem:[%s9 + $0x828] sm:$0xff]
          %v866 = vld [vmem:[%s9 + $0x830] sm:$0xff]
          %v867 = vld [vmem:[%s9 + $0x838] sm:$0xff]
          %v868 = vld [vmem:[%s9 + $0x840] sm:$0xff]
          %v869 = vld [vmem:[%s9 + $0x848] sm:$0xff]
          %v870 = vld [vmem:[%s9 + $0x850] sm:$0xff]
          %v871 = vld [vmem:[%s9 + $0x858] sm:$0xff]
          %v872 = vld [vmem:[%s9 + $0x860] sm:$0xff]
          %v873 = vld [vmem:[%s9 + $0x868] sm:$0xff]
          %v874 = vld [vmem:[%s9 + $0x870] sm:$0xff]
          %v875 = vld [vmem:[%s9 + $0x878] sm:$0xff]
          %v876 = vld [vmem:[%s9 + $0x880] sm:$0xff]
          %v877 = vld [vmem:[%s9 + $0x888] sm:$0xff]
          %v878 = vld [vmem:[%s9 + $0x890] sm:$0xff]
          %v879 = vld [vmem:[%s9 + $0x898] sm:$0xff]
          %v880 = vld [vmem:[%s9 + $0x8a0] sm:$0xff]
          %v881 = vld [vmem:[%s9 + $0x8a8] sm:$0xff]
          %v882 = vld [vmem:[%s9 + $0x8b0] sm:$0xff]
          %v883 = vld [vmem:[%s9 + $0x8b8] sm:$0xff]
          %v884 = vld [vmem:[%s9 + $0x8c0] sm:$0xff]
          %v885 = vld [vmem:[%s9 + $0x8c8] sm:$0xff]
          %v886 = vld [vmem:[%s9 + $0x8d0] sm:$0xff]
          %v887 = vld [vmem:[%s9 + $0x8d8] sm:$0xff]
          %v888 = vld [vmem:[%s9 + $0x8e0] sm:$0xff]
          %v889 = vld [vmem:[%s9 + $0x8e8] sm:$0xff]
          %v890 = vld [vmem:[%s9 + $0x8f0] sm:$0xff]
          %v891 = vld [vmem:[%s9 + $0x8f8] sm:$0xff]
          %892 = vst [vmem:[#allocation2 + $0x6c0] sm:$0xff] %v820
          %893 = vst [vmem:[#allocation2 + $0x6c8] sm:$0xff] %v821
          %894 = vst [vmem:[#allocation2 + $0x6d0] sm:$0xff] %v822
          %895 = vst [vmem:[#allocation2 + $0x6d8] sm:$0xff] %v823
          %896 = vst [vmem:[#allocation2 + $0x6e0] sm:$0xff] %v824
          %897 = vst [vmem:[#allocation2 + $0x6e8] sm:$0xff] %v825
          %898 = vst [vmem:[#allocation2 + $0x6f0] sm:$0xff] %v826
          %899 = vst [vmem:[#allocation2 + $0x6f8] sm:$0xff] %v827
          %900 = vst [vmem:[#allocation2 + $0x700] sm:$0xff] %v828
          %901 = vst [vmem:[#allocation2 + $0x708] sm:$0xff] %v829
          %902 = vst [vmem:[#allocation2 + $0x710] sm:$0xff] %v830
          %903 = vst [vmem:[#allocation2 + $0x718] sm:$0xff] %v831
          %904 = vst [vmem:[#allocation2 + $0x720] sm:$0xff] %v832
          %905 = vst [vmem:[#allocation2 + $0x728] sm:$0xff] %v833
          %906 = vst [vmem:[#allocation2 + $0x730] sm:$0xff] %v834
          %907 = vst [vmem:[#allocation2 + $0x738] sm:$0xff] %v835
          %908 = vst [vmem:[#allocation2 + $0x740] sm:$0xff] %v836
          %909 = vst [vmem:[#allocation2 + $0x748] sm:$0xff] %v837
          %910 = vst [vmem:[#allocation2 + $0x750] sm:$0xff] %v838
          %911 = vst [vmem:[#allocation2 + $0x758] sm:$0xff] %v839
          %912 = vst [vmem:[#allocation2 + $0x760] sm:$0xff] %v840
          %913 = vst [vmem:[#allocation2 + $0x768] sm:$0xff] %v841
          %914 = vst [vmem:[#allocation2 + $0x770] sm:$0xff] %v842
          %915 = vst [vmem:[#allocation2 + $0x778] sm:$0xff] %v843
          %916 = vst [vmem:[#allocation2 + $0x780] sm:$0xff] %v844
          %917 = vst [vmem:[#allocation2 + $0x788] sm:$0xff] %v845
          %918 = vst [vmem:[#allocation2 + $0x790] sm:$0xff] %v846
          %919 = vst [vmem:[#allocation2 + $0x798] sm:$0xff] %v847
          %920 = vst [vmem:[#allocation2 + $0x7a0] sm:$0xff] %v848
          %921 = vst [vmem:[#allocation2 + $0x7a8] sm:$0xff] %v849
          %922 = vst [vmem:[#allocation2 + $0x7b0] sm:$0xff] %v850
          %923 = vst [vmem:[#allocation2 + $0x7b8] sm:$0xff] %v851
          %924 = vst [vmem:[#allocation2 + $0x7c0] sm:$0xff] %v852
          %925 = vst [vmem:[#allocation2 + $0x7c8] sm:$0xff] %v853
          %926 = vst [vmem:[#allocation2 + $0x7d0] sm:$0xff] %v854
          %927 = vst [vmem:[#allocation2 + $0x7d8] sm:$0xff] %v855
          %928 = vst [vmem:[#allocation2 + $0x7e0] sm:$0xff] %v856
          %929 = vst [vmem:[#allocation2 + $0x7e8] sm:$0xff] %v857
          %930 = vst [vmem:[#allocation2 + $0x7f0] sm:$0xff] %v858
          %931 = vst [vmem:[#allocation2 + $0x7f8] sm:$0xff] %v859
          %932 = vst [vmem:[#allocation2 + $0x800] sm:$0xff] %v860
          %933 = vst [vmem:[#allocation2 + $0x808] sm:$0xff] %v861
          %934 = vst [vmem:[#allocation2 + $0x810] sm:$0xff] %v862
          %935 = vst [vmem:[#allocation2 + $0x818] sm:$0xff] %v863
          %936 = vst [vmem:[#allocation2 + $0x820] sm:$0xff] %v864
          %937 = vst [vmem:[#allocation2 + $0x828] sm:$0xff] %v865
          %938 = vst [vmem:[#allocation2 + $0x830] sm:$0xff] %v866
          %939 = vst [vmem:[#allocation2 + $0x838] sm:$0xff] %v867
          %940 = vst [vmem:[#allocation2 + $0x840] sm:$0xff] %v868
          %941 = vst [vmem:[#allocation2 + $0x848] sm:$0xff] %v869
          %942 = vst [vmem:[#allocation2 + $0x850] sm:$0xff] %v870
          %943 = vst [vmem:[#allocation2 + $0x858] sm:$0xff] %v871
          %944 = vst [vmem:[#allocation2 + $0x860] sm:$0xff] %v872
          %945 = vst [vmem:[#allocation2 + $0x868] sm:$0xff] %v873
          %946 = vst [vmem:[#allocation2 + $0x870] sm:$0xff] %v874
          %947 = vst [vmem:[#allocation2 + $0x878] sm:$0xff] %v875
          %948 = vst [vmem:[#allocation2 + $0x880] sm:$0xff] %v876
          %949 = vst [vmem:[#allocation2 + $0x888] sm:$0xff] %v877
          %950 = vst [vmem:[#allocation2 + $0x890] sm:$0xff] %v878
          %951 = vst [vmem:[#allocation2 + $0x898] sm:$0xff] %v879
          %952 = vst [vmem:[#allocation2 + $0x8a0] sm:$0xff] %v880
          %953 = vst [vmem:[#allocation2 + $0x8a8] sm:$0xff] %v881
          %954 = vst [vmem:[#allocation2 + $0x8b0] sm:$0xff] %v882
          %955 = vst [vmem:[#allocation2 + $0x8b8] sm:$0xff] %v883
          %956 = vst [vmem:[#allocation2 + $0x8c0] sm:$0xff] %v884
          %957 = vst [vmem:[#allocation2 + $0x8c8] sm:$0xff] %v885
          %958 = vst [vmem:[#allocation2 + $0x8d0] sm:$0xff] %v886
          %959 = vst [vmem:[#allocation2 + $0x8d8] sm:$0xff] %v887
          %960 = vst [vmem:[#allocation2 + $0x8e0] sm:$0xff] %v888
          %961 = vst [vmem:[#allocation2 + $0x8e8] sm:$0xff] %v889
          %962 = vst [vmem:[#allocation2 + $0x8f0] sm:$0xff] %v890
          %963 = vst [vmem:[#allocation2 + $0x8f8] sm:$0xff] %v891
          %964 = vst [vmem:[#allocation2 + $0x900] sm:$0xff] 0.0
          %965 = vst [vmem:[#allocation2 + $0x908] sm:$0xff] 0.0
          %966 = vst [vmem:[#allocation2 + $0x910] sm:$0xff] 0.0
          %967 = vst [vmem:[#allocation2 + $0x918] sm:$0xff] 0.0
          %968 = vst [vmem:[#allocation2 + $0x920] sm:$0xff] 0.0
          %969 = vst [vmem:[#allocation2 + $0x928] sm:$0xff] 0.0
          %970 = vst [vmem:[#allocation2 + $0x930] sm:$0xff] 0.0
          %971 = vst [vmem:[#allocation2 + $0x938] sm:$0xff] 0.0
          %972 = vst [vmem:[#allocation2 + $0x940] sm:$0xff] 0.0
          %973 = vst [vmem:[#allocation2 + $0x948] sm:$0xff] 0.0
          %974 = vst [vmem:[#allocation2 + $0x950] sm:$0xff] 0.0
          %975 = vst [vmem:[#allocation2 + $0x958] sm:$0xff] 0.0
          %976 = vst [vmem:[#allocation2 + $0x960] sm:$0xff] 0.0
        $region56: #{tpu_custom_call.1} parent=47 // pred_fallthru
          _
        %s977 = sld [smem:[#allocation5 + %s39]]
        %s978 = sld [smem:[#allocation7 + %s39]]
        %v979 = vld [vmem:[%s383] sm:$0xff]
        %v980 = vld [vmem:[%s383 + $0x8] sm:$0xff]
        %v981 = vld [vmem:[%s383 + $0x10] sm:$0xff]
        %v982 = vld [vmem:[%s383 + $0x18] sm:$0xff]
        %v983 = vld [vmem:[%s383 + $0x20] sm:$0xff]
        %v984 = vld [vmem:[%s383 + $0x28] sm:$0xff]
        %v985 = vld [vmem:[%s383 + $0x30] sm:$0xff]
        %v986 = vld [vmem:[%s383 + $0x38] sm:$0xff]
        %v987 = vld [vmem:[%s383 + $0x40] sm:$0xff]
        %v988 = vld [vmem:[%s383 + $0x48] sm:$0xff]
        %v989 = vld [vmem:[%s383 + $0x50] sm:$0xff]
        %v990 = vld [vmem:[%s383 + $0x58] sm:$0xff]
        %v991 = vld [vmem:[%s383 + $0x60] sm:$0xff]
        %v992 = vld [vmem:[%s383 + $0x68] sm:$0xff]
        %v993 = vld [vmem:[%s383 + $0x70] sm:$0xff]
        %v994 = vld [vmem:[%s383 + $0x78] sm:$0xff]
        %v995 = vld [vmem:[%s383 + $0x80] sm:$0xff]
        %v996 = vld [vmem:[%s383 + $0x88] sm:$0xff]
        %v997 = vld [vmem:[%s383 + $0x90] sm:$0xff]
        %v998 = vld [vmem:[%s383 + $0x98] sm:$0xff]
        %v999 = vld [vmem:[%s383 + $0xa0] sm:$0xff]
        %v1000 = vld [vmem:[%s383 + $0xa8] sm:$0xff]
        %v1001 = vld [vmem:[%s383 + $0xb0] sm:$0xff]
        %v1002 = vld [vmem:[%s383 + $0xb8] sm:$0xff]
        %v1003 = vld [vmem:[%s383 + $0xc0] sm:$0xff]
        %v1004 = vld [vmem:[%s383 + $0xc8] sm:$0xff]
        %v1005 = vld [vmem:[%s383 + $0xd0] sm:$0xff]
        %v1006 = vld [vmem:[%s383 + $0xd8] sm:$0xff]
        %v1007 = vld [vmem:[%s383 + $0xe0] sm:$0xff]
        %v1008 = vld [vmem:[%s383 + $0xe8] sm:$0xff]
        %v1009 = vld [vmem:[%s383 + $0xf0] sm:$0xff]
        %v1010 = vld [vmem:[%s383 + $0xf8] sm:$0xff]
        %v1011 = vld [vmem:[%s383 + $0x100] sm:$0xff]
        %v1012 = vld [vmem:[%s383 + $0x108] sm:$0xff]
        %v1013 = vld [vmem:[%s383 + $0x110] sm:$0xff]
        %v1014 = vld [vmem:[%s383 + $0x118] sm:$0xff]
        %v1015 = vld [vmem:[%s383 + $0x120] sm:$0xff]
        %v1016 = vld [vmem:[%s383 + $0x128] sm:$0xff]
        %v1017 = vld [vmem:[%s383 + $0x130] sm:$0xff]
        %v1018 = vld [vmem:[%s383 + $0x138] sm:$0xff]
        %v1019 = vld [vmem:[%s383 + $0x140] sm:$0xff]
        %v1020 = vld [vmem:[%s383 + $0x148] sm:$0xff]
        %v1021 = vld [vmem:[%s383 + $0x150] sm:$0xff]
        %v1022 = vld [vmem:[%s383 + $0x158] sm:$0xff]
        %v1023 = vld [vmem:[%s383 + $0x160] sm:$0xff]
        %v1024 = vld [vmem:[%s383 + $0x168] sm:$0xff]
        %v1025 = vld [vmem:[%s383 + $0x170] sm:$0xff]
        %v1026 = vld [vmem:[%s383 + $0x178] sm:$0xff]
        %v1027 = vld [vmem:[%s383 + $0x180] sm:$0xff]
        %v1028 = vld [vmem:[%s383 + $0x188] sm:$0xff]
        %v1029 = vld [vmem:[%s383 + $0x190] sm:$0xff]
        %v1030 = vld [vmem:[%s383 + $0x198] sm:$0xff]
        %v1031 = vld [vmem:[%s383 + $0x1a0] sm:$0xff]
        %v1032 = vld [vmem:[%s383 + $0x1a8] sm:$0xff]
        %v1033 = vld [vmem:[%s383 + $0x1b0] sm:$0xff]
        %v1034 = vld [vmem:[%s383 + $0x1b8] sm:$0xff]
        %v1035 = vld [vmem:[%s383 + $0x1c0] sm:$0xff]
        %v1036 = vld [vmem:[%s383 + $0x1c8] sm:$0xff]
        %v1037 = vld [vmem:[%s383 + $0x1d0] sm:$0xff]
        %v1038 = vld [vmem:[%s383 + $0x1d8] sm:$0xff]
        %v1039 = vld [vmem:[%s383 + $0x1e0] sm:$0xff]
        %v1040 = vld [vmem:[%s383 + $0x1e8] sm:$0xff]
        %v1041 = vld [vmem:[%s383 + $0x1f0] sm:$0xff]
        %v1042 = vld [vmem:[%s383 + $0x1f8] sm:$0xff]
        %v1043 = vld [vmem:[%s383 + $0x200] sm:$0xff]
        %v1044 = vld [vmem:[%s383 + $0x208] sm:$0xff]
        %v1045 = vld [vmem:[%s383 + $0x210] sm:$0xff]
        %v1046 = vld [vmem:[%s383 + $0x218] sm:$0xff]
        %v1047 = vld [vmem:[%s383 + $0x220] sm:$0xff]
        %v1048 = vld [vmem:[%s383 + $0x228] sm:$0xff]
        %v1049 = vld [vmem:[%s383 + $0x230] sm:$0xff]
        %v1050 = vld [vmem:[%s383 + $0x238] sm:$0xff]
        // While loop
        $region57: #{tpu_custom_call.1} parent=47 // loop_pre_header
          _
        $region58: #{tpu_custom_call.1} parent=47 // loop_header
          %s1052 = sphi 0, %s1054
          %p1053 = scmp.ge.s32.totalorder %s1052, %s978
          %v1057 = vphi 0.0, %v7682
          %v1058 = vphi 0.0, %v8123
        $region59: #{tpu_custom_call.1} parent=47 // loop_header_branch
          %1056 = sbr.rel (%p1053) target = $region63
        $region60: #{tpu_custom_call.1} parent=47 // loop_body
          %s1059 = smul.u32 %s1052, 576
          %s1060 = scalar_lea.vmem [#allocation2], %s1059
          %v1061 = vld [vmem:[%s1060] sm:$0xff]
          %v1062 = vld [vmem:[%s1060 + $0x8] sm:$0xff]
          %v1063 = vld [vmem:[%s1060 + $0x10] sm:$0xff]
          %v1064 = vld [vmem:[%s1060 + $0x18] sm:$0xff]
          %v1065 = vld [vmem:[%s1060 + $0x20] sm:$0xff]
          %v1066 = vld [vmem:[%s1060 + $0x28] sm:$0xff]
          %v1067 = vld [vmem:[%s1060 + $0x30] sm:$0xff]
          %v1068 = vld [vmem:[%s1060 + $0x38] sm:$0xff]
          %v1069 = vld [vmem:[%s1060 + $0x40] sm:$0xff]
          %v1070 = vld [vmem:[%s1060 + $0x48] sm:$0xff]
          %v1071 = vld [vmem:[%s1060 + $0x50] sm:$0xff]
          %v1072 = vld [vmem:[%s1060 + $0x58] sm:$0xff]
          %v1073 = vld [vmem:[%s1060 + $0x60] sm:$0xff]
          %v1074 = vld [vmem:[%s1060 + $0x68] sm:$0xff]
          %v1075 = vld [vmem:[%s1060 + $0x70] sm:$0xff]
          %v1076 = vld [vmem:[%s1060 + $0x78] sm:$0xff]
          %v1077 = vld [vmem:[%s1060 + $0x80] sm:$0xff]
          %v1078 = vld [vmem:[%s1060 + $0x88] sm:$0xff]
          %v1079 = vld [vmem:[%s1060 + $0x90] sm:$0xff]
          %v1080 = vld [vmem:[%s1060 + $0x98] sm:$0xff]
          %v1081 = vld [vmem:[%s1060 + $0xa0] sm:$0xff]
          %v1082 = vld [vmem:[%s1060 + $0xa8] sm:$0xff]
          %v1083 = vld [vmem:[%s1060 + $0xb0] sm:$0xff]
          %v1084 = vld [vmem:[%s1060 + $0xb8] sm:$0xff]
          %v1085 = vld [vmem:[%s1060 + $0xc0] sm:$0xff]
          %v1086 = vld [vmem:[%s1060 + $0xc8] sm:$0xff]
          %v1087 = vld [vmem:[%s1060 + $0xd0] sm:$0xff]
          %v1088 = vld [vmem:[%s1060 + $0xd8] sm:$0xff]
          %v1089 = vld [vmem:[%s1060 + $0xe0] sm:$0xff]
          %v1090 = vld [vmem:[%s1060 + $0xe8] sm:$0xff]
          %v1091 = vld [vmem:[%s1060 + $0xf0] sm:$0xff]
          %v1092 = vld [vmem:[%s1060 + $0xf8] sm:$0xff]
          %v1093 = vld [vmem:[%s1060 + $0x100] sm:$0xff]
          %v1094 = vld [vmem:[%s1060 + $0x108] sm:$0xff]
          %v1095 = vld [vmem:[%s1060 + $0x110] sm:$0xff]
          %v1096 = vld [vmem:[%s1060 + $0x118] sm:$0xff]
          %v1097 = vld [vmem:[%s1060 + $0x120] sm:$0xff]
          %v1098 = vld [vmem:[%s1060 + $0x128] sm:$0xff]
          %v1099 = vld [vmem:[%s1060 + $0x130] sm:$0xff]
          %v1100 = vld [vmem:[%s1060 + $0x138] sm:$0xff]
          %v1101 = vld [vmem:[%s1060 + $0x140] sm:$0xff]
          %v1102 = vld [vmem:[%s1060 + $0x148] sm:$0xff]
          %v1103 = vld [vmem:[%s1060 + $0x150] sm:$0xff]
          %v1104 = vld [vmem:[%s1060 + $0x158] sm:$0xff]
          %v1105 = vld [vmem:[%s1060 + $0x160] sm:$0xff]
          %v1106 = vld [vmem:[%s1060 + $0x168] sm:$0xff]
          %v1107 = vld [vmem:[%s1060 + $0x170] sm:$0xff]
          %v1108 = vld [vmem:[%s1060 + $0x178] sm:$0xff]
          %v1109 = vld [vmem:[%s1060 + $0x180] sm:$0xff]
          %v1110 = vld [vmem:[%s1060 + $0x188] sm:$0xff]
          %v1111 = vld [vmem:[%s1060 + $0x190] sm:$0xff]
          %v1112 = vld [vmem:[%s1060 + $0x198] sm:$0xff]
          %v1113 = vld [vmem:[%s1060 + $0x1a0] sm:$0xff]
          %v1114 = vld [vmem:[%s1060 + $0x1a8] sm:$0xff]
          %v1115 = vld [vmem:[%s1060 + $0x1b0] sm:$0xff]
          %v1116 = vld [vmem:[%s1060 + $0x1b8] sm:$0xff]
          %v1117 = vld [vmem:[%s1060 + $0x1c0] sm:$0xff]
          %v1118 = vld [vmem:[%s1060 + $0x1c8] sm:$0xff]
          %v1119 = vld [vmem:[%s1060 + $0x1d0] sm:$0xff]
          %v1120 = vld [vmem:[%s1060 + $0x1d8] sm:$0xff]
          %v1121 = vld [vmem:[%s1060 + $0x1e0] sm:$0xff]
          %v1122 = vld [vmem:[%s1060 + $0x1e8] sm:$0xff]
          %v1123 = vld [vmem:[%s1060 + $0x1f0] sm:$0xff]
          %v1124 = vld [vmem:[%s1060 + $0x1f8] sm:$0xff]
          %v1125 = vld [vmem:[%s1060 + $0x200] sm:$0xff]
          %v1126 = vld [vmem:[%s1060 + $0x208] sm:$0xff]
          %v1127 = vld [vmem:[%s1060 + $0x210] sm:$0xff]
          %v1128 = vld [vmem:[%s1060 + $0x218] sm:$0xff]
          %v1129 = vld [vmem:[%s1060 + $0x220] sm:$0xff]
          %v1130 = vld [vmem:[%s1060 + $0x228] sm:$0xff]
          %v1131 = vld [vmem:[%s1060 + $0x230] sm:$0xff]
          %v1132 = vld [vmem:[%s1060 + $0x238] sm:$0xff]
          %v1133 = vld [vmem:[%s1060 + $0x240] sm:$0xff]
          %v1134 = vld [vmem:[%s1060 + $0x248] sm:$0xff]
          %v1135 = vld [vmem:[%s1060 + $0x250] sm:$0xff]
          %v1136 = vld [vmem:[%s1060 + $0x258] sm:$0xff]
          %v1137 = vld [vmem:[%s1060 + $0x260] sm:$0xff]
          %v1138 = vld [vmem:[%s1060 + $0x268] sm:$0xff]
          %v1139 = vld [vmem:[%s1060 + $0x270] sm:$0xff]
          %v1140 = vld [vmem:[%s1060 + $0x278] sm:$0xff]
          %v1141 = vld [vmem:[%s1060 + $0x280] sm:$0xff]
          %v1142 = vld [vmem:[%s1060 + $0x288] sm:$0xff]
          %v1143 = vld [vmem:[%s1060 + $0x290] sm:$0xff]
          %v1144 = vld [vmem:[%s1060 + $0x298] sm:$0xff]
          %v1145 = vld [vmem:[%s1060 + $0x2a0] sm:$0xff]
          %v1146 = vld [vmem:[%s320] sm:$0xff]
          %v1147 = vld [vmem:[%s320 + $0x8] sm:$0xff]
          %v1148 = vld [vmem:[%s320 + $0x10] sm:$0xff]
          %v1149 = vld [vmem:[%s320 + $0x18] sm:$0xff]
          %v1150 = vld [vmem:[%s320 + $0x20] sm:$0xff]
          %v1151 = vld [vmem:[%s320 + $0x28] sm:$0xff]
          %v1152 = vld [vmem:[%s320 + $0x30] sm:$0xff]
          %v1153 = vld [vmem:[%s320 + $0x38] sm:$0xff]
          %v1154 = vld [vmem:[%s320 + $0x40] sm:$0xff]
          %v1155 = vld [vmem:[%s320 + $0x48] sm:$0xff]
          %v1156 = vld [vmem:[%s320 + $0x50] sm:$0xff]
          %v1157 = vld [vmem:[%s320 + $0x58] sm:$0xff]
          %v1158 = vld [vmem:[%s320 + $0x60] sm:$0xff]
          %v1159 = vld [vmem:[%s320 + $0x68] sm:$0xff]
          %v1160 = vld [vmem:[%s320 + $0x70] sm:$0xff]
          %v1161 = vld [vmem:[%s320 + $0x78] sm:$0xff]
          %v1162 = vld [vmem:[%s320 + $0x80] sm:$0xff]
          %v1163 = vld [vmem:[%s320 + $0x88] sm:$0xff]
          %v1164 = vld [vmem:[%s320 + $0x90] sm:$0xff]
          %v1165 = vld [vmem:[%s320 + $0x98] sm:$0xff]
          %v1166 = vld [vmem:[%s320 + $0xa0] sm:$0xff]
          %v1167 = vld [vmem:[%s320 + $0xa8] sm:$0xff]
          %v1168 = vld [vmem:[%s320 + $0xb0] sm:$0xff]
          %v1169 = vld [vmem:[%s320 + $0xb8] sm:$0xff]
          %v1170 = vld [vmem:[%s320 + $0xc0] sm:$0xff]
          %v1171 = vld [vmem:[%s320 + $0xc8] sm:$0xff]
          %v1172 = vld [vmem:[%s320 + $0xd0] sm:$0xff]
          %v1173 = vld [vmem:[%s320 + $0xd8] sm:$0xff]
          %v1174 = vld [vmem:[%s320 + $0xe0] sm:$0xff]
          %v1175 = vld [vmem:[%s320 + $0xe8] sm:$0xff]
          %v1176 = vld [vmem:[%s320 + $0xf0] sm:$0xff]
          %v1177 = vld [vmem:[%s320 + $0xf8] sm:$0xff]
          %v1178 = vld [vmem:[%s320 + $0x100] sm:$0xff]
          %v1179 = vld [vmem:[%s320 + $0x108] sm:$0xff]
          %v1180 = vld [vmem:[%s320 + $0x110] sm:$0xff]
          %v1181 = vld [vmem:[%s320 + $0x118] sm:$0xff]
          %v1182 = vld [vmem:[%s320 + $0x120] sm:$0xff]
          %v1183 = vld [vmem:[%s320 + $0x128] sm:$0xff]
          %v1184 = vld [vmem:[%s320 + $0x130] sm:$0xff]
          %v1185 = vld [vmem:[%s320 + $0x138] sm:$0xff]
          %v1186 = vld [vmem:[%s320 + $0x140] sm:$0xff]
          %v1187 = vld [vmem:[%s320 + $0x148] sm:$0xff]
          %v1188 = vld [vmem:[%s320 + $0x150] sm:$0xff]
          %v1189 = vld [vmem:[%s320 + $0x158] sm:$0xff]
          %v1190 = vld [vmem:[%s320 + $0x160] sm:$0xff]
          %v1191 = vld [vmem:[%s320 + $0x168] sm:$0xff]
          %v1192 = vld [vmem:[%s320 + $0x170] sm:$0xff]
          %v1193 = vld [vmem:[%s320 + $0x178] sm:$0xff]
          %v1194 = vld [vmem:[%s320 + $0x180] sm:$0xff]
          %v1195 = vld [vmem:[%s320 + $0x188] sm:$0xff]
          %v1196 = vld [vmem:[%s320 + $0x190] sm:$0xff]
          %v1197 = vld [vmem:[%s320 + $0x198] sm:$0xff]
          %v1198 = vld [vmem:[%s320 + $0x1a0] sm:$0xff]
          %v1199 = vld [vmem:[%s320 + $0x1a8] sm:$0xff]
          %v1200 = vld [vmem:[%s320 + $0x1b0] sm:$0xff]
          %v1201 = vld [vmem:[%s320 + $0x1b8] sm:$0xff]
          %v1202 = vld [vmem:[%s320 + $0x1c0] sm:$0xff]
          %v1203 = vld [vmem:[%s320 + $0x1c8] sm:$0xff]
          %v1204 = vld [vmem:[%s320 + $0x1d0] sm:$0xff]
          %v1205 = vld [vmem:[%s320 + $0x1d8] sm:$0xff]
          %v1206 = vld [vmem:[%s320 + $0x1e0] sm:$0xff]
          %v1207 = vld [vmem:[%s320 + $0x1e8] sm:$0xff]
          %v1208 = vld [vmem:[%s320 + $0x1f0] sm:$0xff]
          %v1209 = vld [vmem:[%s320 + $0x1f8] sm:$0xff]
          %v1210 = vld [vmem:[%s320 + $0x200] sm:$0xff]
          %v1211 = vld [vmem:[%s320 + $0x208] sm:$0xff]
          %v1212 = vld [vmem:[%s320 + $0x210] sm:$0xff]
          %v1213 = vld [vmem:[%s320 + $0x218] sm:$0xff]
          %v1214 = vld [vmem:[%s320 + $0x220] sm:$0xff]
          %v1215 = vld [vmem:[%s320 + $0x228] sm:$0xff]
          %v1216 = vld [vmem:[%s320 + $0x230] sm:$0xff]
          %v1217 = vld [vmem:[%s320 + $0x238] sm:$0xff]
          %v1218 = vld [vmem:[%s320 + $0x240] sm:$0xff]
          %v1219 = vld [vmem:[%s320 + $0x248] sm:$0xff]
          %v1220 = vld [vmem:[%s320 + $0x250] sm:$0xff]
          %v1221 = vld [vmem:[%s320 + $0x258] sm:$0xff]
          %v1222 = vld [vmem:[%s320 + $0x260] sm:$0xff]
          %v1223 = vld [vmem:[%s320 + $0x268] sm:$0xff]
          %v1224 = vld [vmem:[%s320 + $0x270] sm:$0xff]
          %v1225 = vld [vmem:[%s320 + $0x278] sm:$0xff]
          %v1226 = vld [vmem:[%s320 + $0x280] sm:$0xff]
          %v1227 = vld [vmem:[%s320 + $0x288] sm:$0xff]
          %v1228 = vld [vmem:[%s320 + $0x290] sm:$0xff]
          %v1229 = vld [vmem:[%s320 + $0x298] sm:$0xff]
          %v1230 = vld [vmem:[%s320 + $0x2a0] sm:$0xff]
          %v1231 = vld [vmem:[%s320 + $0x2a8] sm:$0xff]
          %v1232 = vld [vmem:[%s320 + $0x2b0] sm:$0xff]
          %v1233 = vld [vmem:[%s320 + $0x2b8] sm:$0xff]
          %v1234 = vld [vmem:[%s320 + $0x2c0] sm:$0xff]
          %v1235 = vld [vmem:[%s320 + $0x2c8] sm:$0xff]
          %v1236 = vld [vmem:[%s320 + $0x2d0] sm:$0xff]
          %v1237 = vld [vmem:[%s320 + $0x2d8] sm:$0xff]
          %v1238 = vld [vmem:[%s320 + $0x2e0] sm:$0xff]
          %v1239 = vld [vmem:[%s320 + $0x2e8] sm:$0xff]
          %v1240 = vld [vmem:[%s320 + $0x2f0] sm:$0xff]
          %v1241 = vld [vmem:[%s320 + $0x2f8] sm:$0xff]
          %v1242 = vld [vmem:[%s320 + $0x300] sm:$0xff]
          %v1243 = vld [vmem:[%s320 + $0x308] sm:$0xff]
          %v1244 = vld [vmem:[%s320 + $0x310] sm:$0xff]
          %v1245 = vld [vmem:[%s320 + $0x318] sm:$0xff]
          %v1246 = vld [vmem:[%s320 + $0x320] sm:$0xff]
          %v1247 = vld [vmem:[%s320 + $0x328] sm:$0xff]
          %v1248 = vld [vmem:[%s320 + $0x330] sm:$0xff]
          %v1249 = vld [vmem:[%s320 + $0x338] sm:$0xff]
          %v1250 = vld [vmem:[%s320 + $0x340] sm:$0xff]
          %v1251 = vld [vmem:[%s320 + $0x348] sm:$0xff]
          %v1252 = vld [vmem:[%s320 + $0x350] sm:$0xff]
          %v1253 = vld [vmem:[%s320 + $0x358] sm:$0xff]
          %v1254 = vld [vmem:[%s320 + $0x360] sm:$0xff]
          %v1255 = vld [vmem:[%s320 + $0x368] sm:$0xff]
          %v1256 = vld [vmem:[%s320 + $0x370] sm:$0xff]
          %v1257 = vld [vmem:[%s320 + $0x378] sm:$0xff]
          %v1258 = vld [vmem:[%s320 + $0x380] sm:$0xff]
          %v1259 = vld [vmem:[%s320 + $0x388] sm:$0xff]
          %v1260 = vld [vmem:[%s320 + $0x390] sm:$0xff]
          %v1261 = vld [vmem:[%s320 + $0x398] sm:$0xff]
          %v1262 = vld [vmem:[%s320 + $0x3a0] sm:$0xff]
          %v1263 = vld [vmem:[%s320 + $0x3a8] sm:$0xff]
          %v1264 = vld [vmem:[%s320 + $0x3b0] sm:$0xff]
          %v1265 = vld [vmem:[%s320 + $0x3b8] sm:$0xff]
          %v1266 = vld [vmem:[%s320 + $0x3c0] sm:$0xff]
          %v1267 = vld [vmem:[%s320 + $0x3c8] sm:$0xff]
          %v1268 = vld [vmem:[%s320 + $0x3d0] sm:$0xff]
          %v1269 = vld [vmem:[%s320 + $0x3d8] sm:$0xff]
          %v1270 = vld [vmem:[%s320 + $0x3e0] sm:$0xff]
          %v1271 = vld [vmem:[%s320 + $0x3e8] sm:$0xff]
          %v1272 = vld [vmem:[%s320 + $0x3f0] sm:$0xff]
          %v1273 = vld [vmem:[%s320 + $0x3f8] sm:$0xff]
          %1274 = vmatprep.subr.mxu0 %v1147
          %1275 = vmatpush1.msra.mxu0 %v1146
          %1276 = vmatprep.subr.mxu0 %v1155
          %1277 = vmatpush1.msra.mxu0 %v1154
          %1278 = vmatprep.subr.mxu0 %v1163
          %1279 = vmatpush1.msra.mxu0 %v1162
          %1280 = vmatprep.subr.mxu0 %v1171
          %1281 = vmatpush1.msra.mxu0 %v1170
          %1282 = vmatprep.subr.mxu0 %v1179
          %1283 = vmatpush1.msra.mxu0 %v1178
          %1284 = vmatprep.subr.mxu0 %v1187
          %1285 = vmatpush1.msra.mxu0 %v1186
          %1286 = vmatprep.subr.mxu0 %v1195
          %1287 = vmatpush1.msra.mxu0 %v1194
          %1288 = vmatprep.subr.mxu0 %v1203
          %1289 = vmatpush1.msra.mxu0 %v1202
          %1290 = vmatprep.subr.mxu0 %v1211
          %1291 = vmatpush1.msra.mxu0 %v1210
          %1292 = vmatprep.subr.mxu0 %v1219
          %1293 = vmatpush1.msra.mxu0 %v1218
          %1294 = vmatprep.subr.mxu0 %v1227
          %1295 = vmatpush1.msra.mxu0 %v1226
          %1296 = vmatprep.subr.mxu0 %v1235
          %1297 = vmatpush1.msra.mxu0 %v1234
          %1298 = vmatprep.subr.mxu0 %v1243
          %1299 = vmatpush1.msra.mxu0 %v1242
          %1300 = vmatprep.subr.mxu0 %v1251
          %1301 = vmatpush1.msra.mxu0 %v1250
          %1302 = vmatprep.subr.mxu0 %v1259
          %1303 = vmatpush1.msra.mxu0 %v1258
          %1304 = vmatprep.subr.mxu0 %v1267
          %1305 = vmatpush1.msra.mxu0 %v1266
          %1306 = vmatprep.subr.mxu0 0.0
          %1307 = vmatpush1.msra.mxu0 0.0
          %1308 = vmatprep.subr.mxu0 0.0
          %1309 = vmatpush1.msra.mxu0 0.0
          %1310 = vmatprep.subr.mxu0 0.0
          %1311 = vmatpush1.msra.mxu0 0.0
          %1312 = vmatprep.subr.mxu0 0.0
          %1313 = vmatpush1.msra.mxu0 0.0
          %1314 = vmatprep.subr.mxu0 0.0
          %1315 = vmatpush1.msra.mxu0 0.0
          %1316 = vmatprep.subr.mxu0 0.0
          %1317 = vmatpush1.msra.mxu0 0.0
          %1318 = vmatprep.subr.mxu0 0.0
          %1319 = vmatpush1.msra.mxu0 0.0
          %1320 = vmatprep.subr.mxu0 0.0
          %1321 = vmatpush1.msra.mxu0 0.0
          %1322 = vmatprep.subr.mxu0 0.0
          %1323 = vmatpush1.msra.mxu0 0.0
          %1324 = vmatprep.subr.mxu0 0.0
          %1325 = vmatpush1.msra.mxu0 0.0
          %1326 = vmatprep.subr.mxu0 0.0
          %1327 = vmatpush1.msra.mxu0 0.0
          %1328 = vmatprep.subr.mxu0 0.0
          %1329 = vmatpush1.msra.mxu0 0.0
          %1330 = vmatprep.subr.mxu0 0.0
          %1331 = vmatpush1.msra.mxu0 0.0
          %1332 = vmatprep.subr.mxu0 0.0
          %1333 = vmatpush1.msra.mxu0 0.0
          %1334 = vmatprep.subr.mxu0 0.0
          %1335 = vmatpush1.msra.mxu0 0.0
          %1336 = vmatprep.subr.mxu0 0.0
          %1337 = vmatpush1.msra.mxu0 0.0
          %1338 = vmatprep.mubr.f32.mxu0 0.0
          %1339 = vmatmul.mubr.f32.gmra.mrb[0].mxu0 %v1061
          %v1340 = vpop.f32.mrb[0].mxu0
          %v1341 = vadd.f32 0.0, %v1340
          %v1342 = vpop.f32.mrb[0].mxu0
          %v1343 = vadd.f32 0.0, %v1342
          %1344 = vmatprep.mubr.f32.mxu0 0.0
          %1345 = vmatmul.mubr.f32.gmra.mrb[0].mxu0 %v1062
          %v1346 = vpop.f32.mrb[0].mxu0
          %v1347 = vadd.f32 0.0, %v1346
          %v1348 = vpop.f32.mrb[0].mxu0
          %v1349 = vadd.f32 0.0, %v1348
          %1350 = vmatprep.mubr.f32.mxu0 0.0
          %1351 = vmatmul.mubr.f32.gmra.mrb[0].mxu0 %v1063
          %v1352 = vpop.f32.mrb[0].mxu0
          %v1353 = vadd.f32 0.0, %v1352
          %v1354 = vpop.f32.mrb[0].mxu0
          %v1355 = vadd.f32 0.0, %v1354
          %1356 = vmatprep.mubr.f32.mxu0 0.0
          %1357 = vmatmul.mubr.f32.gmra.mrb[0].mxu0 %v1064
          %v1358 = vpop.f32.mrb[0].mxu0
          %v1359 = vadd.f32 0.0, %v1358
          %v1360 = vpop.f32.mrb[0].mxu0
          %v1361 = vadd.f32 0.0, %v1360
          %1362 = vmatprep.mubr.f32.mxu0 0.0
          %1363 = vmatmul.mubr.f32.gmra.mrb[0].mxu0 %v1065
          %v1364 = vpop.f32.mrb[0].mxu0
          %v1365 = vadd.f32 0.0, %v1364
          %v1366 = vpop.f32.mrb[0].mxu0
          %v1367 = vadd.f32 0.0, %v1366
          %1368 = vmatprep.mubr.f32.mxu0 0.0
          %1369 = vmatmul.mubr.f32.gmra.mrb[0].mxu0 %v1066
          %v1370 = vpop.f32.mrb[0].mxu0
          %v1371 = vadd.f32 0.0, %v1370
          %v1372 = vpop.f32.mrb[0].mxu0
          %v1373 = vadd.f32 0.0, %v1372
          %1374 = vmatprep.mubr.f32.mxu0 0.0
          %1375 = vmatmul.mubr.f32.gmra.mrb[0].mxu0 %v1067
          %v1376 = vpop.f32.mrb[0].mxu0
          %v1377 = vadd.f32 0.0, %v1376
          %v1378 = vpop.f32.mrb[0].mxu0
          %v1379 = vadd.f32 0.0, %v1378
          %1380 = vmatprep.mubr.f32.mxu0 0.0
          %1381 = vmatmul.mubr.f32.gmra.mrb[0].mxu0 %v1068
          %v1382 = vpop.f32.mrb[0].mxu0
          %v1383 = vadd.f32 0.0, %v1382
          %v1384 = vpop.f32.mrb[0].mxu0
          %v1385 = vadd.f32 0.0, %v1384
          %1386 = vmatprep.mubr.f32.mxu0 0.0
          %1387 = vmatmul.mubr.f32.gmra.mrb[0].mxu0 %v1069
          %v1388 = vpop.f32.mrb[0].mxu0
          %v1389 = vadd.f32 0.0, %v1388
          %v1390 = vpop.f32.mrb[0].mxu0
          %v1391 = vadd.f32 0.0, %v1390
          %1392 = vmatprep.mubr.f32.mxu0 0.0
          %1393 = vmatmul.mubr.f32.gmra.mrb[0].mxu0 %v1070
          %v1394 = vpop.f32.mrb[0].mxu0
          %v1395 = vadd.f32 0.0, %v1394
          %v1396 = vpop.f32.mrb[0].mxu0
          %v1397 = vadd.f32 0.0, %v1396
          %1398 = vmatprep.mubr.f32.mxu0 0.0
          %1399 = vmatmul.mubr.f32.gmra.mrb[0].mxu0 %v1071
          %v1400 = vpop.f32.mrb[0].mxu0
          %v1401 = vadd.f32 0.0, %v1400
          %v1402 = vpop.f32.mrb[0].mxu0
          %v1403 = vadd.f32 0.0, %v1402
          %1404 = vmatprep.mubr.f32.mxu0 0.0
          %1405 = vmatmul.mubr.f32.gmra.mrb[0].mxu0 %v1072
          %v1406 = vpop.f32.mrb[0].mxu0
          %v1407 = vadd.f32 0.0, %v1406
          %v1408 = vpop.f32.mrb[0].mxu0
          %v1409 = vadd.f32 0.0, %v1408
          %1410 = vmatprep.mubr.f32.mxu0 0.0
          %1411 = vmatmul.mubr.f32.gmra.mrb[0].mxu0 %v1073
          %v1412 = vpop.f32.mrb[0].mxu0
          %v1413 = vadd.f32 0.0, %v1412
          %v1414 = vpop.f32.mrb[0].mxu0
          %v1415 = vadd.f32 0.0, %v1414
          %1416 = vmatprep.mubr.f32.mxu0 0.0
          %1417 = vmatmul.mubr.f32.gmra.mrb[0].mxu0 %v1074
          %v1418 = vpop.f32.mrb[0].mxu0
          %v1419 = vadd.f32 0.0, %v1418
          %v1420 = vpop.f32.mrb[0].mxu0
          %v1421 = vadd.f32 0.0, %v1420
          %1422 = vmatprep.mubr.f32.mxu0 0.0
          %1423 = vmatmul.mubr.f32.gmra.mrb[0].mxu0 %v1075
          %v1424 = vpop.f32.mrb[0].mxu0
          %v1425 = vadd.f32 0.0, %v1424
          %v1426 = vpop.f32.mrb[0].mxu0
          %v1427 = vadd.f32 0.0, %v1426
          %1428 = vmatprep.mubr.f32.mxu0 0.0
          %1429 = vmatmul.mubr.f32.gmra.mrb[0].mxu0 %v1076
          %v1430 = vpop.f32.mrb[0].mxu0
          %v1431 = vadd.f32 0.0, %v1430
          %v1432 = vpop.f32.mrb[0].mxu0
          %v1433 = vadd.f32 0.0, %v1432
          %1434 = vmatprep.mubr.f32.mxu0 0.0
          %1435 = vmatmul.mubr.f32.gmra.mrb[0].mxu0 %v1077
          %v1436 = vpop.f32.mrb[0].mxu0
          %v1437 = vadd.f32 0.0, %v1436
          %v1438 = vpop.f32.mrb[0].mxu0
          %v1439 = vadd.f32 0.0, %v1438
          %1440 = vmatprep.mubr.f32.mxu0 0.0
          %1441 = vmatmul.mubr.f32.gmra.mrb[0].mxu0 %v1078
          %v1442 = vpop.f32.mrb[0].mxu0
          %v1443 = vadd.f32 0.0, %v1442
          %v1444 = vpop.f32.mrb[0].mxu0
          %v1445 = vadd.f32 0.0, %v1444
          %1446 = vmatprep.mubr.f32.mxu0 0.0
          %1447 = vmatmul.mubr.f32.gmra.mrb[0].mxu0 %v1079
          %v1448 = vpop.f32.mrb[0].mxu0
          %v1449 = vadd.f32 0.0, %v1448
          %v1450 = vpop.f32.mrb[0].mxu0
          %v1451 = vadd.f32 0.0, %v1450
          %1452 = vmatprep.mubr.f32.mxu0 0.0
          %1453 = vmatmul.mubr.f32.gmra.mrb[0].mxu0 %v1080
          %v1454 = vpop.f32.mrb[0].mxu0
          %v1455 = vadd.f32 0.0, %v1454
          %v1456 = vpop.f32.mrb[0].mxu0
          %v1457 = vadd.f32 0.0, %v1456
          %1458 = vmatprep.mubr.f32.mxu0 0.0
          %1459 = vmatmul.mubr.f32.gmra.mrb[0].mxu0 %v1081
          %v1460 = vpop.f32.mrb[0].mxu0
          %v1461 = vadd.f32 0.0, %v1460
          %v1462 = vpop.f32.mrb[0].mxu0
          %v1463 = vadd.f32 0.0, %v1462
          %1464 = vmatprep.mubr.f32.mxu0 0.0
          %1465 = vmatmul.mubr.f32.gmra.mrb[0].mxu0 %v1082
          %v1466 = vpop.f32.mrb[0].mxu0
          %v1467 = vadd.f32 0.0, %v1466
          %v1468 = vpop.f32.mrb[0].mxu0
          %v1469 = vadd.f32 0.0, %v1468
          %1470 = vmatprep.mubr.f32.mxu0 0.0
          %1471 = vmatmul.mubr.f32.gmra.mrb[0].mxu0 %v1083
          %v1472 = vpop.f32.mrb[0].mxu0
          %v1473 = vadd.f32 0.0, %v1472
          %v1474 = vpop.f32.mrb[0].mxu0
          %v1475 = vadd.f32 0.0, %v1474
          %1476 = vmatprep.mubr.f32.mxu0 0.0
          %1477 = vmatmul.mubr.f32.gmra.mrb[0].mxu0 %v1084
          %v1478 = vpop.f32.mrb[0].mxu0
          %v1479 = vadd.f32 0.0, %v1478
          %v1480 = vpop.f32.mrb[0].mxu0
          %v1481 = vadd.f32 0.0, %v1480
          %1482 = vmatprep.mubr.f32.mxu0 0.0
          %1483 = vmatmul.mubr.f32.gmra.mrb[0].mxu0 %v1085
          %v1484 = vpop.f32.mrb[0].mxu0
          %v1485 = vadd.f32 0.0, %v1484
          %v1486 = vpop.f32.mrb[0].mxu0
          %v1487 = vadd.f32 0.0, %v1486
          %1488 = vmatprep.mubr.f32.mxu0 0.0
          %1489 = vmatmul.mubr.f32.gmra.mrb[0].mxu0 %v1086
          %v1490 = vpop.f32.mrb[0].mxu0
          %v1491 = vadd.f32 0.0, %v1490
          %v1492 = vpop.f32.mrb[0].mxu0
          %v1493 = vadd.f32 0.0, %v1492
          %1494 = vmatprep.mubr.f32.mxu0 0.0
          %1495 = vmatmul.mubr.f32.gmra.mrb[0].mxu0 %v1087
          %v1496 = vpop.f32.mrb[0].mxu0
          %v1497 = vadd.f32 0.0, %v1496
          %v1498 = vpop.f32.mrb[0].mxu0
          %v1499 = vadd.f32 0.0, %v1498
          %1500 = vmatprep.mubr.f32.mxu0 0.0
          %1501 = vmatmul.mubr.f32.gmra.mrb[0].mxu0 %v1088
          %v1502 = vpop.f32.mrb[0].mxu0
          %v1503 = vadd.f32 0.0, %v1502
          %v1504 = vpop.f32.mrb[0].mxu0
          %v1505 = vadd.f32 0.0, %v1504
          %1506 = vmatprep.mubr.f32.mxu0 0.0
          %1507 = vmatmul.mubr.f32.gmra.mrb[0].mxu0 %v1089
          %v1508 = vpop.f32.mrb[0].mxu0
          %v1509 = vadd.f32 0.0, %v1508
          %v1510 = vpop.f32.mrb[0].mxu0
          %v1511 = vadd.f32 0.0, %v1510
          %1512 = vmatprep.mubr.f32.mxu0 0.0
          %1513 = vmatmul.mubr.f32.gmra.mrb[0].mxu0 %v1090
          %v1514 = vpop.f32.mrb[0].mxu0
          %v1515 = vadd.f32 0.0, %v1514
          %v1516 = vpop.f32.mrb[0].mxu0
          %v1517 = vadd.f32 0.0, %v1516
          %1518 = vmatprep.mubr.f32.mxu0 0.0
          %1519 = vmatmul.mubr.f32.gmra.mrb[0].mxu0 %v1091
          %v1520 = vpop.f32.mrb[0].mxu0
          %v1521 = vadd.f32 0.0, %v1520
          %v1522 = vpop.f32.mrb[0].mxu0
          %v1523 = vadd.f32 0.0, %v1522
          %1524 = vmatprep.mubr.f32.mxu0 0.0
          %1525 = vmatmul.mubr.f32.gmra.mrb[0].mxu0 %v1092
          %v1526 = vpop.f32.mrb[0].mxu0
          %v1527 = vadd.f32 0.0, %v1526
          %v1528 = vpop.f32.mrb[0].mxu0
          %v1529 = vadd.f32 0.0, %v1528
          %1530 = vmatprep.mubr.f32.mxu0 0.0
          %1531 = vmatmul.mubr.f32.gmra.mrb[0].mxu0 %v1093
          %v1532 = vpop.f32.mrb[0].mxu0
          %v1533 = vadd.f32 0.0, %v1532
          %v1534 = vpop.f32.mrb[0].mxu0
          %v1535 = vadd.f32 0.0, %v1534
          %1536 = vmatprep.mubr.f32.mxu0 0.0
          %1537 = vmatmul.mubr.f32.gmra.mrb[0].mxu0 %v1094
          %v1538 = vpop.f32.mrb[0].mxu0
          %v1539 = vadd.f32 0.0, %v1538
          %v1540 = vpop.f32.mrb[0].mxu0
          %v1541 = vadd.f32 0.0, %v1540
          %1542 = vmatprep.mubr.f32.mxu0 0.0
          %1543 = vmatmul.mubr.f32.gmra.mrb[0].mxu0 %v1095
          %v1544 = vpop.f32.mrb[0].mxu0
          %v1545 = vadd.f32 0.0, %v1544
          %v1546 = vpop.f32.mrb[0].mxu0
          %v1547 = vadd.f32 0.0, %v1546
          %1548 = vmatprep.mubr.f32.mxu0 0.0
          %1549 = vmatmul.mubr.f32.gmra.mrb[0].mxu0 %v1096
          %v1550 = vpop.f32.mrb[0].mxu0
          %v1551 = vadd.f32 0.0, %v1550
          %v1552 = vpop.f32.mrb[0].mxu0
          %v1553 = vadd.f32 0.0, %v1552
          %1554 = vmatprep.mubr.f32.mxu0 0.0
          %1555 = vmatmul.mubr.f32.gmra.mrb[0].mxu0 %v1097
          %v1556 = vpop.f32.mrb[0].mxu0
          %v1557 = vadd.f32 0.0, %v1556
          %v1558 = vpop.f32.mrb[0].mxu0
          %v1559 = vadd.f32 0.0, %v1558
          %1560 = vmatprep.mubr.f32.mxu0 0.0
          %1561 = vmatmul.mubr.f32.gmra.mrb[0].mxu0 %v1098
          %v1562 = vpop.f32.mrb[0].mxu0
          %v1563 = vadd.f32 0.0, %v1562
          %v1564 = vpop.f32.mrb[0].mxu0
          %v1565 = vadd.f32 0.0, %v1564
          %1566 = vmatprep.mubr.f32.mxu0 0.0
          %1567 = vmatmul.mubr.f32.gmra.mrb[0].mxu0 %v1099
          %v1568 = vpop.f32.mrb[0].mxu0
          %v1569 = vadd.f32 0.0, %v1568
          %v1570 = vpop.f32.mrb[0].mxu0
          %v1571 = vadd.f32 0.0, %v1570
          %1572 = vmatprep.mubr.f32.mxu0 0.0
          %1573 = vmatmul.mubr.f32.gmra.mrb[0].mxu0 %v1100
          %v1574 = vpop.f32.mrb[0].mxu0
          %v1575 = vadd.f32 0.0, %v1574
          %v1576 = vpop.f32.mrb[0].mxu0
          %v1577 = vadd.f32 0.0, %v1576
          %1578 = vmatprep.mubr.f32.mxu0 0.0
          %1579 = vmatmul.mubr.f32.gmra.mrb[0].mxu0 %v1101
          %v1580 = vpop.f32.mrb[0].mxu0
          %v1581 = vadd.f32 0.0, %v1580
          %v1582 = vpop.f32.mrb[0].mxu0
          %v1583 = vadd.f32 0.0, %v1582
          %1584 = vmatprep.mubr.f32.mxu0 0.0
          %1585 = vmatmul.mubr.f32.gmra.mrb[0].mxu0 %v1102
          %v1586 = vpop.f32.mrb[0].mxu0
          %v1587 = vadd.f32 0.0, %v1586
          %v1588 = vpop.f32.mrb[0].mxu0
          %v1589 = vadd.f32 0.0, %v1588
          %1590 = vmatprep.mubr.f32.mxu0 0.0
          %1591 = vmatmul.mubr.f32.gmra.mrb[0].mxu0 %v1103
          %v1592 = vpop.f32.mrb[0].mxu0
          %v1593 = vadd.f32 0.0, %v1592
          %v1594 = vpop.f32.mrb[0].mxu0
          %v1595 = vadd.f32 0.0, %v1594
          %1596 = vmatprep.mubr.f32.mxu0 0.0
          %1597 = vmatmul.mubr.f32.gmra.mrb[0].mxu0 %v1104
          %v1598 = vpop.f32.mrb[0].mxu0
          %v1599 = vadd.f32 0.0, %v1598
          %v1600 = vpop.f32.mrb[0].mxu0
          %v1601 = vadd.f32 0.0, %v1600
          %1602 = vmatprep.mubr.f32.mxu0 0.0
          %1603 = vmatmul.mubr.f32.gmra.mrb[0].mxu0 %v1105
          %v1604 = vpop.f32.mrb[0].mxu0
          %v1605 = vadd.f32 0.0, %v1604
          %v1606 = vpop.f32.mrb[0].mxu0
          %v1607 = vadd.f32 0.0, %v1606
          %1608 = vmatprep.mubr.f32.mxu0 0.0
          %1609 = vmatmul.mubr.f32.gmra.mrb[0].mxu0 %v1106
          %v1610 = vpop.f32.mrb[0].mxu0
          %v1611 = vadd.f32 0.0, %v1610
          %v1612 = vpop.f32.mrb[0].mxu0
          %v1613 = vadd.f32 0.0, %v1612
          %1614 = vmatprep.mubr.f32.mxu0 0.0
          %1615 = vmatmul.mubr.f32.gmra.mrb[0].mxu0 %v1107
          %v1616 = vpop.f32.mrb[0].mxu0
          %v1617 = vadd.f32 0.0, %v1616
          %v1618 = vpop.f32.mrb[0].mxu0
          %v1619 = vadd.f32 0.0, %v1618
          %1620 = vmatprep.mubr.f32.mxu0 0.0
          %1621 = vmatmul.mubr.f32.gmra.mrb[0].mxu0 %v1108
          %v1622 = vpop.f32.mrb[0].mxu0
          %v1623 = vadd.f32 0.0, %v1622
          %v1624 = vpop.f32.mrb[0].mxu0
          %v1625 = vadd.f32 0.0, %v1624
          %1626 = vmatprep.mubr.f32.mxu0 0.0
          %1627 = vmatmul.mubr.f32.gmra.mrb[0].mxu0 %v1109
          %v1628 = vpop.f32.mrb[0].mxu0
          %v1629 = vadd.f32 0.0, %v1628
          %v1630 = vpop.f32.mrb[0].mxu0
          %v1631 = vadd.f32 0.0, %v1630
          %1632 = vmatprep.mubr.f32.mxu0 0.0
          %1633 = vmatmul.mubr.f32.gmra.mrb[0].mxu0 %v1110
          %v1634 = vpop.f32.mrb[0].mxu0
          %v1635 = vadd.f32 0.0, %v1634
          %v1636 = vpop.f32.mrb[0].mxu0
          %v1637 = vadd.f32 0.0, %v1636
          %1638 = vmatprep.mubr.f32.mxu0 0.0
          %1639 = vmatmul.mubr.f32.gmra.mrb[0].mxu0 %v1111
          %v1640 = vpop.f32.mrb[0].mxu0
          %v1641 = vadd.f32 0.0, %v1640
          %v1642 = vpop.f32.mrb[0].mxu0
          %v1643 = vadd.f32 0.0, %v1642
          %1644 = vmatprep.mubr.f32.mxu0 0.0
          %1645 = vmatmul.mubr.f32.gmra.mrb[0].mxu0 %v1112
          %v1646 = vpop.f32.mrb[0].mxu0
          %v1647 = vadd.f32 0.0, %v1646
          %v1648 = vpop.f32.mrb[0].mxu0
          %v1649 = vadd.f32 0.0, %v1648
          %1650 = vmatprep.mubr.f32.mxu0 0.0
          %1651 = vmatmul.mubr.f32.gmra.mrb[0].mxu0 %v1113
          %v1652 = vpop.f32.mrb[0].mxu0
          %v1653 = vadd.f32 0.0, %v1652
          %v1654 = vpop.f32.mrb[0].mxu0
          %v1655 = vadd.f32 0.0, %v1654
          %1656 = vmatprep.mubr.f32.mxu0 0.0
          %1657 = vmatmul.mubr.f32.gmra.mrb[0].mxu0 %v1114
          %v1658 = vpop.f32.mrb[0].mxu0
          %v1659 = vadd.f32 0.0, %v1658
          %v1660 = vpop.f32.mrb[0].mxu0
          %v1661 = vadd.f32 0.0, %v1660
          %1662 = vmatprep.mubr.f32.mxu0 0.0
          %1663 = vmatmul.mubr.f32.gmra.mrb[0].mxu0 %v1115
          %v1664 = vpop.f32.mrb[0].mxu0
          %v1665 = vadd.f32 0.0, %v1664
          %v1666 = vpop.f32.mrb[0].mxu0
          %v1667 = vadd.f32 0.0, %v1666
          %1668 = vmatprep.mubr.f32.mxu0 0.0
          %1669 = vmatmul.mubr.f32.gmra.mrb[0].mxu0 %v1116
          %v1670 = vpop.f32.mrb[0].mxu0
          %v1671 = vadd.f32 0.0, %v1670
          %v1672 = vpop.f32.mrb[0].mxu0
          %v1673 = vadd.f32 0.0, %v1672
          %1674 = vmatprep.mubr.f32.mxu0 0.0
          %1675 = vmatmul.mubr.f32.gmra.mrb[0].mxu0 %v1117
          %v1676 = vpop.f32.mrb[0].mxu0
          %v1677 = vadd.f32 0.0, %v1676
          %v1678 = vpop.f32.mrb[0].mxu0
          %v1679 = vadd.f32 0.0, %v1678
          %1680 = vmatprep.mubr.f32.mxu0 0.0
          %1681 = vmatmul.mubr.f32.gmra.mrb[0].mxu0 %v1118
          %v1682 = vpop.f32.mrb[0].mxu0
          %v1683 = vadd.f32 0.0, %v1682
          %v1684 = vpop.f32.mrb[0].mxu0
          %v1685 = vadd.f32 0.0, %v1684
          %1686 = vmatprep.mubr.f32.mxu0 0.0
          %1687 = vmatmul.mubr.f32.gmra.mrb[0].mxu0 %v1119
          %v1688 = vpop.f32.mrb[0].mxu0
          %v1689 = vadd.f32 0.0, %v1688
          %v1690 = vpop.f32.mrb[0].mxu0
          %v1691 = vadd.f32 0.0, %v1690
          %1692 = vmatprep.mubr.f32.mxu0 0.0
          %1693 = vmatmul.mubr.f32.gmra.mrb[0].mxu0 %v1120
          %v1694 = vpop.f32.mrb[0].mxu0
          %v1695 = vadd.f32 0.0, %v1694
          %v1696 = vpop.f32.mrb[0].mxu0
          %v1697 = vadd.f32 0.0, %v1696
          %1698 = vmatprep.mubr.f32.mxu0 0.0
          %1699 = vmatmul.mubr.f32.gmra.mrb[0].mxu0 %v1121
          %v1700 = vpop.f32.mrb[0].mxu0
          %v1701 = vadd.f32 0.0, %v1700
          %v1702 = vpop.f32.mrb[0].mxu0
          %v1703 = vadd.f32 0.0, %v1702
          %1704 = vmatprep.mubr.f32.mxu0 0.0
          %1705 = vmatmul.mubr.f32.gmra.mrb[0].mxu0 %v1122
          %v1706 = vpop.f32.mrb[0].mxu0
          %v1707 = vadd.f32 0.0, %v1706
          %v1708 = vpop.f32.mrb[0].mxu0
          %v1709 = vadd.f32 0.0, %v1708
          %1710 = vmatprep.mubr.f32.mxu0 0.0
          %1711 = vmatmul.mubr.f32.gmra.mrb[0].mxu0 %v1123
          %v1712 = vpop.f32.mrb[0].mxu0
          %v1713 = vadd.f32 0.0, %v1712
          %v1714 = vpop.f32.mrb[0].mxu0
          %v1715 = vadd.f32 0.0, %v1714
          %1716 = vmatprep.mubr.f32.mxu0 0.0
          %1717 = vmatmul.mubr.f32.gmra.mrb[0].mxu0 %v1124
          %v1718 = vpop.f32.mrb[0].mxu0
          %v1719 = vadd.f32 0.0, %v1718
          %v1720 = vpop.f32.mrb[0].mxu0
          %v1721 = vadd.f32 0.0, %v1720
          %1722 = vmatprep.mubr.f32.mxu0 0.0
          %1723 = vmatmul.mubr.f32.gmra.mrb[0].mxu0 %v1125
          %v1724 = vpop.f32.mrb[0].mxu0
          %v1725 = vadd.f32 0.0, %v1724
          %v1726 = vpop.f32.mrb[0].mxu0
          %v1727 = vadd.f32 0.0, %v1726
          %1728 = vmatprep.mubr.f32.mxu0 0.0
          %1729 = vmatmul.mubr.f32.gmra.mrb[0].mxu0 %v1126
          %v1730 = vpop.f32.mrb[0].mxu0
          %v1731 = vadd.f32 0.0, %v1730
          %v1732 = vpop.f32.mrb[0].mxu0
          %v1733 = vadd.f32 0.0, %v1732
          %1734 = vmatprep.mubr.f32.mxu0 0.0
          %1735 = vmatmul.mubr.f32.gmra.mrb[0].mxu0 %v1127
          %v1736 = vpop.f32.mrb[0].mxu0
          %v1737 = vadd.f32 0.0, %v1736
          %v1738 = vpop.f32.mrb[0].mxu0
          %v1739 = vadd.f32 0.0, %v1738
          %1740 = vmatprep.mubr.f32.mxu0 0.0
          %1741 = vmatmul.mubr.f32.gmra.mrb[0].mxu0 %v1128
          %v1742 = vpop.f32.mrb[0].mxu0
          %v1743 = vadd.f32 0.0, %v1742
          %v1744 = vpop.f32.mrb[0].mxu0
          %v1745 = vadd.f32 0.0, %v1744
          %1746 = vmatprep.mubr.f32.mxu0 0.0
          %1747 = vmatmul.mubr.f32.gmra.mrb[0].mxu0 %v1129
          %v1748 = vpop.f32.mrb[0].mxu0
          %v1749 = vadd.f32 0.0, %v1748
          %v1750 = vpop.f32.mrb[0].mxu0
          %v1751 = vadd.f32 0.0, %v1750
          %1752 = vmatprep.mubr.f32.mxu0 0.0
          %1753 = vmatmul.mubr.f32.gmra.mrb[0].mxu0 %v1130
          %v1754 = vpop.f32.mrb[0].mxu0
          %v1755 = vadd.f32 0.0, %v1754
          %v1756 = vpop.f32.mrb[0].mxu0
          %v1757 = vadd.f32 0.0, %v1756
          %1758 = vmatprep.mubr.f32.mxu0 0.0
          %1759 = vmatmul.mubr.f32.gmra.mrb[0].mxu0 %v1131
          %v1760 = vpop.f32.mrb[0].mxu0
          %v1761 = vadd.f32 0.0, %v1760
          %v1762 = vpop.f32.mrb[0].mxu0
          %v1763 = vadd.f32 0.0, %v1762
          %1764 = vmatprep.mubr.f32.mxu0 0.0
          %1765 = vmatmul.mubr.f32.gmra.mrb[0].mxu0 %v1132
          %v1766 = vpop.f32.mrb[0].mxu0
          %v1767 = vadd.f32 0.0, %v1766
          %v1768 = vpop.f32.mrb[0].mxu0
          %v1769 = vadd.f32 0.0, %v1768
          %1770 = vmatprep.mubr.f32.mxu0 0.0
          %1771 = vmatmul.mubr.f32.gmra.mrb[0].mxu0 %v1133
          %v1772 = vpop.f32.mrb[0].mxu0
          %v1773 = vpop.f32.mrb[0].mxu0
          %v1774 = vadd.f32 0.0, %v1773
          %1775 = vmatprep.mubr.f32.mxu0 0.0
          %1776 = vmatmul.mubr.f32.gmra.mrb[0].mxu0 %v1134
          %v1777 = vpop.f32.mrb[0].mxu0
          %v1778 = vpop.f32.mrb[0].mxu0
          %1779 = vmatprep.mubr.f32.mxu0 0.0
          %1780 = vmatmul.mubr.f32.gmra.mrb[0].mxu0 %v1135
          %v1781 = vpop.f32.mrb[0].mxu0
          %v1782 = vpop.f32.mrb[0].mxu0
          %1783 = vmatprep.mubr.f32.mxu0 0.0
          %1784 = vmatmul.mubr.f32.gmra.mrb[0].mxu0 %v1136
          %v1785 = vpop.f32.mrb[0].mxu0
          %v1786 = vpop.f32.mrb[0].mxu0
          %1787 = vmatprep.mubr.f32.mxu0 0.0
          %1788 = vmatmul.mubr.f32.gmra.mrb[0].mxu0 %v1137
          %v1789 = vpop.f32.mrb[0].mxu0
          %v1790 = vpop.f32.mrb[0].mxu0
          %1791 = vmatprep.mubr.f32.mxu0 0.0
          %1792 = vmatmul.mubr.f32.gmra.mrb[0].mxu0 %v1138
          %v1793 = vpop.f32.mrb[0].mxu0
          %v1794 = vpop.f32.mrb[0].mxu0
          %1795 = vmatprep.mubr.f32.mxu0 0.0
          %1796 = vmatmul.mubr.f32.gmra.mrb[0].mxu0 %v1139
          %v1797 = vpop.f32.mrb[0].mxu0
          %v1798 = vpop.f32.mrb[0].mxu0
          %1799 = vmatprep.mubr.f32.mxu0 0.0
          %1800 = vmatmul.mubr.f32.gmra.mrb[0].mxu0 %v1140
          %v1801 = vpop.f32.mrb[0].mxu0
          %v1802 = vpop.f32.mrb[0].mxu0
          %1803 = vmatprep.mubr.f32.mxu0 0.0
          %1804 = vmatmul.mubr.f32.gmra.mrb[0].mxu0 %v1141
          %v1805 = vpop.f32.mrb[0].mxu0
          %v1806 = vpop.f32.mrb[0].mxu0
          %1807 = vmatprep.mubr.f32.mxu0 0.0
          %1808 = vmatmul.mubr.f32.gmra.mrb[0].mxu0 %v1142
          %v1809 = vpop.f32.mrb[0].mxu0
          %v1810 = vpop.f32.mrb[0].mxu0
          %1811 = vmatprep.mubr.f32.mxu0 0.0
          %1812 = vmatmul.mubr.f32.gmra.mrb[0].mxu0 %v1143
          %v1813 = vpop.f32.mrb[0].mxu0
          %v1814 = vpop.f32.mrb[0].mxu0
          %1815 = vmatprep.mubr.f32.mxu0 0.0
          %1816 = vmatmul.mubr.f32.gmra.mrb[0].mxu0 %v1144
          %v1817 = vpop.f32.mrb[0].mxu0
          %v1818 = vpop.f32.mrb[0].mxu0
          %1819 = vmatprep.mubr.f32.mxu0 0.0
          %1820 = vmatmul.mubr.f32.gmra.mrb[0].mxu0 %v1145
          %v1821 = vpop.f32.mrb[0].mxu0
          %v1822 = vpop.f32.mrb[0].mxu0
          %1823 = vdwg.mxu0
          %1824 = vmatprep.subr.mxu0 %v1149
          %1825 = vmatpush1.msra.mxu0 %v1148
          %1826 = vmatprep.subr.mxu0 %v1157
          %1827 = vmatpush1.msra.mxu0 %v1156
          %1828 = vmatprep.subr.mxu0 %v1165
          %1829 = vmatpush1.msra.mxu0 %v1164
          %1830 = vmatprep.subr.mxu0 %v1173
          %1831 = vmatpush1.msra.mxu0 %v1172
          %1832 = vmatprep.subr.mxu0 %v1181
          %1833 = vmatpush1.msra.mxu0 %v1180
          %1834 = vmatprep.subr.mxu0 %v1189
          %1835 = vmatpush1.msra.mxu0 %v1188
          %1836 = vmatprep.subr.mxu0 %v1197
          %1837 = vmatpush1.msra.mxu0 %v1196
          %1838 = vmatprep.subr.mxu0 %v1205
          %1839 = vmatpush1.msra.mxu0 %v1204
          %1840 = vmatprep.subr.mxu0 %v1213
          %1841 = vmatpush1.msra.mxu0 %v1212
          %1842 = vmatprep.subr.mxu0 %v1221
          %1843 = vmatpush1.msra.mxu0 %v1220
          %1844 = vmatprep.subr.mxu0 %v1229
          %1845 = vmatpush1.msra.mxu0 %v1228
          %1846 = vmatprep.subr.mxu0 %v1237
          %1847 = vmatpush1.msra.mxu0 %v1236
          %1848 = vmatprep.subr.mxu0 %v1245
          %1849 = vmatpush1.msra.mxu0 %v1244
          %1850 = vmatprep.subr.mxu0 %v1253
          %1851 = vmatpush1.msra.mxu0 %v1252
          %1852 = vmatprep.subr.mxu0 %v1261
          %1853 = vmatpush1.msra.mxu0 %v1260
          %1854 = vmatprep.subr.mxu0 %v1269
          %1855 = vmatpush1.msra.mxu0 %v1268
          %1856 = vmatprep.subr.mxu0 0.0
          %1857 = vmatpush1.msra.mxu0 0.0
          %1858 = vmatprep.subr.mxu0 0.0
          %1859 = vmatpush1.msra.mxu0 0.0
          %1860 = vmatprep.subr.mxu0 0.0
          %1861 = vmatpush1.msra.mxu0 0.0
          %1862 = vmatprep.subr.mxu0 0.0
          %1863 = vmatpush1.msra.mxu0 0.0
          %1864 = vmatprep.subr.mxu0 0.0
          %1865 = vmatpush1.msra.mxu0 0.0
          %1866 = vmatprep.subr.mxu0 0.0
          %1867 = vmatpush1.msra.mxu0 0.0
          %1868 = vmatprep.subr.mxu0 0.0
          %1869 = vmatpush1.msra.mxu0 0.0
          %1870 = vmatprep.subr.mxu0 0.0
          %1871 = vmatpush1.msra.mxu0 0.0
          %1872 = vmatprep.subr.mxu0 0.0
          %1873 = vmatpush1.msra.mxu0 0.0
          %1874 = vmatprep.subr.mxu0 0.0
          %1875 = vmatpush1.msra.mxu0 0.0
          %1876 = vmatprep.subr.mxu0 0.0
          %1877 = vmatpush1.msra.mxu0 0.0
          %1878 = vmatprep.subr.mxu0 0.0
          %1879 = vmatpush1.msra.mxu0 0.0
          %1880 = vmatprep.subr.mxu0 0.0
          %1881 = vmatpush1.msra.mxu0 0.0
          %1882 = vmatprep.subr.mxu0 0.0
          %1883 = vmatpush1.msra.mxu0 0.0
          %1884 = vmatprep.subr.mxu0 0.0
          %1885 = vmatpush1.msra.mxu0 0.0
          %1886 = vmatprep.subr.mxu0 0.0
          %1887 = vmatpush1.msra.mxu0 0.0
          %1888 = vmatprep.mubr.f32.mxu0 0.0
          %1889 = vmatmul.mubr.f32.gmra.mrb[0].mxu0 %v1061
          %v1890 = vpop.f32.mrb[0].mxu0
          %v1891 = vadd.f32 0.0, %v1890
          %v1892 = vpop.f32.mrb[0].mxu0
          %1893 = vmatprep.mubr.f32.mxu0 0.0
          %1894 = vmatmul.mubr.f32.gmra.mrb[0].mxu0 %v1062
          %v1895 = vpop.f32.mrb[0].mxu0
          %v1896 = vadd.f32 0.0, %v1895
          %v1897 = vpop.f32.mrb[0].mxu0
          %1898 = vmatprep.mubr.f32.mxu0 0.0
          %1899 = vmatmul.mubr.f32.gmra.mrb[0].mxu0 %v1063
          %v1900 = vpop.f32.mrb[0].mxu0
          %v1901 = vadd.f32 0.0, %v1900
          %v1902 = vpop.f32.mrb[0].mxu0
          %1903 = vmatprep.mubr.f32.mxu0 0.0
          %1904 = vmatmul.mubr.f32.gmra.mrb[0].mxu0 %v1064
          %v1905 = vpop.f32.mrb[0].mxu0
          %v1906 = vadd.f32 0.0, %v1905
          %v1907 = vpop.f32.mrb[0].mxu0
          %1908 = vmatprep.mubr.f32.mxu0 0.0
          %1909 = vmatmul.mubr.f32.gmra.mrb[0].mxu0 %v1065
          %v1910 = vpop.f32.mrb[0].mxu0
          %v1911 = vadd.f32 0.0, %v1910
          %v1912 = vpop.f32.mrb[0].mxu0
          %1913 = vmatprep.mubr.f32.mxu0 0.0
          %1914 = vmatmul.mubr.f32.gmra.mrb[0].mxu0 %v1066
          %v1915 = vpop.f32.mrb[0].mxu0
          %v1916 = vadd.f32 0.0, %v1915
          %v1917 = vpop.f32.mrb[0].mxu0
          %1918 = vmatprep.mubr.f32.mxu0 0.0
          %1919 = vmatmul.mubr.f32.gmra.mrb[0].mxu0 %v1067
          %v1920 = vpop.f32.mrb[0].mxu0
          %v1921 = vadd.f32 0.0, %v1920
          %v1922 = vpop.f32.mrb[0].mxu0
          %v1923 = vadd.f32 0.0, %v1922
          %1924 = vmatprep.mubr.f32.mxu0 0.0
          %1925 = vmatmul.mubr.f32.gmra.mrb[0].mxu0 %v1068
          %v1926 = vpop.f32.mrb[0].mxu0
          %v1927 = vadd.f32 0.0, %v1926
          %v1928 = vpop.f32.mrb[0].mxu0
          %v1929 = vadd.f32 0.0, %v1928
          %1930 = vmatprep.mubr.f32.mxu0 0.0
          %1931 = vmatmul.mubr.f32.gmra.mrb[0].mxu0 %v1069
          %v1932 = vpop.f32.mrb[0].mxu0
          %v1933 = vadd.f32 0.0, %v1932
          %v1934 = vpop.f32.mrb[0].mxu0
          %v1935 = vadd.f32 0.0, %v1934
          %1936 = vmatprep.mubr.f32.mxu0 0.0
          %1937 = vmatmul.mubr.f32.gmra.mrb[0].mxu0 %v1070
          %v1938 = vpop.f32.mrb[0].mxu0
          %v1939 = vadd.f32 0.0, %v1938
          %v1940 = vpop.f32.mrb[0].mxu0
          %v1941 = vadd.f32 0.0, %v1940
          %1942 = vmatprep.mubr.f32.mxu0 0.0
          %1943 = vmatmul.mubr.f32.gmra.mrb[0].mxu0 %v1071
          %v1944 = vpop.f32.mrb[0].mxu0
          %v1945 = vadd.f32 0.0, %v1944
          %v1946 = vpop.f32.mrb[0].mxu0
          %v1947 = vadd.f32 0.0, %v1946
          %1948 = vmatprep.mubr.f32.mxu0 0.0
          %1949 = vmatmul.mubr.f32.gmra.mrb[0].mxu0 %v1072
          %v1950 = vpop.f32.mrb[0].mxu0
          %v1951 = vadd.f32 0.0, %v1950
          %v1952 = vpop.f32.mrb[0].mxu0
          %v1953 = vadd.f32 0.0, %v1952
          %1954 = vmatprep.mubr.f32.mxu0 0.0
          %1955 = vmatmul.mubr.f32.gmra.mrb[0].mxu0 %v1073
          %v1956 = vpop.f32.mrb[0].mxu0
          %v1957 = vadd.f32 0.0, %v1956
          %v1958 = vpop.f32.mrb[0].mxu0
          %v1959 = vadd.f32 0.0, %v1958
          %1960 = vmatprep.mubr.f32.mxu0 0.0
          %1961 = vmatmul.mubr.f32.gmra.mrb[0].mxu0 %v1074
          %v1962 = vpop.f32.mrb[0].mxu0
          %v1963 = vadd.f32 0.0, %v1962
          %v1964 = vpop.f32.mrb[0].mxu0
          %v1965 = vadd.f32 0.0, %v1964
          %1966 = vmatprep.mubr.f32.mxu0 0.0
          %1967 = vmatmul.mubr.f32.gmra.mrb[0].mxu0 %v1075
          %v1968 = vpop.f32.mrb[0].mxu0
          %v1969 = vadd.f32 0.0, %v1968
          %v1970 = vpop.f32.mrb[0].mxu0
          %v1971 = vadd.f32 0.0, %v1970
          %1972 = vmatprep.mubr.f32.mxu0 0.0
          %1973 = vmatmul.mubr.f32.gmra.mrb[0].mxu0 %v1076
          %v1974 = vpop.f32.mrb[0].mxu0
          %v1975 = vadd.f32 0.0, %v1974
          %v1976 = vpop.f32.mrb[0].mxu0
          %v1977 = vadd.f32 0.0, %v1976
          %1978 = vmatprep.mubr.f32.mxu0 0.0
          %1979 = vmatmul.mubr.f32.gmra.mrb[0].mxu0 %v1077
          %v1980 = vpop.f32.mrb[0].mxu0
          %v1981 = vadd.f32 0.0, %v1980
          %v1982 = vpop.f32.mrb[0].mxu0
          %v1983 = vadd.f32 0.0, %v1982
          %1984 = vmatprep.mubr.f32.mxu0 0.0
          %1985 = vmatmul.mubr.f32.gmra.mrb[0].mxu0 %v1078
          %v1986 = vpop.f32.mrb[0].mxu0
          %v1987 = vadd.f32 0.0, %v1986
          %v1988 = vpop.f32.mrb[0].mxu0
          %v1989 = vadd.f32 0.0, %v1988
          %1990 = vmatprep.mubr.f32.mxu0 0.0
          %1991 = vmatmul.mubr.f32.gmra.mrb[0].mxu0 %v1079
          %v1992 = vpop.f32.mrb[0].mxu0
          %v1993 = vadd.f32 0.0, %v1992
          %v1994 = vpop.f32.mrb[0].mxu0
          %v1995 = vadd.f32 0.0, %v1994
          %1996 = vmatprep.mubr.f32.mxu0 0.0
          %1997 = vmatmul.mubr.f32.gmra.mrb[0].mxu0 %v1080
          %v1998 = vpop.f32.mrb[0].mxu0
          %v1999 = vadd.f32 0.0, %v1998
          %v2000 = vpop.f32.mrb[0].mxu0
          %v2001 = vadd.f32 0.0, %v2000
          %2002 = vmatprep.mubr.f32.mxu0 0.0
          %2003 = vmatmul.mubr.f32.gmra.mrb[0].mxu0 %v1081
          %v2004 = vpop.f32.mrb[0].mxu0
          %v2005 = vadd.f32 0.0, %v2004
          %v2006 = vpop.f32.mrb[0].mxu0
          %v2007 = vadd.f32 0.0, %v2006
          %2008 = vmatprep.mubr.f32.mxu0 0.0
          %2009 = vmatmul.mubr.f32.gmra.mrb[0].mxu0 %v1082
          %v2010 = vpop.f32.mrb[0].mxu0
          %v2011 = vadd.f32 0.0, %v2010
          %v2012 = vpop.f32.mrb[0].mxu0
          %v2013 = vadd.f32 0.0, %v2012
          %2014 = vmatprep.mubr.f32.mxu0 0.0
          %2015 = vmatmul.mubr.f32.gmra.mrb[0].mxu0 %v1083
          %v2016 = vpop.f32.mrb[0].mxu0
          %v2017 = vadd.f32 0.0, %v2016
          %v2018 = vpop.f32.mrb[0].mxu0
          %v2019 = vadd.f32 0.0, %v2018
          %2020 = vmatprep.mubr.f32.mxu0 0.0
          %2021 = vmatmul.mubr.f32.gmra.mrb[0].mxu0 %v1084
          %v2022 = vpop.f32.mrb[0].mxu0
          %v2023 = vadd.f32 0.0, %v2022
          %v2024 = vpop.f32.mrb[0].mxu0
          %v2025 = vadd.f32 0.0, %v2024
          %2026 = vmatprep.mubr.f32.mxu0 0.0
          %2027 = vmatmul.mubr.f32.gmra.mrb[0].mxu0 %v1085
          %v2028 = vpop.f32.mrb[0].mxu0
          %v2029 = vadd.f32 0.0, %v2028
          %v2030 = vpop.f32.mrb[0].mxu0
          %v2031 = vadd.f32 0.0, %v2030
          %2032 = vmatprep.mubr.f32.mxu0 0.0
          %2033 = vmatmul.mubr.f32.gmra.mrb[0].mxu0 %v1086
          %v2034 = vpop.f32.mrb[0].mxu0
          %v2035 = vadd.f32 0.0, %v2034
          %v2036 = vpop.f32.mrb[0].mxu0
          %v2037 = vadd.f32 0.0, %v2036
          %2038 = vmatprep.mubr.f32.mxu0 0.0
          %2039 = vmatmul.mubr.f32.gmra.mrb[0].mxu0 %v1087
          %v2040 = vpop.f32.mrb[0].mxu0
          %v2041 = vadd.f32 0.0, %v2040
          %v2042 = vpop.f32.mrb[0].mxu0
          %v2043 = vadd.f32 0.0, %v2042
          %2044 = vmatprep.mubr.f32.mxu0 0.0
          %2045 = vmatmul.mubr.f32.gmra.mrb[0].mxu0 %v1088
          %v2046 = vpop.f32.mrb[0].mxu0
          %v2047 = vadd.f32 0.0, %v2046
          %v2048 = vpop.f32.mrb[0].mxu0
          %v2049 = vadd.f32 0.0, %v2048
          %2050 = vmatprep.mubr.f32.mxu0 0.0
          %2051 = vmatmul.mubr.f32.gmra.mrb[0].mxu0 %v1089
          %v2052 = vpop.f32.mrb[0].mxu0
          %v2053 = vadd.f32 0.0, %v2052
          %v2054 = vpop.f32.mrb[0].mxu0
          %v2055 = vadd.f32 0.0, %v2054
          %2056 = vmatprep.mubr.f32.mxu0 0.0
          %2057 = vmatmul.mubr.f32.gmra.mrb[0].mxu0 %v1090
          %v2058 = vpop.f32.mrb[0].mxu0
          %v2059 = vadd.f32 0.0, %v2058
          %v2060 = vpop.f32.mrb[0].mxu0
          %v2061 = vadd.f32 0.0, %v2060
          %2062 = vmatprep.mubr.f32.mxu0 0.0
          %2063 = vmatmul.mubr.f32.gmra.mrb[0].mxu0 %v1091
          %v2064 = vpop.f32.mrb[0].mxu0
          %v2065 = vadd.f32 0.0, %v2064
          %v2066 = vpop.f32.mrb[0].mxu0
          %v2067 = vadd.f32 0.0, %v2066
          %2068 = vmatprep.mubr.f32.mxu0 0.0
          %2069 = vmatmul.mubr.f32.gmra.mrb[0].mxu0 %v1092
          %v2070 = vpop.f32.mrb[0].mxu0
          %v2071 = vadd.f32 0.0, %v2070
          %v2072 = vpop.f32.mrb[0].mxu0
          %v2073 = vadd.f32 0.0, %v2072
          %2074 = vmatprep.mubr.f32.mxu0 0.0
          %2075 = vmatmul.mubr.f32.gmra.mrb[0].mxu0 %v1093
          %v2076 = vpop.f32.mrb[0].mxu0
          %v2077 = vadd.f32 0.0, %v2076
          %v2078 = vpop.f32.mrb[0].mxu0
          %v2079 = vadd.f32 0.0, %v2078
          %2080 = vmatprep.mubr.f32.mxu0 0.0
          %2081 = vmatmul.mubr.f32.gmra.mrb[0].mxu0 %v1094
          %v2082 = vpop.f32.mrb[0].mxu0
          %v2083 = vadd.f32 0.0, %v2082
          %v2084 = vpop.f32.mrb[0].mxu0
          %v2085 = vadd.f32 0.0, %v2084
          %2086 = vmatprep.mubr.f32.mxu0 0.0
          %2087 = vmatmul.mubr.f32.gmra.mrb[0].mxu0 %v1095
          %v2088 = vpop.f32.mrb[0].mxu0
          %v2089 = vadd.f32 0.0, %v2088
          %v2090 = vpop.f32.mrb[0].mxu0
          %v2091 = vadd.f32 0.0, %v2090
          %2092 = vmatprep.mubr.f32.mxu0 0.0
          %2093 = vmatmul.mubr.f32.gmra.mrb[0].mxu0 %v1096
          %v2094 = vpop.f32.mrb[0].mxu0
          %v2095 = vadd.f32 0.0, %v2094
          %v2096 = vpop.f32.mrb[0].mxu0
          %v2097 = vadd.f32 0.0, %v2096
          %2098 = vmatprep.mubr.f32.mxu0 0.0
          %2099 = vmatmul.mubr.f32.gmra.mrb[0].mxu0 %v1097
          %v2100 = vpop.f32.mrb[0].mxu0
          %v2101 = vadd.f32 0.0, %v2100
          %v2102 = vpop.f32.mrb[0].mxu0
          %v2103 = vadd.f32 0.0, %v2102
          %2104 = vmatprep.mubr.f32.mxu0 0.0
          %2105 = vmatmul.mubr.f32.gmra.mrb[0].mxu0 %v1098
          %v2106 = vpop.f32.mrb[0].mxu0
          %v2107 = vadd.f32 0.0, %v2106
          %v2108 = vpop.f32.mrb[0].mxu0
          %v2109 = vadd.f32 0.0, %v2108
          %2110 = vmatprep.mubr.f32.mxu0 0.0
          %2111 = vmatmul.mubr.f32.gmra.mrb[0].mxu0 %v1099
          %v2112 = vpop.f32.mrb[0].mxu0
          %v2113 = vadd.f32 0.0, %v2112
          %v2114 = vpop.f32.mrb[0].mxu0
          %v2115 = vadd.f32 0.0, %v2114
          %2116 = vmatprep.mubr.f32.mxu0 0.0
          %2117 = vmatmul.mubr.f32.gmra.mrb[0].mxu0 %v1100
          %v2118 = vpop.f32.mrb[0].mxu0
          %v2119 = vadd.f32 0.0, %v2118
          %v2120 = vpop.f32.mrb[0].mxu0
          %v2121 = vadd.f32 0.0, %v2120
          %2122 = vmatprep.mubr.f32.mxu0 0.0
          %2123 = vmatmul.mubr.f32.gmra.mrb[0].mxu0 %v1101
          %v2124 = vpop.f32.mrb[0].mxu0
          %v2125 = vadd.f32 0.0, %v2124
          %v2126 = vpop.f32.mrb[0].mxu0
          %v2127 = vadd.f32 0.0, %v2126
          %2128 = vmatprep.mubr.f32.mxu0 0.0
          %2129 = vmatmul.mubr.f32.gmra.mrb[0].mxu0 %v1102
          %v2130 = vpop.f32.mrb[0].mxu0
          %v2131 = vadd.f32 0.0, %v2130
          %v2132 = vpop.f32.mrb[0].mxu0
          %v2133 = vadd.f32 0.0, %v2132
          %2134 = vmatprep.mubr.f32.mxu0 0.0
          %2135 = vmatmul.mubr.f32.gmra.mrb[0].mxu0 %v1103
          %v2136 = vpop.f32.mrb[0].mxu0
          %v2137 = vadd.f32 0.0, %v2136
          %v2138 = vpop.f32.mrb[0].mxu0
          %v2139 = vadd.f32 0.0, %v2138
          %2140 = vmatprep.mubr.f32.mxu0 0.0
          %2141 = vmatmul.mubr.f32.gmra.mrb[0].mxu0 %v1104
          %v2142 = vpop.f32.mrb[0].mxu0
          %v2143 = vadd.f32 0.0, %v2142
          %v2144 = vpop.f32.mrb[0].mxu0
          %v2145 = vadd.f32 0.0, %v2144
          %2146 = vmatprep.mubr.f32.mxu0 0.0
          %2147 = vmatmul.mubr.f32.gmra.mrb[0].mxu0 %v1105
          %v2148 = vpop.f32.mrb[0].mxu0
          %v2149 = vadd.f32 0.0, %v2148
          %v2150 = vpop.f32.mrb[0].mxu0
          %v2151 = vadd.f32 0.0, %v2150
          %2152 = vmatprep.mubr.f32.mxu0 0.0
          %2153 = vmatmul.mubr.f32.gmra.mrb[0].mxu0 %v1106
          %v2154 = vpop.f32.mrb[0].mxu0
          %v2155 = vadd.f32 0.0, %v2154
          %v2156 = vpop.f32.mrb[0].mxu0
          %v2157 = vadd.f32 0.0, %v2156
          %2158 = vmatprep.mubr.f32.mxu0 0.0
          %2159 = vmatmul.mubr.f32.gmra.mrb[0].mxu0 %v1107
          %v2160 = vpop.f32.mrb[0].mxu0
          %v2161 = vadd.f32 0.0, %v2160
          %v2162 = vpop.f32.mrb[0].mxu0
          %v2163 = vadd.f32 0.0, %v2162
          %2164 = vmatprep.mubr.f32.mxu0 0.0
          %2165 = vmatmul.mubr.f32.gmra.mrb[0].mxu0 %v1108
          %v2166 = vpop.f32.mrb[0].mxu0
          %v2167 = vadd.f32 0.0, %v2166
          %v2168 = vpop.f32.mrb[0].mxu0
          %v2169 = vadd.f32 0.0, %v2168
          %2170 = vmatprep.mubr.f32.mxu0 0.0
          %2171 = vmatmul.mubr.f32.gmra.mrb[0].mxu0 %v1109
          %v2172 = vpop.f32.mrb[0].mxu0
          %v2173 = vadd.f32 0.0, %v2172
          %v2174 = vpop.f32.mrb[0].mxu0
          %v2175 = vadd.f32 0.0, %v2174
          %2176 = vmatprep.mubr.f32.mxu0 0.0
          %2177 = vmatmul.mubr.f32.gmra.mrb[0].mxu0 %v1110
          %v2178 = vpop.f32.mrb[0].mxu0
          %v2179 = vadd.f32 0.0, %v2178
          %v2180 = vpop.f32.mrb[0].mxu0
          %v2181 = vadd.f32 0.0, %v2180
          %2182 = vmatprep.mubr.f32.mxu0 0.0
          %2183 = vmatmul.mubr.f32.gmra.mrb[0].mxu0 %v1111
          %v2184 = vpop.f32.mrb[0].mxu0
          %v2185 = vadd.f32 0.0, %v2184
          %v2186 = vpop.f32.mrb[0].mxu0
          %v2187 = vadd.f32 0.0, %v2186
          %2188 = vmatprep.mubr.f32.mxu0 0.0
          %2189 = vmatmul.mubr.f32.gmra.mrb[0].mxu0 %v1112
          %v2190 = vpop.f32.mrb[0].mxu0
          %v2191 = vadd.f32 0.0, %v2190
          %v2192 = vpop.f32.mrb[0].mxu0
          %v2193 = vadd.f32 0.0, %v2192
          %2194 = vmatprep.mubr.f32.mxu0 0.0
          %2195 = vmatmul.mubr.f32.gmra.mrb[0].mxu0 %v1113
          %v2196 = vpop.f32.mrb[0].mxu0
          %v2197 = vadd.f32 0.0, %v2196
          %v2198 = vpop.f32.mrb[0].mxu0
          %v2199 = vadd.f32 0.0, %v2198
          %2200 = vmatprep.mubr.f32.mxu0 0.0
          %2201 = vmatmul.mubr.f32.gmra.mrb[0].mxu0 %v1114
          %v2202 = vpop.f32.mrb[0].mxu0
          %v2203 = vadd.f32 0.0, %v2202
          %v2204 = vpop.f32.mrb[0].mxu0
          %v2205 = vadd.f32 0.0, %v2204
          %2206 = vmatprep.mubr.f32.mxu0 0.0
          %2207 = vmatmul.mubr.f32.gmra.mrb[0].mxu0 %v1115
          %v2208 = vpop.f32.mrb[0].mxu0
          %v2209 = vadd.f32 0.0, %v2208
          %v2210 = vpop.f32.mrb[0].mxu0
          %v2211 = vadd.f32 0.0, %v2210
          %2212 = vmatprep.mubr.f32.mxu0 0.0
          %2213 = vmatmul.mubr.f32.gmra.mrb[0].mxu0 %v1116
          %v2214 = vpop.f32.mrb[0].mxu0
          %v2215 = vadd.f32 0.0, %v2214
          %v2216 = vpop.f32.mrb[0].mxu0
          %v2217 = vadd.f32 0.0, %v2216
          %2218 = vmatprep.mubr.f32.mxu0 0.0
          %2219 = vmatmul.mubr.f32.gmra.mrb[0].mxu0 %v1117
          %v2220 = vpop.f32.mrb[0].mxu0
          %v2221 = vadd.f32 0.0, %v2220
          %v2222 = vpop.f32.mrb[0].mxu0
          %v2223 = vadd.f32 0.0, %v2222
          %2224 = vmatprep.mubr.f32.mxu0 0.0
          %2225 = vmatmul.mubr.f32.gmra.mrb[0].mxu0 %v1118
          %v2226 = vpop.f32.mrb[0].mxu0
          %v2227 = vadd.f32 0.0, %v2226
          %v2228 = vpop.f32.mrb[0].mxu0
          %v2229 = vadd.f32 0.0, %v2228
          %2230 = vmatprep.mubr.f32.mxu0 0.0
          %2231 = vmatmul.mubr.f32.gmra.mrb[0].mxu0 %v1119
          %v2232 = vpop.f32.mrb[0].mxu0
          %v2233 = vadd.f32 0.0, %v2232
          %v2234 = vpop.f32.mrb[0].mxu0
          %v2235 = vadd.f32 0.0, %v2234
          %2236 = vmatprep.mubr.f32.mxu0 0.0
          %2237 = vmatmul.mubr.f32.gmra.mrb[0].mxu0 %v1120
          %v2238 = vpop.f32.mrb[0].mxu0
          %v2239 = vadd.f32 0.0, %v2238
          %v2240 = vpop.f32.mrb[0].mxu0
          %v2241 = vadd.f32 0.0, %v2240
          %2242 = vmatprep.mubr.f32.mxu0 0.0
          %2243 = vmatmul.mubr.f32.gmra.mrb[0].mxu0 %v1121
          %v2244 = vpop.f32.mrb[0].mxu0
          %v2245 = vadd.f32 0.0, %v2244
          %v2246 = vpop.f32.mrb[0].mxu0
          %v2247 = vadd.f32 0.0, %v2246
          %2248 = vmatprep.mubr.f32.mxu0 0.0
          %2249 = vmatmul.mubr.f32.gmra.mrb[0].mxu0 %v1122
          %v2250 = vpop.f32.mrb[0].mxu0
          %v2251 = vadd.f32 0.0, %v2250
          %v2252 = vpop.f32.mrb[0].mxu0
          %v2253 = vadd.f32 0.0, %v2252
          %2254 = vmatprep.mubr.f32.mxu0 0.0
          %2255 = vmatmul.mubr.f32.gmra.mrb[0].mxu0 %v1123
          %v2256 = vpop.f32.mrb[0].mxu0
          %v2257 = vadd.f32 0.0, %v2256
          %v2258 = vpop.f32.mrb[0].mxu0
          %v2259 = vadd.f32 0.0, %v2258
          %2260 = vmatprep.mubr.f32.mxu0 0.0
          %2261 = vmatmul.mubr.f32.gmra.mrb[0].mxu0 %v1124
          %v2262 = vpop.f32.mrb[0].mxu0
          %v2263 = vadd.f32 0.0, %v2262
          %v2264 = vpop.f32.mrb[0].mxu0
          %v2265 = vadd.f32 0.0, %v2264
          %2266 = vmatprep.mubr.f32.mxu0 0.0
          %2267 = vmatmul.mubr.f32.gmra.mrb[0].mxu0 %v1125
          %v2268 = vpop.f32.mrb[0].mxu0
          %v2269 = vadd.f32 0.0, %v2268
          %v2270 = vpop.f32.mrb[0].mxu0
          %v2271 = vadd.f32 0.0, %v2270
          %2272 = vmatprep.mubr.f32.mxu0 0.0
          %2273 = vmatmul.mubr.f32.gmra.mrb[0].mxu0 %v1126
          %v2274 = vpop.f32.mrb[0].mxu0
          %v2275 = vadd.f32 0.0, %v2274
          %v2276 = vpop.f32.mrb[0].mxu0
          %v2277 = vadd.f32 0.0, %v2276
          %2278 = vmatprep.mubr.f32.mxu0 0.0
          %2279 = vmatmul.mubr.f32.gmra.mrb[0].mxu0 %v1127
          %v2280 = vpop.f32.mrb[0].mxu0
          %v2281 = vadd.f32 0.0, %v2280
          %v2282 = vpop.f32.mrb[0].mxu0
          %v2283 = vadd.f32 0.0, %v2282
          %2284 = vmatprep.mubr.f32.mxu0 0.0
          %2285 = vmatmul.mubr.f32.gmra.mrb[0].mxu0 %v1128
          %v2286 = vpop.f32.mrb[0].mxu0
          %v2287 = vadd.f32 0.0, %v2286
          %v2288 = vpop.f32.mrb[0].mxu0
          %v2289 = vadd.f32 0.0, %v2288
          %2290 = vmatprep.mubr.f32.mxu0 0.0
          %2291 = vmatmul.mubr.f32.gmra.mrb[0].mxu0 %v1129
          %v2292 = vpop.f32.mrb[0].mxu0
          %v2293 = vadd.f32 0.0, %v2292
          %v2294 = vpop.f32.mrb[0].mxu0
          %v2295 = vadd.f32 0.0, %v2294
          %2296 = vmatprep.mubr.f32.mxu0 0.0
          %2297 = vmatmul.mubr.f32.gmra.mrb[0].mxu0 %v1130
          %v2298 = vpop.f32.mrb[0].mxu0
          %v2299 = vadd.f32 0.0, %v2298
          %v2300 = vpop.f32.mrb[0].mxu0
          %v2301 = vadd.f32 0.0, %v2300
          %2302 = vmatprep.mubr.f32.mxu0 0.0
          %2303 = vmatmul.mubr.f32.gmra.mrb[0].mxu0 %v1131
          %v2304 = vpop.f32.mrb[0].mxu0
          %v2305 = vadd.f32 0.0, %v2304
          %v2306 = vpop.f32.mrb[0].mxu0
          %v2307 = vadd.f32 0.0, %v2306
          %2308 = vmatprep.mubr.f32.mxu0 0.0
          %2309 = vmatmul.mubr.f32.gmra.mrb[0].mxu0 %v1132
          %v2310 = vpop.f32.mrb[0].mxu0
          %v2311 = vadd.f32 0.0, %v2310
          %v2312 = vpop.f32.mrb[0].mxu0
          %v2313 = vadd.f32 0.0, %v2312
          %2314 = vmatprep.mubr.f32.mxu0 0.0
          %2315 = vmatmul.mubr.f32.gmra.mrb[0].mxu0 %v1133
          %v2316 = vpop.f32.mrb[0].mxu0
          %v2317 = vadd.f32 0.0, %v2316
          %v2318 = vpop.f32.mrb[0].mxu0
          %v2319 = vadd.f32 0.0, %v2318
          %2320 = vmatprep.mubr.f32.mxu0 0.0
          %2321 = vmatmul.mubr.f32.gmra.mrb[0].mxu0 %v1134
          %v2322 = vpop.f32.mrb[0].mxu0
          %v2323 = vpop.f32.mrb[0].mxu0
          %v2324 = vadd.f32 0.0, %v2323
          %2325 = vmatprep.mubr.f32.mxu0 0.0
          %2326 = vmatmul.mubr.f32.gmra.mrb[0].mxu0 %v1135
          %v2327 = vpop.f32.mrb[0].mxu0
          %v2328 = vpop.f32.mrb[0].mxu0
          %v2329 = vadd.f32 0.0, %v2328
          %2330 = vmatprep.mubr.f32.mxu0 0.0
          %2331 = vmatmul.mubr.f32.gmra.mrb[0].mxu0 %v1136
          %v2332 = vpop.f32.mrb[0].mxu0
          %v2333 = vpop.f32.mrb[0].mxu0
          %v2334 = vadd.f32 0.0, %v2333
          %2335 = vmatprep.mubr.f32.mxu0 0.0
          %2336 = vmatmul.mubr.f32.gmra.mrb[0].mxu0 %v1137
          %v2337 = vpop.f32.mrb[0].mxu0
          %v2338 = vpop.f32.mrb[0].mxu0
          %v2339 = vadd.f32 0.0, %v2338
          %2340 = vmatprep.mubr.f32.mxu0 0.0
          %2341 = vmatmul.mubr.f32.gmra.mrb[0].mxu0 %v1138
          %v2342 = vpop.f32.mrb[0].mxu0
          %v2343 = vpop.f32.mrb[0].mxu0
          %v2344 = vadd.f32 0.0, %v2343
          %2345 = vmatprep.mubr.f32.mxu0 0.0
          %2346 = vmatmul.mubr.f32.gmra.mrb[0].mxu0 %v1139
          %v2347 = vpop.f32.mrb[0].mxu0
          %v2348 = vpop.f32.mrb[0].mxu0
          %2349 = vmatprep.mubr.f32.mxu0 0.0
          %2350 = vmatmul.mubr.f32.gmra.mrb[0].mxu0 %v1140
          %v2351 = vpop.f32.mrb[0].mxu0
          %v2352 = vpop.f32.mrb[0].mxu0
          %2353 = vmatprep.mubr.f32.mxu0 0.0
          %2354 = vmatmul.mubr.f32.gmra.mrb[0].mxu0 %v1141
          %v2355 = vpop.f32.mrb[0].mxu0
          %v2356 = vpop.f32.mrb[0].mxu0
          %2357 = vmatprep.mubr.f32.mxu0 0.0
          %2358 = vmatmul.mubr.f32.gmra.mrb[0].mxu0 %v1142
          %v2359 = vpop.f32.mrb[0].mxu0
          %v2360 = vpop.f32.mrb[0].mxu0
          %2361 = vmatprep.mubr.f32.mxu0 0.0
          %2362 = vmatmul.mubr.f32.gmra.mrb[0].mxu0 %v1143
          %v2363 = vpop.f32.mrb[0].mxu0
          %v2364 = vpop.f32.mrb[0].mxu0
          %2365 = vmatprep.mubr.f32.mxu0 0.0
          %2366 = vmatmul.mubr.f32.gmra.mrb[0].mxu0 %v1144
          %v2367 = vpop.f32.mrb[0].mxu0
          %v2368 = vpop.f32.mrb[0].mxu0
          %2369 = vmatprep.mubr.f32.mxu0 0.0
          %2370 = vmatmul.mubr.f32.gmra.mrb[0].mxu0 %v1145
          %v2371 = vpop.f32.mrb[0].mxu0
          %v2372 = vpop.f32.mrb[0].mxu0
          %2373 = vdwg.mxu0
          %2374 = vmatprep.subr.mxu0 %v1151
          %2375 = vmatpush1.msra.mxu0 %v1150
          %2376 = vmatprep.subr.mxu0 %v1159
          %2377 = vmatpush1.msra.mxu0 %v1158
          %2378 = vmatprep.subr.mxu0 %v1167
          %2379 = vmatpush1.msra.mxu0 %v1166
          %2380 = vmatprep.subr.mxu0 %v1175
          %2381 = vmatpush1.msra.mxu0 %v1174
          %2382 = vmatprep.subr.mxu0 %v1183
          %2383 = vmatpush1.msra.mxu0 %v1182
          %2384 = vmatprep.subr.mxu0 %v1191
          %2385 = vmatpush1.msra.mxu0 %v1190
          %2386 = vmatprep.subr.mxu0 %v1199
          %2387 = vmatpush1.msra.mxu0 %v1198
          %2388 = vmatprep.subr.mxu0 %v1207
          %2389 = vmatpush1.msra.mxu0 %v1206
          %2390 = vmatprep.subr.mxu0 %v1215
          %2391 = vmatpush1.msra.mxu0 %v1214
          %2392 = vmatprep.subr.mxu0 %v1223
          %2393 = vmatpush1.msra.mxu0 %v1222
          %2394 = vmatprep.subr.mxu0 %v1231
          %2395 = vmatpush1.msra.mxu0 %v1230
          %2396 = vmatprep.subr.mxu0 %v1239
          %2397 = vmatpush1.msra.mxu0 %v1238
          %2398 = vmatprep.subr.mxu0 %v1247
          %2399 = vmatpush1.msra.mxu0 %v1246
          %2400 = vmatprep.subr.mxu0 %v1255
          %2401 = vmatpush1.msra.mxu0 %v1254
          %2402 = vmatprep.subr.mxu0 %v1263
          %2403 = vmatpush1.msra.mxu0 %v1262
          %2404 = vmatprep.subr.mxu0 %v1271
          %2405 = vmatpush1.msra.mxu0 %v1270
          %2406 = vmatprep.subr.mxu0 0.0
          %2407 = vmatpush1.msra.mxu0 0.0
          %2408 = vmatprep.subr.mxu0 0.0
          %2409 = vmatpush1.msra.mxu0 0.0
          %2410 = vmatprep.subr.mxu0 0.0
          %2411 = vmatpush1.msra.mxu0 0.0
          %2412 = vmatprep.subr.mxu0 0.0
          %2413 = vmatpush1.msra.mxu0 0.0
          %2414 = vmatprep.subr.mxu0 0.0
          %2415 = vmatpush1.msra.mxu0 0.0
          %2416 = vmatprep.subr.mxu0 0.0
          %2417 = vmatpush1.msra.mxu0 0.0
          %2418 = vmatprep.subr.mxu0 0.0
          %2419 = vmatpush1.msra.mxu0 0.0
          %2420 = vmatprep.subr.mxu0 0.0
          %2421 = vmatpush1.msra.mxu0 0.0
          %2422 = vmatprep.subr.mxu0 0.0
          %2423 = vmatpush1.msra.mxu0 0.0
          %2424 = vmatprep.subr.mxu0 0.0
          %2425 = vmatpush1.msra.mxu0 0.0
          %2426 = vmatprep.subr.mxu0 0.0
          %2427 = vmatpush1.msra.mxu0 0.0
          %2428 = vmatprep.subr.mxu0 0.0
          %2429 = vmatpush1.msra.mxu0 0.0
          %2430 = vmatprep.subr.mxu0 0.0
          %2431 = vmatpush1.msra.mxu0 0.0
          %2432 = vmatprep.subr.mxu0 0.0
          %2433 = vmatpush1.msra.mxu0 0.0
          %2434 = vmatprep.subr.mxu0 0.0
          %2435 = vmatpush1.msra.mxu0 0.0
          %2436 = vmatprep.subr.mxu0 0.0
          %2437 = vmatpush1.msra.mxu0 0.0
          %2438 = vmatprep.mubr.f32.mxu0 0.0
          %2439 = vmatmul.mubr.f32.gmra.mrb[0].mxu0 %v1061
          %v2440 = vpop.f32.mrb[0].mxu0
          %v2441 = vpop.f32.mrb[0].mxu0
          %2442 = vmatprep.mubr.f32.mxu0 0.0
          %2443 = vmatmul.mubr.f32.gmra.mrb[0].mxu0 %v1062
          %v2444 = vpop.f32.mrb[0].mxu0
          %v2445 = vpop.f32.mrb[0].mxu0
          %2446 = vmatprep.mubr.f32.mxu0 0.0
          %2447 = vmatmul.mubr.f32.gmra.mrb[0].mxu0 %v1063
          %v2448 = vpop.f32.mrb[0].mxu0
          %v2449 = vpop.f32.mrb[0].mxu0
          %2450 = vmatprep.mubr.f32.mxu0 0.0
          %2451 = vmatmul.mubr.f32.gmra.mrb[0].mxu0 %v1064
          %v2452 = vpop.f32.mrb[0].mxu0
          %v2453 = vpop.f32.mrb[0].mxu0
          %2454 = vmatprep.mubr.f32.mxu0 0.0
          %2455 = vmatmul.mubr.f32.gmra.mrb[0].mxu0 %v1065
          %v2456 = vpop.f32.mrb[0].mxu0
          %v2457 = vpop.f32.mrb[0].mxu0
          %2458 = vmatprep.mubr.f32.mxu0 0.0
          %2459 = vmatmul.mubr.f32.gmra.mrb[0].mxu0 %v1066
          %v2460 = vpop.f32.mrb[0].mxu0
          %v2461 = vpop.f32.mrb[0].mxu0
          %2462 = vmatprep.mubr.f32.mxu0 0.0
          %2463 = vmatmul.mubr.f32.gmra.mrb[0].mxu0 %v1067
          %v2464 = vpop.f32.mrb[0].mxu0
          %v2465 = vadd.f32 0.0, %v2464
          %v2466 = vpop.f32.mrb[0].mxu0
          %v2467 = vadd.f32 0.0, %v2466
          %2468 = vmatprep.mubr.f32.mxu0 0.0
          %2469 = vmatmul.mubr.f32.gmra.mrb[0].mxu0 %v1068
          %v2470 = vpop.f32.mrb[0].mxu0
          %v2471 = vadd.f32 0.0, %v2470
          %v2472 = vpop.f32.mrb[0].mxu0
          %v2473 = vadd.f32 0.0, %v2472
          %2474 = vmatprep.mubr.f32.mxu0 0.0
          %2475 = vmatmul.mubr.f32.gmra.mrb[0].mxu0 %v1069
          %v2476 = vpop.f32.mrb[0].mxu0
          %v2477 = vadd.f32 0.0, %v2476
          %v2478 = vpop.f32.mrb[0].mxu0
          %v2479 = vadd.f32 0.0, %v2478
          %2480 = vmatprep.mubr.f32.mxu0 0.0
          %2481 = vmatmul.mubr.f32.gmra.mrb[0].mxu0 %v1070
          %v2482 = vpop.f32.mrb[0].mxu0
          %v2483 = vadd.f32 0.0, %v2482
          %v2484 = vpop.f32.mrb[0].mxu0
          %v2485 = vadd.f32 0.0, %v2484
          %2486 = vmatprep.mubr.f32.mxu0 0.0
          %2487 = vmatmul.mubr.f32.gmra.mrb[0].mxu0 %v1071
          %v2488 = vpop.f32.mrb[0].mxu0
          %v2489 = vadd.f32 0.0, %v2488
          %v2490 = vpop.f32.mrb[0].mxu0
          %v2491 = vadd.f32 0.0, %v2490
          %2492 = vmatprep.mubr.f32.mxu0 0.0
          %2493 = vmatmul.mubr.f32.gmra.mrb[0].mxu0 %v1072
          %v2494 = vpop.f32.mrb[0].mxu0
          %v2495 = vadd.f32 0.0, %v2494
          %v2496 = vpop.f32.mrb[0].mxu0
          %v2497 = vadd.f32 0.0, %v2496
          %2498 = vmatprep.mubr.f32.mxu0 0.0
          %2499 = vmatmul.mubr.f32.gmra.mrb[0].mxu0 %v1073
          %v2500 = vpop.f32.mrb[0].mxu0
          %v2501 = vadd.f32 0.0, %v2500
          %v2502 = vpop.f32.mrb[0].mxu0
          %v2503 = vadd.f32 0.0, %v2502
          %2504 = vmatprep.mubr.f32.mxu0 0.0
          %2505 = vmatmul.mubr.f32.gmra.mrb[0].mxu0 %v1074
          %v2506 = vpop.f32.mrb[0].mxu0
          %v2507 = vadd.f32 0.0, %v2506
          %v2508 = vpop.f32.mrb[0].mxu0
          %v2509 = vadd.f32 0.0, %v2508
          %2510 = vmatprep.mubr.f32.mxu0 0.0
          %2511 = vmatmul.mubr.f32.gmra.mrb[0].mxu0 %v1075
          %v2512 = vpop.f32.mrb[0].mxu0
          %v2513 = vadd.f32 0.0, %v2512
          %v2514 = vpop.f32.mrb[0].mxu0
          %v2515 = vadd.f32 0.0, %v2514
          %2516 = vmatprep.mubr.f32.mxu0 0.0
          %2517 = vmatmul.mubr.f32.gmra.mrb[0].mxu0 %v1076
          %v2518 = vpop.f32.mrb[0].mxu0
          %v2519 = vadd.f32 0.0, %v2518
          %v2520 = vpop.f32.mrb[0].mxu0
          %v2521 = vadd.f32 0.0, %v2520
          %2522 = vmatprep.mubr.f32.mxu0 0.0
          %2523 = vmatmul.mubr.f32.gmra.mrb[0].mxu0 %v1077
          %v2524 = vpop.f32.mrb[0].mxu0
          %v2525 = vadd.f32 0.0, %v2524
          %v2526 = vpop.f32.mrb[0].mxu0
          %v2527 = vadd.f32 0.0, %v2526
          %2528 = vmatprep.mubr.f32.mxu0 0.0
          %2529 = vmatmul.mubr.f32.gmra.mrb[0].mxu0 %v1078
          %v2530 = vpop.f32.mrb[0].mxu0
          %v2531 = vadd.f32 0.0, %v2530
          %v2532 = vpop.f32.mrb[0].mxu0
          %v2533 = vadd.f32 0.0, %v2532
          %2534 = vmatprep.mubr.f32.mxu0 0.0
          %2535 = vmatmul.mubr.f32.gmra.mrb[0].mxu0 %v1079
          %v2536 = vpop.f32.mrb[0].mxu0
          %v2537 = vadd.f32 0.0, %v2536
          %v2538 = vpop.f32.mrb[0].mxu0
          %v2539 = vadd.f32 0.0, %v2538
          %2540 = vmatprep.mubr.f32.mxu0 0.0
          %2541 = vmatmul.mubr.f32.gmra.mrb[0].mxu0 %v1080
          %v2542 = vpop.f32.mrb[0].mxu0
          %v2543 = vadd.f32 0.0, %v2542
          %v2544 = vpop.f32.mrb[0].mxu0
          %v2545 = vadd.f32 0.0, %v2544
          %2546 = vmatprep.mubr.f32.mxu0 0.0
          %2547 = vmatmul.mubr.f32.gmra.mrb[0].mxu0 %v1081
          %v2548 = vpop.f32.mrb[0].mxu0
          %v2549 = vadd.f32 0.0, %v2548
          %v2550 = vpop.f32.mrb[0].mxu0
          %v2551 = vadd.f32 0.0, %v2550
          %2552 = vmatprep.mubr.f32.mxu0 0.0
          %2553 = vmatmul.mubr.f32.gmra.mrb[0].mxu0 %v1082
          %v2554 = vpop.f32.mrb[0].mxu0
          %v2555 = vadd.f32 0.0, %v2554
          %v2556 = vpop.f32.mrb[0].mxu0
          %v2557 = vadd.f32 0.0, %v2556
          %2558 = vmatprep.mubr.f32.mxu0 0.0
          %2559 = vmatmul.mubr.f32.gmra.mrb[0].mxu0 %v1083
          %v2560 = vpop.f32.mrb[0].mxu0
          %v2561 = vadd.f32 0.0, %v2560
          %v2562 = vpop.f32.mrb[0].mxu0
          %v2563 = vadd.f32 0.0, %v2562
          %2564 = vmatprep.mubr.f32.mxu0 0.0
          %2565 = vmatmul.mubr.f32.gmra.mrb[0].mxu0 %v1084
          %v2566 = vpop.f32.mrb[0].mxu0
          %v2567 = vadd.f32 0.0, %v2566
          %v2568 = vpop.f32.mrb[0].mxu0
          %v2569 = vadd.f32 0.0, %v2568
          %2570 = vmatprep.mubr.f32.mxu0 0.0
          %2571 = vmatmul.mubr.f32.gmra.mrb[0].mxu0 %v1085
          %v2572 = vpop.f32.mrb[0].mxu0
          %v2573 = vadd.f32 0.0, %v2572
          %v2574 = vpop.f32.mrb[0].mxu0
          %v2575 = vadd.f32 0.0, %v2574
          %2576 = vmatprep.mubr.f32.mxu0 0.0
          %2577 = vmatmul.mubr.f32.gmra.mrb[0].mxu0 %v1086
          %v2578 = vpop.f32.mrb[0].mxu0
          %v2579 = vadd.f32 0.0, %v2578
          %v2580 = vpop.f32.mrb[0].mxu0
          %v2581 = vadd.f32 0.0, %v2580
          %2582 = vmatprep.mubr.f32.mxu0 0.0
          %2583 = vmatmul.mubr.f32.gmra.mrb[0].mxu0 %v1087
          %v2584 = vpop.f32.mrb[0].mxu0
          %v2585 = vadd.f32 0.0, %v2584
          %v2586 = vpop.f32.mrb[0].mxu0
          %v2587 = vadd.f32 0.0, %v2586
          %2588 = vmatprep.mubr.f32.mxu0 0.0
          %2589 = vmatmul.mubr.f32.gmra.mrb[0].mxu0 %v1088
          %v2590 = vpop.f32.mrb[0].mxu0
          %v2591 = vadd.f32 0.0, %v2590
          %v2592 = vpop.f32.mrb[0].mxu0
          %v2593 = vadd.f32 0.0, %v2592
          %2594 = vmatprep.mubr.f32.mxu0 0.0
          %2595 = vmatmul.mubr.f32.gmra.mrb[0].mxu0 %v1089
          %v2596 = vpop.f32.mrb[0].mxu0
          %v2597 = vadd.f32 0.0, %v2596
          %v2598 = vpop.f32.mrb[0].mxu0
          %v2599 = vadd.f32 0.0, %v2598
          %2600 = vmatprep.mubr.f32.mxu0 0.0
          %2601 = vmatmul.mubr.f32.gmra.mrb[0].mxu0 %v1090
          %v2602 = vpop.f32.mrb[0].mxu0
          %v2603 = vadd.f32 0.0, %v2602
          %v2604 = vpop.f32.mrb[0].mxu0
          %v2605 = vadd.f32 0.0, %v2604
          %2606 = vmatprep.mubr.f32.mxu0 0.0
          %2607 = vmatmul.mubr.f32.gmra.mrb[0].mxu0 %v1091
          %v2608 = vpop.f32.mrb[0].mxu0
          %v2609 = vadd.f32 0.0, %v2608
          %v2610 = vpop.f32.mrb[0].mxu0
          %v2611 = vadd.f32 0.0, %v2610
          %2612 = vmatprep.mubr.f32.mxu0 0.0
          %2613 = vmatmul.mubr.f32.gmra.mrb[0].mxu0 %v1092
          %v2614 = vpop.f32.mrb[0].mxu0
          %v2615 = vadd.f32 0.0, %v2614
          %v2616 = vpop.f32.mrb[0].mxu0
          %v2617 = vadd.f32 0.0, %v2616
          %2618 = vmatprep.mubr.f32.mxu0 0.0
          %2619 = vmatmul.mubr.f32.gmra.mrb[0].mxu0 %v1093
          %v2620 = vpop.f32.mrb[0].mxu0
          %v2621 = vadd.f32 0.0, %v2620
          %v2622 = vpop.f32.mrb[0].mxu0
          %v2623 = vadd.f32 0.0, %v2622
          %2624 = vmatprep.mubr.f32.mxu0 0.0
          %2625 = vmatmul.mubr.f32.gmra.mrb[0].mxu0 %v1094
          %v2626 = vpop.f32.mrb[0].mxu0
          %v2627 = vadd.f32 0.0, %v2626
          %v2628 = vpop.f32.mrb[0].mxu0
          %v2629 = vadd.f32 0.0, %v2628
          %2630 = vmatprep.mubr.f32.mxu0 0.0
          %2631 = vmatmul.mubr.f32.gmra.mrb[0].mxu0 %v1095
          %v2632 = vpop.f32.mrb[0].mxu0
          %v2633 = vadd.f32 0.0, %v2632
          %v2634 = vpop.f32.mrb[0].mxu0
          %v2635 = vadd.f32 0.0, %v2634
          %2636 = vmatprep.mubr.f32.mxu0 0.0
          %2637 = vmatmul.mubr.f32.gmra.mrb[0].mxu0 %v1096
          %v2638 = vpop.f32.mrb[0].mxu0
          %v2639 = vadd.f32 0.0, %v2638
          %v2640 = vpop.f32.mrb[0].mxu0
          %v2641 = vadd.f32 0.0, %v2640
          %2642 = vmatprep.mubr.f32.mxu0 0.0
          %2643 = vmatmul.mubr.f32.gmra.mrb[0].mxu0 %v1097
          %v2644 = vpop.f32.mrb[0].mxu0
          %v2645 = vadd.f32 0.0, %v2644
          %v2646 = vpop.f32.mrb[0].mxu0
          %v2647 = vadd.f32 0.0, %v2646
          %2648 = vmatprep.mubr.f32.mxu0 0.0
          %2649 = vmatmul.mubr.f32.gmra.mrb[0].mxu0 %v1098
          %v2650 = vpop.f32.mrb[0].mxu0
          %v2651 = vadd.f32 0.0, %v2650
          %v2652 = vpop.f32.mrb[0].mxu0
          %v2653 = vadd.f32 0.0, %v2652
          %2654 = vmatprep.mubr.f32.mxu0 0.0
          %2655 = vmatmul.mubr.f32.gmra.mrb[0].mxu0 %v1099
          %v2656 = vpop.f32.mrb[0].mxu0
          %v2657 = vadd.f32 0.0, %v2656
          %v2658 = vpop.f32.mrb[0].mxu0
          %v2659 = vadd.f32 0.0, %v2658
          %2660 = vmatprep.mubr.f32.mxu0 0.0
          %2661 = vmatmul.mubr.f32.gmra.mrb[0].mxu0 %v1100
          %v2662 = vpop.f32.mrb[0].mxu0
          %v2663 = vadd.f32 0.0, %v2662
          %v2664 = vpop.f32.mrb[0].mxu0
          %v2665 = vadd.f32 0.0, %v2664
          %2666 = vmatprep.mubr.f32.mxu0 0.0
          %2667 = vmatmul.mubr.f32.gmra.mrb[0].mxu0 %v1101
          %v2668 = vpop.f32.mrb[0].mxu0
          %v2669 = vadd.f32 0.0, %v2668
          %v2670 = vpop.f32.mrb[0].mxu0
          %v2671 = vadd.f32 0.0, %v2670
          %2672 = vmatprep.mubr.f32.mxu0 0.0
          %2673 = vmatmul.mubr.f32.gmra.mrb[0].mxu0 %v1102
          %v2674 = vpop.f32.mrb[0].mxu0
          %v2675 = vadd.f32 0.0, %v2674
          %v2676 = vpop.f32.mrb[0].mxu0
          %v2677 = vadd.f32 0.0, %v2676
          %2678 = vmatprep.mubr.f32.mxu0 0.0
          %2679 = vmatmul.mubr.f32.gmra.mrb[0].mxu0 %v1103
          %v2680 = vpop.f32.mrb[0].mxu0
          %v2681 = vadd.f32 0.0, %v2680
          %v2682 = vpop.f32.mrb[0].mxu0
          %v2683 = vadd.f32 0.0, %v2682
          %2684 = vmatprep.mubr.f32.mxu0 0.0
          %2685 = vmatmul.mubr.f32.gmra.mrb[0].mxu0 %v1104
          %v2686 = vpop.f32.mrb[0].mxu0
          %v2687 = vadd.f32 0.0, %v2686
          %v2688 = vpop.f32.mrb[0].mxu0
          %v2689 = vadd.f32 0.0, %v2688
          %2690 = vmatprep.mubr.f32.mxu0 0.0
          %2691 = vmatmul.mubr.f32.gmra.mrb[0].mxu0 %v1105
          %v2692 = vpop.f32.mrb[0].mxu0
          %v2693 = vadd.f32 0.0, %v2692
          %v2694 = vpop.f32.mrb[0].mxu0
          %v2695 = vadd.f32 0.0, %v2694
          %2696 = vmatprep.mubr.f32.mxu0 0.0
          %2697 = vmatmul.mubr.f32.gmra.mrb[0].mxu0 %v1106
          %v2698 = vpop.f32.mrb[0].mxu0
          %v2699 = vadd.f32 0.0, %v2698
          %v2700 = vpop.f32.mrb[0].mxu0
          %v2701 = vadd.f32 0.0, %v2700
          %2702 = vmatprep.mubr.f32.mxu0 0.0
          %2703 = vmatmul.mubr.f32.gmra.mrb[0].mxu0 %v1107
          %v2704 = vpop.f32.mrb[0].mxu0
          %v2705 = vadd.f32 0.0, %v2704
          %v2706 = vpop.f32.mrb[0].mxu0
          %v2707 = vadd.f32 0.0, %v2706
          %2708 = vmatprep.mubr.f32.mxu0 0.0
          %2709 = vmatmul.mubr.f32.gmra.mrb[0].mxu0 %v1108
          %v2710 = vpop.f32.mrb[0].mxu0
          %v2711 = vadd.f32 0.0, %v2710
          %v2712 = vpop.f32.mrb[0].mxu0
          %v2713 = vadd.f32 0.0, %v2712
          %2714 = vmatprep.mubr.f32.mxu0 0.0
          %2715 = vmatmul.mubr.f32.gmra.mrb[0].mxu0 %v1109
          %v2716 = vpop.f32.mrb[0].mxu0
          %v2717 = vadd.f32 0.0, %v2716
          %v2718 = vpop.f32.mrb[0].mxu0
          %v2719 = vadd.f32 0.0, %v2718
          %2720 = vmatprep.mubr.f32.mxu0 0.0
          %2721 = vmatmul.mubr.f32.gmra.mrb[0].mxu0 %v1110
          %v2722 = vpop.f32.mrb[0].mxu0
          %v2723 = vadd.f32 0.0, %v2722
          %v2724 = vpop.f32.mrb[0].mxu0
          %v2725 = vadd.f32 0.0, %v2724
          %2726 = vmatprep.mubr.f32.mxu0 0.0
          %2727 = vmatmul.mubr.f32.gmra.mrb[0].mxu0 %v1111
          %v2728 = vpop.f32.mrb[0].mxu0
          %v2729 = vadd.f32 0.0, %v2728
          %v2730 = vpop.f32.mrb[0].mxu0
          %v2731 = vadd.f32 0.0, %v2730
          %2732 = vmatprep.mubr.f32.mxu0 0.0
          %2733 = vmatmul.mubr.f32.gmra.mrb[0].mxu0 %v1112
          %v2734 = vpop.f32.mrb[0].mxu0
          %v2735 = vadd.f32 0.0, %v2734
          %v2736 = vpop.f32.mrb[0].mxu0
          %v2737 = vadd.f32 0.0, %v2736
          %2738 = vmatprep.mubr.f32.mxu0 0.0
          %2739 = vmatmul.mubr.f32.gmra.mrb[0].mxu0 %v1113
          %v2740 = vpop.f32.mrb[0].mxu0
          %v2741 = vadd.f32 0.0, %v2740
          %v2742 = vpop.f32.mrb[0].mxu0
          %v2743 = vadd.f32 0.0, %v2742
          %2744 = vmatprep.mubr.f32.mxu0 0.0
          %2745 = vmatmul.mubr.f32.gmra.mrb[0].mxu0 %v1114
          %v2746 = vpop.f32.mrb[0].mxu0
          %v2747 = vadd.f32 0.0, %v2746
          %v2748 = vpop.f32.mrb[0].mxu0
          %v2749 = vadd.f32 0.0, %v2748
          %2750 = vmatprep.mubr.f32.mxu0 0.0
          %2751 = vmatmul.mubr.f32.gmra.mrb[0].mxu0 %v1115
          %v2752 = vpop.f32.mrb[0].mxu0
          %v2753 = vadd.f32 0.0, %v2752
          %v2754 = vpop.f32.mrb[0].mxu0
          %v2755 = vadd.f32 0.0, %v2754
          %2756 = vmatprep.mubr.f32.mxu0 0.0
          %2757 = vmatmul.mubr.f32.gmra.mrb[0].mxu0 %v1116
          %v2758 = vpop.f32.mrb[0].mxu0
          %v2759 = vadd.f32 0.0, %v2758
          %v2760 = vpop.f32.mrb[0].mxu0
          %v2761 = vadd.f32 0.0, %v2760
          %2762 = vmatprep.mubr.f32.mxu0 0.0
          %2763 = vmatmul.mubr.f32.gmra.mrb[0].mxu0 %v1117
          %v2764 = vpop.f32.mrb[0].mxu0
          %v2765 = vadd.f32 0.0, %v2764
          %v2766 = vpop.f32.mrb[0].mxu0
          %v2767 = vadd.f32 0.0, %v2766
          %2768 = vmatprep.mubr.f32.mxu0 0.0
          %2769 = vmatmul.mubr.f32.gmra.mrb[0].mxu0 %v1118
          %v2770 = vpop.f32.mrb[0].mxu0
          %v2771 = vadd.f32 0.0, %v2770
          %v2772 = vpop.f32.mrb[0].mxu0
          %v2773 = vadd.f32 0.0, %v2772
          %2774 = vmatprep.mubr.f32.mxu0 0.0
          %2775 = vmatmul.mubr.f32.gmra.mrb[0].mxu0 %v1119
          %v2776 = vpop.f32.mrb[0].mxu0
          %v2777 = vadd.f32 0.0, %v2776
          %v2778 = vpop.f32.mrb[0].mxu0
          %v2779 = vadd.f32 0.0, %v2778
          %2780 = vmatprep.mubr.f32.mxu0 0.0
          %2781 = vmatmul.mubr.f32.gmra.mrb[0].mxu0 %v1120
          %v2782 = vpop.f32.mrb[0].mxu0
          %v2783 = vadd.f32 0.0, %v2782
          %v2784 = vpop.f32.mrb[0].mxu0
          %v2785 = vadd.f32 0.0, %v2784
          %2786 = vmatprep.mubr.f32.mxu0 0.0
          %2787 = vmatmul.mubr.f32.gmra.mrb[0].mxu0 %v1121
          %v2788 = vpop.f32.mrb[0].mxu0
          %v2789 = vadd.f32 0.0, %v2788
          %v2790 = vpop.f32.mrb[0].mxu0
          %v2791 = vadd.f32 0.0, %v2790
          %2792 = vmatprep.mubr.f32.mxu0 0.0
          %2793 = vmatmul.mubr.f32.gmra.mrb[0].mxu0 %v1122
          %v2794 = vpop.f32.mrb[0].mxu0
          %v2795 = vadd.f32 0.0, %v2794
          %v2796 = vpop.f32.mrb[0].mxu0
          %v2797 = vadd.f32 0.0, %v2796
          %2798 = vmatprep.mubr.f32.mxu0 0.0
          %2799 = vmatmul.mubr.f32.gmra.mrb[0].mxu0 %v1123
          %v2800 = vpop.f32.mrb[0].mxu0
          %v2801 = vadd.f32 0.0, %v2800
          %v2802 = vpop.f32.mrb[0].mxu0
          %v2803 = vadd.f32 0.0, %v2802
          %2804 = vmatprep.mubr.f32.mxu0 0.0
          %2805 = vmatmul.mubr.f32.gmra.mrb[0].mxu0 %v1124
          %v2806 = vpop.f32.mrb[0].mxu0
          %v2807 = vadd.f32 0.0, %v2806
          %v2808 = vpop.f32.mrb[0].mxu0
          %v2809 = vadd.f32 0.0, %v2808
          %2810 = vmatprep.mubr.f32.mxu0 0.0
          %2811 = vmatmul.mubr.f32.gmra.mrb[0].mxu0 %v1125
          %v2812 = vpop.f32.mrb[0].mxu0
          %v2813 = vadd.f32 0.0, %v2812
          %v2814 = vpop.f32.mrb[0].mxu0
          %v2815 = vadd.f32 0.0, %v2814
          %2816 = vmatprep.mubr.f32.mxu0 0.0
          %2817 = vmatmul.mubr.f32.gmra.mrb[0].mxu0 %v1126
          %v2818 = vpop.f32.mrb[0].mxu0
          %v2819 = vadd.f32 0.0, %v2818
          %v2820 = vpop.f32.mrb[0].mxu0
          %v2821 = vadd.f32 0.0, %v2820
          %2822 = vmatprep.mubr.f32.mxu0 0.0
          %2823 = vmatmul.mubr.f32.gmra.mrb[0].mxu0 %v1127
          %v2824 = vpop.f32.mrb[0].mxu0
          %v2825 = vadd.f32 0.0, %v2824
          %v2826 = vpop.f32.mrb[0].mxu0
          %v2827 = vadd.f32 0.0, %v2826
          %2828 = vmatprep.mubr.f32.mxu0 0.0
          %2829 = vmatmul.mubr.f32.gmra.mrb[0].mxu0 %v1128
          %v2830 = vpop.f32.mrb[0].mxu0
          %v2831 = vadd.f32 0.0, %v2830
          %v2832 = vpop.f32.mrb[0].mxu0
          %v2833 = vadd.f32 0.0, %v2832
          %2834 = vmatprep.mubr.f32.mxu0 0.0
          %2835 = vmatmul.mubr.f32.gmra.mrb[0].mxu0 %v1129
          %v2836 = vpop.f32.mrb[0].mxu0
          %v2837 = vadd.f32 0.0, %v2836
          %v2838 = vpop.f32.mrb[0].mxu0
          %v2839 = vadd.f32 0.0, %v2838
          %2840 = vmatprep.mubr.f32.mxu0 0.0
          %2841 = vmatmul.mubr.f32.gmra.mrb[0].mxu0 %v1130
          %v2842 = vpop.f32.mrb[0].mxu0
          %v2843 = vadd.f32 0.0, %v2842
          %v2844 = vpop.f32.mrb[0].mxu0
          %v2845 = vadd.f32 0.0, %v2844
          %2846 = vmatprep.mubr.f32.mxu0 0.0
          %2847 = vmatmul.mubr.f32.gmra.mrb[0].mxu0 %v1131
          %v2848 = vpop.f32.mrb[0].mxu0
          %v2849 = vadd.f32 0.0, %v2848
          %v2850 = vpop.f32.mrb[0].mxu0
          %v2851 = vadd.f32 0.0, %v2850
          %2852 = vmatprep.mubr.f32.mxu0 0.0
          %2853 = vmatmul.mubr.f32.gmra.mrb[0].mxu0 %v1132
          %v2854 = vpop.f32.mrb[0].mxu0
          %v2855 = vadd.f32 0.0, %v2854
          %v2856 = vpop.f32.mrb[0].mxu0
          %v2857 = vadd.f32 0.0, %v2856
          %2858 = vmatprep.mubr.f32.mxu0 0.0
          %2859 = vmatmul.mubr.f32.gmra.mrb[0].mxu0 %v1133
          %v2860 = vpop.f32.mrb[0].mxu0
          %v2861 = vadd.f32 0.0, %v2860
          %v2862 = vpop.f32.mrb[0].mxu0
          %v2863 = vadd.f32 0.0, %v2862
          %2864 = vmatprep.mubr.f32.mxu0 0.0
          %2865 = vmatmul.mubr.f32.gmra.mrb[0].mxu0 %v1134
          %v2866 = vpop.f32.mrb[0].mxu0
          %v2867 = vadd.f32 0.0, %v2866
          %v2868 = vpop.f32.mrb[0].mxu0
          %v2869 = vadd.f32 0.0, %v2868
          %2870 = vmatprep.mubr.f32.mxu0 0.0
          %2871 = vmatmul.mubr.f32.gmra.mrb[0].mxu0 %v1135
          %v2872 = vpop.f32.mrb[0].mxu0
          %v2873 = vadd.f32 0.0, %v2872
          %v2874 = vpop.f32.mrb[0].mxu0
          %v2875 = vadd.f32 0.0, %v2874
          %2876 = vmatprep.mubr.f32.mxu0 0.0
          %2877 = vmatmul.mubr.f32.gmra.mrb[0].mxu0 %v1136
          %v2878 = vpop.f32.mrb[0].mxu0
          %v2879 = vadd.f32 0.0, %v2878
          %v2880 = vpop.f32.mrb[0].mxu0
          %v2881 = vadd.f32 0.0, %v2880
          %2882 = vmatprep.mubr.f32.mxu0 0.0
          %2883 = vmatmul.mubr.f32.gmra.mrb[0].mxu0 %v1137
          %v2884 = vpop.f32.mrb[0].mxu0
          %v2885 = vadd.f32 0.0, %v2884
          %v2886 = vpop.f32.mrb[0].mxu0
          %v2887 = vadd.f32 0.0, %v2886
          %2888 = vmatprep.mubr.f32.mxu0 0.0
          %2889 = vmatmul.mubr.f32.gmra.mrb[0].mxu0 %v1138
          %v2890 = vpop.f32.mrb[0].mxu0
          %v2891 = vadd.f32 0.0, %v2890
          %v2892 = vpop.f32.mrb[0].mxu0
          %v2893 = vadd.f32 0.0, %v2892
          %2894 = vmatprep.mubr.f32.mxu0 0.0
          %2895 = vmatmul.mubr.f32.gmra.mrb[0].mxu0 %v1139
          %v2896 = vpop.f32.mrb[0].mxu0
          %v2897 = vadd.f32 0.0, %v2896
          %v2898 = vpop.f32.mrb[0].mxu0
          %v2899 = vadd.f32 0.0, %v2898
          %2900 = vmatprep.mubr.f32.mxu0 0.0
          %2901 = vmatmul.mubr.f32.gmra.mrb[0].mxu0 %v1140
          %v2902 = vpop.f32.mrb[0].mxu0
          %v2903 = vpop.f32.mrb[0].mxu0
          %2904 = vmatprep.mubr.f32.mxu0 0.0
          %2905 = vmatmul.mubr.f32.gmra.mrb[0].mxu0 %v1141
          %v2906 = vpop.f32.mrb[0].mxu0
          %v2907 = vpop.f32.mrb[0].mxu0
          %2908 = vmatprep.mubr.f32.mxu0 0.0
          %2909 = vmatmul.mubr.f32.gmra.mrb[0].mxu0 %v1142
          %v2910 = vpop.f32.mrb[0].mxu0
          %v2911 = vpop.f32.mrb[0].mxu0
          %2912 = vmatprep.mubr.f32.mxu0 0.0
          %2913 = vmatmul.mubr.f32.gmra.mrb[0].mxu0 %v1143
          %v2914 = vpop.f32.mrb[0].mxu0
          %v2915 = vpop.f32.mrb[0].mxu0
          %2916 = vmatprep.mubr.f32.mxu0 0.0
          %2917 = vmatmul.mubr.f32.gmra.mrb[0].mxu0 %v1144
          %v2918 = vpop.f32.mrb[0].mxu0
          %v2919 = vpop.f32.mrb[0].mxu0
          %2920 = vmatprep.mubr.f32.mxu0 0.0
          %2921 = vmatmul.mubr.f32.gmra.mrb[0].mxu0 %v1145
          %v2922 = vpop.f32.mrb[0].mxu0
          %v2923 = vpop.f32.mrb[0].mxu0
          %2924 = vdwg.mxu0
          %2925 = vmatprep.subr.mxu0 %v1153
          %2926 = vmatpush1.msra.mxu0 %v1152
          %2927 = vmatprep.subr.mxu0 %v1161
          %2928 = vmatpush1.msra.mxu0 %v1160
          %2929 = vmatprep.subr.mxu0 %v1169
          %2930 = vmatpush1.msra.mxu0 %v1168
          %2931 = vmatprep.subr.mxu0 %v1177
          %2932 = vmatpush1.msra.mxu0 %v1176
          %2933 = vmatprep.subr.mxu0 %v1185
          %2934 = vmatpush1.msra.mxu0 %v1184
          %2935 = vmatprep.subr.mxu0 %v1193
          %2936 = vmatpush1.msra.mxu0 %v1192
          %2937 = vmatprep.subr.mxu0 %v1201
          %2938 = vmatpush1.msra.mxu0 %v1200
          %2939 = vmatprep.subr.mxu0 %v1209
          %2940 = vmatpush1.msra.mxu0 %v1208
          %2941 = vmatprep.subr.mxu0 %v1217
          %2942 = vmatpush1.msra.mxu0 %v1216
          %2943 = vmatprep.subr.mxu0 %v1225
          %2944 = vmatpush1.msra.mxu0 %v1224
          %2945 = vmatprep.subr.mxu0 %v1233
          %2946 = vmatpush1.msra.mxu0 %v1232
          %2947 = vmatprep.subr.mxu0 %v1241
          %2948 = vmatpush1.msra.mxu0 %v1240
          %2949 = vmatprep.subr.mxu0 %v1249
          %2950 = vmatpush1.msra.mxu0 %v1248
          %2951 = vmatprep.subr.mxu0 %v1257
          %2952 = vmatpush1.msra.mxu0 %v1256
          %2953 = vmatprep.subr.mxu0 %v1265
          %2954 = vmatpush1.msra.mxu0 %v1264
          %2955 = vmatprep.subr.mxu0 %v1273
          %2956 = vmatpush1.msra.mxu0 %v1272
          %2957 = vmatprep.subr.mxu0 0.0
          %2958 = vmatpush1.msra.mxu0 0.0
          %2959 = vmatprep.subr.mxu0 0.0
          %2960 = vmatpush1.msra.mxu0 0.0
          %2961 = vmatprep.subr.mxu0 0.0
          %2962 = vmatpush1.msra.mxu0 0.0
          %2963 = vmatprep.subr.mxu0 0.0
          %2964 = vmatpush1.msra.mxu0 0.0
          %2965 = vmatprep.subr.mxu0 0.0
          %2966 = vmatpush1.msra.mxu0 0.0
          %2967 = vmatprep.subr.mxu0 0.0
          %2968 = vmatpush1.msra.mxu0 0.0
          %2969 = vmatprep.subr.mxu0 0.0
          %2970 = vmatpush1.msra.mxu0 0.0
          %2971 = vmatprep.subr.mxu0 0.0
          %2972 = vmatpush1.msra.mxu0 0.0
          %2973 = vmatprep.subr.mxu0 0.0
          %2974 = vmatpush1.msra.mxu0 0.0
          %2975 = vmatprep.subr.mxu0 0.0
          %2976 = vmatpush1.msra.mxu0 0.0
          %2977 = vmatprep.subr.mxu0 0.0
          %2978 = vmatpush1.msra.mxu0 0.0
          %2979 = vmatprep.subr.mxu0 0.0
          %2980 = vmatpush1.msra.mxu0 0.0
          %2981 = vmatprep.subr.mxu0 0.0
          %2982 = vmatpush1.msra.mxu0 0.0
          %2983 = vmatprep.subr.mxu0 0.0
          %2984 = vmatpush1.msra.mxu0 0.0
          %2985 = vmatprep.subr.mxu0 0.0
          %2986 = vmatpush1.msra.mxu0 0.0
          %2987 = vmatprep.subr.mxu0 0.0
          %2988 = vmatpush1.msra.mxu0 0.0
          %2989 = vmatprep.mubr.f32.mxu0 0.0
          %2990 = vmatmul.mubr.f32.gmra.mrb[0].mxu0 %v1061
          %v2991 = vpop.f32.mrb[0].mxu0
          %v2992 = vpop.f32.mrb[0].mxu0
          %2993 = vmatprep.mubr.f32.mxu0 0.0
          %2994 = vmatmul.mubr.f32.gmra.mrb[0].mxu0 %v1062
          %v2995 = vpop.f32.mrb[0].mxu0
          %v2996 = vpop.f32.mrb[0].mxu0
          %2997 = vmatprep.mubr.f32.mxu0 0.0
          %2998 = vmatmul.mubr.f32.gmra.mrb[0].mxu0 %v1063
          %v2999 = vpop.f32.mrb[0].mxu0
          %v3000 = vpop.f32.mrb[0].mxu0
          %3001 = vmatprep.mubr.f32.mxu0 0.0
          %3002 = vmatmul.mubr.f32.gmra.mrb[0].mxu0 %v1064
          %v3003 = vpop.f32.mrb[0].mxu0
          %v3004 = vpop.f32.mrb[0].mxu0
          %3005 = vmatprep.mubr.f32.mxu0 0.0
          %3006 = vmatmul.mubr.f32.gmra.mrb[0].mxu0 %v1065
          %v3007 = vpop.f32.mrb[0].mxu0
          %v3008 = vpop.f32.mrb[0].mxu0
          %3009 = vmatprep.mubr.f32.mxu0 0.0
          %3010 = vmatmul.mubr.f32.gmra.mrb[0].mxu0 %v1066
          %v3011 = vpop.f32.mrb[0].mxu0
          %v3012 = vpop.f32.mrb[0].mxu0
          %3013 = vmatprep.mubr.f32.mxu0 0.0
          %3014 = vmatmul.mubr.f32.gmra.mrb[0].mxu0 %v1067
          %v3015 = vpop.f32.mrb[0].mxu0
          %v3016 = vpop.f32.mrb[0].mxu0
          %3017 = vmatprep.mubr.f32.mxu0 0.0
          %3018 = vmatmul.mubr.f32.gmra.mrb[0].mxu0 %v1068
          %v3019 = vpop.f32.mrb[0].mxu0
          %v3020 = vpop.f32.mrb[0].mxu0
          %3021 = vmatprep.mubr.f32.mxu0 0.0
          %3022 = vmatmul.mubr.f32.gmra.mrb[0].mxu0 %v1069
          %v3023 = vpop.f32.mrb[0].mxu0
          %v3024 = vpop.f32.mrb[0].mxu0
          %3025 = vmatprep.mubr.f32.mxu0 0.0
          %3026 = vmatmul.mubr.f32.gmra.mrb[0].mxu0 %v1070
          %v3027 = vpop.f32.mrb[0].mxu0
          %v3028 = vpop.f32.mrb[0].mxu0
          %3029 = vmatprep.mubr.f32.mxu0 0.0
          %3030 = vmatmul.mubr.f32.gmra.mrb[0].mxu0 %v1071
          %v3031 = vpop.f32.mrb[0].mxu0
          %v3032 = vpop.f32.mrb[0].mxu0
          %3033 = vmatprep.mubr.f32.mxu0 0.0
          %3034 = vmatmul.mubr.f32.gmra.mrb[0].mxu0 %v1072
          %v3035 = vpop.f32.mrb[0].mxu0
          %v3036 = vpop.f32.mrb[0].mxu0
          %3037 = vmatprep.mubr.f32.mxu0 0.0
          %3038 = vmatmul.mubr.f32.gmra.mrb[0].mxu0 %v1073
          %v3039 = vpop.f32.mrb[0].mxu0
          %v3040 = vadd.f32 0.0, %v3039
          %v3041 = vpop.f32.mrb[0].mxu0
          %v3042 = vadd.f32 0.0, %v3041
          %3043 = vmatprep.mubr.f32.mxu0 0.0
          %3044 = vmatmul.mubr.f32.gmra.mrb[0].mxu0 %v1074
          %v3045 = vpop.f32.mrb[0].mxu0
          %v3046 = vadd.f32 0.0, %v3045
          %v3047 = vpop.f32.mrb[0].mxu0
          %v3048 = vadd.f32 0.0, %v3047
          %3049 = vmatprep.mubr.f32.mxu0 0.0
          %3050 = vmatmul.mubr.f32.gmra.mrb[0].mxu0 %v1075
          %v3051 = vpop.f32.mrb[0].mxu0
          %v3052 = vadd.f32 0.0, %v3051
          %v3053 = vpop.f32.mrb[0].mxu0
          %v3054 = vadd.f32 0.0, %v3053
          %3055 = vmatprep.mubr.f32.mxu0 0.0
          %3056 = vmatmul.mubr.f32.gmra.mrb[0].mxu0 %v1076
          %v3057 = vpop.f32.mrb[0].mxu0
          %v3058 = vadd.f32 0.0, %v3057
          %v3059 = vpop.f32.mrb[0].mxu0
          %v3060 = vadd.f32 0.0, %v3059
          %3061 = vmatprep.mubr.f32.mxu0 0.0
          %3062 = vmatmul.mubr.f32.gmra.mrb[0].mxu0 %v1077
          %v3063 = vpop.f32.mrb[0].mxu0
          %v3064 = vadd.f32 0.0, %v3063
          %v3065 = vpop.f32.mrb[0].mxu0
          %v3066 = vadd.f32 0.0, %v3065
          %3067 = vmatprep.mubr.f32.mxu0 0.0
          %3068 = vmatmul.mubr.f32.gmra.mrb[0].mxu0 %v1078
          %v3069 = vpop.f32.mrb[0].mxu0
          %v3070 = vadd.f32 0.0, %v3069
          %v3071 = vpop.f32.mrb[0].mxu0
          %v3072 = vadd.f32 0.0, %v3071
          %3073 = vmatprep.mubr.f32.mxu0 0.0
          %3074 = vmatmul.mubr.f32.gmra.mrb[0].mxu0 %v1079
          %v3075 = vpop.f32.mrb[0].mxu0
          %v3076 = vadd.f32 0.0, %v3075
          %v3077 = vpop.f32.mrb[0].mxu0
          %v3078 = vadd.f32 0.0, %v3077
          %3079 = vmatprep.mubr.f32.mxu0 0.0
          %3080 = vmatmul.mubr.f32.gmra.mrb[0].mxu0 %v1080
          %v3081 = vpop.f32.mrb[0].mxu0
          %v3082 = vadd.f32 0.0, %v3081
          %v3083 = vpop.f32.mrb[0].mxu0
          %v3084 = vadd.f32 0.0, %v3083
          %3085 = vmatprep.mubr.f32.mxu0 0.0
          %3086 = vmatmul.mubr.f32.gmra.mrb[0].mxu0 %v1081
          %v3087 = vpop.f32.mrb[0].mxu0
          %v3088 = vadd.f32 0.0, %v3087
          %v3089 = vpop.f32.mrb[0].mxu0
          %v3090 = vadd.f32 0.0, %v3089
          %3091 = vmatprep.mubr.f32.mxu0 0.0
          %3092 = vmatmul.mubr.f32.gmra.mrb[0].mxu0 %v1082
          %v3093 = vpop.f32.mrb[0].mxu0
          %v3094 = vadd.f32 0.0, %v3093
          %v3095 = vpop.f32.mrb[0].mxu0
          %v3096 = vadd.f32 0.0, %v3095
          %3097 = vmatprep.mubr.f32.mxu0 0.0
          %3098 = vmatmul.mubr.f32.gmra.mrb[0].mxu0 %v1083
          %v3099 = vpop.f32.mrb[0].mxu0
          %v3100 = vadd.f32 0.0, %v3099
          %v3101 = vpop.f32.mrb[0].mxu0
          %v3102 = vadd.f32 0.0, %v3101
          %3103 = vmatprep.mubr.f32.mxu0 0.0
          %3104 = vmatmul.mubr.f32.gmra.mrb[0].mxu0 %v1084
          %v3105 = vpop.f32.mrb[0].mxu0
          %v3106 = vadd.f32 0.0, %v3105
          %v3107 = vpop.f32.mrb[0].mxu0
          %v3108 = vadd.f32 0.0, %v3107
          %3109 = vmatprep.mubr.f32.mxu0 0.0
          %3110 = vmatmul.mubr.f32.gmra.mrb[0].mxu0 %v1085
          %v3111 = vpop.f32.mrb[0].mxu0
          %v3112 = vadd.f32 0.0, %v3111
          %v3113 = vpop.f32.mrb[0].mxu0
          %v3114 = vadd.f32 0.0, %v3113
          %3115 = vmatprep.mubr.f32.mxu0 0.0
          %3116 = vmatmul.mubr.f32.gmra.mrb[0].mxu0 %v1086
          %v3117 = vpop.f32.mrb[0].mxu0
          %v3118 = vadd.f32 0.0, %v3117
          %v3119 = vpop.f32.mrb[0].mxu0
          %v3120 = vadd.f32 0.0, %v3119
          %3121 = vmatprep.mubr.f32.mxu0 0.0
          %3122 = vmatmul.mubr.f32.gmra.mrb[0].mxu0 %v1087
          %v3123 = vpop.f32.mrb[0].mxu0
          %v3124 = vadd.f32 0.0, %v3123
          %v3125 = vpop.f32.mrb[0].mxu0
          %v3126 = vadd.f32 0.0, %v3125
          %3127 = vmatprep.mubr.f32.mxu0 0.0
          %3128 = vmatmul.mubr.f32.gmra.mrb[0].mxu0 %v1088
          %v3129 = vpop.f32.mrb[0].mxu0
          %v3130 = vadd.f32 0.0, %v3129
          %v3131 = vpop.f32.mrb[0].mxu0
          %v3132 = vadd.f32 0.0, %v3131
          %3133 = vmatprep.mubr.f32.mxu0 0.0
          %3134 = vmatmul.mubr.f32.gmra.mrb[0].mxu0 %v1089
          %v3135 = vpop.f32.mrb[0].mxu0
          %v3136 = vadd.f32 0.0, %v3135
          %v3137 = vpop.f32.mrb[0].mxu0
          %v3138 = vadd.f32 0.0, %v3137
          %3139 = vmatprep.mubr.f32.mxu0 0.0
          %3140 = vmatmul.mubr.f32.gmra.mrb[0].mxu0 %v1090
          %v3141 = vpop.f32.mrb[0].mxu0
          %v3142 = vadd.f32 0.0, %v3141
          %v3143 = vpop.f32.mrb[0].mxu0
          %v3144 = vadd.f32 0.0, %v3143
          %3145 = vmatprep.mubr.f32.mxu0 0.0
          %3146 = vmatmul.mubr.f32.gmra.mrb[0].mxu0 %v1091
          %v3147 = vpop.f32.mrb[0].mxu0
          %v3148 = vadd.f32 0.0, %v3147
          %v3149 = vpop.f32.mrb[0].mxu0
          %v3150 = vadd.f32 0.0, %v3149
          %3151 = vmatprep.mubr.f32.mxu0 0.0
          %3152 = vmatmul.mubr.f32.gmra.mrb[0].mxu0 %v1092
          %v3153 = vpop.f32.mrb[0].mxu0
          %v3154 = vadd.f32 0.0, %v3153
          %v3155 = vpop.f32.mrb[0].mxu0
          %v3156 = vadd.f32 0.0, %v3155
          %3157 = vmatprep.mubr.f32.mxu0 0.0
          %3158 = vmatmul.mubr.f32.gmra.mrb[0].mxu0 %v1093
          %v3159 = vpop.f32.mrb[0].mxu0
          %v3160 = vadd.f32 0.0, %v3159
          %v3161 = vpop.f32.mrb[0].mxu0
          %v3162 = vadd.f32 0.0, %v3161
          %3163 = vmatprep.mubr.f32.mxu0 0.0
          %3164 = vmatmul.mubr.f32.gmra.mrb[0].mxu0 %v1094
          %v3165 = vpop.f32.mrb[0].mxu0
          %v3166 = vadd.f32 0.0, %v3165
          %v3167 = vpop.f32.mrb[0].mxu0
          %v3168 = vadd.f32 0.0, %v3167
          %3169 = vmatprep.mubr.f32.mxu0 0.0
          %3170 = vmatmul.mubr.f32.gmra.mrb[0].mxu0 %v1095
          %v3171 = vpop.f32.mrb[0].mxu0
          %v3172 = vadd.f32 0.0, %v3171
          %v3173 = vpop.f32.mrb[0].mxu0
          %v3174 = vadd.f32 0.0, %v3173
          %3175 = vmatprep.mubr.f32.mxu0 0.0
          %3176 = vmatmul.mubr.f32.gmra.mrb[0].mxu0 %v1096
          %v3177 = vpop.f32.mrb[0].mxu0
          %v3178 = vadd.f32 0.0, %v3177
          %v3179 = vpop.f32.mrb[0].mxu0
          %v3180 = vadd.f32 0.0, %v3179
          %3181 = vmatprep.mubr.f32.mxu0 0.0
          %3182 = vmatmul.mubr.f32.gmra.mrb[0].mxu0 %v1097
          %v3183 = vpop.f32.mrb[0].mxu0
          %v3184 = vadd.f32 0.0, %v3183
          %v3185 = vpop.f32.mrb[0].mxu0
          %v3186 = vadd.f32 0.0, %v3185
          %3187 = vmatprep.mubr.f32.mxu0 0.0
          %3188 = vmatmul.mubr.f32.gmra.mrb[0].mxu0 %v1098
          %v3189 = vpop.f32.mrb[0].mxu0
          %v3190 = vadd.f32 0.0, %v3189
          %v3191 = vpop.f32.mrb[0].mxu0
          %v3192 = vadd.f32 0.0, %v3191
          %3193 = vmatprep.mubr.f32.mxu0 0.0
          %3194 = vmatmul.mubr.f32.gmra.mrb[0].mxu0 %v1099
          %v3195 = vpop.f32.mrb[0].mxu0
          %v3196 = vadd.f32 0.0, %v3195
          %v3197 = vpop.f32.mrb[0].mxu0
          %v3198 = vadd.f32 0.0, %v3197
          %3199 = vmatprep.mubr.f32.mxu0 0.0
          %3200 = vmatmul.mubr.f32.gmra.mrb[0].mxu0 %v1100
          %v3201 = vpop.f32.mrb[0].mxu0
          %v3202 = vadd.f32 0.0, %v3201
          %v3203 = vpop.f32.mrb[0].mxu0
          %v3204 = vadd.f32 0.0, %v3203
          %3205 = vmatprep.mubr.f32.mxu0 0.0
          %3206 = vmatmul.mubr.f32.gmra.mrb[0].mxu0 %v1101
          %v3207 = vpop.f32.mrb[0].mxu0
          %v3208 = vadd.f32 0.0, %v3207
          %v3209 = vpop.f32.mrb[0].mxu0
          %v3210 = vadd.f32 0.0, %v3209
          %3211 = vmatprep.mubr.f32.mxu0 0.0
          %3212 = vmatmul.mubr.f32.gmra.mrb[0].mxu0 %v1102
          %v3213 = vpop.f32.mrb[0].mxu0
          %v3214 = vadd.f32 0.0, %v3213
          %v3215 = vpop.f32.mrb[0].mxu0
          %v3216 = vadd.f32 0.0, %v3215
          %3217 = vmatprep.mubr.f32.mxu0 0.0
          %3218 = vmatmul.mubr.f32.gmra.mrb[0].mxu0 %v1103
          %v3219 = vpop.f32.mrb[0].mxu0
          %v3220 = vadd.f32 0.0, %v3219
          %v3221 = vpop.f32.mrb[0].mxu0
          %v3222 = vadd.f32 0.0, %v3221
          %3223 = vmatprep.mubr.f32.mxu0 0.0
          %3224 = vmatmul.mubr.f32.gmra.mrb[0].mxu0 %v1104
          %v3225 = vpop.f32.mrb[0].mxu0
          %v3226 = vadd.f32 0.0, %v3225
          %v3227 = vpop.f32.mrb[0].mxu0
          %v3228 = vadd.f32 0.0, %v3227
          %3229 = vmatprep.mubr.f32.mxu0 0.0
          %3230 = vmatmul.mubr.f32.gmra.mrb[0].mxu0 %v1105
          %v3231 = vpop.f32.mrb[0].mxu0
          %v3232 = vadd.f32 0.0, %v3231
          %v3233 = vpop.f32.mrb[0].mxu0
          %v3234 = vadd.f32 0.0, %v3233
          %3235 = vmatprep.mubr.f32.mxu0 0.0
          %3236 = vmatmul.mubr.f32.gmra.mrb[0].mxu0 %v1106
          %v3237 = vpop.f32.mrb[0].mxu0
          %v3238 = vadd.f32 0.0, %v3237
          %v3239 = vpop.f32.mrb[0].mxu0
          %v3240 = vadd.f32 0.0, %v3239
          %3241 = vmatprep.mubr.f32.mxu0 0.0
          %3242 = vmatmul.mubr.f32.gmra.mrb[0].mxu0 %v1107
          %v3243 = vpop.f32.mrb[0].mxu0
          %v3244 = vadd.f32 0.0, %v3243
          %v3245 = vpop.f32.mrb[0].mxu0
          %v3246 = vadd.f32 0.0, %v3245
          %3247 = vmatprep.mubr.f32.mxu0 0.0
          %3248 = vmatmul.mubr.f32.gmra.mrb[0].mxu0 %v1108
          %v3249 = vpop.f32.mrb[0].mxu0
          %v3250 = vadd.f32 0.0, %v3249
          %v3251 = vpop.f32.mrb[0].mxu0
          %v3252 = vadd.f32 0.0, %v3251
          %3253 = vmatprep.mubr.f32.mxu0 0.0
          %3254 = vmatmul.mubr.f32.gmra.mrb[0].mxu0 %v1109
          %v3255 = vpop.f32.mrb[0].mxu0
          %v3256 = vadd.f32 0.0, %v3255
          %v3257 = vpop.f32.mrb[0].mxu0
          %v3258 = vadd.f32 0.0, %v3257
          %3259 = vmatprep.mubr.f32.mxu0 0.0
          %3260 = vmatmul.mubr.f32.gmra.mrb[0].mxu0 %v1110
          %v3261 = vpop.f32.mrb[0].mxu0
          %v3262 = vadd.f32 0.0, %v3261
          %v3263 = vpop.f32.mrb[0].mxu0
          %v3264 = vadd.f32 0.0, %v3263
          %3265 = vmatprep.mubr.f32.mxu0 0.0
          %3266 = vmatmul.mubr.f32.gmra.mrb[0].mxu0 %v1111
          %v3267 = vpop.f32.mrb[0].mxu0
          %v3268 = vadd.f32 0.0, %v3267
          %v3269 = vpop.f32.mrb[0].mxu0
          %v3270 = vadd.f32 0.0, %v3269
          %3271 = vmatprep.mubr.f32.mxu0 0.0
          %3272 = vmatmul.mubr.f32.gmra.mrb[0].mxu0 %v1112
          %v3273 = vpop.f32.mrb[0].mxu0
          %v3274 = vadd.f32 0.0, %v3273
          %v3275 = vpop.f32.mrb[0].mxu0
          %v3276 = vadd.f32 0.0, %v3275
          %3277 = vmatprep.mubr.f32.mxu0 0.0
          %3278 = vmatmul.mubr.f32.gmra.mrb[0].mxu0 %v1113
          %v3279 = vpop.f32.mrb[0].mxu0
          %v3280 = vadd.f32 0.0, %v3279
          %v3281 = vpop.f32.mrb[0].mxu0
          %v3282 = vadd.f32 0.0, %v3281
          %3283 = vmatprep.mubr.f32.mxu0 0.0
          %3284 = vmatmul.mubr.f32.gmra.mrb[0].mxu0 %v1114
          %v3285 = vpop.f32.mrb[0].mxu0
          %v3286 = vadd.f32 0.0, %v3285
          %v3287 = vpop.f32.mrb[0].mxu0
          %v3288 = vadd.f32 0.0, %v3287
          %3289 = vmatprep.mubr.f32.mxu0 0.0
          %3290 = vmatmul.mubr.f32.gmra.mrb[0].mxu0 %v1115
          %v3291 = vpop.f32.mrb[0].mxu0
          %v3292 = vadd.f32 0.0, %v3291
          %v3293 = vpop.f32.mrb[0].mxu0
          %v3294 = vadd.f32 0.0, %v3293
          %3295 = vmatprep.mubr.f32.mxu0 0.0
          %3296 = vmatmul.mubr.f32.gmra.mrb[0].mxu0 %v1116
          %v3297 = vpop.f32.mrb[0].mxu0
          %v3298 = vadd.f32 0.0, %v3297
          %v3299 = vpop.f32.mrb[0].mxu0
          %v3300 = vadd.f32 0.0, %v3299
          %3301 = vmatprep.mubr.f32.mxu0 0.0
          %3302 = vmatmul.mubr.f32.gmra.mrb[0].mxu0 %v1117
          %v3303 = vpop.f32.mrb[0].mxu0
          %v3304 = vadd.f32 0.0, %v3303
          %v3305 = vpop.f32.mrb[0].mxu0
          %v3306 = vadd.f32 0.0, %v3305
          %3307 = vmatprep.mubr.f32.mxu0 0.0
          %3308 = vmatmul.mubr.f32.gmra.mrb[0].mxu0 %v1118
          %v3309 = vpop.f32.mrb[0].mxu0
          %v3310 = vadd.f32 0.0, %v3309
          %v3311 = vpop.f32.mrb[0].mxu0
          %v3312 = vadd.f32 0.0, %v3311
          %3313 = vmatprep.mubr.f32.mxu0 0.0
          %3314 = vmatmul.mubr.f32.gmra.mrb[0].mxu0 %v1119
          %v3315 = vpop.f32.mrb[0].mxu0
          %v3316 = vadd.f32 0.0, %v3315
          %v3317 = vpop.f32.mrb[0].mxu0
          %v3318 = vadd.f32 0.0, %v3317
          %3319 = vmatprep.mubr.f32.mxu0 0.0
          %3320 = vmatmul.mubr.f32.gmra.mrb[0].mxu0 %v1120
          %v3321 = vpop.f32.mrb[0].mxu0
          %v3322 = vadd.f32 0.0, %v3321
          %v3323 = vpop.f32.mrb[0].mxu0
          %v3324 = vadd.f32 0.0, %v3323
          %3325 = vmatprep.mubr.f32.mxu0 0.0
          %3326 = vmatmul.mubr.f32.gmra.mrb[0].mxu0 %v1121
          %v3327 = vpop.f32.mrb[0].mxu0
          %v3328 = vadd.f32 0.0, %v3327
          %v3329 = vpop.f32.mrb[0].mxu0
          %v3330 = vadd.f32 0.0, %v3329
          %3331 = vmatprep.mubr.f32.mxu0 0.0
          %3332 = vmatmul.mubr.f32.gmra.mrb[0].mxu0 %v1122
          %v3333 = vpop.f32.mrb[0].mxu0
          %v3334 = vadd.f32 0.0, %v3333
          %v3335 = vpop.f32.mrb[0].mxu0
          %v3336 = vadd.f32 0.0, %v3335
          %3337 = vmatprep.mubr.f32.mxu0 0.0
          %3338 = vmatmul.mubr.f32.gmra.mrb[0].mxu0 %v1123
          %v3339 = vpop.f32.mrb[0].mxu0
          %v3340 = vadd.f32 0.0, %v3339
          %v3341 = vpop.f32.mrb[0].mxu0
          %v3342 = vadd.f32 0.0, %v3341
          %3343 = vmatprep.mubr.f32.mxu0 0.0
          %3344 = vmatmul.mubr.f32.gmra.mrb[0].mxu0 %v1124
          %v3345 = vpop.f32.mrb[0].mxu0
          %v3346 = vadd.f32 0.0, %v3345
          %v3347 = vpop.f32.mrb[0].mxu0
          %v3348 = vadd.f32 0.0, %v3347
          %3349 = vmatprep.mubr.f32.mxu0 0.0
          %3350 = vmatmul.mubr.f32.gmra.mrb[0].mxu0 %v1125
          %v3351 = vpop.f32.mrb[0].mxu0
          %v3352 = vadd.f32 0.0, %v3351
          %v3353 = vpop.f32.mrb[0].mxu0
          %v3354 = vadd.f32 0.0, %v3353
          %3355 = vmatprep.mubr.f32.mxu0 0.0
          %3356 = vmatmul.mubr.f32.gmra.mrb[0].mxu0 %v1126
          %v3357 = vpop.f32.mrb[0].mxu0
          %v3358 = vadd.f32 0.0, %v3357
          %v3359 = vpop.f32.mrb[0].mxu0
          %v3360 = vadd.f32 0.0, %v3359
          %3361 = vmatprep.mubr.f32.mxu0 0.0
          %3362 = vmatmul.mubr.f32.gmra.mrb[0].mxu0 %v1127
          %v3363 = vpop.f32.mrb[0].mxu0
          %v3364 = vadd.f32 0.0, %v3363
          %v3365 = vpop.f32.mrb[0].mxu0
          %v3366 = vadd.f32 0.0, %v3365
          %3367 = vmatprep.mubr.f32.mxu0 0.0
          %3368 = vmatmul.mubr.f32.gmra.mrb[0].mxu0 %v1128
          %v3369 = vpop.f32.mrb[0].mxu0
          %v3370 = vadd.f32 0.0, %v3369
          %v3371 = vpop.f32.mrb[0].mxu0
          %v3372 = vadd.f32 0.0, %v3371
          %3373 = vmatprep.mubr.f32.mxu0 0.0
          %3374 = vmatmul.mubr.f32.gmra.mrb[0].mxu0 %v1129
          %v3375 = vpop.f32.mrb[0].mxu0
          %v3376 = vadd.f32 0.0, %v3375
          %v3377 = vpop.f32.mrb[0].mxu0
          %v3378 = vadd.f32 0.0, %v3377
          %3379 = vmatprep.mubr.f32.mxu0 0.0
          %3380 = vmatmul.mubr.f32.gmra.mrb[0].mxu0 %v1130
          %v3381 = vpop.f32.mrb[0].mxu0
          %v3382 = vadd.f32 0.0, %v3381
          %v3383 = vpop.f32.mrb[0].mxu0
          %v3384 = vadd.f32 0.0, %v3383
          %3385 = vmatprep.mubr.f32.mxu0 0.0
          %3386 = vmatmul.mubr.f32.gmra.mrb[0].mxu0 %v1131
          %v3387 = vpop.f32.mrb[0].mxu0
          %v3388 = vadd.f32 0.0, %v3387
          %v3389 = vpop.f32.mrb[0].mxu0
          %v3390 = vadd.f32 0.0, %v3389
          %3391 = vmatprep.mubr.f32.mxu0 0.0
          %3392 = vmatmul.mubr.f32.gmra.mrb[0].mxu0 %v1132
          %v3393 = vpop.f32.mrb[0].mxu0
          %v3394 = vadd.f32 0.0, %v3393
          %v3395 = vpop.f32.mrb[0].mxu0
          %v3396 = vadd.f32 0.0, %v3395
          %3397 = vmatprep.mubr.f32.mxu0 0.0
          %3398 = vmatmul.mubr.f32.gmra.mrb[0].mxu0 %v1133
          %v3399 = vpop.f32.mrb[0].mxu0
          %v3400 = vadd.f32 0.0, %v3399
          %v3401 = vpop.f32.mrb[0].mxu0
          %v3402 = vadd.f32 0.0, %v3401
          %3403 = vmatprep.mubr.f32.mxu0 0.0
          %3404 = vmatmul.mubr.f32.gmra.mrb[0].mxu0 %v1134
          %v3405 = vpop.f32.mrb[0].mxu0
          %v3406 = vadd.f32 0.0, %v3405
          %v3407 = vpop.f32.mrb[0].mxu0
          %v3408 = vadd.f32 0.0, %v3407
          %3409 = vmatprep.mubr.f32.mxu0 0.0
          %3410 = vmatmul.mubr.f32.gmra.mrb[0].mxu0 %v1135
          %v3411 = vpop.f32.mrb[0].mxu0
          %v3412 = vadd.f32 0.0, %v3411
          %v3413 = vpop.f32.mrb[0].mxu0
          %v3414 = vadd.f32 0.0, %v3413
          %3415 = vmatprep.mubr.f32.mxu0 0.0
          %3416 = vmatmul.mubr.f32.gmra.mrb[0].mxu0 %v1136
          %v3417 = vpop.f32.mrb[0].mxu0
          %v3418 = vadd.f32 0.0, %v3417
          %v3419 = vpop.f32.mrb[0].mxu0
          %v3420 = vadd.f32 0.0, %v3419
          %3421 = vmatprep.mubr.f32.mxu0 0.0
          %3422 = vmatmul.mubr.f32.gmra.mrb[0].mxu0 %v1137
          %v3423 = vpop.f32.mrb[0].mxu0
          %v3424 = vadd.f32 0.0, %v3423
          %v3425 = vpop.f32.mrb[0].mxu0
          %v3426 = vadd.f32 0.0, %v3425
          %3427 = vmatprep.mubr.f32.mxu0 0.0
          %3428 = vmatmul.mubr.f32.gmra.mrb[0].mxu0 %v1138
          %v3429 = vpop.f32.mrb[0].mxu0
          %v3430 = vadd.f32 0.0, %v3429
          %v3431 = vpop.f32.mrb[0].mxu0
          %v3432 = vadd.f32 0.0, %v3431
          %3433 = vmatprep.mubr.f32.mxu0 0.0
          %3434 = vmatmul.mubr.f32.gmra.mrb[0].mxu0 %v1139
          %v3435 = vpop.f32.mrb[0].mxu0
          %v3436 = vadd.f32 0.0, %v3435
          %v3437 = vpop.f32.mrb[0].mxu0
          %v3438 = vadd.f32 0.0, %v3437
          %3439 = vmatprep.mubr.f32.mxu0 0.0
          %3440 = vmatmul.mubr.f32.gmra.mrb[0].mxu0 %v1140
          %v3441 = vpop.f32.mrb[0].mxu0
          %v3442 = vadd.f32 0.0, %v3441
          %v3443 = vpop.f32.mrb[0].mxu0
          %v3444 = vadd.f32 0.0, %v3443
          %3445 = vmatprep.mubr.f32.mxu0 0.0
          %3446 = vmatmul.mubr.f32.gmra.mrb[0].mxu0 %v1141
          %v3447 = vpop.f32.mrb[0].mxu0
          %v3448 = vadd.f32 0.0, %v3447
          %v3449 = vpop.f32.mrb[0].mxu0
          %v3450 = vadd.f32 0.0, %v3449
          %3451 = vmatprep.mubr.f32.mxu0 0.0
          %3452 = vmatmul.mubr.f32.gmra.mrb[0].mxu0 %v1142
          %v3453 = vpop.f32.mrb[0].mxu0
          %v3454 = vadd.f32 0.0, %v3453
          %v3455 = vpop.f32.mrb[0].mxu0
          %v3456 = vadd.f32 0.0, %v3455
          %3457 = vmatprep.mubr.f32.mxu0 0.0
          %3458 = vmatmul.mubr.f32.gmra.mrb[0].mxu0 %v1143
          %v3459 = vpop.f32.mrb[0].mxu0
          %v3460 = vadd.f32 0.0, %v3459
          %v3461 = vpop.f32.mrb[0].mxu0
          %v3462 = vadd.f32 0.0, %v3461
          %3463 = vmatprep.mubr.f32.mxu0 0.0
          %3464 = vmatmul.mubr.f32.gmra.mrb[0].mxu0 %v1144
          %v3465 = vpop.f32.mrb[0].mxu0
          %v3466 = vadd.f32 0.0, %v3465
          %v3467 = vpop.f32.mrb[0].mxu0
          %v3468 = vadd.f32 0.0, %v3467
          %3469 = vmatprep.mubr.f32.mxu0 0.0
          %3470 = vmatmul.mubr.f32.gmra.mrb[0].mxu0 %v1145
          %v3471 = vpop.f32.mrb[0].mxu0
          %v3472 = vpop.f32.mrb[0].mxu0
          %v3473 = vadd.f32 0.0, %v3472
          %3474 = vdwg.mxu0
          %v3475 = vld [vmem:[%s369] sm:$0xff]
          %v3476 = vld [vmem:[%s369 + $0x8] sm:$0xff]
          %v3477 = vld [vmem:[%s369 + $0x10] sm:$0xff]
          %v3478 = vld [vmem:[%s369 + $0x18] sm:$0xff]
          %v3479 = vld [vmem:[%s369 + $0x20] sm:$0xff]
          %v3480 = vld [vmem:[%s369 + $0x28] sm:$0xff]
          %v3481 = vld [vmem:[%s369 + $0x30] sm:$0xff]
          %v3482 = vld [vmem:[%s369 + $0x38] sm:$0xff]
          %v3483 = vld [vmem:[%s369 + $0x40] sm:$0xff]
          %v3484 = vld [vmem:[%s369 + $0x48] sm:$0xff]
          %v3485 = vld [vmem:[%s369 + $0x50] sm:$0xff]
          %v3486 = vld [vmem:[%s369 + $0x58] sm:$0xff]
          %v3487 = vld [vmem:[%s369 + $0x60] sm:$0xff]
          %v3488 = vld [vmem:[%s369 + $0x68] sm:$0xff]
          %v3489 = vld [vmem:[%s369 + $0x70] sm:$0xff]
          %v3490 = vld [vmem:[%s369 + $0x78] sm:$0xff]
          %3491 = vmatprep.subr.mxu0 0.0
          %3492 = vmatpush1.msra.mxu0 %v3475
          %3493 = vmatprep.subr.mxu0 0.0
          %3494 = vmatpush1.msra.mxu0 %v3476
          %3495 = vmatprep.subr.mxu0 0.0
          %3496 = vmatpush1.msra.mxu0 %v3477
          %3497 = vmatprep.subr.mxu0 0.0
          %3498 = vmatpush1.msra.mxu0 %v3478
          %3499 = vmatprep.subr.mxu0 0.0
          %3500 = vmatpush1.msra.mxu0 %v3479
          %3501 = vmatprep.subr.mxu0 0.0
          %3502 = vmatpush1.msra.mxu0 %v3480
          %3503 = vmatprep.subr.mxu0 0.0
          %3504 = vmatpush1.msra.mxu0 %v3481
          %3505 = vmatprep.subr.mxu0 0.0
          %3506 = vmatpush1.msra.mxu0 %v3482
          %3507 = vmatprep.subr.mxu0 0.0
          %3508 = vmatpush1.msra.mxu0 %v3483
          %3509 = vmatprep.subr.mxu0 0.0
          %3510 = vmatpush1.msra.mxu0 %v3484
          %3511 = vmatprep.subr.mxu0 0.0
          %3512 = vmatpush1.msra.mxu0 %v3485
          %3513 = vmatprep.subr.mxu0 0.0
          %3514 = vmatpush1.msra.mxu0 %v3486
          %3515 = vmatprep.subr.mxu0 0.0
          %3516 = vmatpush1.msra.mxu0 %v3487
          %3517 = vmatprep.subr.mxu0 0.0
          %3518 = vmatpush1.msra.mxu0 %v3488
          %3519 = vmatprep.subr.mxu0 0.0
          %3520 = vmatpush1.msra.mxu0 %v3489
          %3521 = vmatprep.subr.mxu0 0.0
          %3522 = vmatpush1.msra.mxu0 %v3490
          %3523 = vmatprep.subr.mxu0 0.0
          %3524 = vmatpush1.msra.mxu0 0.0
          %3525 = vmatprep.subr.mxu0 0.0
          %3526 = vmatpush1.msra.mxu0 0.0
          %3527 = vmatprep.subr.mxu0 0.0
          %3528 = vmatpush1.msra.mxu0 0.0
          %3529 = vmatprep.subr.mxu0 0.0
          %3530 = vmatpush1.msra.mxu0 0.0
          %3531 = vmatprep.subr.mxu0 0.0
          %3532 = vmatpush1.msra.mxu0 0.0
          %3533 = vmatprep.subr.mxu0 0.0
          %3534 = vmatpush1.msra.mxu0 0.0
          %3535 = vmatprep.subr.mxu0 0.0
          %3536 = vmatpush1.msra.mxu0 0.0
          %3537 = vmatprep.subr.mxu0 0.0
          %3538 = vmatpush1.msra.mxu0 0.0
          %3539 = vmatprep.subr.mxu0 0.0
          %3540 = vmatpush1.msra.mxu0 0.0
          %3541 = vmatprep.subr.mxu0 0.0
          %3542 = vmatpush1.msra.mxu0 0.0
          %3543 = vmatprep.subr.mxu0 0.0
          %3544 = vmatpush1.msra.mxu0 0.0
          %3545 = vmatprep.subr.mxu0 0.0
          %3546 = vmatpush1.msra.mxu0 0.0
          %3547 = vmatprep.subr.mxu0 0.0
          %3548 = vmatpush1.msra.mxu0 0.0
          %3549 = vmatprep.subr.mxu0 0.0
          %3550 = vmatpush1.msra.mxu0 0.0
          %3551 = vmatprep.subr.mxu0 0.0
          %3552 = vmatpush1.msra.mxu0 0.0
          %3553 = vmatprep.subr.mxu0 0.0
          %3554 = vmatpush1.msra.mxu0 0.0
          %3555 = vmatprep.mubr.f32.mxu0 0.0
          %3556 = vmatmul.mubr.f32.gmra.mrb[0].mxu0 %v1061
          %v3557 = vpop.f32.mrb[0].mxu0
          %v3558 = vpop.f32.mrb[0].mxu0
          %3559 = vmatprep.mubr.f32.mxu0 0.0
          %3560 = vmatmul.mubr.f32.gmra.mrb[0].mxu0 %v1062
          %v3561 = vpop.f32.mrb[0].mxu0
          %v3562 = vpop.f32.mrb[0].mxu0
          %3563 = vmatprep.mubr.f32.mxu0 0.0
          %3564 = vmatmul.mubr.f32.gmra.mrb[0].mxu0 %v1063
          %v3565 = vpop.f32.mrb[0].mxu0
          %v3566 = vpop.f32.mrb[0].mxu0
          %3567 = vmatprep.mubr.f32.mxu0 0.0
          %3568 = vmatmul.mubr.f32.gmra.mrb[0].mxu0 %v1064
          %v3569 = vpop.f32.mrb[0].mxu0
          %v3570 = vpop.f32.mrb[0].mxu0
          %3571 = vmatprep.mubr.f32.mxu0 0.0
          %3572 = vmatmul.mubr.f32.gmra.mrb[0].mxu0 %v1065
          %v3573 = vpop.f32.mrb[0].mxu0
          %v3574 = vpop.f32.mrb[0].mxu0
          %3575 = vmatprep.mubr.f32.mxu0 0.0
          %3576 = vmatmul.mubr.f32.gmra.mrb[0].mxu0 %v1066
          %v3577 = vpop.f32.mrb[0].mxu0
          %v3578 = vpop.f32.mrb[0].mxu0
          %3579 = vmatprep.mubr.f32.mxu0 0.0
          %3580 = vmatmul.mubr.f32.gmra.mrb[0].mxu0 %v1067
          %v3581 = vpop.f32.mrb[0].mxu0
          %v3582 = vpop.f32.mrb[0].mxu0
          %3583 = vmatprep.mubr.f32.mxu0 0.0
          %3584 = vmatmul.mubr.f32.gmra.mrb[0].mxu0 %v1068
          %v3585 = vpop.f32.mrb[0].mxu0
          %v3586 = vpop.f32.mrb[0].mxu0
          %3587 = vmatprep.mubr.f32.mxu0 0.0
          %3588 = vmatmul.mubr.f32.gmra.mrb[0].mxu0 %v1069
          %v3589 = vpop.f32.mrb[0].mxu0
          %v3590 = vpop.f32.mrb[0].mxu0
          %3591 = vmatprep.mubr.f32.mxu0 0.0
          %3592 = vmatmul.mubr.f32.gmra.mrb[0].mxu0 %v1070
          %v3593 = vpop.f32.mrb[0].mxu0
          %v3594 = vpop.f32.mrb[0].mxu0
          %3595 = vmatprep.mubr.f32.mxu0 0.0
          %3596 = vmatmul.mubr.f32.gmra.mrb[0].mxu0 %v1071
          %v3597 = vpop.f32.mrb[0].mxu0
          %v3598 = vpop.f32.mrb[0].mxu0
          %3599 = vmatprep.mubr.f32.mxu0 0.0
          %3600 = vmatmul.mubr.f32.gmra.mrb[0].mxu0 %v1072
          %v3601 = vpop.f32.mrb[0].mxu0
          %v3602 = vpop.f32.mrb[0].mxu0
          %3603 = vmatprep.mubr.f32.mxu0 0.0
          %3604 = vmatmul.mubr.f32.gmra.mrb[0].mxu0 %v1073
          %v3605 = vpop.f32.mrb[0].mxu0
          %v3606 = vadd.f32 0.0, %v3605
          %v3607 = vpop.f32.mrb[0].mxu0
          %3608 = vmatprep.mubr.f32.mxu0 0.0
          %3609 = vmatmul.mubr.f32.gmra.mrb[0].mxu0 %v1074
          %v3610 = vpop.f32.mrb[0].mxu0
          %v3611 = vadd.f32 0.0, %v3610
          %v3612 = vpop.f32.mrb[0].mxu0
          %3613 = vmatprep.mubr.f32.mxu0 0.0
          %3614 = vmatmul.mubr.f32.gmra.mrb[0].mxu0 %v1075
          %v3615 = vpop.f32.mrb[0].mxu0
          %v3616 = vadd.f32 0.0, %v3615
          %v3617 = vpop.f32.mrb[0].mxu0
          %3618 = vmatprep.mubr.f32.mxu0 0.0
          %3619 = vmatmul.mubr.f32.gmra.mrb[0].mxu0 %v1076
          %v3620 = vpop.f32.mrb[0].mxu0
          %v3621 = vadd.f32 0.0, %v3620
          %v3622 = vpop.f32.mrb[0].mxu0
          %3623 = vmatprep.mubr.f32.mxu0 0.0
          %3624 = vmatmul.mubr.f32.gmra.mrb[0].mxu0 %v1077
          %v3625 = vpop.f32.mrb[0].mxu0
          %v3626 = vadd.f32 0.0, %v3625
          %v3627 = vpop.f32.mrb[0].mxu0
          %3628 = vmatprep.mubr.f32.mxu0 0.0
          %3629 = vmatmul.mubr.f32.gmra.mrb[0].mxu0 %v1078
          %v3630 = vpop.f32.mrb[0].mxu0
          %v3631 = vadd.f32 0.0, %v3630
          %v3632 = vpop.f32.mrb[0].mxu0
          %3633 = vmatprep.mubr.f32.mxu0 0.0
          %3634 = vmatmul.mubr.f32.gmra.mrb[0].mxu0 %v1079
          %v3635 = vpop.f32.mrb[0].mxu0
          %v3636 = vadd.f32 0.0, %v3635
          %v3637 = vpop.f32.mrb[0].mxu0
          %3638 = vmatprep.mubr.f32.mxu0 0.0
          %3639 = vmatmul.mubr.f32.gmra.mrb[0].mxu0 %v1080
          %v3640 = vpop.f32.mrb[0].mxu0
          %v3641 = vadd.f32 0.0, %v3640
          %v3642 = vpop.f32.mrb[0].mxu0
          %3643 = vmatprep.mubr.f32.mxu0 0.0
          %3644 = vmatmul.mubr.f32.gmra.mrb[0].mxu0 %v1081
          %v3645 = vpop.f32.mrb[0].mxu0
          %v3646 = vadd.f32 0.0, %v3645
          %v3647 = vpop.f32.mrb[0].mxu0
          %3648 = vmatprep.mubr.f32.mxu0 0.0
          %3649 = vmatmul.mubr.f32.gmra.mrb[0].mxu0 %v1082
          %v3650 = vpop.f32.mrb[0].mxu0
          %v3651 = vadd.f32 0.0, %v3650
          %v3652 = vpop.f32.mrb[0].mxu0
          %3653 = vmatprep.mubr.f32.mxu0 0.0
          %3654 = vmatmul.mubr.f32.gmra.mrb[0].mxu0 %v1083
          %v3655 = vpop.f32.mrb[0].mxu0
          %v3656 = vadd.f32 0.0, %v3655
          %v3657 = vpop.f32.mrb[0].mxu0
          %3658 = vmatprep.mubr.f32.mxu0 0.0
          %3659 = vmatmul.mubr.f32.gmra.mrb[0].mxu0 %v1084
          %v3660 = vpop.f32.mrb[0].mxu0
          %v3661 = vadd.f32 0.0, %v3660
          %v3662 = vpop.f32.mrb[0].mxu0
          %3663 = vmatprep.mubr.f32.mxu0 0.0
          %3664 = vmatmul.mubr.f32.gmra.mrb[0].mxu0 %v1085
          %v3665 = vpop.f32.mrb[0].mxu0
          %v3666 = vadd.f32 0.0, %v3665
          %v3667 = vpop.f32.mrb[0].mxu0
          %3668 = vmatprep.mubr.f32.mxu0 0.0
          %3669 = vmatmul.mubr.f32.gmra.mrb[0].mxu0 %v1086
          %v3670 = vpop.f32.mrb[0].mxu0
          %v3671 = vadd.f32 0.0, %v3670
          %v3672 = vpop.f32.mrb[0].mxu0
          %3673 = vmatprep.mubr.f32.mxu0 0.0
          %3674 = vmatmul.mubr.f32.gmra.mrb[0].mxu0 %v1087
          %v3675 = vpop.f32.mrb[0].mxu0
          %v3676 = vadd.f32 0.0, %v3675
          %v3677 = vpop.f32.mrb[0].mxu0
          %3678 = vmatprep.mubr.f32.mxu0 0.0
          %3679 = vmatmul.mubr.f32.gmra.mrb[0].mxu0 %v1088
          %v3680 = vpop.f32.mrb[0].mxu0
          %v3681 = vadd.f32 0.0, %v3680
          %v3682 = vpop.f32.mrb[0].mxu0
          %3683 = vmatprep.mubr.f32.mxu0 0.0
          %3684 = vmatmul.mubr.f32.gmra.mrb[0].mxu0 %v1089
          %v3685 = vpop.f32.mrb[0].mxu0
          %v3686 = vadd.f32 0.0, %v3685
          %v3687 = vpop.f32.mrb[0].mxu0
          %3688 = vmatprep.mubr.f32.mxu0 0.0
          %3689 = vmatmul.mubr.f32.gmra.mrb[0].mxu0 %v1090
          %v3690 = vpop.f32.mrb[0].mxu0
          %v3691 = vadd.f32 0.0, %v3690
          %v3692 = vpop.f32.mrb[0].mxu0
          %3693 = vmatprep.mubr.f32.mxu0 0.0
          %3694 = vmatmul.mubr.f32.gmra.mrb[0].mxu0 %v1091
          %v3695 = vpop.f32.mrb[0].mxu0
          %v3696 = vadd.f32 0.0, %v3695
          %v3697 = vpop.f32.mrb[0].mxu0
          %3698 = vmatprep.mubr.f32.mxu0 0.0
          %3699 = vmatmul.mubr.f32.gmra.mrb[0].mxu0 %v1092
          %v3700 = vpop.f32.mrb[0].mxu0
          %v3701 = vadd.f32 0.0, %v3700
          %v3702 = vpop.f32.mrb[0].mxu0
          %3703 = vmatprep.mubr.f32.mxu0 0.0
          %3704 = vmatmul.mubr.f32.gmra.mrb[0].mxu0 %v1093
          %v3705 = vpop.f32.mrb[0].mxu0
          %v3706 = vadd.f32 0.0, %v3705
          %v3707 = vpop.f32.mrb[0].mxu0
          %3708 = vmatprep.mubr.f32.mxu0 0.0
          %3709 = vmatmul.mubr.f32.gmra.mrb[0].mxu0 %v1094
          %v3710 = vpop.f32.mrb[0].mxu0
          %v3711 = vadd.f32 0.0, %v3710
          %v3712 = vpop.f32.mrb[0].mxu0
          %3713 = vmatprep.mubr.f32.mxu0 0.0
          %3714 = vmatmul.mubr.f32.gmra.mrb[0].mxu0 %v1095
          %v3715 = vpop.f32.mrb[0].mxu0
          %v3716 = vadd.f32 0.0, %v3715
          %v3717 = vpop.f32.mrb[0].mxu0
          %3718 = vmatprep.mubr.f32.mxu0 0.0
          %3719 = vmatmul.mubr.f32.gmra.mrb[0].mxu0 %v1096
          %v3720 = vpop.f32.mrb[0].mxu0
          %v3721 = vadd.f32 0.0, %v3720
          %v3722 = vpop.f32.mrb[0].mxu0
          %3723 = vmatprep.mubr.f32.mxu0 0.0
          %3724 = vmatmul.mubr.f32.gmra.mrb[0].mxu0 %v1097
          %v3725 = vpop.f32.mrb[0].mxu0
          %v3726 = vadd.f32 0.0, %v3725
          %v3727 = vpop.f32.mrb[0].mxu0
          %3728 = vmatprep.mubr.f32.mxu0 0.0
          %3729 = vmatmul.mubr.f32.gmra.mrb[0].mxu0 %v1098
          %v3730 = vpop.f32.mrb[0].mxu0
          %v3731 = vadd.f32 0.0, %v3730
          %v3732 = vpop.f32.mrb[0].mxu0
          %3733 = vmatprep.mubr.f32.mxu0 0.0
          %3734 = vmatmul.mubr.f32.gmra.mrb[0].mxu0 %v1099
          %v3735 = vpop.f32.mrb[0].mxu0
          %v3736 = vadd.f32 0.0, %v3735
          %v3737 = vpop.f32.mrb[0].mxu0
          %3738 = vmatprep.mubr.f32.mxu0 0.0
          %3739 = vmatmul.mubr.f32.gmra.mrb[0].mxu0 %v1100
          %v3740 = vpop.f32.mrb[0].mxu0
          %v3741 = vadd.f32 0.0, %v3740
          %v3742 = vpop.f32.mrb[0].mxu0
          %3743 = vmatprep.mubr.f32.mxu0 0.0
          %3744 = vmatmul.mubr.f32.gmra.mrb[0].mxu0 %v1101
          %v3745 = vpop.f32.mrb[0].mxu0
          %v3746 = vadd.f32 0.0, %v3745
          %v3747 = vpop.f32.mrb[0].mxu0
          %3748 = vmatprep.mubr.f32.mxu0 0.0
          %3749 = vmatmul.mubr.f32.gmra.mrb[0].mxu0 %v1102
          %v3750 = vpop.f32.mrb[0].mxu0
          %v3751 = vadd.f32 0.0, %v3750
          %v3752 = vpop.f32.mrb[0].mxu0
          %3753 = vmatprep.mubr.f32.mxu0 0.0
          %3754 = vmatmul.mubr.f32.gmra.mrb[0].mxu0 %v1103
          %v3755 = vpop.f32.mrb[0].mxu0
          %v3756 = vadd.f32 0.0, %v3755
          %v3757 = vpop.f32.mrb[0].mxu0
          %3758 = vmatprep.mubr.f32.mxu0 0.0
          %3759 = vmatmul.mubr.f32.gmra.mrb[0].mxu0 %v1104
          %v3760 = vpop.f32.mrb[0].mxu0
          %v3761 = vadd.f32 0.0, %v3760
          %v3762 = vpop.f32.mrb[0].mxu0
          %3763 = vmatprep.mubr.f32.mxu0 0.0
          %3764 = vmatmul.mubr.f32.gmra.mrb[0].mxu0 %v1105
          %v3765 = vpop.f32.mrb[0].mxu0
          %v3766 = vadd.f32 0.0, %v3765
          %v3767 = vpop.f32.mrb[0].mxu0
          %3768 = vmatprep.mubr.f32.mxu0 0.0
          %3769 = vmatmul.mubr.f32.gmra.mrb[0].mxu0 %v1106
          %v3770 = vpop.f32.mrb[0].mxu0
          %v3771 = vadd.f32 0.0, %v3770
          %v3772 = vpop.f32.mrb[0].mxu0
          %3773 = vmatprep.mubr.f32.mxu0 0.0
          %3774 = vmatmul.mubr.f32.gmra.mrb[0].mxu0 %v1107
          %v3775 = vpop.f32.mrb[0].mxu0
          %v3776 = vadd.f32 0.0, %v3775
          %v3777 = vpop.f32.mrb[0].mxu0
          %3778 = vmatprep.mubr.f32.mxu0 0.0
          %3779 = vmatmul.mubr.f32.gmra.mrb[0].mxu0 %v1108
          %v3780 = vpop.f32.mrb[0].mxu0
          %v3781 = vadd.f32 0.0, %v3780
          %v3782 = vpop.f32.mrb[0].mxu0
          %3783 = vmatprep.mubr.f32.mxu0 0.0
          %3784 = vmatmul.mubr.f32.gmra.mrb[0].mxu0 %v1109
          %v3785 = vpop.f32.mrb[0].mxu0
          %v3786 = vadd.f32 0.0, %v3785
          %v3787 = vpop.f32.mrb[0].mxu0
          %3788 = vmatprep.mubr.f32.mxu0 0.0
          %3789 = vmatmul.mubr.f32.gmra.mrb[0].mxu0 %v1110
          %v3790 = vpop.f32.mrb[0].mxu0
          %v3791 = vadd.f32 0.0, %v3790
          %v3792 = vpop.f32.mrb[0].mxu0
          %3793 = vmatprep.mubr.f32.mxu0 0.0
          %3794 = vmatmul.mubr.f32.gmra.mrb[0].mxu0 %v1111
          %v3795 = vpop.f32.mrb[0].mxu0
          %v3796 = vadd.f32 0.0, %v3795
          %v3797 = vpop.f32.mrb[0].mxu0
          %3798 = vmatprep.mubr.f32.mxu0 0.0
          %3799 = vmatmul.mubr.f32.gmra.mrb[0].mxu0 %v1112
          %v3800 = vpop.f32.mrb[0].mxu0
          %v3801 = vadd.f32 0.0, %v3800
          %v3802 = vpop.f32.mrb[0].mxu0
          %3803 = vmatprep.mubr.f32.mxu0 0.0
          %3804 = vmatmul.mubr.f32.gmra.mrb[0].mxu0 %v1113
          %v3805 = vpop.f32.mrb[0].mxu0
          %v3806 = vadd.f32 0.0, %v3805
          %v3807 = vpop.f32.mrb[0].mxu0
          %3808 = vmatprep.mubr.f32.mxu0 0.0
          %3809 = vmatmul.mubr.f32.gmra.mrb[0].mxu0 %v1114
          %v3810 = vpop.f32.mrb[0].mxu0
          %v3811 = vadd.f32 0.0, %v3810
          %v3812 = vpop.f32.mrb[0].mxu0
          %3813 = vmatprep.mubr.f32.mxu0 0.0
          %3814 = vmatmul.mubr.f32.gmra.mrb[0].mxu0 %v1115
          %v3815 = vpop.f32.mrb[0].mxu0
          %v3816 = vadd.f32 0.0, %v3815
          %v3817 = vpop.f32.mrb[0].mxu0
          %3818 = vmatprep.mubr.f32.mxu0 0.0
          %3819 = vmatmul.mubr.f32.gmra.mrb[0].mxu0 %v1116
          %v3820 = vpop.f32.mrb[0].mxu0
          %v3821 = vadd.f32 0.0, %v3820
          %v3822 = vpop.f32.mrb[0].mxu0
          %3823 = vmatprep.mubr.f32.mxu0 0.0
          %3824 = vmatmul.mubr.f32.gmra.mrb[0].mxu0 %v1117
          %v3825 = vpop.f32.mrb[0].mxu0
          %v3826 = vadd.f32 0.0, %v3825
          %v3827 = vpop.f32.mrb[0].mxu0
          %3828 = vmatprep.mubr.f32.mxu0 0.0
          %3829 = vmatmul.mubr.f32.gmra.mrb[0].mxu0 %v1118
          %v3830 = vpop.f32.mrb[0].mxu0
          %v3831 = vadd.f32 0.0, %v3830
          %v3832 = vpop.f32.mrb[0].mxu0
          %3833 = vmatprep.mubr.f32.mxu0 0.0
          %3834 = vmatmul.mubr.f32.gmra.mrb[0].mxu0 %v1119
          %v3835 = vpop.f32.mrb[0].mxu0
          %v3836 = vadd.f32 0.0, %v3835
          %v3837 = vpop.f32.mrb[0].mxu0
          %3838 = vmatprep.mubr.f32.mxu0 0.0
          %3839 = vmatmul.mubr.f32.gmra.mrb[0].mxu0 %v1120
          %v3840 = vpop.f32.mrb[0].mxu0
          %v3841 = vadd.f32 0.0, %v3840
          %v3842 = vpop.f32.mrb[0].mxu0
          %3843 = vmatprep.mubr.f32.mxu0 0.0
          %3844 = vmatmul.mubr.f32.gmra.mrb[0].mxu0 %v1121
          %v3845 = vpop.f32.mrb[0].mxu0
          %v3846 = vadd.f32 0.0, %v3845
          %v3847 = vpop.f32.mrb[0].mxu0
          %3848 = vmatprep.mubr.f32.mxu0 0.0
          %3849 = vmatmul.mubr.f32.gmra.mrb[0].mxu0 %v1122
          %v3850 = vpop.f32.mrb[0].mxu0
          %v3851 = vadd.f32 0.0, %v3850
          %v3852 = vpop.f32.mrb[0].mxu0
          %3853 = vmatprep.mubr.f32.mxu0 0.0
          %3854 = vmatmul.mubr.f32.gmra.mrb[0].mxu0 %v1123
          %v3855 = vpop.f32.mrb[0].mxu0
          %v3856 = vadd.f32 0.0, %v3855
          %v3857 = vpop.f32.mrb[0].mxu0
          %3858 = vmatprep.mubr.f32.mxu0 0.0
          %3859 = vmatmul.mubr.f32.gmra.mrb[0].mxu0 %v1124
          %v3860 = vpop.f32.mrb[0].mxu0
          %v3861 = vadd.f32 0.0, %v3860
          %v3862 = vpop.f32.mrb[0].mxu0
          %3863 = vmatprep.mubr.f32.mxu0 0.0
          %3864 = vmatmul.mubr.f32.gmra.mrb[0].mxu0 %v1125
          %v3865 = vpop.f32.mrb[0].mxu0
          %v3866 = vadd.f32 0.0, %v3865
          %v3867 = vpop.f32.mrb[0].mxu0
          %3868 = vmatprep.mubr.f32.mxu0 0.0
          %3869 = vmatmul.mubr.f32.gmra.mrb[0].mxu0 %v1126
          %v3870 = vpop.f32.mrb[0].mxu0
          %v3871 = vadd.f32 0.0, %v3870
          %v3872 = vpop.f32.mrb[0].mxu0
          %3873 = vmatprep.mubr.f32.mxu0 0.0
          %3874 = vmatmul.mubr.f32.gmra.mrb[0].mxu0 %v1127
          %v3875 = vpop.f32.mrb[0].mxu0
          %v3876 = vadd.f32 0.0, %v3875
          %v3877 = vpop.f32.mrb[0].mxu0
          %3878 = vmatprep.mubr.f32.mxu0 0.0
          %3879 = vmatmul.mubr.f32.gmra.mrb[0].mxu0 %v1128
          %v3880 = vpop.f32.mrb[0].mxu0
          %v3881 = vadd.f32 0.0, %v3880
          %v3882 = vpop.f32.mrb[0].mxu0
          %3883 = vmatprep.mubr.f32.mxu0 0.0
          %3884 = vmatmul.mubr.f32.gmra.mrb[0].mxu0 %v1129
          %v3885 = vpop.f32.mrb[0].mxu0
          %v3886 = vadd.f32 0.0, %v3885
          %v3887 = vpop.f32.mrb[0].mxu0
          %3888 = vmatprep.mubr.f32.mxu0 0.0
          %3889 = vmatmul.mubr.f32.gmra.mrb[0].mxu0 %v1130
          %v3890 = vpop.f32.mrb[0].mxu0
          %v3891 = vadd.f32 0.0, %v3890
          %v3892 = vpop.f32.mrb[0].mxu0
          %3893 = vmatprep.mubr.f32.mxu0 0.0
          %3894 = vmatmul.mubr.f32.gmra.mrb[0].mxu0 %v1131
          %v3895 = vpop.f32.mrb[0].mxu0
          %v3896 = vadd.f32 0.0, %v3895
          %v3897 = vpop.f32.mrb[0].mxu0
          %3898 = vmatprep.mubr.f32.mxu0 0.0
          %3899 = vmatmul.mubr.f32.gmra.mrb[0].mxu0 %v1132
          %v3900 = vpop.f32.mrb[0].mxu0
          %v3901 = vadd.f32 0.0, %v3900
          %v3902 = vpop.f32.mrb[0].mxu0
          %3903 = vmatprep.mubr.f32.mxu0 0.0
          %3904 = vmatmul.mubr.f32.gmra.mrb[0].mxu0 %v1133
          %v3905 = vpop.f32.mrb[0].mxu0
          %v3906 = vadd.f32 0.0, %v3905
          %v3907 = vpop.f32.mrb[0].mxu0
          %3908 = vmatprep.mubr.f32.mxu0 0.0
          %3909 = vmatmul.mubr.f32.gmra.mrb[0].mxu0 %v1134
          %v3910 = vpop.f32.mrb[0].mxu0
          %v3911 = vadd.f32 0.0, %v3910
          %v3912 = vpop.f32.mrb[0].mxu0
          %3913 = vmatprep.mubr.f32.mxu0 0.0
          %3914 = vmatmul.mubr.f32.gmra.mrb[0].mxu0 %v1135
          %v3915 = vpop.f32.mrb[0].mxu0
          %v3916 = vadd.f32 0.0, %v3915
          %v3917 = vpop.f32.mrb[0].mxu0
          %3918 = vmatprep.mubr.f32.mxu0 0.0
          %3919 = vmatmul.mubr.f32.gmra.mrb[0].mxu0 %v1136
          %v3920 = vpop.f32.mrb[0].mxu0
          %v3921 = vadd.f32 0.0, %v3920
          %v3922 = vpop.f32.mrb[0].mxu0
          %3923 = vmatprep.mubr.f32.mxu0 0.0
          %3924 = vmatmul.mubr.f32.gmra.mrb[0].mxu0 %v1137
          %v3925 = vpop.f32.mrb[0].mxu0
          %v3926 = vadd.f32 0.0, %v3925
          %v3927 = vpop.f32.mrb[0].mxu0
          %3928 = vmatprep.mubr.f32.mxu0 0.0
          %3929 = vmatmul.mubr.f32.gmra.mrb[0].mxu0 %v1138
          %v3930 = vpop.f32.mrb[0].mxu0
          %v3931 = vadd.f32 0.0, %v3930
          %v3932 = vpop.f32.mrb[0].mxu0
          %3933 = vmatprep.mubr.f32.mxu0 0.0
          %3934 = vmatmul.mubr.f32.gmra.mrb[0].mxu0 %v1139
          %v3935 = vpop.f32.mrb[0].mxu0
          %v3936 = vadd.f32 0.0, %v3935
          %v3937 = vpop.f32.mrb[0].mxu0
          %3938 = vmatprep.mubr.f32.mxu0 0.0
          %3939 = vmatmul.mubr.f32.gmra.mrb[0].mxu0 %v1140
          %v3940 = vpop.f32.mrb[0].mxu0
          %v3941 = vadd.f32 0.0, %v3940
          %v3942 = vpop.f32.mrb[0].mxu0
          %3943 = vmatprep.mubr.f32.mxu0 0.0
          %3944 = vmatmul.mubr.f32.gmra.mrb[0].mxu0 %v1141
          %v3945 = vpop.f32.mrb[0].mxu0
          %v3946 = vadd.f32 0.0, %v3945
          %v3947 = vpop.f32.mrb[0].mxu0
          %3948 = vmatprep.mubr.f32.mxu0 0.0
          %3949 = vmatmul.mubr.f32.gmra.mrb[0].mxu0 %v1142
          %v3950 = vpop.f32.mrb[0].mxu0
          %v3951 = vadd.f32 0.0, %v3950
          %v3952 = vpop.f32.mrb[0].mxu0
          %3953 = vmatprep.mubr.f32.mxu0 0.0
          %3954 = vmatmul.mubr.f32.gmra.mrb[0].mxu0 %v1143
          %v3955 = vpop.f32.mrb[0].mxu0
          %v3956 = vadd.f32 0.0, %v3955
          %v3957 = vpop.f32.mrb[0].mxu0
          %3958 = vmatprep.mubr.f32.mxu0 0.0
          %3959 = vmatmul.mubr.f32.gmra.mrb[0].mxu0 %v1144
          %v3960 = vpop.f32.mrb[0].mxu0
          %v3961 = vadd.f32 0.0, %v3960
          %v3962 = vpop.f32.mrb[0].mxu0
          %3963 = vmatprep.mubr.f32.mxu0 0.0
          %3964 = vmatmul.mubr.f32.gmra.mrb[0].mxu0 %v1145
          %v3965 = vpop.f32.mrb[0].mxu0
          %v3966 = vadd.f32 0.0, %v3965
          %v3967 = vpop.f32.mrb[0].mxu0
          %3968 = vdwg.mxu0
          %vm4041 = vcmask 1041408
          %v4042 = vrot.slane %v1341, 6
          %v4043 = vrot.slane %v1347, 6
          %v4044 = vsel %vm4041, %v4042, %v4043
          %v4045 = vrot.slane %v1353, 6
          %v4046 = vsel %vm4041, %v4043, %v4045
          %v4047 = vrot.slane %v1359, 6
          %v4048 = vsel %vm4041, %v4045, %v4047
          %v4049 = vrot.slane %v1365, 6
          %v4050 = vsel %vm4041, %v4047, %v4049
          %v4051 = vrot.slane %v1371, 6
          %v4052 = vsel %vm4041, %v4049, %v4051
          %v4053 = vrot.slane %v1377, 6
          %v4054 = vsel %vm4041, %v4051, %v4053
          %v4055 = vrot.slane %v1383, 6
          %v4056 = vsel %vm4041, %v4053, %v4055
          %v4057 = vrot.slane %v1389, 6
          %v4058 = vsel %vm4041, %v4055, %v4057
          %v4059 = vrot.slane %v1395, 6
          %v4060 = vsel %vm4041, %v4057, %v4059
          %v4061 = vrot.slane %v1401, 6
          %v4062 = vsel %vm4041, %v4059, %v4061
          %v4063 = vrot.slane %v1407, 6
          %v4064 = vsel %vm4041, %v4061, %v4063
          %v4065 = vrot.slane %v1413, 6
          %v4066 = vsel %vm4041, %v4063, %v4065
          %v4067 = vrot.slane %v1419, 6
          %v4068 = vsel %vm4041, %v4065, %v4067
          %v4069 = vrot.slane %v1425, 6
          %v4070 = vsel %vm4041, %v4067, %v4069
          %v4071 = vrot.slane %v1431, 6
          %v4072 = vsel %vm4041, %v4069, %v4071
          %v4073 = vrot.slane %v1437, 6
          %v4074 = vsel %vm4041, %v4071, %v4073
          %v4075 = vrot.slane %v1443, 6
          %v4076 = vsel %vm4041, %v4073, %v4075
          %v4077 = vrot.slane %v1449, 6
          %v4078 = vsel %vm4041, %v4075, %v4077
          %v4079 = vrot.slane %v1455, 6
          %v4080 = vsel %vm4041, %v4077, %v4079
          %v4081 = vrot.slane %v1461, 6
          %v4082 = vsel %vm4041, %v4079, %v4081
          %v4083 = vrot.slane %v1467, 6
          %v4084 = vsel %vm4041, %v4081, %v4083
          %v4085 = vrot.slane %v1473, 6
          %v4086 = vsel %vm4041, %v4083, %v4085
          %v4087 = vrot.slane %v1479, 6
          %v4088 = vsel %vm4041, %v4085, %v4087
          %v4089 = vrot.slane %v1485, 6
          %v4090 = vsel %vm4041, %v4087, %v4089
          %v4091 = vrot.slane %v1491, 6
          %v4092 = vsel %vm4041, %v4089, %v4091
          %v4093 = vrot.slane %v1497, 6
          %v4094 = vsel %vm4041, %v4091, %v4093
          %v4095 = vrot.slane %v1503, 6
          %v4096 = vsel %vm4041, %v4093, %v4095
          %v4097 = vrot.slane %v1509, 6
          %v4098 = vsel %vm4041, %v4095, %v4097
          %v4099 = vrot.slane %v1515, 6
          %v4100 = vsel %vm4041, %v4097, %v4099
          %v4101 = vrot.slane %v1521, 6
          %v4102 = vsel %vm4041, %v4099, %v4101
          %v4103 = vrot.slane %v1527, 6
          %v4104 = vsel %vm4041, %v4101, %v4103
          %v4105 = vrot.slane %v1533, 6
          %v4106 = vsel %vm4041, %v4103, %v4105
          %v4107 = vrot.slane %v1539, 6
          %v4108 = vsel %vm4041, %v4105, %v4107
          %v4109 = vrot.slane %v1545, 6
          %v4110 = vsel %vm4041, %v4107, %v4109
          %v4111 = vrot.slane %v1551, 6
          %v4112 = vsel %vm4041, %v4109, %v4111
          %v4113 = vrot.slane %v1557, 6
          %v4114 = vsel %vm4041, %v4111, %v4113
          %v4115 = vrot.slane %v1563, 6
          %v4116 = vsel %vm4041, %v4113, %v4115
          %v4117 = vrot.slane %v1569, 6
          %v4118 = vsel %vm4041, %v4115, %v4117
          %v4119 = vrot.slane %v1575, 6
          %v4120 = vsel %vm4041, %v4117, %v4119
          %v4121 = vrot.slane %v1581, 6
          %v4122 = vsel %vm4041, %v4119, %v4121
          %v4123 = vrot.slane %v1587, 6
          %v4124 = vsel %vm4041, %v4121, %v4123
          %v4125 = vrot.slane %v1593, 6
          %v4126 = vsel %vm4041, %v4123, %v4125
          %v4127 = vrot.slane %v1599, 6
          %v4128 = vsel %vm4041, %v4125, %v4127
          %v4129 = vrot.slane %v1605, 6
          %v4130 = vsel %vm4041, %v4127, %v4129
          %v4131 = vrot.slane %v1611, 6
          %v4132 = vsel %vm4041, %v4129, %v4131
          %v4133 = vrot.slane %v1617, 6
          %v4134 = vsel %vm4041, %v4131, %v4133
          %v4135 = vrot.slane %v1623, 6
          %v4136 = vsel %vm4041, %v4133, %v4135
          %v4137 = vrot.slane %v1629, 6
          %v4138 = vsel %vm4041, %v4135, %v4137
          %v4139 = vrot.slane %v1635, 6
          %v4140 = vsel %vm4041, %v4137, %v4139
          %v4141 = vrot.slane %v1641, 6
          %v4142 = vsel %vm4041, %v4139, %v4141
          %v4143 = vrot.slane %v1647, 6
          %v4144 = vsel %vm4041, %v4141, %v4143
          %v4145 = vrot.slane %v1653, 6
          %v4146 = vsel %vm4041, %v4143, %v4145
          %v4147 = vrot.slane %v1659, 6
          %v4148 = vsel %vm4041, %v4145, %v4147
          %v4149 = vrot.slane %v1665, 6
          %v4150 = vsel %vm4041, %v4147, %v4149
          %v4151 = vrot.slane %v1671, 6
          %v4152 = vsel %vm4041, %v4149, %v4151
          %v4153 = vrot.slane %v1677, 6
          %v4154 = vsel %vm4041, %v4151, %v4153
          %v4155 = vrot.slane %v1683, 6
          %v4156 = vsel %vm4041, %v4153, %v4155
          %v4157 = vrot.slane %v1689, 6
          %v4158 = vsel %vm4041, %v4155, %v4157
          %v4159 = vrot.slane %v1695, 6
          %v4160 = vsel %vm4041, %v4157, %v4159
          %v4161 = vrot.slane %v1701, 6
          %v4162 = vsel %vm4041, %v4159, %v4161
          %v4163 = vrot.slane %v1707, 6
          %v4164 = vsel %vm4041, %v4161, %v4163
          %v4165 = vrot.slane %v1713, 6
          %v4166 = vsel %vm4041, %v4163, %v4165
          %v4167 = vrot.slane %v1719, 6
          %v4168 = vsel %vm4041, %v4165, %v4167
          %v4169 = vrot.slane %v1725, 6
          %v4170 = vsel %vm4041, %v4167, %v4169
          %v4171 = vrot.slane %v1731, 6
          %v4172 = vsel %vm4041, %v4169, %v4171
          %v4173 = vrot.slane %v1737, 6
          %v4174 = vsel %vm4041, %v4171, %v4173
          %v4175 = vrot.slane %v1743, 6
          %v4176 = vsel %vm4041, %v4173, %v4175
          %v4177 = vrot.slane %v1749, 6
          %v4178 = vsel %vm4041, %v4175, %v4177
          %v4179 = vrot.slane %v1755, 6
          %v4180 = vsel %vm4041, %v4177, %v4179
          %v4181 = vrot.slane %v1761, 6
          %v4182 = vsel %vm4041, %v4179, %v4181
          %v4183 = vrot.slane %v1767, 6
          %v4184 = vsel %vm4041, %v4181, %v4183
          %v4258 = vadd.f32 %v3606, %v4042
          %v4259 = vadd.f32 %v3611, %v4044
          %v4260 = vadd.f32 %v3616, %v4046
          %v4261 = vadd.f32 %v3621, %v4048
          %v4262 = vadd.f32 %v3626, %v4050
          %v4263 = vadd.f32 %v3631, %v4052
          %v4264 = vadd.f32 %v3636, %v4054
          %v4265 = vadd.f32 %v3641, %v4056
          %v4266 = vadd.f32 %v3646, %v4058
          %v4267 = vadd.f32 %v3651, %v4060
          %v4268 = vadd.f32 %v3656, %v4062
          %v4269 = vadd.f32 %v3661, %v4064
          %v4270 = vadd.f32 %v3666, %v4066
          %v4271 = vadd.f32 %v3671, %v4068
          %v4272 = vadd.f32 %v3676, %v4070
          %v4273 = vadd.f32 %v3681, %v4072
          %v4274 = vadd.f32 %v3686, %v4074
          %v4275 = vadd.f32 %v3691, %v4076
          %v4276 = vadd.f32 %v3696, %v4078
          %v4277 = vadd.f32 %v3701, %v4080
          %v4278 = vadd.f32 %v3706, %v4082
          %v4279 = vadd.f32 %v3711, %v4084
          %v4280 = vadd.f32 %v3716, %v4086
          %v4281 = vadd.f32 %v3721, %v4088
          %v4282 = vadd.f32 %v3726, %v4090
          %v4283 = vadd.f32 %v3731, %v4092
          %v4284 = vadd.f32 %v3736, %v4094
          %v4285 = vadd.f32 %v3741, %v4096
          %v4286 = vadd.f32 %v3746, %v4098
          %v4287 = vadd.f32 %v3751, %v4100
          %v4288 = vadd.f32 %v3756, %v4102
          %v4289 = vadd.f32 %v3761, %v4104
          %v4290 = vadd.f32 %v3766, %v4106
          %v4291 = vadd.f32 %v3771, %v4108
          %v4292 = vadd.f32 %v3776, %v4110
          %v4293 = vadd.f32 %v3781, %v4112
          %v4294 = vadd.f32 %v3786, %v4114
          %v4295 = vadd.f32 %v3791, %v4116
          %v4296 = vadd.f32 %v3796, %v4118
          %v4297 = vadd.f32 %v3801, %v4120
          %v4298 = vadd.f32 %v3806, %v4122
          %v4299 = vadd.f32 %v3811, %v4124
          %v4300 = vadd.f32 %v3816, %v4126
          %v4301 = vadd.f32 %v3821, %v4128
          %v4302 = vadd.f32 %v3826, %v4130
          %v4303 = vadd.f32 %v3831, %v4132
          %v4304 = vadd.f32 %v3836, %v4134
          %v4305 = vadd.f32 %v3841, %v4136
          %v4306 = vadd.f32 %v3846, %v4138
          %v4307 = vadd.f32 %v3851, %v4140
          %v4308 = vadd.f32 %v3856, %v4142
          %v4309 = vadd.f32 %v3861, %v4144
          %v4310 = vadd.f32 %v3866, %v4146
          %v4311 = vadd.f32 %v3871, %v4148
          %v4312 = vadd.f32 %v3876, %v4150
          %v4313 = vadd.f32 %v3881, %v4152
          %v4314 = vadd.f32 %v3886, %v4154
          %v4315 = vadd.f32 %v3891, %v4156
          %v4316 = vadd.f32 %v3896, %v4158
          %v4317 = vadd.f32 %v3901, %v4160
          %v4318 = vadd.f32 %v3906, %v4162
          %v4319 = vadd.f32 %v3911, %v4164
          %v4320 = vadd.f32 %v3916, %v4166
          %v4321 = vadd.f32 %v3921, %v4168
          %v4322 = vadd.f32 %v3926, %v4170
          %v4323 = vadd.f32 %v3931, %v4172
          %v4324 = vadd.f32 %v3936, %v4174
          %v4325 = vadd.f32 %v3941, %v4176
          %v4326 = vadd.f32 %v3946, %v4178
          %v4327 = vadd.f32 %v3951, %v4180
          %v4328 = vadd.f32 %v3956, %v4182
          %v4329 = vadd.f32 %v3961, %v4184
          %v4330 = vadd.f32 %v3966, %v4183
          %vm4404 = vcmask 1040384
          %v4405 = vrot.slane %v1343, 7
          %v4406 = vrot.slane %v1349, 7
          %v4407 = vsel %vm4404, %v4405, %v4406
          %v4408 = vrot.slane %v1355, 7
          %v4409 = vsel %vm4404, %v4406, %v4408
          %v4410 = vrot.slane %v1361, 7
          %v4411 = vsel %vm4404, %v4408, %v4410
          %v4412 = vrot.slane %v1367, 7
          %v4413 = vsel %vm4404, %v4410, %v4412
          %v4414 = vrot.slane %v1373, 7
          %v4415 = vsel %vm4404, %v4412, %v4414
          %v4416 = vrot.slane %v1379, 7
          %v4417 = vsel %vm4404, %v4414, %v4416
          %v4418 = vrot.slane %v1385, 7
          %v4419 = vsel %vm4404, %v4416, %v4418
          %v4420 = vrot.slane %v1391, 7
          %v4421 = vsel %vm4404, %v4418, %v4420
          %v4422 = vrot.slane %v1397, 7
          %v4423 = vsel %vm4404, %v4420, %v4422
          %v4424 = vrot.slane %v1403, 7
          %v4425 = vsel %vm4404, %v4422, %v4424
          %v4426 = vrot.slane %v1409, 7
          %v4427 = vsel %vm4404, %v4424, %v4426
          %v4428 = vrot.slane %v1415, 7
          %v4429 = vsel %vm4404, %v4426, %v4428
          %v4430 = vrot.slane %v1421, 7
          %v4431 = vsel %vm4404, %v4428, %v4430
          %v4432 = vrot.slane %v1427, 7
          %v4433 = vsel %vm4404, %v4430, %v4432
          %v4434 = vrot.slane %v1433, 7
          %v4435 = vsel %vm4404, %v4432, %v4434
          %v4436 = vrot.slane %v1439, 7
          %v4437 = vsel %vm4404, %v4434, %v4436
          %v4438 = vrot.slane %v1445, 7
          %v4439 = vsel %vm4404, %v4436, %v4438
          %v4440 = vrot.slane %v1451, 7
          %v4441 = vsel %vm4404, %v4438, %v4440
          %v4442 = vrot.slane %v1457, 7
          %v4443 = vsel %vm4404, %v4440, %v4442
          %v4444 = vrot.slane %v1463, 7
          %v4445 = vsel %vm4404, %v4442, %v4444
          %v4446 = vrot.slane %v1469, 7
          %v4447 = vsel %vm4404, %v4444, %v4446
          %v4448 = vrot.slane %v1475, 7
          %v4449 = vsel %vm4404, %v4446, %v4448
          %v4450 = vrot.slane %v1481, 7
          %v4451 = vsel %vm4404, %v4448, %v4450
          %v4452 = vrot.slane %v1487, 7
          %v4453 = vsel %vm4404, %v4450, %v4452
          %v4454 = vrot.slane %v1493, 7
          %v4455 = vsel %vm4404, %v4452, %v4454
          %v4456 = vrot.slane %v1499, 7
          %v4457 = vsel %vm4404, %v4454, %v4456
          %v4458 = vrot.slane %v1505, 7
          %v4459 = vsel %vm4404, %v4456, %v4458
          %v4460 = vrot.slane %v1511, 7
          %v4461 = vsel %vm4404, %v4458, %v4460
          %v4462 = vrot.slane %v1517, 7
          %v4463 = vsel %vm4404, %v4460, %v4462
          %v4464 = vrot.slane %v1523, 7
          %v4465 = vsel %vm4404, %v4462, %v4464
          %v4466 = vrot.slane %v1529, 7
          %v4467 = vsel %vm4404, %v4464, %v4466
          %v4468 = vrot.slane %v1535, 7
          %v4469 = vsel %vm4404, %v4466, %v4468
          %v4470 = vrot.slane %v1541, 7
          %v4471 = vsel %vm4404, %v4468, %v4470
          %v4472 = vrot.slane %v1547, 7
          %v4473 = vsel %vm4404, %v4470, %v4472
          %v4474 = vrot.slane %v1553, 7
          %v4475 = vsel %vm4404, %v4472, %v4474
          %v4476 = vrot.slane %v1559, 7
          %v4477 = vsel %vm4404, %v4474, %v4476
          %v4478 = vrot.slane %v1565, 7
          %v4479 = vsel %vm4404, %v4476, %v4478
          %v4480 = vrot.slane %v1571, 7
          %v4481 = vsel %vm4404, %v4478, %v4480
          %v4482 = vrot.slane %v1577, 7
          %v4483 = vsel %vm4404, %v4480, %v4482
          %v4484 = vrot.slane %v1583, 7
          %v4485 = vsel %vm4404, %v4482, %v4484
          %v4486 = vrot.slane %v1589, 7
          %v4487 = vsel %vm4404, %v4484, %v4486
          %v4488 = vrot.slane %v1595, 7
          %v4489 = vsel %vm4404, %v4486, %v4488
          %v4490 = vrot.slane %v1601, 7
          %v4491 = vsel %vm4404, %v4488, %v4490
          %v4492 = vrot.slane %v1607, 7
          %v4493 = vsel %vm4404, %v4490, %v4492
          %v4494 = vrot.slane %v1613, 7
          %v4495 = vsel %vm4404, %v4492, %v4494
          %v4496 = vrot.slane %v1619, 7
          %v4497 = vsel %vm4404, %v4494, %v4496
          %v4498 = vrot.slane %v1625, 7
          %v4499 = vsel %vm4404, %v4496, %v4498
          %v4500 = vrot.slane %v1631, 7
          %v4501 = vsel %vm4404, %v4498, %v4500
          %v4502 = vrot.slane %v1637, 7
          %v4503 = vsel %vm4404, %v4500, %v4502
          %v4504 = vrot.slane %v1643, 7
          %v4505 = vsel %vm4404, %v4502, %v4504
          %v4506 = vrot.slane %v1649, 7
          %v4507 = vsel %vm4404, %v4504, %v4506
          %v4508 = vrot.slane %v1655, 7
          %v4509 = vsel %vm4404, %v4506, %v4508
          %v4510 = vrot.slane %v1661, 7
          %v4511 = vsel %vm4404, %v4508, %v4510
          %v4512 = vrot.slane %v1667, 7
          %v4513 = vsel %vm4404, %v4510, %v4512
          %v4514 = vrot.slane %v1673, 7
          %v4515 = vsel %vm4404, %v4512, %v4514
          %v4516 = vrot.slane %v1679, 7
          %v4517 = vsel %vm4404, %v4514, %v4516
          %v4518 = vrot.slane %v1685, 7
          %v4519 = vsel %vm4404, %v4516, %v4518
          %v4520 = vrot.slane %v1691, 7
          %v4521 = vsel %vm4404, %v4518, %v4520
          %v4522 = vrot.slane %v1697, 7
          %v4523 = vsel %vm4404, %v4520, %v4522
          %v4524 = vrot.slane %v1703, 7
          %v4525 = vsel %vm4404, %v4522, %v4524
          %v4526 = vrot.slane %v1709, 7
          %v4527 = vsel %vm4404, %v4524, %v4526
          %v4528 = vrot.slane %v1715, 7
          %v4529 = vsel %vm4404, %v4526, %v4528
          %v4530 = vrot.slane %v1721, 7
          %v4531 = vsel %vm4404, %v4528, %v4530
          %v4532 = vrot.slane %v1727, 7
          %v4533 = vsel %vm4404, %v4530, %v4532
          %v4534 = vrot.slane %v1733, 7
          %v4535 = vsel %vm4404, %v4532, %v4534
          %v4536 = vrot.slane %v1739, 7
          %v4537 = vsel %vm4404, %v4534, %v4536
          %v4538 = vrot.slane %v1745, 7
          %v4539 = vsel %vm4404, %v4536, %v4538
          %v4540 = vrot.slane %v1751, 7
          %v4541 = vsel %vm4404, %v4538, %v4540
          %v4542 = vrot.slane %v1757, 7
          %v4543 = vsel %vm4404, %v4540, %v4542
          %v4544 = vrot.slane %v1763, 7
          %v4545 = vsel %vm4404, %v4542, %v4544
          %v4546 = vrot.slane %v1769, 7
          %v4547 = vsel %vm4404, %v4544, %v4546
          %v4548 = vrot.slane %v1774, 7
          %v4549 = vsel %vm4404, %v4546, %v4548
          %v4623 = vadd.f32 %v4258, %v4405
          %v4624 = vadd.f32 %v4259, %v4407
          %v4625 = vadd.f32 %v4260, %v4409
          %v4626 = vadd.f32 %v4261, %v4411
          %v4627 = vadd.f32 %v4262, %v4413
          %v4628 = vadd.f32 %v4263, %v4415
          %v4629 = vadd.f32 %v4264, %v4417
          %v4630 = vadd.f32 %v4265, %v4419
          %v4631 = vadd.f32 %v4266, %v4421
          %v4632 = vadd.f32 %v4267, %v4423
          %v4633 = vadd.f32 %v4268, %v4425
          %v4634 = vadd.f32 %v4269, %v4427
          %v4635 = vadd.f32 %v4270, %v4429
          %v4636 = vadd.f32 %v4271, %v4431
          %v4637 = vadd.f32 %v4272, %v4433
          %v4638 = vadd.f32 %v4273, %v4435
          %v4639 = vadd.f32 %v4274, %v4437
          %v4640 = vadd.f32 %v4275, %v4439
          %v4641 = vadd.f32 %v4276, %v4441
          %v4642 = vadd.f32 %v4277, %v4443
          %v4643 = vadd.f32 %v4278, %v4445
          %v4644 = vadd.f32 %v4279, %v4447
          %v4645 = vadd.f32 %v4280, %v4449
          %v4646 = vadd.f32 %v4281, %v4451
          %v4647 = vadd.f32 %v4282, %v4453
          %v4648 = vadd.f32 %v4283, %v4455
          %v4649 = vadd.f32 %v4284, %v4457
          %v4650 = vadd.f32 %v4285, %v4459
          %v4651 = vadd.f32 %v4286, %v4461
          %v4652 = vadd.f32 %v4287, %v4463
          %v4653 = vadd.f32 %v4288, %v4465
          %v4654 = vadd.f32 %v4289, %v4467
          %v4655 = vadd.f32 %v4290, %v4469
          %v4656 = vadd.f32 %v4291, %v4471
          %v4657 = vadd.f32 %v4292, %v4473
          %v4658 = vadd.f32 %v4293, %v4475
          %v4659 = vadd.f32 %v4294, %v4477
          %v4660 = vadd.f32 %v4295, %v4479
          %v4661 = vadd.f32 %v4296, %v4481
          %v4662 = vadd.f32 %v4297, %v4483
          %v4663 = vadd.f32 %v4298, %v4485
          %v4664 = vadd.f32 %v4299, %v4487
          %v4665 = vadd.f32 %v4300, %v4489
          %v4666 = vadd.f32 %v4301, %v4491
          %v4667 = vadd.f32 %v4302, %v4493
          %v4668 = vadd.f32 %v4303, %v4495
          %v4669 = vadd.f32 %v4304, %v4497
          %v4670 = vadd.f32 %v4305, %v4499
          %v4671 = vadd.f32 %v4306, %v4501
          %v4672 = vadd.f32 %v4307, %v4503
          %v4673 = vadd.f32 %v4308, %v4505
          %v4674 = vadd.f32 %v4309, %v4507
          %v4675 = vadd.f32 %v4310, %v4509
          %v4676 = vadd.f32 %v4311, %v4511
          %v4677 = vadd.f32 %v4312, %v4513
          %v4678 = vadd.f32 %v4313, %v4515
          %v4679 = vadd.f32 %v4314, %v4517
          %v4680 = vadd.f32 %v4315, %v4519
          %v4681 = vadd.f32 %v4316, %v4521
          %v4682 = vadd.f32 %v4317, %v4523
          %v4683 = vadd.f32 %v4318, %v4525
          %v4684 = vadd.f32 %v4319, %v4527
          %v4685 = vadd.f32 %v4320, %v4529
          %v4686 = vadd.f32 %v4321, %v4531
          %v4687 = vadd.f32 %v4322, %v4533
          %v4688 = vadd.f32 %v4323, %v4535
          %v4689 = vadd.f32 %v4324, %v4537
          %v4690 = vadd.f32 %v4325, %v4539
          %v4691 = vadd.f32 %v4326, %v4541
          %v4692 = vadd.f32 %v4327, %v4543
          %v4693 = vadd.f32 %v4328, %v4545
          %v4694 = vadd.f32 %v4329, %v4547
          %v4695 = vadd.f32 %v4330, %v4549
          %v4696 = vadd.f32 %v4623, %v1891
          %v4697 = vadd.f32 %v4624, %v1896
          %v4698 = vadd.f32 %v4625, %v1901
          %v4699 = vadd.f32 %v4626, %v1906
          %v4700 = vadd.f32 %v4627, %v1911
          %v4701 = vadd.f32 %v4628, %v1916
          %v4702 = vadd.f32 %v4629, %v1921
          %v4703 = vadd.f32 %v4630, %v1927
          %v4704 = vadd.f32 %v4631, %v1933
          %v4705 = vadd.f32 %v4632, %v1939
          %v4706 = vadd.f32 %v4633, %v1945
          %v4707 = vadd.f32 %v4634, %v1951
          %v4708 = vadd.f32 %v4635, %v1957
          %v4709 = vadd.f32 %v4636, %v1963
          %v4710 = vadd.f32 %v4637, %v1969
          %v4711 = vadd.f32 %v4638, %v1975
          %v4712 = vadd.f32 %v4639, %v1981
          %v4713 = vadd.f32 %v4640, %v1987
          %v4714 = vadd.f32 %v4641, %v1993
          %v4715 = vadd.f32 %v4642, %v1999
          %v4716 = vadd.f32 %v4643, %v2005
          %v4717 = vadd.f32 %v4644, %v2011
          %v4718 = vadd.f32 %v4645, %v2017
          %v4719 = vadd.f32 %v4646, %v2023
          %v4720 = vadd.f32 %v4647, %v2029
          %v4721 = vadd.f32 %v4648, %v2035
          %v4722 = vadd.f32 %v4649, %v2041
          %v4723 = vadd.f32 %v4650, %v2047
          %v4724 = vadd.f32 %v4651, %v2053
          %v4725 = vadd.f32 %v4652, %v2059
          %v4726 = vadd.f32 %v4653, %v2065
          %v4727 = vadd.f32 %v4654, %v2071
          %v4728 = vadd.f32 %v4655, %v2077
          %v4729 = vadd.f32 %v4656, %v2083
          %v4730 = vadd.f32 %v4657, %v2089
          %v4731 = vadd.f32 %v4658, %v2095
          %v4732 = vadd.f32 %v4659, %v2101
          %v4733 = vadd.f32 %v4660, %v2107
          %v4734 = vadd.f32 %v4661, %v2113
          %v4735 = vadd.f32 %v4662, %v2119
          %v4736 = vadd.f32 %v4663, %v2125
          %v4737 = vadd.f32 %v4664, %v2131
          %v4738 = vadd.f32 %v4665, %v2137
          %v4739 = vadd.f32 %v4666, %v2143
          %v4740 = vadd.f32 %v4667, %v2149
          %v4741 = vadd.f32 %v4668, %v2155
          %v4742 = vadd.f32 %v4669, %v2161
          %v4743 = vadd.f32 %v4670, %v2167
          %v4744 = vadd.f32 %v4671, %v2173
          %v4745 = vadd.f32 %v4672, %v2179
          %v4746 = vadd.f32 %v4673, %v2185
          %v4747 = vadd.f32 %v4674, %v2191
          %v4748 = vadd.f32 %v4675, %v2197
          %v4749 = vadd.f32 %v4676, %v2203
          %v4750 = vadd.f32 %v4677, %v2209
          %v4751 = vadd.f32 %v4678, %v2215
          %v4752 = vadd.f32 %v4679, %v2221
          %v4753 = vadd.f32 %v4680, %v2227
          %v4754 = vadd.f32 %v4681, %v2233
          %v4755 = vadd.f32 %v4682, %v2239
          %v4756 = vadd.f32 %v4683, %v2245
          %v4757 = vadd.f32 %v4684, %v2251
          %v4758 = vadd.f32 %v4685, %v2257
          %v4759 = vadd.f32 %v4686, %v2263
          %v4760 = vadd.f32 %v4687, %v2269
          %v4761 = vadd.f32 %v4688, %v2275
          %v4762 = vadd.f32 %v4689, %v2281
          %v4763 = vadd.f32 %v4690, %v2287
          %v4764 = vadd.f32 %v4691, %v2293
          %v4765 = vadd.f32 %v4692, %v2299
          %v4766 = vadd.f32 %v4693, %v2305
          %v4767 = vadd.f32 %v4694, %v2311
          %v4768 = vadd.f32 %v4695, %v2317
          %v4841 = vrot.slane %v1923, 6
          %v4842 = vrot.slane %v1929, 6
          %v4843 = vsel %vm4041, %v4841, %v4842
          %v4844 = vrot.slane %v1935, 6
          %v4845 = vsel %vm4041, %v4842, %v4844
          %v4846 = vrot.slane %v1941, 6
          %v4847 = vsel %vm4041, %v4844, %v4846
          %v4848 = vrot.slane %v1947, 6
          %v4849 = vsel %vm4041, %v4846, %v4848
          %v4850 = vrot.slane %v1953, 6
          %v4851 = vsel %vm4041, %v4848, %v4850
          %v4852 = vrot.slane %v1959, 6
          %v4853 = vsel %vm4041, %v4850, %v4852
          %v4854 = vrot.slane %v1965, 6
          %v4855 = vsel %vm4041, %v4852, %v4854
          %v4856 = vrot.slane %v1971, 6
          %v4857 = vsel %vm4041, %v4854, %v4856
          %v4858 = vrot.slane %v1977, 6
          %v4859 = vsel %vm4041, %v4856, %v4858
          %v4860 = vrot.slane %v1983, 6
          %v4861 = vsel %vm4041, %v4858, %v4860
          %v4862 = vrot.slane %v1989, 6
          %v4863 = vsel %vm4041, %v4860, %v4862
          %v4864 = vrot.slane %v1995, 6
          %v4865 = vsel %vm4041, %v4862, %v4864
          %v4866 = vrot.slane %v2001, 6
          %v4867 = vsel %vm4041, %v4864, %v4866
          %v4868 = vrot.slane %v2007, 6
          %v4869 = vsel %vm4041, %v4866, %v4868
          %v4870 = vrot.slane %v2013, 6
          %v4871 = vsel %vm4041, %v4868, %v4870
          %v4872 = vrot.slane %v2019, 6
          %v4873 = vsel %vm4041, %v4870, %v4872
          %v4874 = vrot.slane %v2025, 6
          %v4875 = vsel %vm4041, %v4872, %v4874
          %v4876 = vrot.slane %v2031, 6
          %v4877 = vsel %vm4041, %v4874, %v4876
          %v4878 = vrot.slane %v2037, 6
          %v4879 = vsel %vm4041, %v4876, %v4878
          %v4880 = vrot.slane %v2043, 6
          %v4881 = vsel %vm4041, %v4878, %v4880
          %v4882 = vrot.slane %v2049, 6
          %v4883 = vsel %vm4041, %v4880, %v4882
          %v4884 = vrot.slane %v2055, 6
          %v4885 = vsel %vm4041, %v4882, %v4884
          %v4886 = vrot.slane %v2061, 6
          %v4887 = vsel %vm4041, %v4884, %v4886
          %v4888 = vrot.slane %v2067, 6
          %v4889 = vsel %vm4041, %v4886, %v4888
          %v4890 = vrot.slane %v2073, 6
          %v4891 = vsel %vm4041, %v4888, %v4890
          %v4892 = vrot.slane %v2079, 6
          %v4893 = vsel %vm4041, %v4890, %v4892
          %v4894 = vrot.slane %v2085, 6
          %v4895 = vsel %vm4041, %v4892, %v4894
          %v4896 = vrot.slane %v2091, 6
          %v4897 = vsel %vm4041, %v4894, %v4896
          %v4898 = vrot.slane %v2097, 6
          %v4899 = vsel %vm4041, %v4896, %v4898
          %v4900 = vrot.slane %v2103, 6
          %v4901 = vsel %vm4041, %v4898, %v4900
          %v4902 = vrot.slane %v2109, 6
          %v4903 = vsel %vm4041, %v4900, %v4902
          %v4904 = vrot.slane %v2115, 6
          %v4905 = vsel %vm4041, %v4902, %v4904
          %v4906 = vrot.slane %v2121, 6
          %v4907 = vsel %vm4041, %v4904, %v4906
          %v4908 = vrot.slane %v2127, 6
          %v4909 = vsel %vm4041, %v4906, %v4908
          %v4910 = vrot.slane %v2133, 6
          %v4911 = vsel %vm4041, %v4908, %v4910
          %v4912 = vrot.slane %v2139, 6
          %v4913 = vsel %vm4041, %v4910, %v4912
          %v4914 = vrot.slane %v2145, 6
          %v4915 = vsel %vm4041, %v4912, %v4914
          %v4916 = vrot.slane %v2151, 6
          %v4917 = vsel %vm4041, %v4914, %v4916
          %v4918 = vrot.slane %v2157, 6
          %v4919 = vsel %vm4041, %v4916, %v4918
          %v4920 = vrot.slane %v2163, 6
          %v4921 = vsel %vm4041, %v4918, %v4920
          %v4922 = vrot.slane %v2169, 6
          %v4923 = vsel %vm4041, %v4920, %v4922
          %v4924 = vrot.slane %v2175, 6
          %v4925 = vsel %vm4041, %v4922, %v4924
          %v4926 = vrot.slane %v2181, 6
          %v4927 = vsel %vm4041, %v4924, %v4926
          %v4928 = vrot.slane %v2187, 6
          %v4929 = vsel %vm4041, %v4926, %v4928
          %v4930 = vrot.slane %v2193, 6
          %v4931 = vsel %vm4041, %v4928, %v4930
          %v4932 = vrot.slane %v2199, 6
          %v4933 = vsel %vm4041, %v4930, %v4932
          %v4934 = vrot.slane %v2205, 6
          %v4935 = vsel %vm4041, %v4932, %v4934
          %v4936 = vrot.slane %v2211, 6
          %v4937 = vsel %vm4041, %v4934, %v4936
          %v4938 = vrot.slane %v2217, 6
          %v4939 = vsel %vm4041, %v4936, %v4938
          %v4940 = vrot.slane %v2223, 6
          %v4941 = vsel %vm4041, %v4938, %v4940
          %v4942 = vrot.slane %v2229, 6
          %v4943 = vsel %vm4041, %v4940, %v4942
          %v4944 = vrot.slane %v2235, 6
          %v4945 = vsel %vm4041, %v4942, %v4944
          %v4946 = vrot.slane %v2241, 6
          %v4947 = vsel %vm4041, %v4944, %v4946
          %v4948 = vrot.slane %v2247, 6
          %v4949 = vsel %vm4041, %v4946, %v4948
          %v4950 = vrot.slane %v2253, 6
          %v4951 = vsel %vm4041, %v4948, %v4950
          %v4952 = vrot.slane %v2259, 6
          %v4953 = vsel %vm4041, %v4950, %v4952
          %v4954 = vrot.slane %v2265, 6
          %v4955 = vsel %vm4041, %v4952, %v4954
          %v4956 = vrot.slane %v2271, 6
          %v4957 = vsel %vm4041, %v4954, %v4956
          %v4958 = vrot.slane %v2277, 6
          %v4959 = vsel %vm4041, %v4956, %v4958
          %v4960 = vrot.slane %v2283, 6
          %v4961 = vsel %vm4041, %v4958, %v4960
          %v4962 = vrot.slane %v2289, 6
          %v4963 = vsel %vm4041, %v4960, %v4962
          %v4964 = vrot.slane %v2295, 6
          %v4965 = vsel %vm4041, %v4962, %v4964
          %v4966 = vrot.slane %v2301, 6
          %v4967 = vsel %vm4041, %v4964, %v4966
          %v4968 = vrot.slane %v2307, 6
          %v4969 = vsel %vm4041, %v4966, %v4968
          %v4970 = vrot.slane %v2313, 6
          %v4971 = vsel %vm4041, %v4968, %v4970
          %v4972 = vrot.slane %v2319, 6
          %v4973 = vsel %vm4041, %v4970, %v4972
          %v4974 = vrot.slane %v2324, 6
          %v4975 = vsel %vm4041, %v4972, %v4974
          %v4976 = vrot.slane %v2329, 6
          %v4977 = vsel %vm4041, %v4974, %v4976
          %v4978 = vrot.slane %v2334, 6
          %v4979 = vsel %vm4041, %v4976, %v4978
          %v4980 = vrot.slane %v2339, 6
          %v4981 = vsel %vm4041, %v4978, %v4980
          %v4982 = vrot.slane %v2344, 6
          %v4983 = vsel %vm4041, %v4980, %v4982
          %v5057 = vadd.f32 %v4696, %v4841
          %v5058 = vadd.f32 %v4697, %v4843
          %v5059 = vadd.f32 %v4698, %v4845
          %v5060 = vadd.f32 %v4699, %v4847
          %v5061 = vadd.f32 %v4700, %v4849
          %v5062 = vadd.f32 %v4701, %v4851
          %v5063 = vadd.f32 %v4702, %v4853
          %v5064 = vadd.f32 %v4703, %v4855
          %v5065 = vadd.f32 %v4704, %v4857
          %v5066 = vadd.f32 %v4705, %v4859
          %v5067 = vadd.f32 %v4706, %v4861
          %v5068 = vadd.f32 %v4707, %v4863
          %v5069 = vadd.f32 %v4708, %v4865
          %v5070 = vadd.f32 %v4709, %v4867
          %v5071 = vadd.f32 %v4710, %v4869
          %v5072 = vadd.f32 %v4711, %v4871
          %v5073 = vadd.f32 %v4712, %v4873
          %v5074 = vadd.f32 %v4713, %v4875
          %v5075 = vadd.f32 %v4714, %v4877
          %v5076 = vadd.f32 %v4715, %v4879
          %v5077 = vadd.f32 %v4716, %v4881
          %v5078 = vadd.f32 %v4717, %v4883
          %v5079 = vadd.f32 %v4718, %v4885
          %v5080 = vadd.f32 %v4719, %v4887
          %v5081 = vadd.f32 %v4720, %v4889
          %v5082 = vadd.f32 %v4721, %v4891
          %v5083 = vadd.f32 %v4722, %v4893
          %v5084 = vadd.f32 %v4723, %v4895
          %v5085 = vadd.f32 %v4724, %v4897
          %v5086 = vadd.f32 %v4725, %v4899
          %v5087 = vadd.f32 %v4726, %v4901
          %v5088 = vadd.f32 %v4727, %v4903
          %v5089 = vadd.f32 %v4728, %v4905
          %v5090 = vadd.f32 %v4729, %v4907
          %v5091 = vadd.f32 %v4730, %v4909
          %v5092 = vadd.f32 %v4731, %v4911
          %v5093 = vadd.f32 %v4732, %v4913
          %v5094 = vadd.f32 %v4733, %v4915
          %v5095 = vadd.f32 %v4734, %v4917
          %v5096 = vadd.f32 %v4735, %v4919
          %v5097 = vadd.f32 %v4736, %v4921
          %v5098 = vadd.f32 %v4737, %v4923
          %v5099 = vadd.f32 %v4738, %v4925
          %v5100 = vadd.f32 %v4739, %v4927
          %v5101 = vadd.f32 %v4740, %v4929
          %v5102 = vadd.f32 %v4741, %v4931
          %v5103 = vadd.f32 %v4742, %v4933
          %v5104 = vadd.f32 %v4743, %v4935
          %v5105 = vadd.f32 %v4744, %v4937
          %v5106 = vadd.f32 %v4745, %v4939
          %v5107 = vadd.f32 %v4746, %v4941
          %v5108 = vadd.f32 %v4747, %v4943
          %v5109 = vadd.f32 %v4748, %v4945
          %v5110 = vadd.f32 %v4749, %v4947
          %v5111 = vadd.f32 %v4750, %v4949
          %v5112 = vadd.f32 %v4751, %v4951
          %v5113 = vadd.f32 %v4752, %v4953
          %v5114 = vadd.f32 %v4753, %v4955
          %v5115 = vadd.f32 %v4754, %v4957
          %v5116 = vadd.f32 %v4755, %v4959
          %v5117 = vadd.f32 %v4756, %v4961
          %v5118 = vadd.f32 %v4757, %v4963
          %v5119 = vadd.f32 %v4758, %v4965
          %v5120 = vadd.f32 %v4759, %v4967
          %v5121 = vadd.f32 %v4760, %v4969
          %v5122 = vadd.f32 %v4761, %v4971
          %v5123 = vadd.f32 %v4762, %v4973
          %v5124 = vadd.f32 %v4763, %v4975
          %v5125 = vadd.f32 %v4764, %v4977
          %v5126 = vadd.f32 %v4765, %v4979
          %v5127 = vadd.f32 %v4766, %v4981
          %v5128 = vadd.f32 %v4767, %v4983
          %v5129 = vadd.f32 %v4768, %v4982
          %v5203 = vrot.slane %v2465, 7
          %v5204 = vrot.slane %v2471, 7
          %v5205 = vsel %vm4404, %v5203, %v5204
          %v5206 = vrot.slane %v2477, 7
          %v5207 = vsel %vm4404, %v5204, %v5206
          %v5208 = vrot.slane %v2483, 7
          %v5209 = vsel %vm4404, %v5206, %v5208
          %v5210 = vrot.slane %v2489, 7
          %v5211 = vsel %vm4404, %v5208, %v5210
          %v5212 = vrot.slane %v2495, 7
          %v5213 = vsel %vm4404, %v5210, %v5212
          %v5214 = vrot.slane %v2501, 7
          %v5215 = vsel %vm4404, %v5212, %v5214
          %v5216 = vrot.slane %v2507, 7
          %v5217 = vsel %vm4404, %v5214, %v5216
          %v5218 = vrot.slane %v2513, 7
          %v5219 = vsel %vm4404, %v5216, %v5218
          %v5220 = vrot.slane %v2519, 7
          %v5221 = vsel %vm4404, %v5218, %v5220
          %v5222 = vrot.slane %v2525, 7
          %v5223 = vsel %vm4404, %v5220, %v5222
          %v5224 = vrot.slane %v2531, 7
          %v5225 = vsel %vm4404, %v5222, %v5224
          %v5226 = vrot.slane %v2537, 7
          %v5227 = vsel %vm4404, %v5224, %v5226
          %v5228 = vrot.slane %v2543, 7
          %v5229 = vsel %vm4404, %v5226, %v5228
          %v5230 = vrot.slane %v2549, 7
          %v5231 = vsel %vm4404, %v5228, %v5230
          %v5232 = vrot.slane %v2555, 7
          %v5233 = vsel %vm4404, %v5230, %v5232
          %v5234 = vrot.slane %v2561, 7
          %v5235 = vsel %vm4404, %v5232, %v5234
          %v5236 = vrot.slane %v2567, 7
          %v5237 = vsel %vm4404, %v5234, %v5236
          %v5238 = vrot.slane %v2573, 7
          %v5239 = vsel %vm4404, %v5236, %v5238
          %v5240 = vrot.slane %v2579, 7
          %v5241 = vsel %vm4404, %v5238, %v5240
          %v5242 = vrot.slane %v2585, 7
          %v5243 = vsel %vm4404, %v5240, %v5242
          %v5244 = vrot.slane %v2591, 7
          %v5245 = vsel %vm4404, %v5242, %v5244
          %v5246 = vrot.slane %v2597, 7
          %v5247 = vsel %vm4404, %v5244, %v5246
          %v5248 = vrot.slane %v2603, 7
          %v5249 = vsel %vm4404, %v5246, %v5248
          %v5250 = vrot.slane %v2609, 7
          %v5251 = vsel %vm4404, %v5248, %v5250
          %v5252 = vrot.slane %v2615, 7
          %v5253 = vsel %vm4404, %v5250, %v5252
          %v5254 = vrot.slane %v2621, 7
          %v5255 = vsel %vm4404, %v5252, %v5254
          %v5256 = vrot.slane %v2627, 7
          %v5257 = vsel %vm4404, %v5254, %v5256
          %v5258 = vrot.slane %v2633, 7
          %v5259 = vsel %vm4404, %v5256, %v5258
          %v5260 = vrot.slane %v2639, 7
          %v5261 = vsel %vm4404, %v5258, %v5260
          %v5262 = vrot.slane %v2645, 7
          %v5263 = vsel %vm4404, %v5260, %v5262
          %v5264 = vrot.slane %v2651, 7
          %v5265 = vsel %vm4404, %v5262, %v5264
          %v5266 = vrot.slane %v2657, 7
          %v5267 = vsel %vm4404, %v5264, %v5266
          %v5268 = vrot.slane %v2663, 7
          %v5269 = vsel %vm4404, %v5266, %v5268
          %v5270 = vrot.slane %v2669, 7
          %v5271 = vsel %vm4404, %v5268, %v5270
          %v5272 = vrot.slane %v2675, 7
          %v5273 = vsel %vm4404, %v5270, %v5272
          %v5274 = vrot.slane %v2681, 7
          %v5275 = vsel %vm4404, %v5272, %v5274
          %v5276 = vrot.slane %v2687, 7
          %v5277 = vsel %vm4404, %v5274, %v5276
          %v5278 = vrot.slane %v2693, 7
          %v5279 = vsel %vm4404, %v5276, %v5278
          %v5280 = vrot.slane %v2699, 7
          %v5281 = vsel %vm4404, %v5278, %v5280
          %v5282 = vrot.slane %v2705, 7
          %v5283 = vsel %vm4404, %v5280, %v5282
          %v5284 = vrot.slane %v2711, 7
          %v5285 = vsel %vm4404, %v5282, %v5284
          %v5286 = vrot.slane %v2717, 7
          %v5287 = vsel %vm4404, %v5284, %v5286
          %v5288 = vrot.slane %v2723, 7
          %v5289 = vsel %vm4404, %v5286, %v5288
          %v5290 = vrot.slane %v2729, 7
          %v5291 = vsel %vm4404, %v5288, %v5290
          %v5292 = vrot.slane %v2735, 7
          %v5293 = vsel %vm4404, %v5290, %v5292
          %v5294 = vrot.slane %v2741, 7
          %v5295 = vsel %vm4404, %v5292, %v5294
          %v5296 = vrot.slane %v2747, 7
          %v5297 = vsel %vm4404, %v5294, %v5296
          %v5298 = vrot.slane %v2753, 7
          %v5299 = vsel %vm4404, %v5296, %v5298
          %v5300 = vrot.slane %v2759, 7
          %v5301 = vsel %vm4404, %v5298, %v5300
          %v5302 = vrot.slane %v2765, 7
          %v5303 = vsel %vm4404, %v5300, %v5302
          %v5304 = vrot.slane %v2771, 7
          %v5305 = vsel %vm4404, %v5302, %v5304
          %v5306 = vrot.slane %v2777, 7
          %v5307 = vsel %vm4404, %v5304, %v5306
          %v5308 = vrot.slane %v2783, 7
          %v5309 = vsel %vm4404, %v5306, %v5308
          %v5310 = vrot.slane %v2789, 7
          %v5311 = vsel %vm4404, %v5308, %v5310
          %v5312 = vrot.slane %v2795, 7
          %v5313 = vsel %vm4404, %v5310, %v5312
          %v5314 = vrot.slane %v2801, 7
          %v5315 = vsel %vm4404, %v5312, %v5314
          %v5316 = vrot.slane %v2807, 7
          %v5317 = vsel %vm4404, %v5314, %v5316
          %v5318 = vrot.slane %v2813, 7
          %v5319 = vsel %vm4404, %v5316, %v5318
          %v5320 = vrot.slane %v2819, 7
          %v5321 = vsel %vm4404, %v5318, %v5320
          %v5322 = vrot.slane %v2825, 7
          %v5323 = vsel %vm4404, %v5320, %v5322
          %v5324 = vrot.slane %v2831, 7
          %v5325 = vsel %vm4404, %v5322, %v5324
          %v5326 = vrot.slane %v2837, 7
          %v5327 = vsel %vm4404, %v5324, %v5326
          %v5328 = vrot.slane %v2843, 7
          %v5329 = vsel %vm4404, %v5326, %v5328
          %v5330 = vrot.slane %v2849, 7
          %v5331 = vsel %vm4404, %v5328, %v5330
          %v5332 = vrot.slane %v2855, 7
          %v5333 = vsel %vm4404, %v5330, %v5332
          %v5334 = vrot.slane %v2861, 7
          %v5335 = vsel %vm4404, %v5332, %v5334
          %v5336 = vrot.slane %v2867, 7
          %v5337 = vsel %vm4404, %v5334, %v5336
          %v5338 = vrot.slane %v2873, 7
          %v5339 = vsel %vm4404, %v5336, %v5338
          %v5340 = vrot.slane %v2879, 7
          %v5341 = vsel %vm4404, %v5338, %v5340
          %v5342 = vrot.slane %v2885, 7
          %v5343 = vsel %vm4404, %v5340, %v5342
          %v5344 = vrot.slane %v2891, 7
          %v5345 = vsel %vm4404, %v5342, %v5344
          %v5346 = vrot.slane %v2897, 7
          %v5347 = vsel %vm4404, %v5344, %v5346
          %v5421 = vadd.f32 %v5057, %v5203
          %v5422 = vadd.f32 %v5058, %v5205
          %v5423 = vadd.f32 %v5059, %v5207
          %v5424 = vadd.f32 %v5060, %v5209
          %v5425 = vadd.f32 %v5061, %v5211
          %v5426 = vadd.f32 %v5062, %v5213
          %v5427 = vadd.f32 %v5063, %v5215
          %v5428 = vadd.f32 %v5064, %v5217
          %v5429 = vadd.f32 %v5065, %v5219
          %v5430 = vadd.f32 %v5066, %v5221
          %v5431 = vadd.f32 %v5067, %v5223
          %v5432 = vadd.f32 %v5068, %v5225
          %v5433 = vadd.f32 %v5069, %v5227
          %v5434 = vadd.f32 %v5070, %v5229
          %v5435 = vadd.f32 %v5071, %v5231
          %v5436 = vadd.f32 %v5072, %v5233
          %v5437 = vadd.f32 %v5073, %v5235
          %v5438 = vadd.f32 %v5074, %v5237
          %v5439 = vadd.f32 %v5075, %v5239
          %v5440 = vadd.f32 %v5076, %v5241
          %v5441 = vadd.f32 %v5077, %v5243
          %v5442 = vadd.f32 %v5078, %v5245
          %v5443 = vadd.f32 %v5079, %v5247
          %v5444 = vadd.f32 %v5080, %v5249
          %v5445 = vadd.f32 %v5081, %v5251
          %v5446 = vadd.f32 %v5082, %v5253
          %v5447 = vadd.f32 %v5083, %v5255
          %v5448 = vadd.f32 %v5084, %v5257
          %v5449 = vadd.f32 %v5085, %v5259
          %v5450 = vadd.f32 %v5086, %v5261
          %v5451 = vadd.f32 %v5087, %v5263
          %v5452 = vadd.f32 %v5088, %v5265
          %v5453 = vadd.f32 %v5089, %v5267
          %v5454 = vadd.f32 %v5090, %v5269
          %v5455 = vadd.f32 %v5091, %v5271
          %v5456 = vadd.f32 %v5092, %v5273
          %v5457 = vadd.f32 %v5093, %v5275
          %v5458 = vadd.f32 %v5094, %v5277
          %v5459 = vadd.f32 %v5095, %v5279
          %v5460 = vadd.f32 %v5096, %v5281
          %v5461 = vadd.f32 %v5097, %v5283
          %v5462 = vadd.f32 %v5098, %v5285
          %v5463 = vadd.f32 %v5099, %v5287
          %v5464 = vadd.f32 %v5100, %v5289
          %v5465 = vadd.f32 %v5101, %v5291
          %v5466 = vadd.f32 %v5102, %v5293
          %v5467 = vadd.f32 %v5103, %v5295
          %v5468 = vadd.f32 %v5104, %v5297
          %v5469 = vadd.f32 %v5105, %v5299
          %v5470 = vadd.f32 %v5106, %v5301
          %v5471 = vadd.f32 %v5107, %v5303
          %v5472 = vadd.f32 %v5108, %v5305
          %v5473 = vadd.f32 %v5109, %v5307
          %v5474 = vadd.f32 %v5110, %v5309
          %v5475 = vadd.f32 %v5111, %v5311
          %v5476 = vadd.f32 %v5112, %v5313
          %v5477 = vadd.f32 %v5113, %v5315
          %v5478 = vadd.f32 %v5114, %v5317
          %v5479 = vadd.f32 %v5115, %v5319
          %v5480 = vadd.f32 %v5116, %v5321
          %v5481 = vadd.f32 %v5117, %v5323
          %v5482 = vadd.f32 %v5118, %v5325
          %v5483 = vadd.f32 %v5119, %v5327
          %v5484 = vadd.f32 %v5120, %v5329
          %v5485 = vadd.f32 %v5121, %v5331
          %v5486 = vadd.f32 %v5122, %v5333
          %v5487 = vadd.f32 %v5123, %v5335
          %v5488 = vadd.f32 %v5124, %v5337
          %v5489 = vadd.f32 %v5125, %v5339
          %v5490 = vadd.f32 %v5126, %v5341
          %v5491 = vadd.f32 %v5127, %v5343
          %v5492 = vadd.f32 %v5128, %v5345
          %v5493 = vadd.f32 %v5129, %v5347
          %v5494 = vadd.f32 %v5421, %v2467
          %v5495 = vadd.f32 %v5422, %v2473
          %v5496 = vadd.f32 %v5423, %v2479
          %v5497 = vadd.f32 %v5424, %v2485
          %v5498 = vadd.f32 %v5425, %v2491
          %v5499 = vadd.f32 %v5426, %v2497
          %v5500 = vadd.f32 %v5427, %v2503
          %v5501 = vadd.f32 %v5428, %v2509
          %v5502 = vadd.f32 %v5429, %v2515
          %v5503 = vadd.f32 %v5430, %v2521
          %v5504 = vadd.f32 %v5431, %v2527
          %v5505 = vadd.f32 %v5432, %v2533
          %v5506 = vadd.f32 %v5433, %v2539
          %v5507 = vadd.f32 %v5434, %v2545
          %v5508 = vadd.f32 %v5435, %v2551
          %v5509 = vadd.f32 %v5436, %v2557
          %v5510 = vadd.f32 %v5437, %v2563
          %v5511 = vadd.f32 %v5438, %v2569
          %v5512 = vadd.f32 %v5439, %v2575
          %v5513 = vadd.f32 %v5440, %v2581
          %v5514 = vadd.f32 %v5441, %v2587
          %v5515 = vadd.f32 %v5442, %v2593
          %v5516 = vadd.f32 %v5443, %v2599
          %v5517 = vadd.f32 %v5444, %v2605
          %v5518 = vadd.f32 %v5445, %v2611
          %v5519 = vadd.f32 %v5446, %v2617
          %v5520 = vadd.f32 %v5447, %v2623
          %v5521 = vadd.f32 %v5448, %v2629
          %v5522 = vadd.f32 %v5449, %v2635
          %v5523 = vadd.f32 %v5450, %v2641
          %v5524 = vadd.f32 %v5451, %v2647
          %v5525 = vadd.f32 %v5452, %v2653
          %v5526 = vadd.f32 %v5453, %v2659
          %v5527 = vadd.f32 %v5454, %v2665
          %v5528 = vadd.f32 %v5455, %v2671
          %v5529 = vadd.f32 %v5456, %v2677
          %v5530 = vadd.f32 %v5457, %v2683
          %v5531 = vadd.f32 %v5458, %v2689
          %v5532 = vadd.f32 %v5459, %v2695
          %v5533 = vadd.f32 %v5460, %v2701
          %v5534 = vadd.f32 %v5461, %v2707
          %v5535 = vadd.f32 %v5462, %v2713
          %v5536 = vadd.f32 %v5463, %v2719
          %v5537 = vadd.f32 %v5464, %v2725
          %v5538 = vadd.f32 %v5465, %v2731
          %v5539 = vadd.f32 %v5466, %v2737
          %v5540 = vadd.f32 %v5467, %v2743
          %v5541 = vadd.f32 %v5468, %v2749
          %v5542 = vadd.f32 %v5469, %v2755
          %v5543 = vadd.f32 %v5470, %v2761
          %v5544 = vadd.f32 %v5471, %v2767
          %v5545 = vadd.f32 %v5472, %v2773
          %v5546 = vadd.f32 %v5473, %v2779
          %v5547 = vadd.f32 %v5474, %v2785
          %v5548 = vadd.f32 %v5475, %v2791
          %v5549 = vadd.f32 %v5476, %v2797
          %v5550 = vadd.f32 %v5477, %v2803
          %v5551 = vadd.f32 %v5478, %v2809
          %v5552 = vadd.f32 %v5479, %v2815
          %v5553 = vadd.f32 %v5480, %v2821
          %v5554 = vadd.f32 %v5481, %v2827
          %v5555 = vadd.f32 %v5482, %v2833
          %v5556 = vadd.f32 %v5483, %v2839
          %v5557 = vadd.f32 %v5484, %v2845
          %v5558 = vadd.f32 %v5485, %v2851
          %v5559 = vadd.f32 %v5486, %v2857
          %v5560 = vadd.f32 %v5487, %v2863
          %v5561 = vadd.f32 %v5488, %v2869
          %v5562 = vadd.f32 %v5489, %v2875
          %v5563 = vadd.f32 %v5490, %v2881
          %v5564 = vadd.f32 %v5491, %v2887
          %v5565 = vadd.f32 %v5492, %v2893
          %v5566 = vadd.f32 %v5493, %v2899
          %v5639 = vrot.slane %v3040, 6
          %v5640 = vrot.slane %v3046, 6
          %v5641 = vsel %vm4041, %v5639, %v5640
          %v5642 = vrot.slane %v3052, 6
          %v5643 = vsel %vm4041, %v5640, %v5642
          %v5644 = vrot.slane %v3058, 6
          %v5645 = vsel %vm4041, %v5642, %v5644
          %v5646 = vrot.slane %v3064, 6
          %v5647 = vsel %vm4041, %v5644, %v5646
          %v5648 = vrot.slane %v3070, 6
          %v5649 = vsel %vm4041, %v5646, %v5648
          %v5650 = vrot.slane %v3076, 6
          %v5651 = vsel %vm4041, %v5648, %v5650
          %v5652 = vrot.slane %v3082, 6
          %v5653 = vsel %vm4041, %v5650, %v5652
          %v5654 = vrot.slane %v3088, 6
          %v5655 = vsel %vm4041, %v5652, %v5654
          %v5656 = vrot.slane %v3094, 6
          %v5657 = vsel %vm4041, %v5654, %v5656
          %v5658 = vrot.slane %v3100, 6
          %v5659 = vsel %vm4041, %v5656, %v5658
          %v5660 = vrot.slane %v3106, 6
          %v5661 = vsel %vm4041, %v5658, %v5660
          %v5662 = vrot.slane %v3112, 6
          %v5663 = vsel %vm4041, %v5660, %v5662
          %v5664 = vrot.slane %v3118, 6
          %v5665 = vsel %vm4041, %v5662, %v5664
          %v5666 = vrot.slane %v3124, 6
          %v5667 = vsel %vm4041, %v5664, %v5666
          %v5668 = vrot.slane %v3130, 6
          %v5669 = vsel %vm4041, %v5666, %v5668
          %v5670 = vrot.slane %v3136, 6
          %v5671 = vsel %vm4041, %v5668, %v5670
          %v5672 = vrot.slane %v3142, 6
          %v5673 = vsel %vm4041, %v5670, %v5672
          %v5674 = vrot.slane %v3148, 6
          %v5675 = vsel %vm4041, %v5672, %v5674
          %v5676 = vrot.slane %v3154, 6
          %v5677 = vsel %vm4041, %v5674, %v5676
          %v5678 = vrot.slane %v3160, 6
          %v5679 = vsel %vm4041, %v5676, %v5678
          %v5680 = vrot.slane %v3166, 6
          %v5681 = vsel %vm4041, %v5678, %v5680
          %v5682 = vrot.slane %v3172, 6
          %v5683 = vsel %vm4041, %v5680, %v5682
          %v5684 = vrot.slane %v3178, 6
          %v5685 = vsel %vm4041, %v5682, %v5684
          %v5686 = vrot.slane %v3184, 6
          %v5687 = vsel %vm4041, %v5684, %v5686
          %v5688 = vrot.slane %v3190, 6
          %v5689 = vsel %vm4041, %v5686, %v5688
          %v5690 = vrot.slane %v3196, 6
          %v5691 = vsel %vm4041, %v5688, %v5690
          %v5692 = vrot.slane %v3202, 6
          %v5693 = vsel %vm4041, %v5690, %v5692
          %v5694 = vrot.slane %v3208, 6
          %v5695 = vsel %vm4041, %v5692, %v5694
          %v5696 = vrot.slane %v3214, 6
          %v5697 = vsel %vm4041, %v5694, %v5696
          %v5698 = vrot.slane %v3220, 6
          %v5699 = vsel %vm4041, %v5696, %v5698
          %v5700 = vrot.slane %v3226, 6
          %v5701 = vsel %vm4041, %v5698, %v5700
          %v5702 = vrot.slane %v3232, 6
          %v5703 = vsel %vm4041, %v5700, %v5702
          %v5704 = vrot.slane %v3238, 6
          %v5705 = vsel %vm4041, %v5702, %v5704
          %v5706 = vrot.slane %v3244, 6
          %v5707 = vsel %vm4041, %v5704, %v5706
          %v5708 = vrot.slane %v3250, 6
          %v5709 = vsel %vm4041, %v5706, %v5708
          %v5710 = vrot.slane %v3256, 6
          %v5711 = vsel %vm4041, %v5708, %v5710
          %v5712 = vrot.slane %v3262, 6
          %v5713 = vsel %vm4041, %v5710, %v5712
          %v5714 = vrot.slane %v3268, 6
          %v5715 = vsel %vm4041, %v5712, %v5714
          %v5716 = vrot.slane %v3274, 6
          %v5717 = vsel %vm4041, %v5714, %v5716
          %v5718 = vrot.slane %v3280, 6
          %v5719 = vsel %vm4041, %v5716, %v5718
          %v5720 = vrot.slane %v3286, 6
          %v5721 = vsel %vm4041, %v5718, %v5720
          %v5722 = vrot.slane %v3292, 6
          %v5723 = vsel %vm4041, %v5720, %v5722
          %v5724 = vrot.slane %v3298, 6
          %v5725 = vsel %vm4041, %v5722, %v5724
          %v5726 = vrot.slane %v3304, 6
          %v5727 = vsel %vm4041, %v5724, %v5726
          %v5728 = vrot.slane %v3310, 6
          %v5729 = vsel %vm4041, %v5726, %v5728
          %v5730 = vrot.slane %v3316, 6
          %v5731 = vsel %vm4041, %v5728, %v5730
          %v5732 = vrot.slane %v3322, 6
          %v5733 = vsel %vm4041, %v5730, %v5732
          %v5734 = vrot.slane %v3328, 6
          %v5735 = vsel %vm4041, %v5732, %v5734
          %v5736 = vrot.slane %v3334, 6
          %v5737 = vsel %vm4041, %v5734, %v5736
          %v5738 = vrot.slane %v3340, 6
          %v5739 = vsel %vm4041, %v5736, %v5738
          %v5740 = vrot.slane %v3346, 6
          %v5741 = vsel %vm4041, %v5738, %v5740
          %v5742 = vrot.slane %v3352, 6
          %v5743 = vsel %vm4041, %v5740, %v5742
          %v5744 = vrot.slane %v3358, 6
          %v5745 = vsel %vm4041, %v5742, %v5744
          %v5746 = vrot.slane %v3364, 6
          %v5747 = vsel %vm4041, %v5744, %v5746
          %v5748 = vrot.slane %v3370, 6
          %v5749 = vsel %vm4041, %v5746, %v5748
          %v5750 = vrot.slane %v3376, 6
          %v5751 = vsel %vm4041, %v5748, %v5750
          %v5752 = vrot.slane %v3382, 6
          %v5753 = vsel %vm4041, %v5750, %v5752
          %v5754 = vrot.slane %v3388, 6
          %v5755 = vsel %vm4041, %v5752, %v5754
          %v5756 = vrot.slane %v3394, 6
          %v5757 = vsel %vm4041, %v5754, %v5756
          %v5758 = vrot.slane %v3400, 6
          %v5759 = vsel %vm4041, %v5756, %v5758
          %v5760 = vrot.slane %v3406, 6
          %v5761 = vsel %vm4041, %v5758, %v5760
          %v5762 = vrot.slane %v3412, 6
          %v5763 = vsel %vm4041, %v5760, %v5762
          %v5764 = vrot.slane %v3418, 6
          %v5765 = vsel %vm4041, %v5762, %v5764
          %v5766 = vrot.slane %v3424, 6
          %v5767 = vsel %vm4041, %v5764, %v5766
          %v5768 = vrot.slane %v3430, 6
          %v5769 = vsel %vm4041, %v5766, %v5768
          %v5770 = vrot.slane %v3436, 6
          %v5771 = vsel %vm4041, %v5768, %v5770
          %v5772 = vrot.slane %v3442, 6
          %v5773 = vsel %vm4041, %v5770, %v5772
          %v5774 = vrot.slane %v3448, 6
          %v5775 = vsel %vm4041, %v5772, %v5774
          %v5776 = vrot.slane %v3454, 6
          %v5777 = vsel %vm4041, %v5774, %v5776
          %v5778 = vrot.slane %v3460, 6
          %v5779 = vsel %vm4041, %v5776, %v5778
          %v5780 = vrot.slane %v3466, 6
          %v5781 = vsel %vm4041, %v5778, %v5780
          %v5855 = vadd.f32 %v5494, %v5639
          %v5856 = vadd.f32 %v5495, %v5641
          %v5857 = vadd.f32 %v5496, %v5643
          %v5858 = vadd.f32 %v5497, %v5645
          %v5859 = vadd.f32 %v5498, %v5647
          %v5860 = vadd.f32 %v5499, %v5649
          %v5861 = vadd.f32 %v5500, %v5651
          %v5862 = vadd.f32 %v5501, %v5653
          %v5863 = vadd.f32 %v5502, %v5655
          %v5864 = vadd.f32 %v5503, %v5657
          %v5865 = vadd.f32 %v5504, %v5659
          %v5866 = vadd.f32 %v5505, %v5661
          %v5867 = vadd.f32 %v5506, %v5663
          %v5868 = vadd.f32 %v5507, %v5665
          %v5869 = vadd.f32 %v5508, %v5667
          %v5870 = vadd.f32 %v5509, %v5669
          %v5871 = vadd.f32 %v5510, %v5671
          %v5872 = vadd.f32 %v5511, %v5673
          %v5873 = vadd.f32 %v5512, %v5675
          %v5874 = vadd.f32 %v5513, %v5677
          %v5875 = vadd.f32 %v5514, %v5679
          %v5876 = vadd.f32 %v5515, %v5681
          %v5877 = vadd.f32 %v5516, %v5683
          %v5878 = vadd.f32 %v5517, %v5685
          %v5879 = vadd.f32 %v5518, %v5687
          %v5880 = vadd.f32 %v5519, %v5689
          %v5881 = vadd.f32 %v5520, %v5691
          %v5882 = vadd.f32 %v5521, %v5693
          %v5883 = vadd.f32 %v5522, %v5695
          %v5884 = vadd.f32 %v5523, %v5697
          %v5885 = vadd.f32 %v5524, %v5699
          %v5886 = vadd.f32 %v5525, %v5701
          %v5887 = vadd.f32 %v5526, %v5703
          %v5888 = vadd.f32 %v5527, %v5705
          %v5889 = vadd.f32 %v5528, %v5707
          %v5890 = vadd.f32 %v5529, %v5709
          %v5891 = vadd.f32 %v5530, %v5711
          %v5892 = vadd.f32 %v5531, %v5713
          %v5893 = vadd.f32 %v5532, %v5715
          %v5894 = vadd.f32 %v5533, %v5717
          %v5895 = vadd.f32 %v5534, %v5719
          %v5896 = vadd.f32 %v5535, %v5721
          %v5897 = vadd.f32 %v5536, %v5723
          %v5898 = vadd.f32 %v5537, %v5725
          %v5899 = vadd.f32 %v5538, %v5727
          %v5900 = vadd.f32 %v5539, %v5729
          %v5901 = vadd.f32 %v5540, %v5731
          %v5902 = vadd.f32 %v5541, %v5733
          %v5903 = vadd.f32 %v5542, %v5735
          %v5904 = vadd.f32 %v5543, %v5737
          %v5905 = vadd.f32 %v5544, %v5739
          %v5906 = vadd.f32 %v5545, %v5741
          %v5907 = vadd.f32 %v5546, %v5743
          %v5908 = vadd.f32 %v5547, %v5745
          %v5909 = vadd.f32 %v5548, %v5747
          %v5910 = vadd.f32 %v5549, %v5749
          %v5911 = vadd.f32 %v5550, %v5751
          %v5912 = vadd.f32 %v5551, %v5753
          %v5913 = vadd.f32 %v5552, %v5755
          %v5914 = vadd.f32 %v5553, %v5757
          %v5915 = vadd.f32 %v5554, %v5759
          %v5916 = vadd.f32 %v5555, %v5761
          %v5917 = vadd.f32 %v5556, %v5763
          %v5918 = vadd.f32 %v5557, %v5765
          %v5919 = vadd.f32 %v5558, %v5767
          %v5920 = vadd.f32 %v5559, %v5769
          %v5921 = vadd.f32 %v5560, %v5771
          %v5922 = vadd.f32 %v5561, %v5773
          %v5923 = vadd.f32 %v5562, %v5775
          %v5924 = vadd.f32 %v5563, %v5777
          %v5925 = vadd.f32 %v5564, %v5779
          %v5926 = vadd.f32 %v5565, %v5781
          %v5927 = vadd.f32 %v5566, %v5780
          %v6001 = vrot.slane %v3042, 7
          %v6002 = vrot.slane %v3048, 7
          %v6003 = vsel %vm4404, %v6001, %v6002
          %v6004 = vrot.slane %v3054, 7
          %v6005 = vsel %vm4404, %v6002, %v6004
          %v6006 = vrot.slane %v3060, 7
          %v6007 = vsel %vm4404, %v6004, %v6006
          %v6008 = vrot.slane %v3066, 7
          %v6009 = vsel %vm4404, %v6006, %v6008
          %v6010 = vrot.slane %v3072, 7
          %v6011 = vsel %vm4404, %v6008, %v6010
          %v6012 = vrot.slane %v3078, 7
          %v6013 = vsel %vm4404, %v6010, %v6012
          %v6014 = vrot.slane %v3084, 7
          %v6015 = vsel %vm4404, %v6012, %v6014
          %v6016 = vrot.slane %v3090, 7
          %v6017 = vsel %vm4404, %v6014, %v6016
          %v6018 = vrot.slane %v3096, 7
          %v6019 = vsel %vm4404, %v6016, %v6018
          %v6020 = vrot.slane %v3102, 7
          %v6021 = vsel %vm4404, %v6018, %v6020
          %v6022 = vrot.slane %v3108, 7
          %v6023 = vsel %vm4404, %v6020, %v6022
          %v6024 = vrot.slane %v3114, 7
          %v6025 = vsel %vm4404, %v6022, %v6024
          %v6026 = vrot.slane %v3120, 7
          %v6027 = vsel %vm4404, %v6024, %v6026
          %v6028 = vrot.slane %v3126, 7
          %v6029 = vsel %vm4404, %v6026, %v6028
          %v6030 = vrot.slane %v3132, 7
          %v6031 = vsel %vm4404, %v6028, %v6030
          %v6032 = vrot.slane %v3138, 7
          %v6033 = vsel %vm4404, %v6030, %v6032
          %v6034 = vrot.slane %v3144, 7
          %v6035 = vsel %vm4404, %v6032, %v6034
          %v6036 = vrot.slane %v3150, 7
          %v6037 = vsel %vm4404, %v6034, %v6036
          %v6038 = vrot.slane %v3156, 7
          %v6039 = vsel %vm4404, %v6036, %v6038
          %v6040 = vrot.slane %v3162, 7
          %v6041 = vsel %vm4404, %v6038, %v6040
          %v6042 = vrot.slane %v3168, 7
          %v6043 = vsel %vm4404, %v6040, %v6042
          %v6044 = vrot.slane %v3174, 7
          %v6045 = vsel %vm4404, %v6042, %v6044
          %v6046 = vrot.slane %v3180, 7
          %v6047 = vsel %vm4404, %v6044, %v6046
          %v6048 = vrot.slane %v3186, 7
          %v6049 = vsel %vm4404, %v6046, %v6048
          %v6050 = vrot.slane %v3192, 7
          %v6051 = vsel %vm4404, %v6048, %v6050
          %v6052 = vrot.slane %v3198, 7
          %v6053 = vsel %vm4404, %v6050, %v6052
          %v6054 = vrot.slane %v3204, 7
          %v6055 = vsel %vm4404, %v6052, %v6054
          %v6056 = vrot.slane %v3210, 7
          %v6057 = vsel %vm4404, %v6054, %v6056
          %v6058 = vrot.slane %v3216, 7
          %v6059 = vsel %vm4404, %v6056, %v6058
          %v6060 = vrot.slane %v3222, 7
          %v6061 = vsel %vm4404, %v6058, %v6060
          %v6062 = vrot.slane %v3228, 7
          %v6063 = vsel %vm4404, %v6060, %v6062
          %v6064 = vrot.slane %v3234, 7
          %v6065 = vsel %vm4404, %v6062, %v6064
          %v6066 = vrot.slane %v3240, 7
          %v6067 = vsel %vm4404, %v6064, %v6066
          %v6068 = vrot.slane %v3246, 7
          %v6069 = vsel %vm4404, %v6066, %v6068
          %v6070 = vrot.slane %v3252, 7
          %v6071 = vsel %vm4404, %v6068, %v6070
          %v6072 = vrot.slane %v3258, 7
          %v6073 = vsel %vm4404, %v6070, %v6072
          %v6074 = vrot.slane %v3264, 7
          %v6075 = vsel %vm4404, %v6072, %v6074
          %v6076 = vrot.slane %v3270, 7
          %v6077 = vsel %vm4404, %v6074, %v6076
          %v6078 = vrot.slane %v3276, 7
          %v6079 = vsel %vm4404, %v6076, %v6078
          %v6080 = vrot.slane %v3282, 7
          %v6081 = vsel %vm4404, %v6078, %v6080
          %v6082 = vrot.slane %v3288, 7
          %v6083 = vsel %vm4404, %v6080, %v6082
          %v6084 = vrot.slane %v3294, 7
          %v6085 = vsel %vm4404, %v6082, %v6084
          %v6086 = vrot.slane %v3300, 7
          %v6087 = vsel %vm4404, %v6084, %v6086
          %v6088 = vrot.slane %v3306, 7
          %v6089 = vsel %vm4404, %v6086, %v6088
          %v6090 = vrot.slane %v3312, 7
          %v6091 = vsel %vm4404, %v6088, %v6090
          %v6092 = vrot.slane %v3318, 7
          %v6093 = vsel %vm4404, %v6090, %v6092
          %v6094 = vrot.slane %v3324, 7
          %v6095 = vsel %vm4404, %v6092, %v6094
          %v6096 = vrot.slane %v3330, 7
          %v6097 = vsel %vm4404, %v6094, %v6096
          %v6098 = vrot.slane %v3336, 7
          %v6099 = vsel %vm4404, %v6096, %v6098
          %v6100 = vrot.slane %v3342, 7
          %v6101 = vsel %vm4404, %v6098, %v6100
          %v6102 = vrot.slane %v3348, 7
          %v6103 = vsel %vm4404, %v6100, %v6102
          %v6104 = vrot.slane %v3354, 7
          %v6105 = vsel %vm4404, %v6102, %v6104
          %v6106 = vrot.slane %v3360, 7
          %v6107 = vsel %vm4404, %v6104, %v6106
          %v6108 = vrot.slane %v3366, 7
          %v6109 = vsel %vm4404, %v6106, %v6108
          %v6110 = vrot.slane %v3372, 7
          %v6111 = vsel %vm4404, %v6108, %v6110
          %v6112 = vrot.slane %v3378, 7
          %v6113 = vsel %vm4404, %v6110, %v6112
          %v6114 = vrot.slane %v3384, 7
          %v6115 = vsel %vm4404, %v6112, %v6114
          %v6116 = vrot.slane %v3390, 7
          %v6117 = vsel %vm4404, %v6114, %v6116
          %v6118 = vrot.slane %v3396, 7
          %v6119 = vsel %vm4404, %v6116, %v6118
          %v6120 = vrot.slane %v3402, 7
          %v6121 = vsel %vm4404, %v6118, %v6120
          %v6122 = vrot.slane %v3408, 7
          %v6123 = vsel %vm4404, %v6120, %v6122
          %v6124 = vrot.slane %v3414, 7
          %v6125 = vsel %vm4404, %v6122, %v6124
          %v6126 = vrot.slane %v3420, 7
          %v6127 = vsel %vm4404, %v6124, %v6126
          %v6128 = vrot.slane %v3426, 7
          %v6129 = vsel %vm4404, %v6126, %v6128
          %v6130 = vrot.slane %v3432, 7
          %v6131 = vsel %vm4404, %v6128, %v6130
          %v6132 = vrot.slane %v3438, 7
          %v6133 = vsel %vm4404, %v6130, %v6132
          %v6134 = vrot.slane %v3444, 7
          %v6135 = vsel %vm4404, %v6132, %v6134
          %v6136 = vrot.slane %v3450, 7
          %v6137 = vsel %vm4404, %v6134, %v6136
          %v6138 = vrot.slane %v3456, 7
          %v6139 = vsel %vm4404, %v6136, %v6138
          %v6140 = vrot.slane %v3462, 7
          %v6141 = vsel %vm4404, %v6138, %v6140
          %v6142 = vrot.slane %v3468, 7
          %v6143 = vsel %vm4404, %v6140, %v6142
          %v6144 = vrot.slane %v3473, 7
          %v6145 = vsel %vm4404, %v6142, %v6144
          %v6219 = vadd.f32 %v5855, %v6001
          %v6220 = vadd.f32 %v5856, %v6003
          %v6221 = vadd.f32 %v5857, %v6005
          %v6222 = vadd.f32 %v5858, %v6007
          %v6223 = vadd.f32 %v5859, %v6009
          %v6224 = vadd.f32 %v5860, %v6011
          %v6225 = vadd.f32 %v5861, %v6013
          %v6226 = vadd.f32 %v5862, %v6015
          %v6227 = vadd.f32 %v5863, %v6017
          %v6228 = vadd.f32 %v5864, %v6019
          %v6229 = vadd.f32 %v5865, %v6021
          %v6230 = vadd.f32 %v5866, %v6023
          %v6231 = vadd.f32 %v5867, %v6025
          %v6232 = vadd.f32 %v5868, %v6027
          %v6233 = vadd.f32 %v5869, %v6029
          %v6234 = vadd.f32 %v5870, %v6031
          %v6235 = vadd.f32 %v5871, %v6033
          %v6236 = vadd.f32 %v5872, %v6035
          %v6237 = vadd.f32 %v5873, %v6037
          %v6238 = vadd.f32 %v5874, %v6039
          %v6239 = vadd.f32 %v5875, %v6041
          %v6240 = vadd.f32 %v5876, %v6043
          %v6241 = vadd.f32 %v5877, %v6045
          %v6242 = vadd.f32 %v5878, %v6047
          %v6243 = vadd.f32 %v5879, %v6049
          %v6244 = vadd.f32 %v5880, %v6051
          %v6245 = vadd.f32 %v5881, %v6053
          %v6246 = vadd.f32 %v5882, %v6055
          %v6247 = vadd.f32 %v5883, %v6057
          %v6248 = vadd.f32 %v5884, %v6059
          %v6249 = vadd.f32 %v5885, %v6061
          %v6250 = vadd.f32 %v5886, %v6063
          %v6251 = vadd.f32 %v5887, %v6065
          %v6252 = vadd.f32 %v5888, %v6067
          %v6253 = vadd.f32 %v5889, %v6069
          %v6254 = vadd.f32 %v5890, %v6071
          %v6255 = vadd.f32 %v5891, %v6073
          %v6256 = vadd.f32 %v5892, %v6075
          %v6257 = vadd.f32 %v5893, %v6077
          %v6258 = vadd.f32 %v5894, %v6079
          %v6259 = vadd.f32 %v5895, %v6081
          %v6260 = vadd.f32 %v5896, %v6083
          %v6261 = vadd.f32 %v5897, %v6085
          %v6262 = vadd.f32 %v5898, %v6087
          %v6263 = vadd.f32 %v5899, %v6089
          %v6264 = vadd.f32 %v5900, %v6091
          %v6265 = vadd.f32 %v5901, %v6093
          %v6266 = vadd.f32 %v5902, %v6095
          %v6267 = vadd.f32 %v5903, %v6097
          %v6268 = vadd.f32 %v5904, %v6099
          %v6269 = vadd.f32 %v5905, %v6101
          %v6270 = vadd.f32 %v5906, %v6103
          %v6271 = vadd.f32 %v5907, %v6105
          %v6272 = vadd.f32 %v5908, %v6107
          %v6273 = vadd.f32 %v5909, %v6109
          %v6274 = vadd.f32 %v5910, %v6111
          %v6275 = vadd.f32 %v5911, %v6113
          %v6276 = vadd.f32 %v5912, %v6115
          %v6277 = vadd.f32 %v5913, %v6117
          %v6278 = vadd.f32 %v5914, %v6119
          %v6279 = vadd.f32 %v5915, %v6121
          %v6280 = vadd.f32 %v5916, %v6123
          %v6281 = vadd.f32 %v5917, %v6125
          %v6282 = vadd.f32 %v5918, %v6127
          %v6283 = vadd.f32 %v5919, %v6129
          %v6284 = vadd.f32 %v5920, %v6131
          %v6285 = vadd.f32 %v5921, %v6133
          %v6286 = vadd.f32 %v5922, %v6135
          %v6287 = vadd.f32 %v5923, %v6137
          %v6288 = vadd.f32 %v5924, %v6139
          %v6289 = vadd.f32 %v5925, %v6141
          %v6290 = vadd.f32 %v5926, %v6143
          %v6291 = vadd.f32 %v5927, %v6145
          %v6292 = vld [vmem:[%s372] sm:$0x1]
          %v6294 = vlaneseq
          %v6295 = vshrl.u32 %v6294, 7
          %v6296 = vsub.s32 0, %v6295
          %v6297 = vrot.slane %v6292, %v6296
          %v6299 = vadd.f32 %v6219, %v6297
          %v6300 = vadd.f32 %v6220, %v6297
          %v6301 = vadd.f32 %v6221, %v6297
          %v6302 = vadd.f32 %v6222, %v6297
          %v6303 = vadd.f32 %v6223, %v6297
          %v6304 = vadd.f32 %v6224, %v6297
          %v6305 = vadd.f32 %v6225, %v6297
          %v6306 = vadd.f32 %v6226, %v6297
          %v6307 = vadd.f32 %v6227, %v6297
          %v6308 = vadd.f32 %v6228, %v6297
          %v6309 = vadd.f32 %v6229, %v6297
          %v6310 = vadd.f32 %v6230, %v6297
          %v6311 = vadd.f32 %v6231, %v6297
          %v6312 = vadd.f32 %v6232, %v6297
          %v6313 = vadd.f32 %v6233, %v6297
          %v6314 = vadd.f32 %v6234, %v6297
          %v6315 = vadd.f32 %v6235, %v6297
          %v6316 = vadd.f32 %v6236, %v6297
          %v6317 = vadd.f32 %v6237, %v6297
          %v6318 = vadd.f32 %v6238, %v6297
          %v6319 = vadd.f32 %v6239, %v6297
          %v6320 = vadd.f32 %v6240, %v6297
          %v6321 = vadd.f32 %v6241, %v6297
          %v6322 = vadd.f32 %v6242, %v6297
          %v6323 = vadd.f32 %v6243, %v6297
          %v6324 = vadd.f32 %v6244, %v6297
          %v6325 = vadd.f32 %v6245, %v6297
          %v6326 = vadd.f32 %v6246, %v6297
          %v6327 = vadd.f32 %v6247, %v6297
          %v6328 = vadd.f32 %v6248, %v6297
          %v6329 = vadd.f32 %v6249, %v6297
          %v6330 = vadd.f32 %v6250, %v6297
          %v6331 = vadd.f32 %v6251, %v6297
          %v6332 = vadd.f32 %v6252, %v6297
          %v6333 = vadd.f32 %v6253, %v6297
          %v6334 = vadd.f32 %v6254, %v6297
          %v6335 = vadd.f32 %v6255, %v6297
          %v6336 = vadd.f32 %v6256, %v6297
          %v6337 = vadd.f32 %v6257, %v6297
          %v6338 = vadd.f32 %v6258, %v6297
          %v6339 = vadd.f32 %v6259, %v6297
          %v6340 = vadd.f32 %v6260, %v6297
          %v6341 = vadd.f32 %v6261, %v6297
          %v6342 = vadd.f32 %v6262, %v6297
          %v6343 = vadd.f32 %v6263, %v6297
          %v6344 = vadd.f32 %v6264, %v6297
          %v6345 = vadd.f32 %v6265, %v6297
          %v6346 = vadd.f32 %v6266, %v6297
          %v6347 = vadd.f32 %v6267, %v6297
          %v6348 = vadd.f32 %v6268, %v6297
          %v6349 = vadd.f32 %v6269, %v6297
          %v6350 = vadd.f32 %v6270, %v6297
          %v6351 = vadd.f32 %v6271, %v6297
          %v6352 = vadd.f32 %v6272, %v6297
          %v6353 = vadd.f32 %v6273, %v6297
          %v6354 = vadd.f32 %v6274, %v6297
          %v6355 = vadd.f32 %v6275, %v6297
          %v6356 = vadd.f32 %v6276, %v6297
          %v6357 = vadd.f32 %v6277, %v6297
          %v6358 = vadd.f32 %v6278, %v6297
          %v6359 = vadd.f32 %v6279, %v6297
          %v6360 = vadd.f32 %v6280, %v6297
          %v6361 = vadd.f32 %v6281, %v6297
          %v6362 = vadd.f32 %v6282, %v6297
          %v6363 = vadd.f32 %v6283, %v6297
          %v6364 = vadd.f32 %v6284, %v6297
          %v6365 = vadd.f32 %v6285, %v6297
          %v6366 = vadd.f32 %v6286, %v6297
          %v6367 = vadd.f32 %v6287, %v6297
          %v6368 = vadd.f32 %v6288, %v6297
          %v6369 = vadd.f32 %v6289, %v6297
          %v6370 = vadd.f32 %v6290, %v6297
          %v6371 = vadd.f32 %v6291, %v6297
          %s6372 = scalar_lea.vmem [#allocation3], %s1059
          %6373 = vst [vmem:[%s6372 - $0x2] sm:$0xfc] %v6299
          %6374 = vst [vmem:[%s6372 + $0x6] sm:$0xff] %v6300
          %6375 = vst [vmem:[%s6372 + $0xe] sm:$0xff] %v6301
          %6376 = vst [vmem:[%s6372 + $0x16] sm:$0xff] %v6302
          %6377 = vst [vmem:[%s6372 + $0x1e] sm:$0xff] %v6303
          %6378 = vst [vmem:[%s6372 + $0x26] sm:$0xff] %v6304
          %6379 = vst [vmem:[%s6372 + $0x2e] sm:$0xff] %v6305
          %6380 = vst [vmem:[%s6372 + $0x36] sm:$0xff] %v6306
          %6381 = vst [vmem:[%s6372 + $0x3e] sm:$0xff] %v6307
          %6382 = vst [vmem:[%s6372 + $0x46] sm:$0xff] %v6308
          %6383 = vst [vmem:[%s6372 + $0x4e] sm:$0xff] %v6309
          %6384 = vst [vmem:[%s6372 + $0x56] sm:$0xff] %v6310
          %6385 = vst [vmem:[%s6372 + $0x5e] sm:$0xff] %v6311
          %6386 = vst [vmem:[%s6372 + $0x66] sm:$0xff] %v6312
          %6387 = vst [vmem:[%s6372 + $0x6e] sm:$0xff] %v6313
          %6388 = vst [vmem:[%s6372 + $0x76] sm:$0xff] %v6314
          %6389 = vst [vmem:[%s6372 + $0x7e] sm:$0xff] %v6315
          %6390 = vst [vmem:[%s6372 + $0x86] sm:$0xff] %v6316
          %6391 = vst [vmem:[%s6372 + $0x8e] sm:$0xff] %v6317
          %6392 = vst [vmem:[%s6372 + $0x96] sm:$0xff] %v6318
          %6393 = vst [vmem:[%s6372 + $0x9e] sm:$0xff] %v6319
          %6394 = vst [vmem:[%s6372 + $0xa6] sm:$0xff] %v6320
          %6395 = vst [vmem:[%s6372 + $0xae] sm:$0xff] %v6321
          %6396 = vst [vmem:[%s6372 + $0xb6] sm:$0xff] %v6322
          %6397 = vst [vmem:[%s6372 + $0xbe] sm:$0xff] %v6323
          %6398 = vst [vmem:[%s6372 + $0xc6] sm:$0xff] %v6324
          %6399 = vst [vmem:[%s6372 + $0xce] sm:$0xff] %v6325
          %6400 = vst [vmem:[%s6372 + $0xd6] sm:$0xff] %v6326
          %6401 = vst [vmem:[%s6372 + $0xde] sm:$0xff] %v6327
          %6402 = vst [vmem:[%s6372 + $0xe6] sm:$0xff] %v6328
          %6403 = vst [vmem:[%s6372 + $0xee] sm:$0xff] %v6329
          %6404 = vst [vmem:[%s6372 + $0xf6] sm:$0xff] %v6330
          %6405 = vst [vmem:[%s6372 + $0xfe] sm:$0xff] %v6331
          %6406 = vst [vmem:[%s6372 + $0x106] sm:$0xff] %v6332
          %6407 = vst [vmem:[%s6372 + $0x10e] sm:$0xff] %v6333
          %6408 = vst [vmem:[%s6372 + $0x116] sm:$0xff] %v6334
          %6409 = vst [vmem:[%s6372 + $0x11e] sm:$0xff] %v6335
          %6410 = vst [vmem:[%s6372 + $0x126] sm:$0xff] %v6336
          %6411 = vst [vmem:[%s6372 + $0x12e] sm:$0xff] %v6337
          %6412 = vst [vmem:[%s6372 + $0x136] sm:$0xff] %v6338
          %6413 = vst [vmem:[%s6372 + $0x13e] sm:$0xff] %v6339
          %6414 = vst [vmem:[%s6372 + $0x146] sm:$0xff] %v6340
          %6415 = vst [vmem:[%s6372 + $0x14e] sm:$0xff] %v6341
          %6416 = vst [vmem:[%s6372 + $0x156] sm:$0xff] %v6342
          %6417 = vst [vmem:[%s6372 + $0x15e] sm:$0xff] %v6343
          %6418 = vst [vmem:[%s6372 + $0x166] sm:$0xff] %v6344
          %6419 = vst [vmem:[%s6372 + $0x16e] sm:$0xff] %v6345
          %6420 = vst [vmem:[%s6372 + $0x176] sm:$0xff] %v6346
          %6421 = vst [vmem:[%s6372 + $0x17e] sm:$0xff] %v6347
          %6422 = vst [vmem:[%s6372 + $0x186] sm:$0xff] %v6348
          %6423 = vst [vmem:[%s6372 + $0x18e] sm:$0xff] %v6349
          %6424 = vst [vmem:[%s6372 + $0x196] sm:$0xff] %v6350
          %6425 = vst [vmem:[%s6372 + $0x19e] sm:$0xff] %v6351
          %6426 = vst [vmem:[%s6372 + $0x1a6] sm:$0xff] %v6352
          %6427 = vst [vmem:[%s6372 + $0x1ae] sm:$0xff] %v6353
          %6428 = vst [vmem:[%s6372 + $0x1b6] sm:$0xff] %v6354
          %6429 = vst [vmem:[%s6372 + $0x1be] sm:$0xff] %v6355
          %6430 = vst [vmem:[%s6372 + $0x1c6] sm:$0xff] %v6356
          %6431 = vst [vmem:[%s6372 + $0x1ce] sm:$0xff] %v6357
          %6432 = vst [vmem:[%s6372 + $0x1d6] sm:$0xff] %v6358
          %6433 = vst [vmem:[%s6372 + $0x1de] sm:$0xff] %v6359
          %6434 = vst [vmem:[%s6372 + $0x1e6] sm:$0xff] %v6360
          %6435 = vst [vmem:[%s6372 + $0x1ee] sm:$0xff] %v6361
          %6436 = vst [vmem:[%s6372 + $0x1f6] sm:$0xff] %v6362
          %6437 = vst [vmem:[%s6372 + $0x1fe] sm:$0xff] %v6363
          %6438 = vst [vmem:[%s6372 + $0x206] sm:$0xff] %v6364
          %6439 = vst [vmem:[%s6372 + $0x20e] sm:$0xff] %v6365
          %6440 = vst [vmem:[%s6372 + $0x216] sm:$0xff] %v6366
          %6441 = vst [vmem:[%s6372 + $0x21e] sm:$0xff] %v6367
          %6442 = vst [vmem:[%s6372 + $0x226] sm:$0xff] %v6368
          %6443 = vst [vmem:[%s6372 + $0x22e] sm:$0xff] %v6369
          %6444 = vst [vmem:[%s6372 + $0x236] sm:$0xff] %v6370
          %6445 = vst [vmem:[%s6372 + $0x23e] sm:$0x3] %v6371
          %v6446 = vlaneseq
          %v6447 = vshrl.u32 %v6446, 7
          %v6448 = vadd.s32 %v6447, 8
          %v6449 = vadd.s32 %v6447, 16
          %v6450 = vadd.s32 %v6447, 24
          %v6451 = vadd.s32 %v6447, 32
          %v6452 = vadd.s32 %v6447, 40
          %v6453 = vadd.s32 %v6447, 48
          %v6454 = vadd.s32 %v6447, 56
          %v6455 = vadd.s32 %v6447, 64
          %v6456 = vadd.s32 %v6447, 72
          %v6457 = vadd.s32 %v6447, 80
          %v6458 = vadd.s32 %v6447, 88
          %v6459 = vadd.s32 %v6447, 96
          %v6460 = vadd.s32 %v6447, 104
          %v6461 = vadd.s32 %v6447, 112
          %v6462 = vadd.s32 %v6447, 120
          %v6463 = vadd.s32 %v6447, 128
          %v6464 = vadd.s32 %v6447, 136
          %v6465 = vadd.s32 %v6447, 144
          %v6466 = vadd.s32 %v6447, 152
          %v6467 = vadd.s32 %v6447, 160
          %v6468 = vadd.s32 %v6447, 168
          %v6469 = vadd.s32 %v6447, 176
          %v6470 = vadd.s32 %v6447, 184
          %v6471 = vadd.s32 %v6447, 192
          %v6472 = vadd.s32 %v6447, 200
          %v6473 = vadd.s32 %v6447, 208
          %v6474 = vadd.s32 %v6447, 216
          %v6475 = vadd.s32 %v6447, 224
          %v6476 = vadd.s32 %v6447, 232
          %v6477 = vadd.s32 %v6447, 240
          %v6478 = vadd.s32 %v6447, 248
          %v6479 = vadd.s32 %v6447, 256
          %v6480 = vadd.s32 %v6447, 264
          %v6481 = vadd.s32 %v6447, 272
          %v6482 = vadd.s32 %v6447, 280
          %v6483 = vadd.s32 %v6447, 288
          %v6484 = vadd.s32 %v6447, 296
          %v6485 = vadd.s32 %v6447, 304
          %v6486 = vadd.s32 %v6447, 312
          %v6487 = vadd.s32 %v6447, 320
          %v6488 = vadd.s32 %v6447, 328
          %v6489 = vadd.s32 %v6447, 336
          %v6490 = vadd.s32 %v6447, 344
          %v6491 = vadd.s32 %v6447, 352
          %v6492 = vadd.s32 %v6447, 360
          %v6493 = vadd.s32 %v6447, 368
          %v6494 = vadd.s32 %v6447, 376
          %v6495 = vadd.s32 %v6447, 384
          %v6496 = vadd.s32 %v6447, 392
          %v6497 = vadd.s32 %v6447, 400
          %v6498 = vadd.s32 %v6447, 408
          %v6499 = vadd.s32 %v6447, 416
          %v6500 = vadd.s32 %v6447, 424
          %v6501 = vadd.s32 %v6447, 432
          %v6502 = vadd.s32 %v6447, 440
          %v6503 = vadd.s32 %v6447, 448
          %v6504 = vadd.s32 %v6447, 456
          %v6505 = vadd.s32 %v6447, 464
          %v6506 = vadd.s32 %v6447, 472
          %v6507 = vadd.s32 %v6447, 480
          %v6508 = vadd.s32 %v6447, 488
          %v6509 = vadd.s32 %v6447, 496
          %v6510 = vadd.s32 %v6447, 504
          %v6511 = vadd.s32 %v6447, 512
          %v6512 = vadd.s32 %v6447, 520
          %v6513 = vadd.s32 %v6447, 528
          %v6514 = vadd.s32 %v6447, 536
          %v6515 = vadd.s32 %v6447, 544
          %v6516 = vadd.s32 %v6447, 552
          %v6517 = vadd.s32 %v6447, 560
          %v6518 = vadd.s32 %v6447, 568
          %v6519 = vstv %s1059
          %v6520 = vadd.s32 %v6447, %v6519
          %v6521 = vadd.s32 %v6448, %v6519
          %v6522 = vadd.s32 %v6449, %v6519
          %v6523 = vadd.s32 %v6450, %v6519
          %v6524 = vadd.s32 %v6451, %v6519
          %v6525 = vadd.s32 %v6452, %v6519
          %v6526 = vadd.s32 %v6453, %v6519
          %v6527 = vadd.s32 %v6454, %v6519
          %v6528 = vadd.s32 %v6455, %v6519
          %v6529 = vadd.s32 %v6456, %v6519
          %v6530 = vadd.s32 %v6457, %v6519
          %v6531 = vadd.s32 %v6458, %v6519
          %v6532 = vadd.s32 %v6459, %v6519
          %v6533 = vadd.s32 %v6460, %v6519
          %v6534 = vadd.s32 %v6461, %v6519
          %v6535 = vadd.s32 %v6462, %v6519
          %v6536 = vadd.s32 %v6463, %v6519
          %v6537 = vadd.s32 %v6464, %v6519
          %v6538 = vadd.s32 %v6465, %v6519
          %v6539 = vadd.s32 %v6466, %v6519
          %v6540 = vadd.s32 %v6467, %v6519
          %v6541 = vadd.s32 %v6468, %v6519
          %v6542 = vadd.s32 %v6469, %v6519
          %v6543 = vadd.s32 %v6470, %v6519
          %v6544 = vadd.s32 %v6471, %v6519
          %v6545 = vadd.s32 %v6472, %v6519
          %v6546 = vadd.s32 %v6473, %v6519
          %v6547 = vadd.s32 %v6474, %v6519
          %v6548 = vadd.s32 %v6475, %v6519
          %v6549 = vadd.s32 %v6476, %v6519
          %v6550 = vadd.s32 %v6477, %v6519
          %v6551 = vadd.s32 %v6478, %v6519
          %v6552 = vadd.s32 %v6479, %v6519
          %v6553 = vadd.s32 %v6480, %v6519
          %v6554 = vadd.s32 %v6481, %v6519
          %v6555 = vadd.s32 %v6482, %v6519
          %v6556 = vadd.s32 %v6483, %v6519
          %v6557 = vadd.s32 %v6484, %v6519
          %v6558 = vadd.s32 %v6485, %v6519
          %v6559 = vadd.s32 %v6486, %v6519
          %v6560 = vadd.s32 %v6487, %v6519
          %v6561 = vadd.s32 %v6488, %v6519
          %v6562 = vadd.s32 %v6489, %v6519
          %v6563 = vadd.s32 %v6490, %v6519
          %v6564 = vadd.s32 %v6491, %v6519
          %v6565 = vadd.s32 %v6492, %v6519
          %v6566 = vadd.s32 %v6493, %v6519
          %v6567 = vadd.s32 %v6494, %v6519
          %v6568 = vadd.s32 %v6495, %v6519
          %v6569 = vadd.s32 %v6496, %v6519
          %v6570 = vadd.s32 %v6497, %v6519
          %v6571 = vadd.s32 %v6498, %v6519
          %v6572 = vadd.s32 %v6499, %v6519
          %v6573 = vadd.s32 %v6500, %v6519
          %v6574 = vadd.s32 %v6501, %v6519
          %v6575 = vadd.s32 %v6502, %v6519
          %v6576 = vadd.s32 %v6503, %v6519
          %v6577 = vadd.s32 %v6504, %v6519
          %v6578 = vadd.s32 %v6505, %v6519
          %v6579 = vadd.s32 %v6506, %v6519
          %v6580 = vadd.s32 %v6507, %v6519
          %v6581 = vadd.s32 %v6508, %v6519
          %v6582 = vadd.s32 %v6509, %v6519
          %v6583 = vadd.s32 %v6510, %v6519
          %v6584 = vadd.s32 %v6511, %v6519
          %v6585 = vadd.s32 %v6512, %v6519
          %v6586 = vadd.s32 %v6513, %v6519
          %v6587 = vadd.s32 %v6514, %v6519
          %v6588 = vadd.s32 %v6515, %v6519
          %v6589 = vadd.s32 %v6516, %v6519
          %v6590 = vadd.s32 %v6517, %v6519
          %v6591 = vadd.s32 %v6518, %v6519
          %v6592 = vstv %s977
          %vm6593 = vcmp.lt.s32.totalorder %v6520, %v6592
          %vm6594 = vcmp.lt.s32.totalorder %v6521, %v6592
          %vm6595 = vcmp.lt.s32.totalorder %v6522, %v6592
          %vm6596 = vcmp.lt.s32.totalorder %v6523, %v6592
          %vm6597 = vcmp.lt.s32.totalorder %v6524, %v6592
          %vm6598 = vcmp.lt.s32.totalorder %v6525, %v6592
          %vm6599 = vcmp.lt.s32.totalorder %v6526, %v6592
          %vm6600 = vcmp.lt.s32.totalorder %v6527, %v6592
          %vm6601 = vcmp.lt.s32.totalorder %v6528, %v6592
          %vm6602 = vcmp.lt.s32.totalorder %v6529, %v6592
          %vm6603 = vcmp.lt.s32.totalorder %v6530, %v6592
          %vm6604 = vcmp.lt.s32.totalorder %v6531, %v6592
          %vm6605 = vcmp.lt.s32.totalorder %v6532, %v6592
          %vm6606 = vcmp.lt.s32.totalorder %v6533, %v6592
          %vm6607 = vcmp.lt.s32.totalorder %v6534, %v6592
          %vm6608 = vcmp.lt.s32.totalorder %v6535, %v6592
          %vm6609 = vcmp.lt.s32.totalorder %v6536, %v6592
          %vm6610 = vcmp.lt.s32.totalorder %v6537, %v6592
          %vm6611 = vcmp.lt.s32.totalorder %v6538, %v6592
          %vm6612 = vcmp.lt.s32.totalorder %v6539, %v6592
          %vm6613 = vcmp.lt.s32.totalorder %v6540, %v6592
          %vm6614 = vcmp.lt.s32.totalorder %v6541, %v6592
          %vm6615 = vcmp.lt.s32.totalorder %v6542, %v6592
          %vm6616 = vcmp.lt.s32.totalorder %v6543, %v6592
          %vm6617 = vcmp.lt.s32.totalorder %v6544, %v6592
          %vm6618 = vcmp.lt.s32.totalorder %v6545, %v6592
          %vm6619 = vcmp.lt.s32.totalorder %v6546, %v6592
          %vm6620 = vcmp.lt.s32.totalorder %v6547, %v6592
          %vm6621 = vcmp.lt.s32.totalorder %v6548, %v6592
          %vm6622 = vcmp.lt.s32.totalorder %v6549, %v6592
          %vm6623 = vcmp.lt.s32.totalorder %v6550, %v6592
          %vm6624 = vcmp.lt.s32.totalorder %v6551, %v6592
          %vm6625 = vcmp.lt.s32.totalorder %v6552, %v6592
          %vm6626 = vcmp.lt.s32.totalorder %v6553, %v6592
          %vm6627 = vcmp.lt.s32.totalorder %v6554, %v6592
          %vm6628 = vcmp.lt.s32.totalorder %v6555, %v6592
          %vm6629 = vcmp.lt.s32.totalorder %v6556, %v6592
          %vm6630 = vcmp.lt.s32.totalorder %v6557, %v6592
          %vm6631 = vcmp.lt.s32.totalorder %v6558, %v6592
          %vm6632 = vcmp.lt.s32.totalorder %v6559, %v6592
          %vm6633 = vcmp.lt.s32.totalorder %v6560, %v6592
          %vm6634 = vcmp.lt.s32.totalorder %v6561, %v6592
          %vm6635 = vcmp.lt.s32.totalorder %v6562, %v6592
          %vm6636 = vcmp.lt.s32.totalorder %v6563, %v6592
          %vm6637 = vcmp.lt.s32.totalorder %v6564, %v6592
          %vm6638 = vcmp.lt.s32.totalorder %v6565, %v6592
          %vm6639 = vcmp.lt.s32.totalorder %v6566, %v6592
          %vm6640 = vcmp.lt.s32.totalorder %v6567, %v6592
          %vm6641 = vcmp.lt.s32.totalorder %v6568, %v6592
          %vm6642 = vcmp.lt.s32.totalorder %v6569, %v6592
          %vm6643 = vcmp.lt.s32.totalorder %v6570, %v6592
          %vm6644 = vcmp.lt.s32.totalorder %v6571, %v6592
          %vm6645 = vcmp.lt.s32.totalorder %v6572, %v6592
          %vm6646 = vcmp.lt.s32.totalorder %v6573, %v6592
          %vm6647 = vcmp.lt.s32.totalorder %v6574, %v6592
          %vm6648 = vcmp.lt.s32.totalorder %v6575, %v6592
          %vm6649 = vcmp.lt.s32.totalorder %v6576, %v6592
          %vm6650 = vcmp.lt.s32.totalorder %v6577, %v6592
          %vm6651 = vcmp.lt.s32.totalorder %v6578, %v6592
          %vm6652 = vcmp.lt.s32.totalorder %v6579, %v6592
          %vm6653 = vcmp.lt.s32.totalorder %v6580, %v6592
          %vm6654 = vcmp.lt.s32.totalorder %v6581, %v6592
          %vm6655 = vcmp.lt.s32.totalorder %v6582, %v6592
          %vm6656 = vcmp.lt.s32.totalorder %v6583, %v6592
          %vm6657 = vcmp.lt.s32.totalorder %v6584, %v6592
          %vm6658 = vcmp.lt.s32.totalorder %v6585, %v6592
          %vm6659 = vcmp.lt.s32.totalorder %v6586, %v6592
          %vm6660 = vcmp.lt.s32.totalorder %v6587, %v6592
          %vm6661 = vcmp.lt.s32.totalorder %v6588, %v6592
          %vm6662 = vcmp.lt.s32.totalorder %v6589, %v6592
          %vm6663 = vcmp.lt.s32.totalorder %v6590, %v6592
          %vm6664 = vcmp.lt.s32.totalorder %v6591, %v6592
          %v6665 = vsel %vm6593, %v979, 0.0
          %v6666 = vsel %vm6594, %v980, 0.0
          %v6667 = vsel %vm6595, %v981, 0.0
          %v6668 = vsel %vm6596, %v982, 0.0
          %v6669 = vsel %vm6597, %v983, 0.0
          %v6670 = vsel %vm6598, %v984, 0.0
          %v6671 = vsel %vm6599, %v985, 0.0
          %v6672 = vsel %vm6600, %v986, 0.0
          %v6673 = vsel %vm6601, %v987, 0.0
          %v6674 = vsel %vm6602, %v988, 0.0
          %v6675 = vsel %vm6603, %v989, 0.0
          %v6676 = vsel %vm6604, %v990, 0.0
          %v6677 = vsel %vm6605, %v991, 0.0
          %v6678 = vsel %vm6606, %v992, 0.0
          %v6679 = vsel %vm6607, %v993, 0.0
          %v6680 = vsel %vm6608, %v994, 0.0
          %v6681 = vsel %vm6609, %v995, 0.0
          %v6682 = vsel %vm6610, %v996, 0.0
          %v6683 = vsel %vm6611, %v997, 0.0
          %v6684 = vsel %vm6612, %v998, 0.0
          %v6685 = vsel %vm6613, %v999, 0.0
          %v6686 = vsel %vm6614, %v1000, 0.0
          %v6687 = vsel %vm6615, %v1001, 0.0
          %v6688 = vsel %vm6616, %v1002, 0.0
          %v6689 = vsel %vm6617, %v1003, 0.0
          %v6690 = vsel %vm6618, %v1004, 0.0
          %v6691 = vsel %vm6619, %v1005, 0.0
          %v6692 = vsel %vm6620, %v1006, 0.0
          %v6693 = vsel %vm6621, %v1007, 0.0
          %v6694 = vsel %vm6622, %v1008, 0.0
          %v6695 = vsel %vm6623, %v1009, 0.0
          %v6696 = vsel %vm6624, %v1010, 0.0
          %v6697 = vsel %vm6625, %v1011, 0.0
          %v6698 = vsel %vm6626, %v1012, 0.0
          %v6699 = vsel %vm6627, %v1013, 0.0
          %v6700 = vsel %vm6628, %v1014, 0.0
          %v6701 = vsel %vm6629, %v1015, 0.0
          %v6702 = vsel %vm6630, %v1016, 0.0
          %v6703 = vsel %vm6631, %v1017, 0.0
          %v6704 = vsel %vm6632, %v1018, 0.0
          %v6705 = vsel %vm6633, %v1019, 0.0
          %v6706 = vsel %vm6634, %v1020, 0.0
          %v6707 = vsel %vm6635, %v1021, 0.0
          %v6708 = vsel %vm6636, %v1022, 0.0
          %v6709 = vsel %vm6637, %v1023, 0.0
          %v6710 = vsel %vm6638, %v1024, 0.0
          %v6711 = vsel %vm6639, %v1025, 0.0
          %v6712 = vsel %vm6640, %v1026, 0.0
          %v6713 = vsel %vm6641, %v1027, 0.0
          %v6714 = vsel %vm6642, %v1028, 0.0
          %v6715 = vsel %vm6643, %v1029, 0.0
          %v6716 = vsel %vm6644, %v1030, 0.0
          %v6717 = vsel %vm6645, %v1031, 0.0
          %v6718 = vsel %vm6646, %v1032, 0.0
          %v6719 = vsel %vm6647, %v1033, 0.0
          %v6720 = vsel %vm6648, %v1034, 0.0
          %v6721 = vsel %vm6649, %v1035, 0.0
          %v6722 = vsel %vm6650, %v1036, 0.0
          %v6723 = vsel %vm6651, %v1037, 0.0
          %v6724 = vsel %vm6652, %v1038, 0.0
          %v6725 = vsel %vm6653, %v1039, 0.0
          %v6726 = vsel %vm6654, %v1040, 0.0
          %v6727 = vsel %vm6655, %v1041, 0.0
          %v6728 = vsel %vm6656, %v1042, 0.0
          %v6729 = vsel %vm6657, %v1043, 0.0
          %v6730 = vsel %vm6658, %v1044, 0.0
          %v6731 = vsel %vm6659, %v1045, 0.0
          %v6732 = vsel %vm6660, %v1046, 0.0
          %v6733 = vsel %vm6661, %v1047, 0.0
          %v6734 = vsel %vm6662, %v1048, 0.0
          %v6735 = vsel %vm6663, %v1049, 0.0
          %v6736 = vsel %vm6664, %v1050, 0.0
          %6738 = vset.pattern.permute.xlu0 0
          %6739 = vperm.xlu0 %6738, %v6665
          %v6740 = vpop.permute.xlu0 %6739
          %6742 = vset.pattern.permute.xlu0 0
          %6743 = vperm.xlu0 %6742, %v6666
          %v6744 = vpop.permute.xlu0 %6743
          %6746 = vset.pattern.permute.xlu0 0
          %6747 = vperm.xlu0 %6746, %v6667
          %v6748 = vpop.permute.xlu0 %6747
          %6750 = vset.pattern.permute.xlu0 0
          %6751 = vperm.xlu0 %6750, %v6668
          %v6752 = vpop.permute.xlu0 %6751
          %6754 = vset.pattern.permute.xlu0 0
          %6755 = vperm.xlu0 %6754, %v6669
          %v6756 = vpop.permute.xlu0 %6755
          %6758 = vset.pattern.permute.xlu0 0
          %6759 = vperm.xlu0 %6758, %v6670
          %v6760 = vpop.permute.xlu0 %6759
          %6762 = vset.pattern.permute.xlu0 0
          %6763 = vperm.xlu0 %6762, %v6671
          %v6764 = vpop.permute.xlu0 %6763
          %6766 = vset.pattern.permute.xlu0 0
          %6767 = vperm.xlu0 %6766, %v6672
          %v6768 = vpop.permute.xlu0 %6767
          %6770 = vset.pattern.permute.xlu0 0
          %6771 = vperm.xlu0 %6770, %v6673
          %v6772 = vpop.permute.xlu0 %6771
          %6774 = vset.pattern.permute.xlu0 0
          %6775 = vperm.xlu0 %6774, %v6674
          %v6776 = vpop.permute.xlu0 %6775
          %6778 = vset.pattern.permute.xlu0 0
          %6779 = vperm.xlu0 %6778, %v6675
          %v6780 = vpop.permute.xlu0 %6779
          %6782 = vset.pattern.permute.xlu0 0
          %6783 = vperm.xlu0 %6782, %v6676
          %v6784 = vpop.permute.xlu0 %6783
          %6786 = vset.pattern.permute.xlu0 0
          %6787 = vperm.xlu0 %6786, %v6677
          %v6788 = vpop.permute.xlu0 %6787
          %6790 = vset.pattern.permute.xlu0 0
          %6791 = vperm.xlu0 %6790, %v6678
          %v6792 = vpop.permute.xlu0 %6791
          %6794 = vset.pattern.permute.xlu0 0
          %6795 = vperm.xlu0 %6794, %v6679
          %v6796 = vpop.permute.xlu0 %6795
          %6798 = vset.pattern.permute.xlu0 0
          %6799 = vperm.xlu0 %6798, %v6680
          %v6800 = vpop.permute.xlu0 %6799
          %6802 = vset.pattern.permute.xlu0 0
          %6803 = vperm.xlu0 %6802, %v6681
          %v6804 = vpop.permute.xlu0 %6803
          %6806 = vset.pattern.permute.xlu0 0
          %6807 = vperm.xlu0 %6806, %v6682
          %v6808 = vpop.permute.xlu0 %6807
          %6810 = vset.pattern.permute.xlu0 0
          %6811 = vperm.xlu0 %6810, %v6683
          %v6812 = vpop.permute.xlu0 %6811
          %6814 = vset.pattern.permute.xlu0 0
          %6815 = vperm.xlu0 %6814, %v6684
          %v6816 = vpop.permute.xlu0 %6815
          %6818 = vset.pattern.permute.xlu0 0
          %6819 = vperm.xlu0 %6818, %v6685
          %v6820 = vpop.permute.xlu0 %6819
          %6822 = vset.pattern.permute.xlu0 0
          %6823 = vperm.xlu0 %6822, %v6686
          %v6824 = vpop.permute.xlu0 %6823
          %6826 = vset.pattern.permute.xlu0 0
          %6827 = vperm.xlu0 %6826, %v6687
          %v6828 = vpop.permute.xlu0 %6827
          %6830 = vset.pattern.permute.xlu0 0
          %6831 = vperm.xlu0 %6830, %v6688
          %v6832 = vpop.permute.xlu0 %6831
          %6834 = vset.pattern.permute.xlu0 0
          %6835 = vperm.xlu0 %6834, %v6689
          %v6836 = vpop.permute.xlu0 %6835
          %6838 = vset.pattern.permute.xlu0 0
          %6839 = vperm.xlu0 %6838, %v6690
          %v6840 = vpop.permute.xlu0 %6839
          %6842 = vset.pattern.permute.xlu0 0
          %6843 = vperm.xlu0 %6842, %v6691
          %v6844 = vpop.permute.xlu0 %6843
          %6846 = vset.pattern.permute.xlu0 0
          %6847 = vperm.xlu0 %6846, %v6692
          %v6848 = vpop.permute.xlu0 %6847
          %6850 = vset.pattern.permute.xlu0 0
          %6851 = vperm.xlu0 %6850, %v6693
          %v6852 = vpop.permute.xlu0 %6851
          %6854 = vset.pattern.permute.xlu0 0
          %6855 = vperm.xlu0 %6854, %v6694
          %v6856 = vpop.permute.xlu0 %6855
          %6858 = vset.pattern.permute.xlu0 0
          %6859 = vperm.xlu0 %6858, %v6695
          %v6860 = vpop.permute.xlu0 %6859
          %6862 = vset.pattern.permute.xlu0 0
          %6863 = vperm.xlu0 %6862, %v6696
          %v6864 = vpop.permute.xlu0 %6863
          %6866 = vset.pattern.permute.xlu0 0
          %6867 = vperm.xlu0 %6866, %v6697
          %v6868 = vpop.permute.xlu0 %6867
          %6870 = vset.pattern.permute.xlu0 0
          %6871 = vperm.xlu0 %6870, %v6698
          %v6872 = vpop.permute.xlu0 %6871
          %6874 = vset.pattern.permute.xlu0 0
          %6875 = vperm.xlu0 %6874, %v6699
          %v6876 = vpop.permute.xlu0 %6875
          %6878 = vset.pattern.permute.xlu0 0
          %6879 = vperm.xlu0 %6878, %v6700
          %v6880 = vpop.permute.xlu0 %6879
          %6882 = vset.pattern.permute.xlu0 0
          %6883 = vperm.xlu0 %6882, %v6701
          %v6884 = vpop.permute.xlu0 %6883
          %6886 = vset.pattern.permute.xlu0 0
          %6887 = vperm.xlu0 %6886, %v6702
          %v6888 = vpop.permute.xlu0 %6887
          %6890 = vset.pattern.permute.xlu0 0
          %6891 = vperm.xlu0 %6890, %v6703
          %v6892 = vpop.permute.xlu0 %6891
          %6894 = vset.pattern.permute.xlu0 0
          %6895 = vperm.xlu0 %6894, %v6704
          %v6896 = vpop.permute.xlu0 %6895
          %6898 = vset.pattern.permute.xlu0 0
          %6899 = vperm.xlu0 %6898, %v6705
          %v6900 = vpop.permute.xlu0 %6899
          %6902 = vset.pattern.permute.xlu0 0
          %6903 = vperm.xlu0 %6902, %v6706
          %v6904 = vpop.permute.xlu0 %6903
          %6906 = vset.pattern.permute.xlu0 0
          %6907 = vperm.xlu0 %6906, %v6707
          %v6908 = vpop.permute.xlu0 %6907
          %6910 = vset.pattern.permute.xlu0 0
          %6911 = vperm.xlu0 %6910, %v6708
          %v6912 = vpop.permute.xlu0 %6911
          %6914 = vset.pattern.permute.xlu0 0
          %6915 = vperm.xlu0 %6914, %v6709
          %v6916 = vpop.permute.xlu0 %6915
          %6918 = vset.pattern.permute.xlu0 0
          %6919 = vperm.xlu0 %6918, %v6710
          %v6920 = vpop.permute.xlu0 %6919
          %6922 = vset.pattern.permute.xlu0 0
          %6923 = vperm.xlu0 %6922, %v6711
          %v6924 = vpop.permute.xlu0 %6923
          %6926 = vset.pattern.permute.xlu0 0
          %6927 = vperm.xlu0 %6926, %v6712
          %v6928 = vpop.permute.xlu0 %6927
          %6930 = vset.pattern.permute.xlu0 0
          %6931 = vperm.xlu0 %6930, %v6713
          %v6932 = vpop.permute.xlu0 %6931
          %6934 = vset.pattern.permute.xlu0 0
          %6935 = vperm.xlu0 %6934, %v6714
          %v6936 = vpop.permute.xlu0 %6935
          %6938 = vset.pattern.permute.xlu0 0
          %6939 = vperm.xlu0 %6938, %v6715
          %v6940 = vpop.permute.xlu0 %6939
          %6942 = vset.pattern.permute.xlu0 0
          %6943 = vperm.xlu0 %6942, %v6716
          %v6944 = vpop.permute.xlu0 %6943
          %6946 = vset.pattern.permute.xlu0 0
          %6947 = vperm.xlu0 %6946, %v6717
          %v6948 = vpop.permute.xlu0 %6947
          %6950 = vset.pattern.permute.xlu0 0
          %6951 = vperm.xlu0 %6950, %v6718
          %v6952 = vpop.permute.xlu0 %6951
          %6954 = vset.pattern.permute.xlu0 0
          %6955 = vperm.xlu0 %6954, %v6719
          %v6956 = vpop.permute.xlu0 %6955
          %6958 = vset.pattern.permute.xlu0 0
          %6959 = vperm.xlu0 %6958, %v6720
          %v6960 = vpop.permute.xlu0 %6959
          %6962 = vset.pattern.permute.xlu0 0
          %6963 = vperm.xlu0 %6962, %v6721
          %v6964 = vpop.permute.xlu0 %6963
          %6966 = vset.pattern.permute.xlu0 0
          %6967 = vperm.xlu0 %6966, %v6722
          %v6968 = vpop.permute.xlu0 %6967
          %6970 = vset.pattern.permute.xlu0 0
          %6971 = vperm.xlu0 %6970, %v6723
          %v6972 = vpop.permute.xlu0 %6971
          %6974 = vset.pattern.permute.xlu0 0
          %6975 = vperm.xlu0 %6974, %v6724
          %v6976 = vpop.permute.xlu0 %6975
          %6978 = vset.pattern.permute.xlu0 0
          %6979 = vperm.xlu0 %6978, %v6725
          %v6980 = vpop.permute.xlu0 %6979
          %6982 = vset.pattern.permute.xlu0 0
          %6983 = vperm.xlu0 %6982, %v6726
          %v6984 = vpop.permute.xlu0 %6983
          %6986 = vset.pattern.permute.xlu0 0
          %6987 = vperm.xlu0 %6986, %v6727
          %v6988 = vpop.permute.xlu0 %6987
          %6990 = vset.pattern.permute.xlu0 0
          %6991 = vperm.xlu0 %6990, %v6728
          %v6992 = vpop.permute.xlu0 %6991
          %6994 = vset.pattern.permute.xlu0 0
          %6995 = vperm.xlu0 %6994, %v6729
          %v6996 = vpop.permute.xlu0 %6995
          %6998 = vset.pattern.permute.xlu0 0
          %6999 = vperm.xlu0 %6998, %v6730
          %v7000 = vpop.permute.xlu0 %6999
          %7002 = vset.pattern.permute.xlu0 0
          %7003 = vperm.xlu0 %7002, %v6731
          %v7004 = vpop.permute.xlu0 %7003
          %7006 = vset.pattern.permute.xlu0 0
          %7007 = vperm.xlu0 %7006, %v6732
          %v7008 = vpop.permute.xlu0 %7007
          %7010 = vset.pattern.permute.xlu0 0
          %7011 = vperm.xlu0 %7010, %v6733
          %v7012 = vpop.permute.xlu0 %7011
          %7014 = vset.pattern.permute.xlu0 0
          %7015 = vperm.xlu0 %7014, %v6734
          %v7016 = vpop.permute.xlu0 %7015
          %7018 = vset.pattern.permute.xlu0 0
          %7019 = vperm.xlu0 %7018, %v6735
          %v7020 = vpop.permute.xlu0 %7019
          %7022 = vset.pattern.permute.xlu0 0
          %7023 = vperm.xlu0 %7022, %v6736
          %v7024 = vpop.permute.xlu0 %7023
          %v7025 = vrot.slane %v6740, 6
          %v7026 = vrot.slane %v6744, 6
          %v7027 = vsel %vm4041, %v7025, %v7026
          %v7028 = vrot.slane %v6748, 6
          %v7029 = vsel %vm4041, %v7026, %v7028
          %v7030 = vrot.slane %v6752, 6
          %v7031 = vsel %vm4041, %v7028, %v7030
          %v7032 = vrot.slane %v6756, 6
          %v7033 = vsel %vm4041, %v7030, %v7032
          %v7034 = vrot.slane %v6760, 6
          %v7035 = vsel %vm4041, %v7032, %v7034
          %v7036 = vrot.slane %v6764, 6
          %v7037 = vsel %vm4041, %v7034, %v7036
          %v7038 = vrot.slane %v6768, 6
          %v7039 = vsel %vm4041, %v7036, %v7038
          %v7040 = vrot.slane %v6772, 6
          %v7041 = vsel %vm4041, %v7038, %v7040
          %v7042 = vrot.slane %v6776, 6
          %v7043 = vsel %vm4041, %v7040, %v7042
          %v7044 = vrot.slane %v6780, 6
          %v7045 = vsel %vm4041, %v7042, %v7044
          %v7046 = vrot.slane %v6784, 6
          %v7047 = vsel %vm4041, %v7044, %v7046
          %v7048 = vrot.slane %v6788, 6
          %v7049 = vsel %vm4041, %v7046, %v7048
          %v7050 = vrot.slane %v6792, 6
          %v7051 = vsel %vm4041, %v7048, %v7050
          %v7052 = vrot.slane %v6796, 6
          %v7053 = vsel %vm4041, %v7050, %v7052
          %v7054 = vrot.slane %v6800, 6
          %v7055 = vsel %vm4041, %v7052, %v7054
          %v7056 = vrot.slane %v6804, 6
          %v7057 = vsel %vm4041, %v7054, %v7056
          %v7058 = vrot.slane %v6808, 6
          %v7059 = vsel %vm4041, %v7056, %v7058
          %v7060 = vrot.slane %v6812, 6
          %v7061 = vsel %vm4041, %v7058, %v7060
          %v7062 = vrot.slane %v6816, 6
          %v7063 = vsel %vm4041, %v7060, %v7062
          %v7064 = vrot.slane %v6820, 6
          %v7065 = vsel %vm4041, %v7062, %v7064
          %v7066 = vrot.slane %v6824, 6
          %v7067 = vsel %vm4041, %v7064, %v7066
          %v7068 = vrot.slane %v6828, 6
          %v7069 = vsel %vm4041, %v7066, %v7068
          %v7070 = vrot.slane %v6832, 6
          %v7071 = vsel %vm4041, %v7068, %v7070
          %v7072 = vrot.slane %v6836, 6
          %v7073 = vsel %vm4041, %v7070, %v7072
          %v7074 = vrot.slane %v6840, 6
          %v7075 = vsel %vm4041, %v7072, %v7074
          %v7076 = vrot.slane %v6844, 6
          %v7077 = vsel %vm4041, %v7074, %v7076
          %v7078 = vrot.slane %v6848, 6
          %v7079 = vsel %vm4041, %v7076, %v7078
          %v7080 = vrot.slane %v6852, 6
          %v7081 = vsel %vm4041, %v7078, %v7080
          %v7082 = vrot.slane %v6856, 6
          %v7083 = vsel %vm4041, %v7080, %v7082
          %v7084 = vrot.slane %v6860, 6
          %v7085 = vsel %vm4041, %v7082, %v7084
          %v7086 = vrot.slane %v6864, 6
          %v7087 = vsel %vm4041, %v7084, %v7086
          %v7088 = vrot.slane %v6868, 6
          %v7089 = vsel %vm4041, %v7086, %v7088
          %v7090 = vrot.slane %v6872, 6
          %v7091 = vsel %vm4041, %v7088, %v7090
          %v7092 = vrot.slane %v6876, 6
          %v7093 = vsel %vm4041, %v7090, %v7092
          %v7094 = vrot.slane %v6880, 6
          %v7095 = vsel %vm4041, %v7092, %v7094
          %v7096 = vrot.slane %v6884, 6
          %v7097 = vsel %vm4041, %v7094, %v7096
          %v7098 = vrot.slane %v6888, 6
          %v7099 = vsel %vm4041, %v7096, %v7098
          %v7100 = vrot.slane %v6892, 6
          %v7101 = vsel %vm4041, %v7098, %v7100
          %v7102 = vrot.slane %v6896, 6
          %v7103 = vsel %vm4041, %v7100, %v7102
          %v7104 = vrot.slane %v6900, 6
          %v7105 = vsel %vm4041, %v7102, %v7104
          %v7106 = vrot.slane %v6904, 6
          %v7107 = vsel %vm4041, %v7104, %v7106
          %v7108 = vrot.slane %v6908, 6
          %v7109 = vsel %vm4041, %v7106, %v7108
          %v7110 = vrot.slane %v6912, 6
          %v7111 = vsel %vm4041, %v7108, %v7110
          %v7112 = vrot.slane %v6916, 6
          %v7113 = vsel %vm4041, %v7110, %v7112
          %v7114 = vrot.slane %v6920, 6
          %v7115 = vsel %vm4041, %v7112, %v7114
          %v7116 = vrot.slane %v6924, 6
          %v7117 = vsel %vm4041, %v7114, %v7116
          %v7118 = vrot.slane %v6928, 6
          %v7119 = vsel %vm4041, %v7116, %v7118
          %v7120 = vrot.slane %v6932, 6
          %v7121 = vsel %vm4041, %v7118, %v7120
          %v7122 = vrot.slane %v6936, 6
          %v7123 = vsel %vm4041, %v7120, %v7122
          %v7124 = vrot.slane %v6940, 6
          %v7125 = vsel %vm4041, %v7122, %v7124
          %v7126 = vrot.slane %v6944, 6
          %v7127 = vsel %vm4041, %v7124, %v7126
          %v7128 = vrot.slane %v6948, 6
          %v7129 = vsel %vm4041, %v7126, %v7128
          %v7130 = vrot.slane %v6952, 6
          %v7131 = vsel %vm4041, %v7128, %v7130
          %v7132 = vrot.slane %v6956, 6
          %v7133 = vsel %vm4041, %v7130, %v7132
          %v7134 = vrot.slane %v6960, 6
          %v7135 = vsel %vm4041, %v7132, %v7134
          %v7136 = vrot.slane %v6964, 6
          %v7137 = vsel %vm4041, %v7134, %v7136
          %v7138 = vrot.slane %v6968, 6
          %v7139 = vsel %vm4041, %v7136, %v7138
          %v7140 = vrot.slane %v6972, 6
          %v7141 = vsel %vm4041, %v7138, %v7140
          %v7142 = vrot.slane %v6976, 6
          %v7143 = vsel %vm4041, %v7140, %v7142
          %v7144 = vrot.slane %v6980, 6
          %v7145 = vsel %vm4041, %v7142, %v7144
          %v7146 = vrot.slane %v6984, 6
          %v7147 = vsel %vm4041, %v7144, %v7146
          %v7148 = vrot.slane %v6988, 6
          %v7149 = vsel %vm4041, %v7146, %v7148
          %v7150 = vrot.slane %v6992, 6
          %v7151 = vsel %vm4041, %v7148, %v7150
          %v7152 = vrot.slane %v6996, 6
          %v7153 = vsel %vm4041, %v7150, %v7152
          %v7154 = vrot.slane %v7000, 6
          %v7155 = vsel %vm4041, %v7152, %v7154
          %v7156 = vrot.slane %v7004, 6
          %v7157 = vsel %vm4041, %v7154, %v7156
          %v7158 = vrot.slane %v7008, 6
          %v7159 = vsel %vm4041, %v7156, %v7158
          %v7160 = vrot.slane %v7012, 6
          %v7161 = vsel %vm4041, %v7158, %v7160
          %v7162 = vrot.slane %v7016, 6
          %v7163 = vsel %vm4041, %v7160, %v7162
          %v7164 = vrot.slane %v7020, 6
          %v7165 = vsel %vm4041, %v7162, %v7164
          %v7166 = vrot.slane %v7024, 6
          %v7167 = vsel %vm4041, %v7164, %v7166
          %v7241 = vmul.f32 %v6299, %v7025
          %v7242 = vmul.f32 %v6300, %v7027
          %v7243 = vmul.f32 %v6301, %v7029
          %v7244 = vmul.f32 %v6302, %v7031
          %v7245 = vmul.f32 %v6303, %v7033
          %v7246 = vmul.f32 %v6304, %v7035
          %v7247 = vmul.f32 %v6305, %v7037
          %v7248 = vmul.f32 %v6306, %v7039
          %v7249 = vmul.f32 %v6307, %v7041
          %v7250 = vmul.f32 %v6308, %v7043
          %v7251 = vmul.f32 %v6309, %v7045
          %v7252 = vmul.f32 %v6310, %v7047
          %v7253 = vmul.f32 %v6311, %v7049
          %v7254 = vmul.f32 %v6312, %v7051
          %v7255 = vmul.f32 %v6313, %v7053
          %v7256 = vmul.f32 %v6314, %v7055
          %v7257 = vmul.f32 %v6315, %v7057
          %v7258 = vmul.f32 %v6316, %v7059
          %v7259 = vmul.f32 %v6317, %v7061
          %v7260 = vmul.f32 %v6318, %v7063
          %v7261 = vmul.f32 %v6319, %v7065
          %v7262 = vmul.f32 %v6320, %v7067
          %v7263 = vmul.f32 %v6321, %v7069
          %v7264 = vmul.f32 %v6322, %v7071
          %v7265 = vmul.f32 %v6323, %v7073
          %v7266 = vmul.f32 %v6324, %v7075
          %v7267 = vmul.f32 %v6325, %v7077
          %v7268 = vmul.f32 %v6326, %v7079
          %v7269 = vmul.f32 %v6327, %v7081
          %v7270 = vmul.f32 %v6328, %v7083
          %v7271 = vmul.f32 %v6329, %v7085
          %v7272 = vmul.f32 %v6330, %v7087
          %v7273 = vmul.f32 %v6331, %v7089
          %v7274 = vmul.f32 %v6332, %v7091
          %v7275 = vmul.f32 %v6333, %v7093
          %v7276 = vmul.f32 %v6334, %v7095
          %v7277 = vmul.f32 %v6335, %v7097
          %v7278 = vmul.f32 %v6336, %v7099
          %v7279 = vmul.f32 %v6337, %v7101
          %v7280 = vmul.f32 %v6338, %v7103
          %v7281 = vmul.f32 %v6339, %v7105
          %v7282 = vmul.f32 %v6340, %v7107
          %v7283 = vmul.f32 %v6341, %v7109
          %v7284 = vmul.f32 %v6342, %v7111
          %v7285 = vmul.f32 %v6343, %v7113
          %v7286 = vmul.f32 %v6344, %v7115
          %v7287 = vmul.f32 %v6345, %v7117
          %v7288 = vmul.f32 %v6346, %v7119
          %v7289 = vmul.f32 %v6347, %v7121
          %v7290 = vmul.f32 %v6348, %v7123
          %v7291 = vmul.f32 %v6349, %v7125
          %v7292 = vmul.f32 %v6350, %v7127
          %v7293 = vmul.f32 %v6351, %v7129
          %v7294 = vmul.f32 %v6352, %v7131
          %v7295 = vmul.f32 %v6353, %v7133
          %v7296 = vmul.f32 %v6354, %v7135
          %v7297 = vmul.f32 %v6355, %v7137
          %v7298 = vmul.f32 %v6356, %v7139
          %v7299 = vmul.f32 %v6357, %v7141
          %v7300 = vmul.f32 %v6358, %v7143
          %v7301 = vmul.f32 %v6359, %v7145
          %v7302 = vmul.f32 %v6360, %v7147
          %v7303 = vmul.f32 %v6361, %v7149
          %v7304 = vmul.f32 %v6362, %v7151
          %v7305 = vmul.f32 %v6363, %v7153
          %v7306 = vmul.f32 %v6364, %v7155
          %v7307 = vmul.f32 %v6365, %v7157
          %v7308 = vmul.f32 %v6366, %v7159
          %v7309 = vmul.f32 %v6367, %v7161
          %v7310 = vmul.f32 %v6368, %v7163
          %v7311 = vmul.f32 %v6369, %v7165
          %v7312 = vmul.f32 %v6370, %v7167
          %v7313 = vmul.f32 %v6371, %v7166
          %vm7387 = vcmask 1045504
          %v7388 = vrot.slane %v7241, 2
          %v7389 = vrot.slane %v7242, 2
          %v7390 = vsel %vm7387, %v7388, %v7389
          %v7391 = vrot.slane %v7243, 2
          %v7392 = vsel %vm7387, %v7389, %v7391
          %v7393 = vrot.slane %v7244, 2
          %v7394 = vsel %vm7387, %v7391, %v7393
          %v7395 = vrot.slane %v7245, 2
          %v7396 = vsel %vm7387, %v7393, %v7395
          %v7397 = vrot.slane %v7246, 2
          %v7398 = vsel %vm7387, %v7395, %v7397
          %v7399 = vrot.slane %v7247, 2
          %v7400 = vsel %vm7387, %v7397, %v7399
          %v7401 = vrot.slane %v7248, 2
          %v7402 = vsel %vm7387, %v7399, %v7401
          %v7403 = vrot.slane %v7249, 2
          %v7404 = vsel %vm7387, %v7401, %v7403
          %v7405 = vrot.slane %v7250, 2
          %v7406 = vsel %vm7387, %v7403, %v7405
          %v7407 = vrot.slane %v7251, 2
          %v7408 = vsel %vm7387, %v7405, %v7407
          %v7409 = vrot.slane %v7252, 2
          %v7410 = vsel %vm7387, %v7407, %v7409
          %v7411 = vrot.slane %v7253, 2
          %v7412 = vsel %vm7387, %v7409, %v7411
          %v7413 = vrot.slane %v7254, 2
          %v7414 = vsel %vm7387, %v7411, %v7413
          %v7415 = vrot.slane %v7255, 2
          %v7416 = vsel %vm7387, %v7413, %v7415
          %v7417 = vrot.slane %v7256, 2
          %v7418 = vsel %vm7387, %v7415, %v7417
          %v7419 = vrot.slane %v7257, 2
          %v7420 = vsel %vm7387, %v7417, %v7419
          %v7421 = vrot.slane %v7258, 2
          %v7422 = vsel %vm7387, %v7419, %v7421
          %v7423 = vrot.slane %v7259, 2
          %v7424 = vsel %vm7387, %v7421, %v7423
          %v7425 = vrot.slane %v7260, 2
          %v7426 = vsel %vm7387, %v7423, %v7425
          %v7427 = vrot.slane %v7261, 2
          %v7428 = vsel %vm7387, %v7425, %v7427
          %v7429 = vrot.slane %v7262, 2
          %v7430 = vsel %vm7387, %v7427, %v7429
          %v7431 = vrot.slane %v7263, 2
          %v7432 = vsel %vm7387, %v7429, %v7431
          %v7433 = vrot.slane %v7264, 2
          %v7434 = vsel %vm7387, %v7431, %v7433
          %v7435 = vrot.slane %v7265, 2
          %v7436 = vsel %vm7387, %v7433, %v7435
          %v7437 = vrot.slane %v7266, 2
          %v7438 = vsel %vm7387, %v7435, %v7437
          %v7439 = vrot.slane %v7267, 2
          %v7440 = vsel %vm7387, %v7437, %v7439
          %v7441 = vrot.slane %v7268, 2
          %v7442 = vsel %vm7387, %v7439, %v7441
          %v7443 = vrot.slane %v7269, 2
          %v7444 = vsel %vm7387, %v7441, %v7443
          %v7445 = vrot.slane %v7270, 2
          %v7446 = vsel %vm7387, %v7443, %v7445
          %v7447 = vrot.slane %v7271, 2
          %v7448 = vsel %vm7387, %v7445, %v7447
          %v7449 = vrot.slane %v7272, 2
          %v7450 = vsel %vm7387, %v7447, %v7449
          %v7451 = vrot.slane %v7273, 2
          %v7452 = vsel %vm7387, %v7449, %v7451
          %v7453 = vrot.slane %v7274, 2
          %v7454 = vsel %vm7387, %v7451, %v7453
          %v7455 = vrot.slane %v7275, 2
          %v7456 = vsel %vm7387, %v7453, %v7455
          %v7457 = vrot.slane %v7276, 2
          %v7458 = vsel %vm7387, %v7455, %v7457
          %v7459 = vrot.slane %v7277, 2
          %v7460 = vsel %vm7387, %v7457, %v7459
          %v7461 = vrot.slane %v7278, 2
          %v7462 = vsel %vm7387, %v7459, %v7461
          %v7463 = vrot.slane %v7279, 2
          %v7464 = vsel %vm7387, %v7461, %v7463
          %v7465 = vrot.slane %v7280, 2
          %v7466 = vsel %vm7387, %v7463, %v7465
          %v7467 = vrot.slane %v7281, 2
          %v7468 = vsel %vm7387, %v7465, %v7467
          %v7469 = vrot.slane %v7282, 2
          %v7470 = vsel %vm7387, %v7467, %v7469
          %v7471 = vrot.slane %v7283, 2
          %v7472 = vsel %vm7387, %v7469, %v7471
          %v7473 = vrot.slane %v7284, 2
          %v7474 = vsel %vm7387, %v7471, %v7473
          %v7475 = vrot.slane %v7285, 2
          %v7476 = vsel %vm7387, %v7473, %v7475
          %v7477 = vrot.slane %v7286, 2
          %v7478 = vsel %vm7387, %v7475, %v7477
          %v7479 = vrot.slane %v7287, 2
          %v7480 = vsel %vm7387, %v7477, %v7479
          %v7481 = vrot.slane %v7288, 2
          %v7482 = vsel %vm7387, %v7479, %v7481
          %v7483 = vrot.slane %v7289, 2
          %v7484 = vsel %vm7387, %v7481, %v7483
          %v7485 = vrot.slane %v7290, 2
          %v7486 = vsel %vm7387, %v7483, %v7485
          %v7487 = vrot.slane %v7291, 2
          %v7488 = vsel %vm7387, %v7485, %v7487
          %v7489 = vrot.slane %v7292, 2
          %v7490 = vsel %vm7387, %v7487, %v7489
          %v7491 = vrot.slane %v7293, 2
          %v7492 = vsel %vm7387, %v7489, %v7491
          %v7493 = vrot.slane %v7294, 2
          %v7494 = vsel %vm7387, %v7491, %v7493
          %v7495 = vrot.slane %v7295, 2
          %v7496 = vsel %vm7387, %v7493, %v7495
          %v7497 = vrot.slane %v7296, 2
          %v7498 = vsel %vm7387, %v7495, %v7497
          %v7499 = vrot.slane %v7297, 2
          %v7500 = vsel %vm7387, %v7497, %v7499
          %v7501 = vrot.slane %v7298, 2
          %v7502 = vsel %vm7387, %v7499, %v7501
          %v7503 = vrot.slane %v7299, 2
          %v7504 = vsel %vm7387, %v7501, %v7503
          %v7505 = vrot.slane %v7300, 2
          %v7506 = vsel %vm7387, %v7503, %v7505
          %v7507 = vrot.slane %v7301, 2
          %v7508 = vsel %vm7387, %v7505, %v7507
          %v7509 = vrot.slane %v7302, 2
          %v7510 = vsel %vm7387, %v7507, %v7509
          %v7511 = vrot.slane %v7303, 2
          %v7512 = vsel %vm7387, %v7509, %v7511
          %v7513 = vrot.slane %v7304, 2
          %v7514 = vsel %vm7387, %v7511, %v7513
          %v7515 = vrot.slane %v7305, 2
          %v7516 = vsel %vm7387, %v7513, %v7515
          %v7517 = vrot.slane %v7306, 2
          %v7518 = vsel %vm7387, %v7515, %v7517
          %v7519 = vrot.slane %v7307, 2
          %v7520 = vsel %vm7387, %v7517, %v7519
          %v7521 = vrot.slane %v7308, 2
          %v7522 = vsel %vm7387, %v7519, %v7521
          %v7523 = vrot.slane %v7309, 2
          %v7524 = vsel %vm7387, %v7521, %v7523
          %v7525 = vrot.slane %v7310, 2
          %v7526 = vsel %vm7387, %v7523, %v7525
          %v7527 = vrot.slane %v7311, 2
          %v7528 = vsel %vm7387, %v7525, %v7527
          %v7529 = vrot.slane %v7312, 2
          %v7530 = vsel %vm7387, %v7527, %v7529
          %v7531 = vrot.slane %v7313, 2
          %v7532 = vsel %vm7387, %v7529, %v7531
          %v7605 = vadd.f32 %v7390, %v7392
          %v7606 = vadd.f32 %v7605, %v7394
          %v7607 = vadd.f32 %v7606, %v7396
          %v7608 = vadd.f32 %v7607, %v7398
          %v7609 = vadd.f32 %v7608, %v7400
          %v7610 = vadd.f32 %v7609, %v7402
          %v7611 = vadd.f32 %v7610, %v7404
          %v7612 = vadd.f32 %v7611, %v7406
          %v7613 = vadd.f32 %v7612, %v7408
          %v7614 = vadd.f32 %v7613, %v7410
          %v7615 = vadd.f32 %v7614, %v7412
          %v7616 = vadd.f32 %v7615, %v7414
          %v7617 = vadd.f32 %v7616, %v7416
          %v7618 = vadd.f32 %v7617, %v7418
          %v7619 = vadd.f32 %v7618, %v7420
          %v7620 = vadd.f32 %v7619, %v7422
          %v7621 = vadd.f32 %v7620, %v7424
          %v7622 = vadd.f32 %v7621, %v7426
          %v7623 = vadd.f32 %v7622, %v7428
          %v7624 = vadd.f32 %v7623, %v7430
          %v7625 = vadd.f32 %v7624, %v7432
          %v7626 = vadd.f32 %v7625, %v7434
          %v7627 = vadd.f32 %v7626, %v7436
          %v7628 = vadd.f32 %v7627, %v7438
          %v7629 = vadd.f32 %v7628, %v7440
          %v7630 = vadd.f32 %v7629, %v7442
          %v7631 = vadd.f32 %v7630, %v7444
          %v7632 = vadd.f32 %v7631, %v7446
          %v7633 = vadd.f32 %v7632, %v7448
          %v7634 = vadd.f32 %v7633, %v7450
          %v7635 = vadd.f32 %v7634, %v7452
          %v7636 = vadd.f32 %v7635, %v7454
          %v7637 = vadd.f32 %v7636, %v7456
          %v7638 = vadd.f32 %v7637, %v7458
          %v7639 = vadd.f32 %v7638, %v7460
          %v7640 = vadd.f32 %v7639, %v7462
          %v7641 = vadd.f32 %v7640, %v7464
          %v7642 = vadd.f32 %v7641, %v7466
          %v7643 = vadd.f32 %v7642, %v7468
          %v7644 = vadd.f32 %v7643, %v7470
          %v7645 = vadd.f32 %v7644, %v7472
          %v7646 = vadd.f32 %v7645, %v7474
          %v7647 = vadd.f32 %v7646, %v7476
          %v7648 = vadd.f32 %v7647, %v7478
          %v7649 = vadd.f32 %v7648, %v7480
          %v7650 = vadd.f32 %v7649, %v7482
          %v7651 = vadd.f32 %v7650, %v7484
          %v7652 = vadd.f32 %v7651, %v7486
          %v7653 = vadd.f32 %v7652, %v7488
          %v7654 = vadd.f32 %v7653, %v7490
          %v7655 = vadd.f32 %v7654, %v7492
          %v7656 = vadd.f32 %v7655, %v7494
          %v7657 = vadd.f32 %v7656, %v7496
          %v7658 = vadd.f32 %v7657, %v7498
          %v7659 = vadd.f32 %v7658, %v7500
          %v7660 = vadd.f32 %v7659, %v7502
          %v7661 = vadd.f32 %v7660, %v7504
          %v7662 = vadd.f32 %v7661, %v7506
          %v7663 = vadd.f32 %v7662, %v7508
          %v7664 = vadd.f32 %v7663, %v7510
          %v7665 = vadd.f32 %v7664, %v7512
          %v7666 = vadd.f32 %v7665, %v7514
          %v7667 = vadd.f32 %v7666, %v7516
          %v7668 = vadd.f32 %v7667, %v7518
          %v7669 = vadd.f32 %v7668, %v7520
          %v7670 = vadd.f32 %v7669, %v7522
          %v7671 = vadd.f32 %v7670, %v7524
          %v7672 = vadd.f32 %v7671, %v7526
          %v7673 = vadd.f32 %v7672, %v7528
          %v7674 = vadd.f32 %v7673, %v7530
          %v7675 = vadd.f32 %v7674, %v7532
          %v7676 = vrot.slane %v7675, 4
          %v7677 = vadd.f32 %v7675, %v7676
          %v7678 = vrot.slane %v7677, 2
          %v7679 = vadd.f32 %v7677, %v7678
          %v7680 = vrot.slane %v7679, 1
          %v7681 = vadd.f32 %v7679, %v7680
          %v7682 = vadd.f32 %v1057, %v7681
          %v7683 = vmul.f32 %v7241, %v7241
          %v7684 = vmul.f32 %v7242, %v7242
          %v7685 = vmul.f32 %v7243, %v7243
          %v7686 = vmul.f32 %v7244, %v7244
          %v7687 = vmul.f32 %v7245, %v7245
          %v7688 = vmul.f32 %v7246, %v7246
          %v7689 = vmul.f32 %v7247, %v7247
          %v7690 = vmul.f32 %v7248, %v7248
          %v7691 = vmul.f32 %v7249, %v7249
          %v7692 = vmul.f32 %v7250, %v7250
          %v7693 = vmul.f32 %v7251, %v7251
          %v7694 = vmul.f32 %v7252, %v7252
          %v7695 = vmul.f32 %v7253, %v7253
          %v7696 = vmul.f32 %v7254, %v7254
          %v7697 = vmul.f32 %v7255, %v7255
          %v7698 = vmul.f32 %v7256, %v7256
          %v7699 = vmul.f32 %v7257, %v7257
          %v7700 = vmul.f32 %v7258, %v7258
          %v7701 = vmul.f32 %v7259, %v7259
          %v7702 = vmul.f32 %v7260, %v7260
          %v7703 = vmul.f32 %v7261, %v7261
          %v7704 = vmul.f32 %v7262, %v7262
          %v7705 = vmul.f32 %v7263, %v7263
          %v7706 = vmul.f32 %v7264, %v7264
          %v7707 = vmul.f32 %v7265, %v7265
          %v7708 = vmul.f32 %v7266, %v7266
          %v7709 = vmul.f32 %v7267, %v7267
          %v7710 = vmul.f32 %v7268, %v7268
          %v7711 = vmul.f32 %v7269, %v7269
          %v7712 = vmul.f32 %v7270, %v7270
          %v7713 = vmul.f32 %v7271, %v7271
          %v7714 = vmul.f32 %v7272, %v7272
          %v7715 = vmul.f32 %v7273, %v7273
          %v7716 = vmul.f32 %v7274, %v7274
          %v7717 = vmul.f32 %v7275, %v7275
          %v7718 = vmul.f32 %v7276, %v7276
          %v7719 = vmul.f32 %v7277, %v7277
          %v7720 = vmul.f32 %v7278, %v7278
          %v7721 = vmul.f32 %v7279, %v7279
          %v7722 = vmul.f32 %v7280, %v7280
          %v7723 = vmul.f32 %v7281, %v7281
          %v7724 = vmul.f32 %v7282, %v7282
          %v7725 = vmul.f32 %v7283, %v7283
          %v7726 = vmul.f32 %v7284, %v7284
          %v7727 = vmul.f32 %v7285, %v7285
          %v7728 = vmul.f32 %v7286, %v7286
          %v7729 = vmul.f32 %v7287, %v7287
          %v7730 = vmul.f32 %v7288, %v7288
          %v7731 = vmul.f32 %v7289, %v7289
          %v7732 = vmul.f32 %v7290, %v7290
          %v7733 = vmul.f32 %v7291, %v7291
          %v7734 = vmul.f32 %v7292, %v7292
          %v7735 = vmul.f32 %v7293, %v7293
          %v7736 = vmul.f32 %v7294, %v7294
          %v7737 = vmul.f32 %v7295, %v7295
          %v7738 = vmul.f32 %v7296, %v7296
          %v7739 = vmul.f32 %v7297, %v7297
          %v7740 = vmul.f32 %v7298, %v7298
          %v7741 = vmul.f32 %v7299, %v7299
          %v7742 = vmul.f32 %v7300, %v7300
          %v7743 = vmul.f32 %v7301, %v7301
          %v7744 = vmul.f32 %v7302, %v7302
          %v7745 = vmul.f32 %v7303, %v7303
          %v7746 = vmul.f32 %v7304, %v7304
          %v7747 = vmul.f32 %v7305, %v7305
          %v7748 = vmul.f32 %v7306, %v7306
          %v7749 = vmul.f32 %v7307, %v7307
          %v7750 = vmul.f32 %v7308, %v7308
          %v7751 = vmul.f32 %v7309, %v7309
          %v7752 = vmul.f32 %v7310, %v7310
          %v7753 = vmul.f32 %v7311, %v7311
          %v7754 = vmul.f32 %v7312, %v7312
          %v7755 = vmul.f32 %v7313, %v7313
          %v7829 = vrot.slane %v7683, 2
          %v7830 = vrot.slane %v7684, 2
          %v7831 = vsel %vm7387, %v7829, %v7830
          %v7832 = vrot.slane %v7685, 2
          %v7833 = vsel %vm7387, %v7830, %v7832
          %v7834 = vrot.slane %v7686, 2
          %v7835 = vsel %vm7387, %v7832, %v7834
          %v7836 = vrot.slane %v7687, 2
          %v7837 = vsel %vm7387, %v7834, %v7836
          %v7838 = vrot.slane %v7688, 2
          %v7839 = vsel %vm7387, %v7836, %v7838
          %v7840 = vrot.slane %v7689, 2
          %v7841 = vsel %vm7387, %v7838, %v7840
          %v7842 = vrot.slane %v7690, 2
          %v7843 = vsel %vm7387, %v7840, %v7842
          %v7844 = vrot.slane %v7691, 2
          %v7845 = vsel %vm7387, %v7842, %v7844
          %v7846 = vrot.slane %v7692, 2
          %v7847 = vsel %vm7387, %v7844, %v7846
          %v7848 = vrot.slane %v7693, 2
          %v7849 = vsel %vm7387, %v7846, %v7848
          %v7850 = vrot.slane %v7694, 2
          %v7851 = vsel %vm7387, %v7848, %v7850
          %v7852 = vrot.slane %v7695, 2
          %v7853 = vsel %vm7387, %v7850, %v7852
          %v7854 = vrot.slane %v7696, 2
          %v7855 = vsel %vm7387, %v7852, %v7854
          %v7856 = vrot.slane %v7697, 2
          %v7857 = vsel %vm7387, %v7854, %v7856
          %v7858 = vrot.slane %v7698, 2
          %v7859 = vsel %vm7387, %v7856, %v7858
          %v7860 = vrot.slane %v7699, 2
          %v7861 = vsel %vm7387, %v7858, %v7860
          %v7862 = vrot.slane %v7700, 2
          %v7863 = vsel %vm7387, %v7860, %v7862
          %v7864 = vrot.slane %v7701, 2
          %v7865 = vsel %vm7387, %v7862, %v7864
          %v7866 = vrot.slane %v7702, 2
          %v7867 = vsel %vm7387, %v7864, %v7866
          %v7868 = vrot.slane %v7703, 2
          %v7869 = vsel %vm7387, %v7866, %v7868
          %v7870 = vrot.slane %v7704, 2
          %v7871 = vsel %vm7387, %v7868, %v7870
          %v7872 = vrot.slane %v7705, 2
          %v7873 = vsel %vm7387, %v7870, %v7872
          %v7874 = vrot.slane %v7706, 2
          %v7875 = vsel %vm7387, %v7872, %v7874
          %v7876 = vrot.slane %v7707, 2
          %v7877 = vsel %vm7387, %v7874, %v7876
          %v7878 = vrot.slane %v7708, 2
          %v7879 = vsel %vm7387, %v7876, %v7878
          %v7880 = vrot.slane %v7709, 2
          %v7881 = vsel %vm7387, %v7878, %v7880
          %v7882 = vrot.slane %v7710, 2
          %v7883 = vsel %vm7387, %v7880, %v7882
          %v7884 = vrot.slane %v7711, 2
          %v7885 = vsel %vm7387, %v7882, %v7884
          %v7886 = vrot.slane %v7712, 2
          %v7887 = vsel %vm7387, %v7884, %v7886
          %v7888 = vrot.slane %v7713, 2
          %v7889 = vsel %vm7387, %v7886, %v7888
          %v7890 = vrot.slane %v7714, 2
          %v7891 = vsel %vm7387, %v7888, %v7890
          %v7892 = vrot.slane %v7715, 2
          %v7893 = vsel %vm7387, %v7890, %v7892
          %v7894 = vrot.slane %v7716, 2
          %v7895 = vsel %vm7387, %v7892, %v7894
          %v7896 = vrot.slane %v7717, 2
          %v7897 = vsel %vm7387, %v7894, %v7896
          %v7898 = vrot.slane %v7718, 2
          %v7899 = vsel %vm7387, %v7896, %v7898
          %v7900 = vrot.slane %v7719, 2
          %v7901 = vsel %vm7387, %v7898, %v7900
          %v7902 = vrot.slane %v7720, 2
          %v7903 = vsel %vm7387, %v7900, %v7902
          %v7904 = vrot.slane %v7721, 2
          %v7905 = vsel %vm7387, %v7902, %v7904
          %v7906 = vrot.slane %v7722, 2
          %v7907 = vsel %vm7387, %v7904, %v7906
          %v7908 = vrot.slane %v7723, 2
          %v7909 = vsel %vm7387, %v7906, %v7908
          %v7910 = vrot.slane %v7724, 2
          %v7911 = vsel %vm7387, %v7908, %v7910
          %v7912 = vrot.slane %v7725, 2
          %v7913 = vsel %vm7387, %v7910, %v7912
          %v7914 = vrot.slane %v7726, 2
          %v7915 = vsel %vm7387, %v7912, %v7914
          %v7916 = vrot.slane %v7727, 2
          %v7917 = vsel %vm7387, %v7914, %v7916
          %v7918 = vrot.slane %v7728, 2
          %v7919 = vsel %vm7387, %v7916, %v7918
          %v7920 = vrot.slane %v7729, 2
          %v7921 = vsel %vm7387, %v7918, %v7920
          %v7922 = vrot.slane %v7730, 2
          %v7923 = vsel %vm7387, %v7920, %v7922
          %v7924 = vrot.slane %v7731, 2
          %v7925 = vsel %vm7387, %v7922, %v7924
          %v7926 = vrot.slane %v7732, 2
          %v7927 = vsel %vm7387, %v7924, %v7926
          %v7928 = vrot.slane %v7733, 2
          %v7929 = vsel %vm7387, %v7926, %v7928
          %v7930 = vrot.slane %v7734, 2
          %v7931 = vsel %vm7387, %v7928, %v7930
          %v7932 = vrot.slane %v7735, 2
          %v7933 = vsel %vm7387, %v7930, %v7932
          %v7934 = vrot.slane %v7736, 2
          %v7935 = vsel %vm7387, %v7932, %v7934
          %v7936 = vrot.slane %v7737, 2
          %v7937 = vsel %vm7387, %v7934, %v7936
          %v7938 = vrot.slane %v7738, 2
          %v7939 = vsel %vm7387, %v7936, %v7938
          %v7940 = vrot.slane %v7739, 2
          %v7941 = vsel %vm7387, %v7938, %v7940
          %v7942 = vrot.slane %v7740, 2
          %v7943 = vsel %vm7387, %v7940, %v7942
          %v7944 = vrot.slane %v7741, 2
          %v7945 = vsel %vm7387, %v7942, %v7944
          %v7946 = vrot.slane %v7742, 2
          %v7947 = vsel %vm7387, %v7944, %v7946
          %v7948 = vrot.slane %v7743, 2
          %v7949 = vsel %vm7387, %v7946, %v7948
          %v7950 = vrot.slane %v7744, 2
          %v7951 = vsel %vm7387, %v7948, %v7950
          %v7952 = vrot.slane %v7745, 2
          %v7953 = vsel %vm7387, %v7950, %v7952
          %v7954 = vrot.slane %v7746, 2
          %v7955 = vsel %vm7387, %v7952, %v7954
          %v7956 = vrot.slane %v7747, 2
          %v7957 = vsel %vm7387, %v7954, %v7956
          %v7958 = vrot.slane %v7748, 2
          %v7959 = vsel %vm7387, %v7956, %v7958
          %v7960 = vrot.slane %v7749, 2
          %v7961 = vsel %vm7387, %v7958, %v7960
          %v7962 = vrot.slane %v7750, 2
          %v7963 = vsel %vm7387, %v7960, %v7962
          %v7964 = vrot.slane %v7751, 2
          %v7965 = vsel %vm7387, %v7962, %v7964
          %v7966 = vrot.slane %v7752, 2
          %v7967 = vsel %vm7387, %v7964, %v7966
          %v7968 = vrot.slane %v7753, 2
          %v7969 = vsel %vm7387, %v7966, %v7968
          %v7970 = vrot.slane %v7754, 2
          %v7971 = vsel %vm7387, %v7968, %v7970
          %v7972 = vrot.slane %v7755, 2
          %v7973 = vsel %vm7387, %v7970, %v7972
          %v8046 = vadd.f32 %v7831, %v7833
          %v8047 = vadd.f32 %v8046, %v7835
          %v8048 = vadd.f32 %v8047, %v7837
          %v8049 = vadd.f32 %v8048, %v7839
          %v8050 = vadd.f32 %v8049, %v7841
          %v8051 = vadd.f32 %v8050, %v7843
          %v8052 = vadd.f32 %v8051, %v7845
          %v8053 = vadd.f32 %v8052, %v7847
          %v8054 = vadd.f32 %v8053, %v7849
          %v8055 = vadd.f32 %v8054, %v7851
          %v8056 = vadd.f32 %v8055, %v7853
          %v8057 = vadd.f32 %v8056, %v7855
          %v8058 = vadd.f32 %v8057, %v7857
          %v8059 = vadd.f32 %v8058, %v7859
          %v8060 = vadd.f32 %v8059, %v7861
          %v8061 = vadd.f32 %v8060, %v7863
          %v8062 = vadd.f32 %v8061, %v7865
          %v8063 = vadd.f32 %v8062, %v7867
          %v8064 = vadd.f32 %v8063, %v7869
          %v8065 = vadd.f32 %v8064, %v7871
          %v8066 = vadd.f32 %v8065, %v7873
          %v8067 = vadd.f32 %v8066, %v7875
          %v8068 = vadd.f32 %v8067, %v7877
          %v8069 = vadd.f32 %v8068, %v7879
          %v8070 = vadd.f32 %v8069, %v7881
          %v8071 = vadd.f32 %v8070, %v7883
          %v8072 = vadd.f32 %v8071, %v7885
          %v8073 = vadd.f32 %v8072, %v7887
          %v8074 = vadd.f32 %v8073, %v7889
          %v8075 = vadd.f32 %v8074, %v7891
          %v8076 = vadd.f32 %v8075, %v7893
          %v8077 = vadd.f32 %v8076, %v7895
          %v8078 = vadd.f32 %v8077, %v7897
          %v8079 = vadd.f32 %v8078, %v7899
          %v8080 = vadd.f32 %v8079, %v7901
          %v8081 = vadd.f32 %v8080, %v7903
          %v8082 = vadd.f32 %v8081, %v7905
          %v8083 = vadd.f32 %v8082, %v7907
          %v8084 = vadd.f32 %v8083, %v7909
          %v8085 = vadd.f32 %v8084, %v7911
          %v8086 = vadd.f32 %v8085, %v7913
          %v8087 = vadd.f32 %v8086, %v7915
          %v8088 = vadd.f32 %v8087, %v7917
          %v8089 = vadd.f32 %v8088, %v7919
          %v8090 = vadd.f32 %v8089, %v7921
          %v8091 = vadd.f32 %v8090, %v7923
          %v8092 = vadd.f32 %v8091, %v7925
          %v8093 = vadd.f32 %v8092, %v7927
          %v8094 = vadd.f32 %v8093, %v7929
          %v8095 = vadd.f32 %v8094, %v7931
          %v8096 = vadd.f32 %v8095, %v7933
          %v8097 = vadd.f32 %v8096, %v7935
          %v8098 = vadd.f32 %v8097, %v7937
          %v8099 = vadd.f32 %v8098, %v7939
          %v8100 = vadd.f32 %v8099, %v7941
          %v8101 = vadd.f32 %v8100, %v7943
          %v8102 = vadd.f32 %v8101, %v7945
          %v8103 = vadd.f32 %v8102, %v7947
          %v8104 = vadd.f32 %v8103, %v7949
          %v8105 = vadd.f32 %v8104, %v7951
          %v8106 = vadd.f32 %v8105, %v7953
          %v8107 = vadd.f32 %v8106, %v7955
          %v8108 = vadd.f32 %v8107, %v7957
          %v8109 = vadd.f32 %v8108, %v7959
          %v8110 = vadd.f32 %v8109, %v7961
          %v8111 = vadd.f32 %v8110, %v7963
          %v8112 = vadd.f32 %v8111, %v7965
          %v8113 = vadd.f32 %v8112, %v7967
          %v8114 = vadd.f32 %v8113, %v7969
          %v8115 = vadd.f32 %v8114, %v7971
          %v8116 = vadd.f32 %v8115, %v7973
          %v8117 = vrot.slane %v8116, 4
          %v8118 = vadd.f32 %v8116, %v8117
          %v8119 = vrot.slane %v8118, 2
          %v8120 = vadd.f32 %v8118, %v8119
          %v8121 = vrot.slane %v8120, 1
          %v8122 = vadd.f32 %v8120, %v8121
          %v8123 = vadd.f32 %v1058, %v8122
        $region61: #{tpu_custom_call.1} parent=47 // loop_footer
          %s1054 = sadd.s32 %s1052, 1
        $region62: #{tpu_custom_call.1} parent=47 // loop_footer_branch
          %1051 = sbr.rel target = $region58
        $region63: #{tpu_custom_call.1} parent=47 // loop_exit
          _
        %s8124 = sld [smem:[#allocation6 + %s39]]
        %s8125 = scvt.s32.f32 %s8124
        %8127 = vrot.lane.b32.xlu0 %v1057, 64
        %v8128 = vpop.permute.xlu0 %8127
        %v8130 = vadd.f32 %v1057, %v8128
        %8132 = vrot.lane.b32.xlu0 %v1058, 64
        %v8133 = vpop.permute.xlu0 %8132
        %v8135 = vadd.f32 %v1058, %v8133
        %v8136 = vstv %s8125
        %v8137 = vrcp.pop %v8136
        %v8138 = vmul.f32 %v8130, %v8137
        %v8139 = vmul.f32 %v8135, %v8137
        %v8140 = vmul.f32 %v8138, %v8138
        %v8141 = vsub.f32 %v8139, %v8140
        %v8142 = vmax.f32 %v8141, 0.0
        %v8143 = vadd.f32 %v8142, 1e-05
        %v8144 = vrsqrt.pop %v8143
        %8146 = vrot.lane.b32.xlu0 %v8138, 64
        %v8147 = vpop.permute.xlu0 %8146
        %vm8149 = vcmask 523264
        %v8150 = vsel %vm8149, %v8138, %v8147
        %8152 = vrot.lane.b32.xlu0 %v8144, 64
        %v8153 = vpop.permute.xlu0 %8152
        %v8155 = vsel %vm8149, %v8144, %v8153
        // Predicated region
        $region64: #{tpu_custom_call.1} parent=47 // pred_check
          %p8156 = pneg %p384
        $region65: #{tpu_custom_call.1} parent=47 // pred_check_branch
          %8158 = sbr.rel (%p8156) target = $region67
        $region66: #{tpu_custom_call.1} parent=47 // pred_region
          // While loop
          $region68: #{tpu_custom_call.1} parent=66 // loop_pre_header
            _
          $region69: #{tpu_custom_call.1} parent=66 // loop_header
            %s8160 = sphi 0, %s8162
            %p8161 = scmp.ge.s32.totalorder %s8160, %s978
          $region70: #{tpu_custom_call.1} parent=66 // loop_header_branch
            %8164 = sbr.rel (%p8161) target = $region74
          $region71: #{tpu_custom_call.1} parent=66 // loop_body
            %s8165 = smul.u32 %s8160, 576
            %s8166 = scalar_lea.vmem [#allocation3], %s8165
            %v8167 = vld [vmem:[%s8166] sm:$0xff]
            %v8168 = vld [vmem:[%s8166 + $0x8] sm:$0xff]
            %v8169 = vld [vmem:[%s8166 + $0x10] sm:$0xff]
            %v8170 = vld [vmem:[%s8166 + $0x18] sm:$0xff]
            %v8171 = vld [vmem:[%s8166 + $0x20] sm:$0xff]
            %v8172 = vld [vmem:[%s8166 + $0x28] sm:$0xff]
            %v8173 = vld [vmem:[%s8166 + $0x30] sm:$0xff]
            %v8174 = vld [vmem:[%s8166 + $0x38] sm:$0xff]
            %v8175 = vld [vmem:[%s8166 + $0x40] sm:$0xff]
            %v8176 = vld [vmem:[%s8166 + $0x48] sm:$0xff]
            %v8177 = vld [vmem:[%s8166 + $0x50] sm:$0xff]
            %v8178 = vld [vmem:[%s8166 + $0x58] sm:$0xff]
            %v8179 = vld [vmem:[%s8166 + $0x60] sm:$0xff]
            %v8180 = vld [vmem:[%s8166 + $0x68] sm:$0xff]
            %v8181 = vld [vmem:[%s8166 + $0x70] sm:$0xff]
            %v8182 = vld [vmem:[%s8166 + $0x78] sm:$0xff]
            %v8183 = vld [vmem:[%s8166 + $0x80] sm:$0xff]
            %v8184 = vld [vmem:[%s8166 + $0x88] sm:$0xff]
            %v8185 = vld [vmem:[%s8166 + $0x90] sm:$0xff]
            %v8186 = vld [vmem:[%s8166 + $0x98] sm:$0xff]
            %v8187 = vld [vmem:[%s8166 + $0xa0] sm:$0xff]
            %v8188 = vld [vmem:[%s8166 + $0xa8] sm:$0xff]
            %v8189 = vld [vmem:[%s8166 + $0xb0] sm:$0xff]
            %v8190 = vld [vmem:[%s8166 + $0xb8] sm:$0xff]
            %v8191 = vld [vmem:[%s8166 + $0xc0] sm:$0xff]
            %v8192 = vld [vmem:[%s8166 + $0xc8] sm:$0xff]
            %v8193 = vld [vmem:[%s8166 + $0xd0] sm:$0xff]
            %v8194 = vld [vmem:[%s8166 + $0xd8] sm:$0xff]
            %v8195 = vld [vmem:[%s8166 + $0xe0] sm:$0xff]
            %v8196 = vld [vmem:[%s8166 + $0xe8] sm:$0xff]
            %v8197 = vld [vmem:[%s8166 + $0xf0] sm:$0xff]
            %v8198 = vld [vmem:[%s8166 + $0xf8] sm:$0xff]
            %v8199 = vld [vmem:[%s8166 + $0x100] sm:$0xff]
            %v8200 = vld [vmem:[%s8166 + $0x108] sm:$0xff]
            %v8201 = vld [vmem:[%s8166 + $0x110] sm:$0xff]
            %v8202 = vld [vmem:[%s8166 + $0x118] sm:$0xff]
            %v8203 = vld [vmem:[%s8166 + $0x120] sm:$0xff]
            %v8204 = vld [vmem:[%s8166 + $0x128] sm:$0xff]
            %v8205 = vld [vmem:[%s8166 + $0x130] sm:$0xff]
            %v8206 = vld [vmem:[%s8166 + $0x138] sm:$0xff]
            %v8207 = vld [vmem:[%s8166 + $0x140] sm:$0xff]
            %v8208 = vld [vmem:[%s8166 + $0x148] sm:$0xff]
            %v8209 = vld [vmem:[%s8166 + $0x150] sm:$0xff]
            %v8210 = vld [vmem:[%s8166 + $0x158] sm:$0xff]
            %v8211 = vld [vmem:[%s8166 + $0x160] sm:$0xff]
            %v8212 = vld [vmem:[%s8166 + $0x168] sm:$0xff]
            %v8213 = vld [vmem:[%s8166 + $0x170] sm:$0xff]
            %v8214 = vld [vmem:[%s8166 + $0x178] sm:$0xff]
            %v8215 = vld [vmem:[%s8166 + $0x180] sm:$0xff]
            %v8216 = vld [vmem:[%s8166 + $0x188] sm:$0xff]
            %v8217 = vld [vmem:[%s8166 + $0x190] sm:$0xff]
            %v8218 = vld [vmem:[%s8166 + $0x198] sm:$0xff]
            %v8219 = vld [vmem:[%s8166 + $0x1a0] sm:$0xff]
            %v8220 = vld [vmem:[%s8166 + $0x1a8] sm:$0xff]
            %v8221 = vld [vmem:[%s8166 + $0x1b0] sm:$0xff]
            %v8222 = vld [vmem:[%s8166 + $0x1b8] sm:$0xff]
            %v8223 = vld [vmem:[%s8166 + $0x1c0] sm:$0xff]
            %v8224 = vld [vmem:[%s8166 + $0x1c8] sm:$0xff]
            %v8225 = vld [vmem:[%s8166 + $0x1d0] sm:$0xff]
            %v8226 = vld [vmem:[%s8166 + $0x1d8] sm:$0xff]
            %v8227 = vld [vmem:[%s8166 + $0x1e0] sm:$0xff]
            %v8228 = vld [vmem:[%s8166 + $0x1e8] sm:$0xff]
            %v8229 = vld [vmem:[%s8166 + $0x1f0] sm:$0xff]
            %v8230 = vld [vmem:[%s8166 + $0x1f8] sm:$0xff]
            %v8231 = vld [vmem:[%s8166 + $0x200] sm:$0xff]
            %v8232 = vld [vmem:[%s8166 + $0x208] sm:$0xff]
            %v8233 = vld [vmem:[%s8166 + $0x210] sm:$0xff]
            %v8234 = vld [vmem:[%s8166 + $0x218] sm:$0xff]
            %v8235 = vld [vmem:[%s8166 + $0x220] sm:$0xff]
            %v8236 = vld [vmem:[%s8166 + $0x228] sm:$0xff]
            %v8237 = vld [vmem:[%s8166 + $0x230] sm:$0xff]
            %v8238 = vld [vmem:[%s8166 + $0x238] sm:$0xff]
            %v8239 = vmax.f32 %v8167, 0.0
            %v8240 = vmax.f32 %v8168, 0.0
            %v8241 = vmax.f32 %v8169, 0.0
            %v8242 = vmax.f32 %v8170, 0.0
            %v8243 = vmax.f32 %v8171, 0.0
            %v8244 = vmax.f32 %v8172, 0.0
            %v8245 = vmax.f32 %v8173, 0.0
            %v8246 = vmax.f32 %v8174, 0.0
            %v8247 = vmax.f32 %v8175, 0.0
            %v8248 = vmax.f32 %v8176, 0.0
            %v8249 = vmax.f32 %v8177, 0.0
            %v8250 = vmax.f32 %v8178, 0.0
            %v8251 = vmax.f32 %v8179, 0.0
            %v8252 = vmax.f32 %v8180, 0.0
            %v8253 = vmax.f32 %v8181, 0.0
            %v8254 = vmax.f32 %v8182, 0.0
            %v8255 = vmax.f32 %v8183, 0.0
            %v8256 = vmax.f32 %v8184, 0.0
            %v8257 = vmax.f32 %v8185, 0.0
            %v8258 = vmax.f32 %v8186, 0.0
            %v8259 = vmax.f32 %v8187, 0.0
            %v8260 = vmax.f32 %v8188, 0.0
            %v8261 = vmax.f32 %v8189, 0.0
            %v8262 = vmax.f32 %v8190, 0.0
            %v8263 = vmax.f32 %v8191, 0.0
            %v8264 = vmax.f32 %v8192, 0.0
            %v8265 = vmax.f32 %v8193, 0.0
            %v8266 = vmax.f32 %v8194, 0.0
            %v8267 = vmax.f32 %v8195, 0.0
            %v8268 = vmax.f32 %v8196, 0.0
            %v8269 = vmax.f32 %v8197, 0.0
            %v8270 = vmax.f32 %v8198, 0.0
            %v8271 = vmax.f32 %v8199, 0.0
            %v8272 = vmax.f32 %v8200, 0.0
            %v8273 = vmax.f32 %v8201, 0.0
            %v8274 = vmax.f32 %v8202, 0.0
            %v8275 = vmax.f32 %v8203, 0.0
            %v8276 = vmax.f32 %v8204, 0.0
            %v8277 = vmax.f32 %v8205, 0.0
            %v8278 = vmax.f32 %v8206, 0.0
            %v8279 = vmax.f32 %v8207, 0.0
            %v8280 = vmax.f32 %v8208, 0.0
            %v8281 = vmax.f32 %v8209, 0.0
            %v8282 = vmax.f32 %v8210, 0.0
            %v8283 = vmax.f32 %v8211, 0.0
            %v8284 = vmax.f32 %v8212, 0.0
            %v8285 = vmax.f32 %v8213, 0.0
            %v8286 = vmax.f32 %v8214, 0.0
            %v8287 = vmax.f32 %v8215, 0.0
            %v8288 = vmax.f32 %v8216, 0.0
            %v8289 = vmax.f32 %v8217, 0.0
            %v8290 = vmax.f32 %v8218, 0.0
            %v8291 = vmax.f32 %v8219, 0.0
            %v8292 = vmax.f32 %v8220, 0.0
            %v8293 = vmax.f32 %v8221, 0.0
            %v8294 = vmax.f32 %v8222, 0.0
            %v8295 = vmax.f32 %v8223, 0.0
            %v8296 = vmax.f32 %v8224, 0.0
            %v8297 = vmax.f32 %v8225, 0.0
            %v8298 = vmax.f32 %v8226, 0.0
            %v8299 = vmax.f32 %v8227, 0.0
            %v8300 = vmax.f32 %v8228, 0.0
            %v8301 = vmax.f32 %v8229, 0.0
            %v8302 = vmax.f32 %v8230, 0.0
            %v8303 = vmax.f32 %v8231, 0.0
            %v8304 = vmax.f32 %v8232, 0.0
            %v8305 = vmax.f32 %v8233, 0.0
            %v8306 = vmax.f32 %v8234, 0.0
            %v8307 = vmax.f32 %v8235, 0.0
            %v8308 = vmax.f32 %v8236, 0.0
            %v8309 = vmax.f32 %v8237, 0.0
            %v8310 = vmax.f32 %v8238, 0.0
            %s8311 = scalar_lea.vmem [#allocation2], %s8165
            %8312 = vst [vmem:[%s8311] sm:$0xff] %v8239
            %8313 = vst [vmem:[%s8311 + $0x8] sm:$0xff] %v8240
            %8314 = vst [vmem:[%s8311 + $0x10] sm:$0xff] %v8241
            %8315 = vst [vmem:[%s8311 + $0x18] sm:$0xff] %v8242
            %8316 = vst [vmem:[%s8311 + $0x20] sm:$0xff] %v8243
            %8317 = vst [vmem:[%s8311 + $0x28] sm:$0xff] %v8244
            %8318 = vst [vmem:[%s8311 + $0x30] sm:$0xff] %v8245
            %8319 = vst [vmem:[%s8311 + $0x38] sm:$0xff] %v8246
            %8320 = vst [vmem:[%s8311 + $0x40] sm:$0xff] %v8247
            %8321 = vst [vmem:[%s8311 + $0x48] sm:$0xff] %v8248
            %8322 = vst [vmem:[%s8311 + $0x50] sm:$0xff] %v8249
            %8323 = vst [vmem:[%s8311 + $0x58] sm:$0xff] %v8250
            %8324 = vst [vmem:[%s8311 + $0x60] sm:$0xff] %v8251
            %8325 = vst [vmem:[%s8311 + $0x68] sm:$0xff] %v8252
            %8326 = vst [vmem:[%s8311 + $0x70] sm:$0xff] %v8253
            %8327 = vst [vmem:[%s8311 + $0x78] sm:$0xff] %v8254
            %8328 = vst [vmem:[%s8311 + $0x80] sm:$0xff] %v8255
            %8329 = vst [vmem:[%s8311 + $0x88] sm:$0xff] %v8256
            %8330 = vst [vmem:[%s8311 + $0x90] sm:$0xff] %v8257
            %8331 = vst [vmem:[%s8311 + $0x98] sm:$0xff] %v8258
            %8332 = vst [vmem:[%s8311 + $0xa0] sm:$0xff] %v8259
            %8333 = vst [vmem:[%s8311 + $0xa8] sm:$0xff] %v8260
            %8334 = vst [vmem:[%s8311 + $0xb0] sm:$0xff] %v8261
            %8335 = vst [vmem:[%s8311 + $0xb8] sm:$0xff] %v8262
            %8336 = vst [vmem:[%s8311 + $0xc0] sm:$0xff] %v8263
            %8337 = vst [vmem:[%s8311 + $0xc8] sm:$0xff] %v8264
            %8338 = vst [vmem:[%s8311 + $0xd0] sm:$0xff] %v8265
            %8339 = vst [vmem:[%s8311 + $0xd8] sm:$0xff] %v8266
            %8340 = vst [vmem:[%s8311 + $0xe0] sm:$0xff] %v8267
            %8341 = vst [vmem:[%s8311 + $0xe8] sm:$0xff] %v8268
            %8342 = vst [vmem:[%s8311 + $0xf0] sm:$0xff] %v8269
            %8343 = vst [vmem:[%s8311 + $0xf8] sm:$0xff] %v8270
            %8344 = vst [vmem:[%s8311 + $0x100] sm:$0xff] %v8271
            %8345 = vst [vmem:[%s8311 + $0x108] sm:$0xff] %v8272
            %8346 = vst [vmem:[%s8311 + $0x110] sm:$0xff] %v8273
            %8347 = vst [vmem:[%s8311 + $0x118] sm:$0xff] %v8274
            %8348 = vst [vmem:[%s8311 + $0x120] sm:$0xff] %v8275
            %8349 = vst [vmem:[%s8311 + $0x128] sm:$0xff] %v8276
            %8350 = vst [vmem:[%s8311 + $0x130] sm:$0xff] %v8277
            %8351 = vst [vmem:[%s8311 + $0x138] sm:$0xff] %v8278
            %8352 = vst [vmem:[%s8311 + $0x140] sm:$0xff] %v8279
            %8353 = vst [vmem:[%s8311 + $0x148] sm:$0xff] %v8280
            %8354 = vst [vmem:[%s8311 + $0x150] sm:$0xff] %v8281
            %8355 = vst [vmem:[%s8311 + $0x158] sm:$0xff] %v8282
            %8356 = vst [vmem:[%s8311 + $0x160] sm:$0xff] %v8283
            %8357 = vst [vmem:[%s8311 + $0x168] sm:$0xff] %v8284
            %8358 = vst [vmem:[%s8311 + $0x170] sm:$0xff] %v8285
            %8359 = vst [vmem:[%s8311 + $0x178] sm:$0xff] %v8286
            %8360 = vst [vmem:[%s8311 + $0x180] sm:$0xff] %v8287
            %8361 = vst [vmem:[%s8311 + $0x188] sm:$0xff] %v8288
            %8362 = vst [vmem:[%s8311 + $0x190] sm:$0xff] %v8289
            %8363 = vst [vmem:[%s8311 + $0x198] sm:$0xff] %v8290
            %8364 = vst [vmem:[%s8311 + $0x1a0] sm:$0xff] %v8291
            %8365 = vst [vmem:[%s8311 + $0x1a8] sm:$0xff] %v8292
            %8366 = vst [vmem:[%s8311 + $0x1b0] sm:$0xff] %v8293
            %8367 = vst [vmem:[%s8311 + $0x1b8] sm:$0xff] %v8294
            %8368 = vst [vmem:[%s8311 + $0x1c0] sm:$0xff] %v8295
            %8369 = vst [vmem:[%s8311 + $0x1c8] sm:$0xff] %v8296
            %8370 = vst [vmem:[%s8311 + $0x1d0] sm:$0xff] %v8297
            %8371 = vst [vmem:[%s8311 + $0x1d8] sm:$0xff] %v8298
            %8372 = vst [vmem:[%s8311 + $0x1e0] sm:$0xff] %v8299
            %8373 = vst [vmem:[%s8311 + $0x1e8] sm:$0xff] %v8300
            %8374 = vst [vmem:[%s8311 + $0x1f0] sm:$0xff] %v8301
            %8375 = vst [vmem:[%s8311 + $0x1f8] sm:$0xff] %v8302
            %8376 = vst [vmem:[%s8311 + $0x200] sm:$0xff] %v8303
            %8377 = vst [vmem:[%s8311 + $0x208] sm:$0xff] %v8304
            %8378 = vst [vmem:[%s8311 + $0x210] sm:$0xff] %v8305
            %8379 = vst [vmem:[%s8311 + $0x218] sm:$0xff] %v8306
            %8380 = vst [vmem:[%s8311 + $0x220] sm:$0xff] %v8307
            %8381 = vst [vmem:[%s8311 + $0x228] sm:$0xff] %v8308
            %8382 = vst [vmem:[%s8311 + $0x230] sm:$0xff] %v8309
            %8383 = vst [vmem:[%s8311 + $0x238] sm:$0xff] %v8310
          $region72: #{tpu_custom_call.1} parent=66 // loop_footer
            %s8162 = sadd.s32 %s8160, 1
          $region73: #{tpu_custom_call.1} parent=66 // loop_footer_branch
            %8159 = sbr.rel target = $region69
          $region74: #{tpu_custom_call.1} parent=66 // loop_exit
            _
        $region67: #{tpu_custom_call.1} parent=47 // pred_fallthru
          _
        %p8384 = scmp.gt.s32.totalorder %s39, 0
        %p8385 = scmp.lt.s32.totalorder %s39, 19
        %p8386 = pnand %p8384, %p8385
        %p8387 = pneg %p8386
        // Predicated region
        $region75: #{tpu_custom_call.1} parent=47 // pred_check
          _
        $region76: #{tpu_custom_call.1} parent=47 // pred_check_branch
          %8389 = sbr.rel (%p8386) target = $region78
        $region77: #{tpu_custom_call.1} parent=47 // pred_region
          // While loop
          $region79: #{tpu_custom_call.1} parent=77 // loop_pre_header
            _
          $region80: #{tpu_custom_call.1} parent=77 // loop_header
            %s8391 = sphi 0, %s8393
            %p8392 = scmp.ge.s32.totalorder %s8391, %s978
          $region81: #{tpu_custom_call.1} parent=77 // loop_header_branch
            %8395 = sbr.rel (%p8392) target = $region85
          $region82: #{tpu_custom_call.1} parent=77 // loop_body
            %s8396 = smul.u32 %s8391, 576
            %s8397 = scalar_lea.vmem [#allocation3], %s8396
            %v8398 = vld [vmem:[%s8397] sm:$0xff]
            %v8399 = vld [vmem:[%s8397 + $0x8] sm:$0xff]
            %v8400 = vld [vmem:[%s8397 + $0x10] sm:$0xff]
            %v8401 = vld [vmem:[%s8397 + $0x18] sm:$0xff]
            %v8402 = vld [vmem:[%s8397 + $0x20] sm:$0xff]
            %v8403 = vld [vmem:[%s8397 + $0x28] sm:$0xff]
            %v8404 = vld [vmem:[%s8397 + $0x30] sm:$0xff]
            %v8405 = vld [vmem:[%s8397 + $0x38] sm:$0xff]
            %v8406 = vld [vmem:[%s8397 + $0x40] sm:$0xff]
            %v8407 = vld [vmem:[%s8397 + $0x48] sm:$0xff]
            %v8408 = vld [vmem:[%s8397 + $0x50] sm:$0xff]
            %v8409 = vld [vmem:[%s8397 + $0x58] sm:$0xff]
            %v8410 = vld [vmem:[%s8397 + $0x60] sm:$0xff]
            %v8411 = vld [vmem:[%s8397 + $0x68] sm:$0xff]
            %v8412 = vld [vmem:[%s8397 + $0x70] sm:$0xff]
            %v8413 = vld [vmem:[%s8397 + $0x78] sm:$0xff]
            %v8414 = vld [vmem:[%s8397 + $0x80] sm:$0xff]
            %v8415 = vld [vmem:[%s8397 + $0x88] sm:$0xff]
            %v8416 = vld [vmem:[%s8397 + $0x90] sm:$0xff]
            %v8417 = vld [vmem:[%s8397 + $0x98] sm:$0xff]
            %v8418 = vld [vmem:[%s8397 + $0xa0] sm:$0xff]
            %v8419 = vld [vmem:[%s8397 + $0xa8] sm:$0xff]
            %v8420 = vld [vmem:[%s8397 + $0xb0] sm:$0xff]
            %v8421 = vld [vmem:[%s8397 + $0xb8] sm:$0xff]
            %v8422 = vld [vmem:[%s8397 + $0xc0] sm:$0xff]
            %v8423 = vld [vmem:[%s8397 + $0xc8] sm:$0xff]
            %v8424 = vld [vmem:[%s8397 + $0xd0] sm:$0xff]
            %v8425 = vld [vmem:[%s8397 + $0xd8] sm:$0xff]
            %v8426 = vld [vmem:[%s8397 + $0xe0] sm:$0xff]
            %v8427 = vld [vmem:[%s8397 + $0xe8] sm:$0xff]
            %v8428 = vld [vmem:[%s8397 + $0xf0] sm:$0xff]
            %v8429 = vld [vmem:[%s8397 + $0xf8] sm:$0xff]
            %v8430 = vld [vmem:[%s8397 + $0x100] sm:$0xff]
            %v8431 = vld [vmem:[%s8397 + $0x108] sm:$0xff]
            %v8432 = vld [vmem:[%s8397 + $0x110] sm:$0xff]
            %v8433 = vld [vmem:[%s8397 + $0x118] sm:$0xff]
            %v8434 = vld [vmem:[%s8397 + $0x120] sm:$0xff]
            %v8435 = vld [vmem:[%s8397 + $0x128] sm:$0xff]
            %v8436 = vld [vmem:[%s8397 + $0x130] sm:$0xff]
            %v8437 = vld [vmem:[%s8397 + $0x138] sm:$0xff]
            %v8438 = vld [vmem:[%s8397 + $0x140] sm:$0xff]
            %v8439 = vld [vmem:[%s8397 + $0x148] sm:$0xff]
            %v8440 = vld [vmem:[%s8397 + $0x150] sm:$0xff]
            %v8441 = vld [vmem:[%s8397 + $0x158] sm:$0xff]
            %v8442 = vld [vmem:[%s8397 + $0x160] sm:$0xff]
            %v8443 = vld [vmem:[%s8397 + $0x168] sm:$0xff]
            %v8444 = vld [vmem:[%s8397 + $0x170] sm:$0xff]
            %v8445 = vld [vmem:[%s8397 + $0x178] sm:$0xff]
            %v8446 = vld [vmem:[%s8397 + $0x180] sm:$0xff]
            %v8447 = vld [vmem:[%s8397 + $0x188] sm:$0xff]
            %v8448 = vld [vmem:[%s8397 + $0x190] sm:$0xff]
            %v8449 = vld [vmem:[%s8397 + $0x198] sm:$0xff]
            %v8450 = vld [vmem:[%s8397 + $0x1a0] sm:$0xff]
            %v8451 = vld [vmem:[%s8397 + $0x1a8] sm:$0xff]
            %v8452 = vld [vmem:[%s8397 + $0x1b0] sm:$0xff]
            %v8453 = vld [vmem:[%s8397 + $0x1b8] sm:$0xff]
            %v8454 = vld [vmem:[%s8397 + $0x1c0] sm:$0xff]
            %v8455 = vld [vmem:[%s8397 + $0x1c8] sm:$0xff]
            %v8456 = vld [vmem:[%s8397 + $0x1d0] sm:$0xff]
            %v8457 = vld [vmem:[%s8397 + $0x1d8] sm:$0xff]
            %v8458 = vld [vmem:[%s8397 + $0x1e0] sm:$0xff]
            %v8459 = vld [vmem:[%s8397 + $0x1e8] sm:$0xff]
            %v8460 = vld [vmem:[%s8397 + $0x1f0] sm:$0xff]
            %v8461 = vld [vmem:[%s8397 + $0x1f8] sm:$0xff]
            %v8462 = vld [vmem:[%s8397 + $0x200] sm:$0xff]
            %v8463 = vld [vmem:[%s8397 + $0x208] sm:$0xff]
            %v8464 = vld [vmem:[%s8397 + $0x210] sm:$0xff]
            %v8465 = vld [vmem:[%s8397 + $0x218] sm:$0xff]
            %v8466 = vld [vmem:[%s8397 + $0x220] sm:$0xff]
            %v8467 = vld [vmem:[%s8397 + $0x228] sm:$0xff]
            %v8468 = vld [vmem:[%s8397 + $0x230] sm:$0xff]
            %v8469 = vld [vmem:[%s8397 + $0x238] sm:$0xff]
            %v8470 = vlaneseq
            %v8471 = vshrl.u32 %v8470, 7
            %v8472 = vsub.s32 0, %v8471
            %v8473 = vrot.slane %v8150, %v8472
            %v8474 = vsub.f32 %v8398, %v8473
            %v8475 = vsub.f32 %v8399, %v8473
            %v8476 = vsub.f32 %v8400, %v8473
            %v8477 = vsub.f32 %v8401, %v8473
            %v8478 = vsub.f32 %v8402, %v8473
            %v8479 = vsub.f32 %v8403, %v8473
            %v8480 = vsub.f32 %v8404, %v8473
            %v8481 = vsub.f32 %v8405, %v8473
            %v8482 = vsub.f32 %v8406, %v8473
            %v8483 = vsub.f32 %v8407, %v8473
            %v8484 = vsub.f32 %v8408, %v8473
            %v8485 = vsub.f32 %v8409, %v8473
            %v8486 = vsub.f32 %v8410, %v8473
            %v8487 = vsub.f32 %v8411, %v8473
            %v8488 = vsub.f32 %v8412, %v8473
            %v8489 = vsub.f32 %v8413, %v8473
            %v8490 = vsub.f32 %v8414, %v8473
            %v8491 = vsub.f32 %v8415, %v8473
            %v8492 = vsub.f32 %v8416, %v8473
            %v8493 = vsub.f32 %v8417, %v8473
            %v8494 = vsub.f32 %v8418, %v8473
            %v8495 = vsub.f32 %v8419, %v8473
            %v8496 = vsub.f32 %v8420, %v8473
            %v8497 = vsub.f32 %v8421, %v8473
            %v8498 = vsub.f32 %v8422, %v8473
            %v8499 = vsub.f32 %v8423, %v8473
            %v8500 = vsub.f32 %v8424, %v8473
            %v8501 = vsub.f32 %v8425, %v8473
            %v8502 = vsub.f32 %v8426, %v8473
            %v8503 = vsub.f32 %v8427, %v8473
            %v8504 = vsub.f32 %v8428, %v8473
            %v8505 = vsub.f32 %v8429, %v8473
            %v8506 = vsub.f32 %v8430, %v8473
            %v8507 = vsub.f32 %v8431, %v8473
            %v8508 = vsub.f32 %v8432, %v8473
            %v8509 = vsub.f32 %v8433, %v8473
            %v8510 = vsub.f32 %v8434, %v8473
            %v8511 = vsub.f32 %v8435, %v8473
            %v8512 = vsub.f32 %v8436, %v8473
            %v8513 = vsub.f32 %v8437, %v8473
            %v8514 = vsub.f32 %v8438, %v8473
            %v8515 = vsub.f32 %v8439, %v8473
            %v8516 = vsub.f32 %v8440, %v8473
            %v8517 = vsub.f32 %v8441, %v8473
            %v8518 = vsub.f32 %v8442, %v8473
            %v8519 = vsub.f32 %v8443, %v8473
            %v8520 = vsub.f32 %v8444, %v8473
            %v8521 = vsub.f32 %v8445, %v8473
            %v8522 = vsub.f32 %v8446, %v8473
            %v8523 = vsub.f32 %v8447, %v8473
            %v8524 = vsub.f32 %v8448, %v8473
            %v8525 = vsub.f32 %v8449, %v8473
            %v8526 = vsub.f32 %v8450, %v8473
            %v8527 = vsub.f32 %v8451, %v8473
            %v8528 = vsub.f32 %v8452, %v8473
            %v8529 = vsub.f32 %v8453, %v8473
            %v8530 = vsub.f32 %v8454, %v8473
            %v8531 = vsub.f32 %v8455, %v8473
            %v8532 = vsub.f32 %v8456, %v8473
            %v8533 = vsub.f32 %v8457, %v8473
            %v8534 = vsub.f32 %v8458, %v8473
            %v8535 = vsub.f32 %v8459, %v8473
            %v8536 = vsub.f32 %v8460, %v8473
            %v8537 = vsub.f32 %v8461, %v8473
            %v8538 = vsub.f32 %v8462, %v8473
            %v8539 = vsub.f32 %v8463, %v8473
            %v8540 = vsub.f32 %v8464, %v8473
            %v8541 = vsub.f32 %v8465, %v8473
            %v8542 = vsub.f32 %v8466, %v8473
            %v8543 = vsub.f32 %v8467, %v8473
            %v8544 = vsub.f32 %v8468, %v8473
            %v8545 = vsub.f32 %v8469, %v8473
            %v8546 = vlaneseq
            %v8547 = vshrl.u32 %v8546, 7
            %v8548 = vsub.s32 0, %v8547
            %v8549 = vrot.slane %v8155, %v8548
            %v8550 = vmul.f32 %v8474, %v8549
            %v8551 = vmul.f32 %v8475, %v8549
            %v8552 = vmul.f32 %v8476, %v8549
            %v8553 = vmul.f32 %v8477, %v8549
            %v8554 = vmul.f32 %v8478, %v8549
            %v8555 = vmul.f32 %v8479, %v8549
            %v8556 = vmul.f32 %v8480, %v8549
            %v8557 = vmul.f32 %v8481, %v8549
            %v8558 = vmul.f32 %v8482, %v8549
            %v8559 = vmul.f32 %v8483, %v8549
            %v8560 = vmul.f32 %v8484, %v8549
            %v8561 = vmul.f32 %v8485, %v8549
            %v8562 = vmul.f32 %v8486, %v8549
            %v8563 = vmul.f32 %v8487, %v8549
            %v8564 = vmul.f32 %v8488, %v8549
            %v8565 = vmul.f32 %v8489, %v8549
            %v8566 = vmul.f32 %v8490, %v8549
            %v8567 = vmul.f32 %v8491, %v8549
            %v8568 = vmul.f32 %v8492, %v8549
            %v8569 = vmul.f32 %v8493, %v8549
            %v8570 = vmul.f32 %v8494, %v8549
            %v8571 = vmul.f32 %v8495, %v8549
            %v8572 = vmul.f32 %v8496, %v8549
            %v8573 = vmul.f32 %v8497, %v8549
            %v8574 = vmul.f32 %v8498, %v8549
            %v8575 = vmul.f32 %v8499, %v8549
            %v8576 = vmul.f32 %v8500, %v8549
            %v8577 = vmul.f32 %v8501, %v8549
            %v8578 = vmul.f32 %v8502, %v8549
            %v8579 = vmul.f32 %v8503, %v8549
            %v8580 = vmul.f32 %v8504, %v8549
            %v8581 = vmul.f32 %v8505, %v8549
            %v8582 = vmul.f32 %v8506, %v8549
            %v8583 = vmul.f32 %v8507, %v8549
            %v8584 = vmul.f32 %v8508, %v8549
            %v8585 = vmul.f32 %v8509, %v8549
            %v8586 = vmul.f32 %v8510, %v8549
            %v8587 = vmul.f32 %v8511, %v8549
            %v8588 = vmul.f32 %v8512, %v8549
            %v8589 = vmul.f32 %v8513, %v8549
            %v8590 = vmul.f32 %v8514, %v8549
            %v8591 = vmul.f32 %v8515, %v8549
            %v8592 = vmul.f32 %v8516, %v8549
            %v8593 = vmul.f32 %v8517, %v8549
            %v8594 = vmul.f32 %v8518, %v8549
            %v8595 = vmul.f32 %v8519, %v8549
            %v8596 = vmul.f32 %v8520, %v8549
            %v8597 = vmul.f32 %v8521, %v8549
            %v8598 = vmul.f32 %v8522, %v8549
            %v8599 = vmul.f32 %v8523, %v8549
            %v8600 = vmul.f32 %v8524, %v8549
            %v8601 = vmul.f32 %v8525, %v8549
            %v8602 = vmul.f32 %v8526, %v8549
            %v8603 = vmul.f32 %v8527, %v8549
            %v8604 = vmul.f32 %v8528, %v8549
            %v8605 = vmul.f32 %v8529, %v8549
            %v8606 = vmul.f32 %v8530, %v8549
            %v8607 = vmul.f32 %v8531, %v8549
            %v8608 = vmul.f32 %v8532, %v8549
            %v8609 = vmul.f32 %v8533, %v8549
            %v8610 = vmul.f32 %v8534, %v8549
            %v8611 = vmul.f32 %v8535, %v8549
            %v8612 = vmul.f32 %v8536, %v8549
            %v8613 = vmul.f32 %v8537, %v8549
            %v8614 = vmul.f32 %v8538, %v8549
            %v8615 = vmul.f32 %v8539, %v8549
            %v8616 = vmul.f32 %v8540, %v8549
            %v8617 = vmul.f32 %v8541, %v8549
            %v8618 = vmul.f32 %v8542, %v8549
            %v8619 = vmul.f32 %v8543, %v8549
            %v8620 = vmul.f32 %v8544, %v8549
            %v8621 = vmul.f32 %v8545, %v8549
            %v8622 = vld [vmem:[%s375] sm:$0x1]
            %v8624 = vlaneseq
            %v8625 = vshrl.u32 %v8624, 7
            %v8626 = vsub.s32 0, %v8625
            %v8627 = vrot.slane %v8622, %v8626
            %v8629 = vmul.f32 %v8550, %v8627
            %v8630 = vmul.f32 %v8551, %v8627
            %v8631 = vmul.f32 %v8552, %v8627
            %v8632 = vmul.f32 %v8553, %v8627
            %v8633 = vmul.f32 %v8554, %v8627
            %v8634 = vmul.f32 %v8555, %v8627
            %v8635 = vmul.f32 %v8556, %v8627
            %v8636 = vmul.f32 %v8557, %v8627
            %v8637 = vmul.f32 %v8558, %v8627
            %v8638 = vmul.f32 %v8559, %v8627
            %v8639 = vmul.f32 %v8560, %v8627
            %v8640 = vmul.f32 %v8561, %v8627
            %v8641 = vmul.f32 %v8562, %v8627
            %v8642 = vmul.f32 %v8563, %v8627
            %v8643 = vmul.f32 %v8564, %v8627
            %v8644 = vmul.f32 %v8565, %v8627
            %v8645 = vmul.f32 %v8566, %v8627
            %v8646 = vmul.f32 %v8567, %v8627
            %v8647 = vmul.f32 %v8568, %v8627
            %v8648 = vmul.f32 %v8569, %v8627
            %v8649 = vmul.f32 %v8570, %v8627
            %v8650 = vmul.f32 %v8571, %v8627
            %v8651 = vmul.f32 %v8572, %v8627
            %v8652 = vmul.f32 %v8573, %v8627
            %v8653 = vmul.f32 %v8574, %v8627
            %v8654 = vmul.f32 %v8575, %v8627
            %v8655 = vmul.f32 %v8576, %v8627
            %v8656 = vmul.f32 %v8577, %v8627
            %v8657 = vmul.f32 %v8578, %v8627
            %v8658 = vmul.f32 %v8579, %v8627
            %v8659 = vmul.f32 %v8580, %v8627
            %v8660 = vmul.f32 %v8581, %v8627
            %v8661 = vmul.f32 %v8582, %v8627
            %v8662 = vmul.f32 %v8583, %v8627
            %v8663 = vmul.f32 %v8584, %v8627
            %v8664 = vmul.f32 %v8585, %v8627
            %v8665 = vmul.f32 %v8586, %v8627
            %v8666 = vmul.f32 %v8587, %v8627
            %v8667 = vmul.f32 %v8588, %v8627
            %v8668 = vmul.f32 %v8589, %v8627
            %v8669 = vmul.f32 %v8590, %v8627
            %v8670 = vmul.f32 %v8591, %v8627
            %v8671 = vmul.f32 %v8592, %v8627
            %v8672 = vmul.f32 %v8593, %v8627
            %v8673 = vmul.f32 %v8594, %v8627
            %v8674 = vmul.f32 %v8595, %v8627
            %v8675 = vmul.f32 %v8596, %v8627
            %v8676 = vmul.f32 %v8597, %v8627
            %v8677 = vmul.f32 %v8598, %v8627
            %v8678 = vmul.f32 %v8599, %v8627
            %v8679 = vmul.f32 %v8600, %v8627
            %v8680 = vmul.f32 %v8601, %v8627
            %v8681 = vmul.f32 %v8602, %v8627
            %v8682 = vmul.f32 %v8603, %v8627
            %v8683 = vmul.f32 %v8604, %v8627
            %v8684 = vmul.f32 %v8605, %v8627
            %v8685 = vmul.f32 %v8606, %v8627
            %v8686 = vmul.f32 %v8607, %v8627
            %v8687 = vmul.f32 %v8608, %v8627
            %v8688 = vmul.f32 %v8609, %v8627
            %v8689 = vmul.f32 %v8610, %v8627
            %v8690 = vmul.f32 %v8611, %v8627
            %v8691 = vmul.f32 %v8612, %v8627
            %v8692 = vmul.f32 %v8613, %v8627
            %v8693 = vmul.f32 %v8614, %v8627
            %v8694 = vmul.f32 %v8615, %v8627
            %v8695 = vmul.f32 %v8616, %v8627
            %v8696 = vmul.f32 %v8617, %v8627
            %v8697 = vmul.f32 %v8618, %v8627
            %v8698 = vmul.f32 %v8619, %v8627
            %v8699 = vmul.f32 %v8620, %v8627
            %v8700 = vmul.f32 %v8621, %v8627
            %v8701 = vld [vmem:[%s378] sm:$0x1]
            %v8703 = vlaneseq
            %v8704 = vshrl.u32 %v8703, 7
            %v8705 = vsub.s32 0, %v8704
            %v8706 = vrot.slane %v8701, %v8705
            %v8708 = vadd.f32 %v8629, %v8706
            %v8709 = vadd.f32 %v8630, %v8706
            %v8710 = vadd.f32 %v8631, %v8706
            %v8711 = vadd.f32 %v8632, %v8706
            %v8712 = vadd.f32 %v8633, %v8706
            %v8713 = vadd.f32 %v8634, %v8706
            %v8714 = vadd.f32 %v8635, %v8706
            %v8715 = vadd.f32 %v8636, %v8706
            %v8716 = vadd.f32 %v8637, %v8706
            %v8717 = vadd.f32 %v8638, %v8706
            %v8718 = vadd.f32 %v8639, %v8706
            %v8719 = vadd.f32 %v8640, %v8706
            %v8720 = vadd.f32 %v8641, %v8706
            %v8721 = vadd.f32 %v8642, %v8706
            %v8722 = vadd.f32 %v8643, %v8706
            %v8723 = vadd.f32 %v8644, %v8706
            %v8724 = vadd.f32 %v8645, %v8706
            %v8725 = vadd.f32 %v8646, %v8706
            %v8726 = vadd.f32 %v8647, %v8706
            %v8727 = vadd.f32 %v8648, %v8706
            %v8728 = vadd.f32 %v8649, %v8706
            %v8729 = vadd.f32 %v8650, %v8706
            %v8730 = vadd.f32 %v8651, %v8706
            %v8731 = vadd.f32 %v8652, %v8706
            %v8732 = vadd.f32 %v8653, %v8706
            %v8733 = vadd.f32 %v8654, %v8706
            %v8734 = vadd.f32 %v8655, %v8706
            %v8735 = vadd.f32 %v8656, %v8706
            %v8736 = vadd.f32 %v8657, %v8706
            %v8737 = vadd.f32 %v8658, %v8706
            %v8738 = vadd.f32 %v8659, %v8706
            %v8739 = vadd.f32 %v8660, %v8706
            %v8740 = vadd.f32 %v8661, %v8706
            %v8741 = vadd.f32 %v8662, %v8706
            %v8742 = vadd.f32 %v8663, %v8706
            %v8743 = vadd.f32 %v8664, %v8706
            %v8744 = vadd.f32 %v8665, %v8706
            %v8745 = vadd.f32 %v8666, %v8706
            %v8746 = vadd.f32 %v8667, %v8706
            %v8747 = vadd.f32 %v8668, %v8706
            %v8748 = vadd.f32 %v8669, %v8706
            %v8749 = vadd.f32 %v8670, %v8706
            %v8750 = vadd.f32 %v8671, %v8706
            %v8751 = vadd.f32 %v8672, %v8706
            %v8752 = vadd.f32 %v8673, %v8706
            %v8753 = vadd.f32 %v8674, %v8706
            %v8754 = vadd.f32 %v8675, %v8706
            %v8755 = vadd.f32 %v8676, %v8706
            %v8756 = vadd.f32 %v8677, %v8706
            %v8757 = vadd.f32 %v8678, %v8706
            %v8758 = vadd.f32 %v8679, %v8706
            %v8759 = vadd.f32 %v8680, %v8706
            %v8760 = vadd.f32 %v8681, %v8706
            %v8761 = vadd.f32 %v8682, %v8706
            %v8762 = vadd.f32 %v8683, %v8706
            %v8763 = vadd.f32 %v8684, %v8706
            %v8764 = vadd.f32 %v8685, %v8706
            %v8765 = vadd.f32 %v8686, %v8706
            %v8766 = vadd.f32 %v8687, %v8706
            %v8767 = vadd.f32 %v8688, %v8706
            %v8768 = vadd.f32 %v8689, %v8706
            %v8769 = vadd.f32 %v8690, %v8706
            %v8770 = vadd.f32 %v8691, %v8706
            %v8771 = vadd.f32 %v8692, %v8706
            %v8772 = vadd.f32 %v8693, %v8706
            %v8773 = vadd.f32 %v8694, %v8706
            %v8774 = vadd.f32 %v8695, %v8706
            %v8775 = vadd.f32 %v8696, %v8706
            %v8776 = vadd.f32 %v8697, %v8706
            %v8777 = vadd.f32 %v8698, %v8706
            %v8778 = vadd.f32 %v8699, %v8706
            %v8779 = vadd.f32 %v8700, %v8706
            %v8780 = vmax.f32 %v8708, 0.0
            %v8781 = vmax.f32 %v8709, 0.0
            %v8782 = vmax.f32 %v8710, 0.0
            %v8783 = vmax.f32 %v8711, 0.0
            %v8784 = vmax.f32 %v8712, 0.0
            %v8785 = vmax.f32 %v8713, 0.0
            %v8786 = vmax.f32 %v8714, 0.0
            %v8787 = vmax.f32 %v8715, 0.0
            %v8788 = vmax.f32 %v8716, 0.0
            %v8789 = vmax.f32 %v8717, 0.0
            %v8790 = vmax.f32 %v8718, 0.0
            %v8791 = vmax.f32 %v8719, 0.0
            %v8792 = vmax.f32 %v8720, 0.0
            %v8793 = vmax.f32 %v8721, 0.0
            %v8794 = vmax.f32 %v8722, 0.0
            %v8795 = vmax.f32 %v8723, 0.0
            %v8796 = vmax.f32 %v8724, 0.0
            %v8797 = vmax.f32 %v8725, 0.0
            %v8798 = vmax.f32 %v8726, 0.0
            %v8799 = vmax.f32 %v8727, 0.0
            %v8800 = vmax.f32 %v8728, 0.0
            %v8801 = vmax.f32 %v8729, 0.0
            %v8802 = vmax.f32 %v8730, 0.0
            %v8803 = vmax.f32 %v8731, 0.0
            %v8804 = vmax.f32 %v8732, 0.0
            %v8805 = vmax.f32 %v8733, 0.0
            %v8806 = vmax.f32 %v8734, 0.0
            %v8807 = vmax.f32 %v8735, 0.0
            %v8808 = vmax.f32 %v8736, 0.0
            %v8809 = vmax.f32 %v8737, 0.0
            %v8810 = vmax.f32 %v8738, 0.0
            %v8811 = vmax.f32 %v8739, 0.0
            %v8812 = vmax.f32 %v8740, 0.0
            %v8813 = vmax.f32 %v8741, 0.0
            %v8814 = vmax.f32 %v8742, 0.0
            %v8815 = vmax.f32 %v8743, 0.0
            %v8816 = vmax.f32 %v8744, 0.0
            %v8817 = vmax.f32 %v8745, 0.0
            %v8818 = vmax.f32 %v8746, 0.0
            %v8819 = vmax.f32 %v8747, 0.0
            %v8820 = vmax.f32 %v8748, 0.0
            %v8821 = vmax.f32 %v8749, 0.0
            %v8822 = vmax.f32 %v8750, 0.0
            %v8823 = vmax.f32 %v8751, 0.0
            %v8824 = vmax.f32 %v8752, 0.0
            %v8825 = vmax.f32 %v8753, 0.0
            %v8826 = vmax.f32 %v8754, 0.0
            %v8827 = vmax.f32 %v8755, 0.0
            %v8828 = vmax.f32 %v8756, 0.0
            %v8829 = vmax.f32 %v8757, 0.0
            %v8830 = vmax.f32 %v8758, 0.0
            %v8831 = vmax.f32 %v8759, 0.0
            %v8832 = vmax.f32 %v8760, 0.0
            %v8833 = vmax.f32 %v8761, 0.0
            %v8834 = vmax.f32 %v8762, 0.0
            %v8835 = vmax.f32 %v8763, 0.0
            %v8836 = vmax.f32 %v8764, 0.0
            %v8837 = vmax.f32 %v8765, 0.0
            %v8838 = vmax.f32 %v8766, 0.0
            %v8839 = vmax.f32 %v8767, 0.0
            %v8840 = vmax.f32 %v8768, 0.0
            %v8841 = vmax.f32 %v8769, 0.0
            %v8842 = vmax.f32 %v8770, 0.0
            %v8843 = vmax.f32 %v8771, 0.0
            %v8844 = vmax.f32 %v8772, 0.0
            %v8845 = vmax.f32 %v8773, 0.0
            %v8846 = vmax.f32 %v8774, 0.0
            %v8847 = vmax.f32 %v8775, 0.0
            %v8848 = vmax.f32 %v8776, 0.0
            %v8849 = vmax.f32 %v8777, 0.0
            %v8850 = vmax.f32 %v8778, 0.0
            %v8851 = vmax.f32 %v8779, 0.0
            %v8852 = vmin.f32 %v8780, 6.0
            %v8853 = vmin.f32 %v8781, 6.0
            %v8854 = vmin.f32 %v8782, 6.0
            %v8855 = vmin.f32 %v8783, 6.0
            %v8856 = vmin.f32 %v8784, 6.0
            %v8857 = vmin.f32 %v8785, 6.0
            %v8858 = vmin.f32 %v8786, 6.0
            %v8859 = vmin.f32 %v8787, 6.0
            %v8860 = vmin.f32 %v8788, 6.0
            %v8861 = vmin.f32 %v8789, 6.0
            %v8862 = vmin.f32 %v8790, 6.0
            %v8863 = vmin.f32 %v8791, 6.0
            %v8864 = vmin.f32 %v8792, 6.0
            %v8865 = vmin.f32 %v8793, 6.0
            %v8866 = vmin.f32 %v8794, 6.0
            %v8867 = vmin.f32 %v8795, 6.0
            %v8868 = vmin.f32 %v8796, 6.0
            %v8869 = vmin.f32 %v8797, 6.0
            %v8870 = vmin.f32 %v8798, 6.0
            %v8871 = vmin.f32 %v8799, 6.0
            %v8872 = vmin.f32 %v8800, 6.0
            %v8873 = vmin.f32 %v8801, 6.0
            %v8874 = vmin.f32 %v8802, 6.0
            %v8875 = vmin.f32 %v8803, 6.0
            %v8876 = vmin.f32 %v8804, 6.0
            %v8877 = vmin.f32 %v8805, 6.0
            %v8878 = vmin.f32 %v8806, 6.0
            %v8879 = vmin.f32 %v8807, 6.0
            %v8880 = vmin.f32 %v8808, 6.0
            %v8881 = vmin.f32 %v8809, 6.0
            %v8882 = vmin.f32 %v8810, 6.0
            %v8883 = vmin.f32 %v8811, 6.0
            %v8884 = vmin.f32 %v8812, 6.0
            %v8885 = vmin.f32 %v8813, 6.0
            %v8886 = vmin.f32 %v8814, 6.0
            %v8887 = vmin.f32 %v8815, 6.0
            %v8888 = vmin.f32 %v8816, 6.0
            %v8889 = vmin.f32 %v8817, 6.0
            %v8890 = vmin.f32 %v8818, 6.0
            %v8891 = vmin.f32 %v8819, 6.0
            %v8892 = vmin.f32 %v8820, 6.0
            %v8893 = vmin.f32 %v8821, 6.0
            %v8894 = vmin.f32 %v8822, 6.0
            %v8895 = vmin.f32 %v8823, 6.0
            %v8896 = vmin.f32 %v8824, 6.0
            %v8897 = vmin.f32 %v8825, 6.0
            %v8898 = vmin.f32 %v8826, 6.0
            %v8899 = vmin.f32 %v8827, 6.0
            %v8900 = vmin.f32 %v8828, 6.0
            %v8901 = vmin.f32 %v8829, 6.0
            %v8902 = vmin.f32 %v8830, 6.0
            %v8903 = vmin.f32 %v8831, 6.0
            %v8904 = vmin.f32 %v8832, 6.0
            %v8905 = vmin.f32 %v8833, 6.0
            %v8906 = vmin.f32 %v8834, 6.0
            %v8907 = vmin.f32 %v8835, 6.0
            %v8908 = vmin.f32 %v8836, 6.0
            %v8909 = vmin.f32 %v8837, 6.0
            %v8910 = vmin.f32 %v8838, 6.0
            %v8911 = vmin.f32 %v8839, 6.0
            %v8912 = vmin.f32 %v8840, 6.0
            %v8913 = vmin.f32 %v8841, 6.0
            %v8914 = vmin.f32 %v8842, 6.0
            %v8915 = vmin.f32 %v8843, 6.0
            %v8916 = vmin.f32 %v8844, 6.0
            %v8917 = vmin.f32 %v8845, 6.0
            %v8918 = vmin.f32 %v8846, 6.0
            %v8919 = vmin.f32 %v8847, 6.0
            %v8920 = vmin.f32 %v8848, 6.0
            %v8921 = vmin.f32 %v8849, 6.0
            %v8922 = vmin.f32 %v8850, 6.0
            %v8923 = vmin.f32 %v8851, 6.0
            %s8924 = scalar_lea.vmem [#allocation2], %s8396
            %8925 = vst [vmem:[%s8924] sm:$0xff] %v8852
            %8926 = vst [vmem:[%s8924 + $0x8] sm:$0xff] %v8853
            %8927 = vst [vmem:[%s8924 + $0x10] sm:$0xff] %v8854
            %8928 = vst [vmem:[%s8924 + $0x18] sm:$0xff] %v8855
            %8929 = vst [vmem:[%s8924 + $0x20] sm:$0xff] %v8856
            %8930 = vst [vmem:[%s8924 + $0x28] sm:$0xff] %v8857
            %8931 = vst [vmem:[%s8924 + $0x30] sm:$0xff] %v8858
            %8932 = vst [vmem:[%s8924 + $0x38] sm:$0xff] %v8859
            %8933 = vst [vmem:[%s8924 + $0x40] sm:$0xff] %v8860
            %8934 = vst [vmem:[%s8924 + $0x48] sm:$0xff] %v8861
            %8935 = vst [vmem:[%s8924 + $0x50] sm:$0xff] %v8862
            %8936 = vst [vmem:[%s8924 + $0x58] sm:$0xff] %v8863
            %8937 = vst [vmem:[%s8924 + $0x60] sm:$0xff] %v8864
            %8938 = vst [vmem:[%s8924 + $0x68] sm:$0xff] %v8865
            %8939 = vst [vmem:[%s8924 + $0x70] sm:$0xff] %v8866
            %8940 = vst [vmem:[%s8924 + $0x78] sm:$0xff] %v8867
            %8941 = vst [vmem:[%s8924 + $0x80] sm:$0xff] %v8868
            %8942 = vst [vmem:[%s8924 + $0x88] sm:$0xff] %v8869
            %8943 = vst [vmem:[%s8924 + $0x90] sm:$0xff] %v8870
            %8944 = vst [vmem:[%s8924 + $0x98] sm:$0xff] %v8871
            %8945 = vst [vmem:[%s8924 + $0xa0] sm:$0xff] %v8872
            %8946 = vst [vmem:[%s8924 + $0xa8] sm:$0xff] %v8873
            %8947 = vst [vmem:[%s8924 + $0xb0] sm:$0xff] %v8874
            %8948 = vst [vmem:[%s8924 + $0xb8] sm:$0xff] %v8875
            %8949 = vst [vmem:[%s8924 + $0xc0] sm:$0xff] %v8876
            %8950 = vst [vmem:[%s8924 + $0xc8] sm:$0xff] %v8877
            %8951 = vst [vmem:[%s8924 + $0xd0] sm:$0xff] %v8878
            %8952 = vst [vmem:[%s8924 + $0xd8] sm:$0xff] %v8879
            %8953 = vst [vmem:[%s8924 + $0xe0] sm:$0xff] %v8880
            %8954 = vst [vmem:[%s8924 + $0xe8] sm:$0xff] %v8881
            %8955 = vst [vmem:[%s8924 + $0xf0] sm:$0xff] %v8882
            %8956 = vst [vmem:[%s8924 + $0xf8] sm:$0xff] %v8883
            %8957 = vst [vmem:[%s8924 + $0x100] sm:$0xff] %v8884
            %8958 = vst [vmem:[%s8924 + $0x108] sm:$0xff] %v8885
            %8959 = vst [vmem:[%s8924 + $0x110] sm:$0xff] %v8886
            %8960 = vst [vmem:[%s8924 + $0x118] sm:$0xff] %v8887
            %8961 = vst [vmem:[%s8924 + $0x120] sm:$0xff] %v8888
            %8962 = vst [vmem:[%s8924 + $0x128] sm:$0xff] %v8889
            %8963 = vst [vmem:[%s8924 + $0x130] sm:$0xff] %v8890
            %8964 = vst [vmem:[%s8924 + $0x138] sm:$0xff] %v8891
            %8965 = vst [vmem:[%s8924 + $0x140] sm:$0xff] %v8892
            %8966 = vst [vmem:[%s8924 + $0x148] sm:$0xff] %v8893
            %8967 = vst [vmem:[%s8924 + $0x150] sm:$0xff] %v8894
            %8968 = vst [vmem:[%s8924 + $0x158] sm:$0xff] %v8895
            %8969 = vst [vmem:[%s8924 + $0x160] sm:$0xff] %v8896
            %8970 = vst [vmem:[%s8924 + $0x168] sm:$0xff] %v8897
            %8971 = vst [vmem:[%s8924 + $0x170] sm:$0xff] %v8898
            %8972 = vst [vmem:[%s8924 + $0x178] sm:$0xff] %v8899
            %8973 = vst [vmem:[%s8924 + $0x180] sm:$0xff] %v8900
            %8974 = vst [vmem:[%s8924 + $0x188] sm:$0xff] %v8901
            %8975 = vst [vmem:[%s8924 + $0x190] sm:$0xff] %v8902
            %8976 = vst [vmem:[%s8924 + $0x198] sm:$0xff] %v8903
            %8977 = vst [vmem:[%s8924 + $0x1a0] sm:$0xff] %v8904
            %8978 = vst [vmem:[%s8924 + $0x1a8] sm:$0xff] %v8905
            %8979 = vst [vmem:[%s8924 + $0x1b0] sm:$0xff] %v8906
            %8980 = vst [vmem:[%s8924 + $0x1b8] sm:$0xff] %v8907
            %8981 = vst [vmem:[%s8924 + $0x1c0] sm:$0xff] %v8908
            %8982 = vst [vmem:[%s8924 + $0x1c8] sm:$0xff] %v8909
            %8983 = vst [vmem:[%s8924 + $0x1d0] sm:$0xff] %v8910
            %8984 = vst [vmem:[%s8924 + $0x1d8] sm:$0xff] %v8911
            %8985 = vst [vmem:[%s8924 + $0x1e0] sm:$0xff] %v8912
            %8986 = vst [vmem:[%s8924 + $0x1e8] sm:$0xff] %v8913
            %8987 = vst [vmem:[%s8924 + $0x1f0] sm:$0xff] %v8914
            %8988 = vst [vmem:[%s8924 + $0x1f8] sm:$0xff] %v8915
            %8989 = vst [vmem:[%s8924 + $0x200] sm:$0xff] %v8916
            %8990 = vst [vmem:[%s8924 + $0x208] sm:$0xff] %v8917
            %8991 = vst [vmem:[%s8924 + $0x210] sm:$0xff] %v8918
            %8992 = vst [vmem:[%s8924 + $0x218] sm:$0xff] %v8919
            %8993 = vst [vmem:[%s8924 + $0x220] sm:$0xff] %v8920
            %8994 = vst [vmem:[%s8924 + $0x228] sm:$0xff] %v8921
            %8995 = vst [vmem:[%s8924 + $0x230] sm:$0xff] %v8922
            %8996 = vst [vmem:[%s8924 + $0x238] sm:$0xff] %v8923
          $region83: #{tpu_custom_call.1} parent=77 // loop_footer
            %s8393 = sadd.s32 %s8391, 1
          $region84: #{tpu_custom_call.1} parent=77 // loop_footer_branch
            %8390 = sbr.rel target = $region80
          $region85: #{tpu_custom_call.1} parent=77 // loop_exit
            _
        $region78: #{tpu_custom_call.1} parent=47 // pred_fallthru
          _
        %p8997 = scmp.eq.s32.totalorder %s39, 19
        // Predicated region
        $region86: #{tpu_custom_call.1} parent=47 // pred_check
          %p8998 = pneg %p8997
        $region87: #{tpu_custom_call.1} parent=47 // pred_check_branch
          %9000 = sbr.rel (%p8998) target = $region89
        $region88: #{tpu_custom_call.1} parent=47 // pred_region
          %v9001 = vld [vmem:[#allocation3] sm:$0xff]
          %v9002 = vld [vmem:[#allocation3 + $0x8] sm:$0xff]
          %v9003 = vld [vmem:[#allocation3 + $0x10] sm:$0xff]
          %v9004 = vld [vmem:[#allocation3 + $0x18] sm:$0xff]
          %v9005 = vld [vmem:[#allocation3 + $0x20] sm:$0xff]
          %v9006 = vld [vmem:[#allocation3 + $0x28] sm:$0xff]
          %v9007 = vld [vmem:[#allocation3 + $0x30] sm:$0xff]
          %v9008 = vld [vmem:[#allocation3 + $0x38] sm:$0xff]
          %v9009 = vld [vmem:[#allocation3 + $0x40] sm:$0xff]
          %v9010 = vld [vmem:[#allocation3 + $0x48] sm:$0xff]
          %v9011 = vld [vmem:[#allocation3 + $0x50] sm:$0xff]
          %v9012 = vld [vmem:[#allocation3 + $0x58] sm:$0xff]
          %v9013 = vld [vmem:[#allocation3 + $0x60] sm:$0xff]
          %v9014 = vld [vmem:[#allocation3 + $0x68] sm:$0xff]
          %v9015 = vld [vmem:[#allocation3 + $0x70] sm:$0xff]
          %v9016 = vld [vmem:[#allocation3 + $0x78] sm:$0xff]
          %v9017 = vld [vmem:[#allocation3 + $0x80] sm:$0xff]
          %v9018 = vld [vmem:[#allocation3 + $0x88] sm:$0xff]
          %v9019 = vld [vmem:[#allocation3 + $0x90] sm:$0xff]
          %v9020 = vld [vmem:[#allocation3 + $0x98] sm:$0xff]
          %v9021 = vld [vmem:[#allocation3 + $0xa0] sm:$0xff]
          %v9022 = vld [vmem:[#allocation3 + $0xa8] sm:$0xff]
          %v9023 = vld [vmem:[#allocation3 + $0xb0] sm:$0xff]
          %v9024 = vld [vmem:[#allocation3 + $0xb8] sm:$0xff]
          %v9025 = vld [vmem:[#allocation3 + $0xc0] sm:$0xff]
          %v9026 = vld [vmem:[#allocation3 + $0xc8] sm:$0xff]
          %v9027 = vld [vmem:[#allocation3 + $0xd0] sm:$0xff]
          %v9028 = vld [vmem:[#allocation3 + $0xd8] sm:$0xff]
          %v9029 = vld [vmem:[#allocation3 + $0xe0] sm:$0xff]
          %v9030 = vld [vmem:[#allocation3 + $0xe8] sm:$0xff]
          %v9031 = vld [vmem:[#allocation3 + $0xf0] sm:$0xff]
          %v9032 = vld [vmem:[#allocation3 + $0xf8] sm:$0xff]
          %v9033 = vld [vmem:[#allocation3 + $0x100] sm:$0xff]
          %v9034 = vld [vmem:[#allocation3 + $0x108] sm:$0xff]
          %v9035 = vld [vmem:[#allocation3 + $0x110] sm:$0xff]
          %v9036 = vld [vmem:[#allocation3 + $0x118] sm:$0xff]
          %v9037 = vld [vmem:[#allocation3 + $0x120] sm:$0xff]
          %v9038 = vld [vmem:[#allocation3 + $0x128] sm:$0xff]
          %v9039 = vld [vmem:[#allocation3 + $0x130] sm:$0xff]
          %v9040 = vld [vmem:[#allocation3 + $0x138] sm:$0xff]
          %v9041 = vld [vmem:[#allocation3 + $0x140] sm:$0xff]
          %v9042 = vld [vmem:[#allocation3 + $0x148] sm:$0xff]
          %v9043 = vld [vmem:[#allocation3 + $0x150] sm:$0xff]
          %v9044 = vld [vmem:[#allocation3 + $0x158] sm:$0xff]
          %v9045 = vld [vmem:[#allocation3 + $0x160] sm:$0xff]
          %v9046 = vld [vmem:[#allocation3 + $0x168] sm:$0xff]
          %v9047 = vld [vmem:[#allocation3 + $0x170] sm:$0xff]
          %v9048 = vld [vmem:[#allocation3 + $0x178] sm:$0xff]
          %9049 = vst [vmem:[#allocation11] sm:$0xff] %v9001
          %9050 = vst [vmem:[#allocation11 + $0x8] sm:$0xff] %v9002
          %9051 = vst [vmem:[#allocation11 + $0x10] sm:$0xff] %v9003
          %9052 = vst [vmem:[#allocation11 + $0x18] sm:$0xff] %v9004
          %9053 = vst [vmem:[#allocation11 + $0x20] sm:$0xff] %v9005
          %9054 = vst [vmem:[#allocation11 + $0x28] sm:$0xff] %v9006
          %9055 = vst [vmem:[#allocation11 + $0x30] sm:$0xff] %v9007
          %9056 = vst [vmem:[#allocation11 + $0x38] sm:$0xff] %v9008
          %9057 = vst [vmem:[#allocation11 + $0x40] sm:$0xff] %v9009
          %9058 = vst [vmem:[#allocation11 + $0x48] sm:$0xff] %v9010
          %9059 = vst [vmem:[#allocation11 + $0x50] sm:$0xff] %v9011
          %9060 = vst [vmem:[#allocation11 + $0x58] sm:$0xff] %v9012
          %9061 = vst [vmem:[#allocation11 + $0x60] sm:$0xff] %v9013
          %9062 = vst [vmem:[#allocation11 + $0x68] sm:$0xff] %v9014
          %9063 = vst [vmem:[#allocation11 + $0x70] sm:$0xff] %v9015
          %9064 = vst [vmem:[#allocation11 + $0x78] sm:$0xff] %v9016
          %9065 = vst [vmem:[#allocation11 + $0x80] sm:$0xff] %v9017
          %9066 = vst [vmem:[#allocation11 + $0x88] sm:$0xff] %v9018
          %9067 = vst [vmem:[#allocation11 + $0x90] sm:$0xff] %v9019
          %9068 = vst [vmem:[#allocation11 + $0x98] sm:$0xff] %v9020
          %9069 = vst [vmem:[#allocation11 + $0xa0] sm:$0xff] %v9021
          %9070 = vst [vmem:[#allocation11 + $0xa8] sm:$0xff] %v9022
          %9071 = vst [vmem:[#allocation11 + $0xb0] sm:$0xff] %v9023
          %9072 = vst [vmem:[#allocation11 + $0xb8] sm:$0xff] %v9024
          %9073 = vst [vmem:[#allocation11 + $0xc0] sm:$0xff] %v9025
          %9074 = vst [vmem:[#allocation11 + $0xc8] sm:$0xff] %v9026
          %9075 = vst [vmem:[#allocation11 + $0xd0] sm:$0xff] %v9027
          %9076 = vst [vmem:[#allocation11 + $0xd8] sm:$0xff] %v9028
          %9077 = vst [vmem:[#allocation11 + $0xe0] sm:$0xff] %v9029
          %9078 = vst [vmem:[#allocation11 + $0xe8] sm:$0xff] %v9030
          %9079 = vst [vmem:[#allocation11 + $0xf0] sm:$0xff] %v9031
          %9080 = vst [vmem:[#allocation11 + $0xf8] sm:$0xff] %v9032
          %9081 = vst [vmem:[#allocation11 + $0x100] sm:$0xff] %v9033
          %9082 = vst [vmem:[#allocation11 + $0x108] sm:$0xff] %v9034
          %9083 = vst [vmem:[#allocation11 + $0x110] sm:$0xff] %v9035
          %9084 = vst [vmem:[#allocation11 + $0x118] sm:$0xff] %v9036
          %9085 = vst [vmem:[#allocation11 + $0x120] sm:$0xff] %v9037
          %9086 = vst [vmem:[#allocation11 + $0x128] sm:$0xff] %v9038
          %9087 = vst [vmem:[#allocation11 + $0x130] sm:$0xff] %v9039
          %9088 = vst [vmem:[#allocation11 + $0x138] sm:$0xff] %v9040
          %9089 = vst [vmem:[#allocation11 + $0x140] sm:$0xff] %v9041
          %9090 = vst [vmem:[#allocation11 + $0x148] sm:$0xff] %v9042
          %9091 = vst [vmem:[#allocation11 + $0x150] sm:$0xff] %v9043
          %9092 = vst [vmem:[#allocation11 + $0x158] sm:$0xff] %v9044
          %9093 = vst [vmem:[#allocation11 + $0x160] sm:$0xff] %v9045
          %9094 = vst [vmem:[#allocation11 + $0x168] sm:$0xff] %v9046
          %9095 = vst [vmem:[#allocation11 + $0x170] sm:$0xff] %v9047
          %9096 = vst [vmem:[#allocation11 + $0x178] sm:$0xff] %v9048
        $region89: #{tpu_custom_call.1} parent=47 // pred_fallthru
          _
        // Predicated region
        $region90: #{tpu_custom_call.1} parent=47 // pred_check
          %p9097 = pneg %p229
        $region91: #{tpu_custom_call.1} parent=47 // pred_check_branch
          %9099 = sbr.rel (%p9097) target = $region93
        $region92: #{tpu_custom_call.1} parent=47 // pred_region
          %s9101 = ssub.s32 6144, 6144
          %9102 = vsyncadd [#allocation10], %s9101
          %s9103 = sshll.u32 [#allocation11], 4
          %s9104 = int_to_ptr.vmem [resolvable:$true] %s9103
          %9109 = dma.vmem_to_hbm [thread:$0]  %s9104, 6144, %s10, [#allocation10], 128, 128, 8
        $region93: #{tpu_custom_call.1} parent=47 // pred_fallthru
          _
        // Predicated region
        $region94: #{tpu_custom_call.1} parent=47 // pred_check
          %p9110 = pneg %p229
        $region95: #{tpu_custom_call.1} parent=47 // pred_check_branch
          %9112 = sbr.rel (%p9110) target = $region97
        $region96: #{tpu_custom_call.1} parent=47 // pred_region
          %9113 = dma.done [#allocation10], 6144
        $region97: #{tpu_custom_call.1} parent=47 // pred_fallthru
          _
      $region48: #{tpu_custom_call.1} parent=5 // pred_fallthru
        _
      %p9114 = scmp.le.s32.totalorder 2, %s34
      // Predicated region
      $region98: #{tpu_custom_call.1} parent=5 // pred_check
        %p9115 = pneg %p9114
      $region99: #{tpu_custom_call.1} parent=5 // pred_check_branch
        %9117 = sbr.rel (%p9115) target = $region101
      $region100: #{tpu_custom_call.1} parent=5 // pred_region
        %s9118 = ssub.s32 %s34, 2
      $region101: #{tpu_custom_call.1} parent=5 // pred_fallthru
        _
    $region6: #{tpu_custom_call.1} parent=1 // loop_footer
      %s38 = sadd.s32 1, %s34
    $region7: #{tpu_custom_call.1} parent=1 // loop_footer_branch
      %33 = sbr.rel target = $region3
    $region8: #{tpu_custom_call.1} parent=1 // loop_exit
      _
    %9119 = vsyncpa [#allocation9], 1
    %s9120 = scalar_lea.sflag [#allocation9], 1
    %9121 = vsyncpa %s9120, 1
    %9122 = vsyncpa [#allocation10], 1
    %s9123 = scalar_lea.sflag [#allocation10], 1
    %9124 = vsyncpa %s9123, 1

</llo_original>
